<compile_context>
chip_gen: v5e
topology: v5e:2x2
jax: 0.10.0
libtpu: 0.0.40
codegen_flags: <defaults>
</compile_context>

<pallas_src>
import functools

import numpy as np
import jax
import jax.numpy as jnp
from jax.experimental import pallas as pl
from jax.experimental.pallas import tpu as pltpu


KH = KW = 4
STRIDE = 2
PAD = 1
H_IN = W_IN = 28          # required by fc in_features == 2c*7*7
H1 = W1 = 14              # conv1 output spatial
H2 = W2 = 7               # conv2 output spatial
N_TAPS = KH * KW          # 16
NW = 128                  # conv2 spatial (49) lane-padded to 128
NH = 128                  # fused fc_mu|fc_logvar output lane-padded to 128


# ----------------------------------------------------------------------------
# Fused encoder kernel (B_TILE images per grid step).
# ----------------------------------------------------------------------------
def _encoder_kernel(p_ref, w1bd_ref, b1s_ref, g_ref, w2bd_ref, b2s_ref,
                    whf_ref, bh_ref, out_ref, win_ref, fcin_ref,
                    *, num_taps, nw, b_tile, c):
    f32 = jnp.float32
    bf16 = jnp.bfloat16
    btc = b_tile * c
    c2 = 2 * c

    # conv1: one block-diag matmul over the whole tile.
    # (B_TILE*c, B_TILE*16) @ (B_TILE*16, 196) -> (B_TILE*c, 196); rows = (b, ci).
    h1 = jnp.dot(w1bd_ref[...], p_ref[...], preferred_element_type=f32)
    h1 = jnp.maximum(h1 + b1s_ref[...], 0.0).astype(bf16)

    # conv2 im2col: 16 independent tap-gather matmuls into a (16*B_TILE*c, 128)
    # scratch (rows = (tap, b, ci), lanes = conv2 spatial, padded 49 -> 128).
    for t in range(num_taps):
        win_ref[t * btc:(t + 1) * btc, :] = jnp.dot(
            h1, g_ref[t], preferred_element_type=f32).astype(bf16)

    # conv2: ONE block-diag matmul, K = 16*B_TILE*c (taps x batch x cin).
    # (B_TILE*2c, 16*B_TILE*c) @ (16*B_TILE*c, 128) -> rows = (co, b).
    h2 = jnp.dot(w2bd_ref[...], win_ref[...], preferred_element_type=f32)
    h2 = jnp.maximum(h2 + b2s_ref[...], 0.0).astype(bf16)

    # Relayout (co, b)-rows -> (b)-rows with lanes (co*128 + s) via 2c aligned
    # one-vreg copies (each (B_TILE, 128) bf16 tile, lane offset multiple of 128).
    for co in range(c2):
        fcin_ref[:, co * nw:(co + 1) * nw] = h2[co * b_tile:(co + 1) * b_tile, :]

    # Fused fc_mu | fc_logvar: ONE matmul (B_TILE, 2c*128) @ (2c*128, 128).
    # Padded lanes (s >= 49) and padded outputs (o >= 2L) hit zero weight rows/cols.
    head = jnp.dot(fcin_ref[...], whf_ref[...], preferred_element_type=f32)
    out_ref[...] = (head + bh_ref[...]).astype(out_ref.dtype)


# ----------------------------------------------------------------------------
# Host-side layout glue (pure data movement; all FLOPs run inside the kernel).
# ----------------------------------------------------------------------------
def _conv1_patches_t(x):
    """x: (B,1,28,28) -> (B, 16, 196) bf16.  Rows = tap (ki*4+kj); lanes = 14x14 pixels."""
    B, C, H, W = x.shape
    ho = (H + 2 * PAD - KH) // STRIDE + 1
    wo = (W + 2 * PAD - KW) // STRIDE + 1
    xp = jnp.pad(x, ((0, 0), (0, 0), (PAD, PAD), (PAD, PAD)))
    taps = []
    for ki in range(KH):
        for kj in range(KW):
            taps.append(xp[:, :, ki:ki + STRIDE * ho:STRIDE, kj:kj + STRIDE * wo:STRIDE])
    p = jnp.stack(taps, axis=2)                     # (B, 1, 16, ho, wo)
    p = p.reshape(B, C * KH * KW, ho * wo)
    return p.astype(jnp.bfloat16)


def _conv2_gather_taps():
    """(16, 196, 128) 0/1 matrix: G[t, p, s] selects conv2 tap t's source pixel."""
    g = np.zeros((N_TAPS, H1 * W1, NW), np.float32)
    for ki in range(KH):
        for kj in range(KW):
            t = ki * KW + kj
            for oh in range(H2):
                for ow in range(W2):
                    y = STRIDE * oh + ki - PAD
                    x = STRIDE * ow + kj - PAD
                    if 0 <= y < H1 and 0 <= x < W1:
                        g[t, y * W1 + x, oh * W2 + ow] = 1.0
    return g


def prepare_params(params, capacity, latent_dims, b_tile):
    """One-time repack of PyTorch-layout params into kernel-friendly operands."""
    c, L = capacity, latent_dims
    assert 2 * L <= NH, "fused mu|logvar head requires 2*latent_dims <= 128"
    assert b_tile % 8 == 0 and (b_tile * c) % 8 == 0, "tile must be sublane-aligned"
    btc = b_tile * c

    # conv1: block-diag weight (rows (b,ci), cols (b,k)) + stacked bias.
    w1 = np.asarray(params["conv1_w"], np.float32).reshape(c, N_TAPS)
    w1bd = np.kron(np.eye(b_tile, dtype=np.float32), w1)                 # (btc, b_tile*16)
    b1s = np.tile(np.asarray(params["conv1_b"], np.float32), b_tile).reshape(btc, 1)

    # conv2: block-diag weight, rows (co*b_tile + b), cols (t*btc + b*c + ci).
    w2tap = np.asarray(params["conv2_w"], np.float32).transpose(2, 3, 1, 0)
    w2tap = w2tap.reshape(N_TAPS, c, 2 * c)                              # [t, ci, co]
    w2bd = np.zeros((2 * c * b_tile, N_TAPS * btc), np.float32)
    for t in range(N_TAPS):
        for b in range(b_tile):
            w2bd[b::b_tile, t * btc + b * c: t * btc + (b + 1) * c] = w2tap[t].T
    b2s = np.repeat(np.asarray(params["conv2_b"], np.float32), b_tile).reshape(-1, 1)

    g = _conv2_gather_taps()                                             # (16, 196, 128)

    # Fused fc heads, PyTorch (C,H,W) flatten order baked in:
    # whf[co*128 + s, o] = Wcat[o, co*49 + s]; padded rows/cols stay zero.
    w = np.concatenate([np.asarray(params["fc_mu_w"], np.float32),
                        np.asarray(params["fc_logvar_w"], np.float32)], axis=0)
    w3 = w.reshape(2 * L, 2 * c, H2 * W2).transpose(1, 2, 0)             # (2c, 49, 2L)
    whf = np.zeros((2 * c, NW, NH), np.float32)
    whf[:, :H2 * W2, :2 * L] = w3
    assert np.all(whf[:, H2 * W2:, :] == 0.0)   # nulls the ReLU(bias) padded lanes of h2
    whf = whf.reshape(2 * c * NW, NH)
    bh = np.zeros((1, NH), np.float32)
    bh[0, :2 * L] = np.concatenate([np.asarray(params["fc_mu_b"], np.float32),
                                    np.asarray(params["fc_logvar_b"], np.float32)])

    tobf = lambda a: jnp.asarray(a, dtype=jnp.bfloat16)
    return {"w1bd": tobf(w1bd), "b1s": jnp.asarray(b1s), "g": tobf(g),
            "w2bd": tobf(w2bd), "b2s": jnp.asarray(b2s),
            "whf": tobf(whf), "bh": jnp.asarray(bh)}


def encoder_forward(prep, x, *, latent_dims, b_tile):
    # TODO(synk): the PyTorch forward's debug print() side effects are omitted.
    B = x.shape[0]
    assert x.shape[1] == 1 and x.shape[2] == H_IN and x.shape[3] == W_IN, \
        "Encoder hard-codes 1x28x28 inputs (fc in_features == 2c*7*7)"
    c = prep["w1bd"].shape[0] // b_tile
    btc = b_tile * c
    num_tiles = -(-B // b_tile)
    b_pad = num_tiles * b_tile
    if b_pad != B:
        x = jnp.pad(x, ((0, b_pad - B), (0, 0), (0, 0), (0, 0)))

    p1 = _conv1_patches_t(x).reshape(b_pad * N_TAPS, H1 * W1)            # (B_pad*16, 196)

    kernel = functools.partial(_encoder_kernel, num_taps=N_TAPS, nw=NW,
                               b_tile=b_tile, c=c)

    flops_per_tile = 2 * (btc * (b_tile * N_TAPS) * (H1 * W1)            # conv1 block-diag
                          + N_TAPS * btc * (H1 * W1) * NW                # tap gathers
                          + (2 * c * b_tile) * (N_TAPS * btc) * NW       # conv2 block-diag
                          + b_tile * (2 * c * NW) * NH)                  # fused fc head
    param_bytes = sum(int(np.prod(v.shape)) * v.dtype.itemsize for v in prep.values())
    cost = pl.CostEstimate(flops=int(flops_per_tile) * num_tiles,
                           transcendentals=0,
                           bytes_accessed=int(p1.size * 2 + param_bytes + b_pad * NH * 4))

    out = pl.pallas_call(
        kernel,
        out_shape=jax.ShapeDtypeStruct((b_pad, NH), jnp.float32),
        grid=(num_tiles,),
        in_specs=[
            pl.BlockSpec((b_tile * N_TAPS, H1 * W1), lambda i: (i, 0)),     # conv1 patches
            pl.BlockSpec((btc, b_tile * N_TAPS), lambda i: (0, 0)),         # conv1 block-diag W
            pl.BlockSpec((btc, 1), lambda i: (0, 0)),                       # conv1 bias (stacked)
            pl.BlockSpec((N_TAPS, H1 * W1, NW), lambda i: (0, 0, 0)),       # per-tap gather mats
            pl.BlockSpec((2 * c * b_tile, N_TAPS * btc), lambda i: (0, 0)), # conv2 block-diag W
            pl.BlockSpec((2 * c * b_tile, 1), lambda i: (0, 0)),            # conv2 bias (stacked)
            pl.BlockSpec((2 * c * NW, NH), lambda i: (0, 0)),               # fused fc-head W
            pl.BlockSpec((1, NH), lambda i: (0, 0)),                        # fused fc-head bias
        ],
        out_specs=pl.BlockSpec((b_tile, NH), lambda i: (i, 0)),
        scratch_shapes=[
            pltpu.VMEM((N_TAPS * btc, NW), jnp.bfloat16),                   # im2col windows
            pltpu.VMEM((b_tile, 2 * c * NW), jnp.bfloat16),                 # fc-head input
        ],
        compiler_params=pltpu.CompilerParams(dimension_semantics=("parallel",)),
        cost_estimate=cost,
    )(p1, prep["w1bd"], prep["b1s"], prep["g"], prep["w2bd"], prep["b2s"],
      prep["whf"], prep["bh"])

    return out[:B, :latent_dims], out[:B, latent_dims:2 * latent_dims]


# ----------------------------------------------------------------------------
# Pure-JAX f32 reference (correctness sanity check) and param init.
# ----------------------------------------------------------------------------
def encoder_reference(params, x):
    dn = ("NCHW", "OIHW", "NCHW")
    h = jax.lax.conv_general_dilated(x, params["conv1_w"], (STRIDE, STRIDE),
                                     ((PAD, PAD), (PAD, PAD)), dimension_numbers=dn)
    h = jax.nn.relu(h + params["conv1_b"][None, :, None, None])
    h = jax.lax.conv_general_dilated(h, params["conv2_w"], (STRIDE, STRIDE),
                                     ((PAD, PAD), (PAD, PAD)), dimension_numbers=dn)
    h = jax.nn.relu(h + params["conv2_b"][None, :, None, None])
    hf = h.reshape(h.shape[0], -1)
    mu = hf @ params["fc_mu_w"].T + params["fc_mu_b"]
    logvar = hf @ params["fc_logvar_w"].T + params["fc_logvar_b"]
    return mu, logvar


def init_params(key, capacity, latent_dims):
    c = capacity
    ks = jax.random.split(key, 8)

    def unif(k, shape, fan_in):
        bound = 1.0 / jnp.sqrt(fan_in)
        return jax.random.uniform(k, shape, jnp.float32, -bound, bound)

    return {
        "conv1_w": unif(ks[0], (c, 1, 4, 4), 1 * 4 * 4),
        "conv1_b": unif(ks[1], (c,), 1 * 4 * 4),
        "conv2_w": unif(ks[2], (2 * c, c, 4, 4), c * 4 * 4),
        "conv2_b": unif(ks[3], (2 * c,), c * 4 * 4),
        "fc_mu_w": unif(ks[4], (latent_dims, 2 * c * 7 * 7), 2 * c * 7 * 7),
        "fc_mu_b": unif(ks[5], (latent_dims,), 2 * c * 7 * 7),
        "fc_logvar_w": unif(ks[6], (latent_dims, 2 * c * 7 * 7), 2 * c * 7 * 7),
        "fc_logvar_b": unif(ks[7], (latent_dims,), 2 * c * 7 * 7),
    }


if __name__ == "__main__":
    capacity = 8          # small capacity (module default is 64)
    latent_dims = 2
    batch = 32            # 2 grid steps of B_TILE -> keeps both v7x TensorCores busy
    B_TILE = 16           # B_TILE*capacity = 128 MXU rows (use 32 on v6e/v7x for 256)

    key = jax.random.PRNGKey(0)
    k_params, k_x = jax.random.split(key)
    params = init_params(k_params, capacity, latent_dims)
    x = jax.random.normal(k_x, (batch, 1, H_IN, W_IN), jnp.float32)   # NCHW, 28x28 required

    prep = prepare_params(params, capacity, latent_dims, B_TILE)
    fwd = jax.jit(functools.partial(encoder_forward, latent_dims=latent_dims, b_tile=B_TILE))
    mu, logvar = fwd(prep, x)
    jax.block_until_ready((mu, logvar))
    assert mu.shape == (batch, latent_dims) and logvar.shape == (batch, latent_dims)

    # sanity check vs pure-JAX f32 reference (bf16 MXU operands -> loose tolerance)
    mu_ref, logvar_ref = encoder_reference(params, x)
    np.testing.assert_allclose(np.asarray(mu), np.asarray(mu_ref), rtol=2e-2, atol=2e-2)
    np.testing.assert_allclose(np.asarray(logvar), np.asarray(logvar_ref), rtol=2e-2, atol=2e-2)

    print("KERNEL_OK")
</pallas_src>

<mosaic_0001>
module attributes {stable_mosaic.version = 11 : i64} {
  func.func @_encoder_kernel(%arg0: i32, %arg1: memref<256x196xbf16, #tpu.memory_space<vmem>>, %arg2: memref<128x256xbf16, #tpu.memory_space<vmem>>, %arg3: memref<128x1xf32, #tpu.memory_space<vmem>>, %arg4: memref<16x196x128xbf16, #tpu.memory_space<vmem>>, %arg5: memref<256x2048xbf16, #tpu.memory_space<vmem>>, %arg6: memref<256x1xf32, #tpu.memory_space<vmem>>, %arg7: memref<2048x128xbf16, #tpu.memory_space<vmem>>, %arg8: memref<1x128xf32, #tpu.memory_space<vmem>>, %arg9: memref<16x128xf32, #tpu.memory_space<vmem>>, %arg10: memref<2048x128xbf16, #tpu.memory_space<vmem>>, %arg11: memref<16x2048xbf16, #tpu.memory_space<vmem>>) attributes {dimension_semantics = [#tpu.dimension_semantics<parallel>], iteration_bounds = array<i64: 2>, scalar_prefetch = 0 : i64, scratch_operands = 2 : i64, tpu.core_type = #tpu.core_type<tc>, window_params = [{transform_indices = @transform_0, window_bounds = array<i64: 256, 196>}, {pipeline_mode = #tpu.pipeline_mode<synchronous>, transform_indices = @transform_1, window_bounds = array<i64: 128, 256>}, {pipeline_mode = #tpu.pipeline_mode<synchronous>, transform_indices = @transform_2, window_bounds = array<i64: 128, 1>}, {pipeline_mode = #tpu.pipeline_mode<synchronous>, transform_indices = @transform_3, window_bounds = array<i64: 16, 196, 128>}, {pipeline_mode = #tpu.pipeline_mode<synchronous>, transform_indices = @transform_4, window_bounds = array<i64: 256, 2048>}, {pipeline_mode = #tpu.pipeline_mode<synchronous>, transform_indices = @transform_5, window_bounds = array<i64: 256, 1>}, {pipeline_mode = #tpu.pipeline_mode<synchronous>, transform_indices = @transform_6, window_bounds = array<i64: 2048, 128>}, {pipeline_mode = #tpu.pipeline_mode<synchronous>, transform_indices = @transform_7, window_bounds = array<i64: 1, 128>}, {transform_indices = @transform_8, window_bounds = array<i64: 16, 128>}]} {
    %c0 = arith.constant 0 : index
    %c0_0 = arith.constant 0 : index
    %0 = vector.load %arg2[%c0, %c0_0] : memref<128x256xbf16, #tpu.memory_space<vmem>>, vector<128x256xbf16>
    %c0_1 = arith.constant 0 : index
    %c0_2 = arith.constant 0 : index
    %1 = vector.load %arg1[%c0_1, %c0_2] : memref<256x196xbf16, #tpu.memory_space<vmem>>, vector<256x196xbf16>
    %cst = arith.constant dense<0.000000e+00> : vector<128x196xf32>
    %2 = tpu.matmul %0, %1, %cst {dimension_numbers = #tpu.dot_dimension_numbers<[1], [0], [0], [1], [0, 0, 1, 1], [], []>} : vector<128x256xbf16>, vector<256x196xbf16>, vector<128x196xf32> -> vector<128x196xf32>
    %c0_3 = arith.constant 0 : index
    %c0_4 = arith.constant 0 : index
    %3 = vector.load %arg3[%c0_3, %c0_4] : memref<128x1xf32, #tpu.memory_space<vmem>>, vector<128x1xf32>
    %4 = vector.broadcast %3 : vector<128x1xf32> to vector<128x196xf32>
    %5 = arith.addf %2, %4 : vector<128x196xf32>
    %cst_5 = arith.constant 0.000000e+00 : f32
    %6 = vector.broadcast %cst_5 : f32 to vector<128x196xf32>
    %7 = arith.maximumf %5, %6 : vector<128x196xf32>
    %8 = arith.truncf %7 : vector<128x196xf32> to vector<128x196xbf16>
    %c0_6 = arith.constant 0 : index
    %c0_7 = arith.constant 0 : index
    %c0_8 = arith.constant 0 : index
    %9 = vector.load %arg4[%c0_6, %c0_7, %c0_8] : memref<16x196x128xbf16, #tpu.memory_space<vmem>>, vector<1x196x128xbf16>
    %10 = vector.shape_cast %9 : vector<1x196x128xbf16> to vector<196x128xbf16>
    %cst_9 = arith.constant dense<0.000000e+00> : vector<128x128xf32>
    %11 = tpu.matmul %8, %10, %cst_9 {dimension_numbers = #tpu.dot_dimension_numbers<[1], [0], [0], [1], [0, 0, 1, 1], [], []>} : vector<128x196xbf16>, vector<196x128xbf16>, vector<128x128xf32> -> vector<128x128xf32>
    %12 = arith.truncf %11 : vector<128x128xf32> to vector<128x128xbf16>
    %c0_10 = arith.constant 0 : index
    %c0_11 = arith.constant 0 : index
    %13 = vector.load %arg10[%c0_10, %c0_11] : memref<2048x128xbf16, #tpu.memory_space<vmem>>, vector<128x128xbf16>
    tpu.vector_store %arg10[%c0_10, %c0_11], %12 {strides = array<i32>} : memref<2048x128xbf16, #tpu.memory_space<vmem>>, vector<128x128xbf16>,
    %c1 = arith.constant 1 : index
    %c0_12 = arith.constant 0 : index
    %c0_13 = arith.constant 0 : index
    %14 = vector.load %arg4[%c1, %c0_12, %c0_13] : memref<16x196x128xbf16, #tpu.memory_space<vmem>>, vector<1x196x128xbf16>
    %15 = vector.shape_cast %14 : vector<1x196x128xbf16> to vector<196x128xbf16>
    %cst_14 = arith.constant dense<0.000000e+00> : vector<128x128xf32>
    %16 = tpu.matmul %8, %15, %cst_14 {dimension_numbers = #tpu.dot_dimension_numbers<[1], [0], [0], [1], [0, 0, 1, 1], [], []>} : vector<128x196xbf16>, vector<196x128xbf16>, vector<128x128xf32> -> vector<128x128xf32>
    %17 = arith.truncf %16 : vector<128x128xf32> to vector<128x128xbf16>
    %c128 = arith.constant 128 : index
    %c0_15 = arith.constant 0 : index
    %18 = vector.load %arg10[%c128, %c0_15] : memref<2048x128xbf16, #tpu.memory_space<vmem>>, vector<128x128xbf16>
    tpu.vector_store %arg10[%c128, %c0_15], %17 {strides = array<i32>} : memref<2048x128xbf16, #tpu.memory_space<vmem>>, vector<128x128xbf16>,
    %c2 = arith.constant 2 : index
    %c0_16 = arith.constant 0 : index
    %c0_17 = arith.constant 0 : index
    %19 = vector.load %arg4[%c2, %c0_16, %c0_17] : memref<16x196x128xbf16, #tpu.memory_space<vmem>>, vector<1x196x128xbf16>
    %20 = vector.shape_cast %19 : vector<1x196x128xbf16> to vector<196x128xbf16>
    %cst_18 = arith.constant dense<0.000000e+00> : vector<128x128xf32>
    %21 = tpu.matmul %8, %20, %cst_18 {dimension_numbers = #tpu.dot_dimension_numbers<[1], [0], [0], [1], [0, 0, 1, 1], [], []>} : vector<128x196xbf16>, vector<196x128xbf16>, vector<128x128xf32> -> vector<128x128xf32>
    %22 = arith.truncf %21 : vector<128x128xf32> to vector<128x128xbf16>
    %c256 = arith.constant 256 : index
    %c0_19 = arith.constant 0 : index
    %23 = vector.load %arg10[%c256, %c0_19] : memref<2048x128xbf16, #tpu.memory_space<vmem>>, vector<128x128xbf16>
    tpu.vector_store %arg10[%c256, %c0_19], %22 {strides = array<i32>} : memref<2048x128xbf16, #tpu.memory_space<vmem>>, vector<128x128xbf16>,
    %c3 = arith.constant 3 : index
    %c0_20 = arith.constant 0 : index
    %c0_21 = arith.constant 0 : index
    %24 = vector.load %arg4[%c3, %c0_20, %c0_21] : memref<16x196x128xbf16, #tpu.memory_space<vmem>>, vector<1x196x128xbf16>
    %25 = vector.shape_cast %24 : vector<1x196x128xbf16> to vector<196x128xbf16>
    %cst_22 = arith.constant dense<0.000000e+00> : vector<128x128xf32>
    %26 = tpu.matmul %8, %25, %cst_22 {dimension_numbers = #tpu.dot_dimension_numbers<[1], [0], [0], [1], [0, 0, 1, 1], [], []>} : vector<128x196xbf16>, vector<196x128xbf16>, vector<128x128xf32> -> vector<128x128xf32>
    %27 = arith.truncf %26 : vector<128x128xf32> to vector<128x128xbf16>
    %c384 = arith.constant 384 : index
    %c0_23 = arith.constant 0 : index
    %28 = vector.load %arg10[%c384, %c0_23] : memref<2048x128xbf16, #tpu.memory_space<vmem>>, vector<128x128xbf16>
    tpu.vector_store %arg10[%c384, %c0_23], %27 {strides = array<i32>} : memref<2048x128xbf16, #tpu.memory_space<vmem>>, vector<128x128xbf16>,
    %c4 = arith.constant 4 : index
    %c0_24 = arith.constant 0 : index
    %c0_25 = arith.constant 0 : index
    %29 = vector.load %arg4[%c4, %c0_24, %c0_25] : memref<16x196x128xbf16, #tpu.memory_space<vmem>>, vector<1x196x128xbf16>
    %30 = vector.shape_cast %29 : vector<1x196x128xbf16> to vector<196x128xbf16>
    %cst_26 = arith.constant dense<0.000000e+00> : vector<128x128xf32>
    %31 = tpu.matmul %8, %30, %cst_26 {dimension_numbers = #tpu.dot_dimension_numbers<[1], [0], [0], [1], [0, 0, 1, 1], [], []>} : vector<128x196xbf16>, vector<196x128xbf16>, vector<128x128xf32> -> vector<128x128xf32>
    %32 = arith.truncf %31 : vector<128x128xf32> to vector<128x128xbf16>
    %c512 = arith.constant 512 : index
    %c0_27 = arith.constant 0 : index
    %33 = vector.load %arg10[%c512, %c0_27] : memref<2048x128xbf16, #tpu.memory_space<vmem>>, vector<128x128xbf16>
    tpu.vector_store %arg10[%c512, %c0_27], %32 {strides = array<i32>} : memref<2048x128xbf16, #tpu.memory_space<vmem>>, vector<128x128xbf16>,
    %c5 = arith.constant 5 : index
    %c0_28 = arith.constant 0 : index
    %c0_29 = arith.constant 0 : index
    %34 = vector.load %arg4[%c5, %c0_28, %c0_29] : memref<16x196x128xbf16, #tpu.memory_space<vmem>>, vector<1x196x128xbf16>
    %35 = vector.shape_cast %34 : vector<1x196x128xbf16> to vector<196x128xbf16>
    %cst_30 = arith.constant dense<0.000000e+00> : vector<128x128xf32>
    %36 = tpu.matmul %8, %35, %cst_30 {dimension_numbers = #tpu.dot_dimension_numbers<[1], [0], [0], [1], [0, 0, 1, 1], [], []>} : vector<128x196xbf16>, vector<196x128xbf16>, vector<128x128xf32> -> vector<128x128xf32>
    %37 = arith.truncf %36 : vector<128x128xf32> to vector<128x128xbf16>
    %c640 = arith.constant 640 : index
    %c0_31 = arith.constant 0 : index
    %38 = vector.load %arg10[%c640, %c0_31] : memref<2048x128xbf16, #tpu.memory_space<vmem>>, vector<128x128xbf16>
    tpu.vector_store %arg10[%c640, %c0_31], %37 {strides = array<i32>} : memref<2048x128xbf16, #tpu.memory_space<vmem>>, vector<128x128xbf16>,
    %c6 = arith.constant 6 : index
    %c0_32 = arith.constant 0 : index
    %c0_33 = arith.constant 0 : index
    %39 = vector.load %arg4[%c6, %c0_32, %c0_33] : memref<16x196x128xbf16, #tpu.memory_space<vmem>>, vector<1x196x128xbf16>
    %40 = vector.shape_cast %39 : vector<1x196x128xbf16> to vector<196x128xbf16>
    %cst_34 = arith.constant dense<0.000000e+00> : vector<128x128xf32>
    %41 = tpu.matmul %8, %40, %cst_34 {dimension_numbers = #tpu.dot_dimension_numbers<[1], [0], [0], [1], [0, 0, 1, 1], [], []>} : vector<128x196xbf16>, vector<196x128xbf16>, vector<128x128xf32> -> vector<128x128xf32>
    %42 = arith.truncf %41 : vector<128x128xf32> to vector<128x128xbf16>
    %c768 = arith.constant 768 : index
    %c0_35 = arith.constant 0 : index
    %43 = vector.load %arg10[%c768, %c0_35] : memref<2048x128xbf16, #tpu.memory_space<vmem>>, vector<128x128xbf16>
    tpu.vector_store %arg10[%c768, %c0_35], %42 {strides = array<i32>} : memref<2048x128xbf16, #tpu.memory_space<vmem>>, vector<128x128xbf16>,
    %c7 = arith.constant 7 : index
    %c0_36 = arith.constant 0 : index
    %c0_37 = arith.constant 0 : index
    %44 = vector.load %arg4[%c7, %c0_36, %c0_37] : memref<16x196x128xbf16, #tpu.memory_space<vmem>>, vector<1x196x128xbf16>
    %45 = vector.shape_cast %44 : vector<1x196x128xbf16> to vector<196x128xbf16>
    %cst_38 = arith.constant dense<0.000000e+00> : vector<128x128xf32>
    %46 = tpu.matmul %8, %45, %cst_38 {dimension_numbers = #tpu.dot_dimension_numbers<[1], [0], [0], [1], [0, 0, 1, 1], [], []>} : vector<128x196xbf16>, vector<196x128xbf16>, vector<128x128xf32> -> vector<128x128xf32>
    %47 = arith.truncf %46 : vector<128x128xf32> to vector<128x128xbf16>
    %c896 = arith.constant 896 : index
    %c0_39 = arith.constant 0 : index
    %48 = vector.load %arg10[%c896, %c0_39] : memref<2048x128xbf16, #tpu.memory_space<vmem>>, vector<128x128xbf16>
    tpu.vector_store %arg10[%c896, %c0_39], %47 {strides = array<i32>} : memref<2048x128xbf16, #tpu.memory_space<vmem>>, vector<128x128xbf16>,
    %c8 = arith.constant 8 : index
    %c0_40 = arith.constant 0 : index
    %c0_41 = arith.constant 0 : index
    %49 = vector.load %arg4[%c8, %c0_40, %c0_41] : memref<16x196x128xbf16, #tpu.memory_space<vmem>>, vector<1x196x128xbf16>
    %50 = vector.shape_cast %49 : vector<1x196x128xbf16> to vector<196x128xbf16>
    %cst_42 = arith.constant dense<0.000000e+00> : vector<128x128xf32>
    %51 = tpu.matmul %8, %50, %cst_42 {dimension_numbers = #tpu.dot_dimension_numbers<[1], [0], [0], [1], [0, 0, 1, 1], [], []>} : vector<128x196xbf16>, vector<196x128xbf16>, vector<128x128xf32> -> vector<128x128xf32>
    %52 = arith.truncf %51 : vector<128x128xf32> to vector<128x128xbf16>
    %c1024 = arith.constant 1024 : index
    %c0_43 = arith.constant 0 : index
    %53 = vector.load %arg10[%c1024, %c0_43] : memref<2048x128xbf16, #tpu.memory_space<vmem>>, vector<128x128xbf16>
    tpu.vector_store %arg10[%c1024, %c0_43], %52 {strides = array<i32>} : memref<2048x128xbf16, #tpu.memory_space<vmem>>, vector<128x128xbf16>,
    %c9 = arith.constant 9 : index
    %c0_44 = arith.constant 0 : index
    %c0_45 = arith.constant 0 : index
    %54 = vector.load %arg4[%c9, %c0_44, %c0_45] : memref<16x196x128xbf16, #tpu.memory_space<vmem>>, vector<1x196x128xbf16>
    %55 = vector.shape_cast %54 : vector<1x196x128xbf16> to vector<196x128xbf16>
    %cst_46 = arith.constant dense<0.000000e+00> : vector<128x128xf32>
    %56 = tpu.matmul %8, %55, %cst_46 {dimension_numbers = #tpu.dot_dimension_numbers<[1], [0], [0], [1], [0, 0, 1, 1], [], []>} : vector<128x196xbf16>, vector<196x128xbf16>, vector<128x128xf32> -> vector<128x128xf32>
    %57 = arith.truncf %56 : vector<128x128xf32> to vector<128x128xbf16>
    %c1152 = arith.constant 1152 : index
    %c0_47 = arith.constant 0 : index
    %58 = vector.load %arg10[%c1152, %c0_47] : memref<2048x128xbf16, #tpu.memory_space<vmem>>, vector<128x128xbf16>
    tpu.vector_store %arg10[%c1152, %c0_47], %57 {strides = array<i32>} : memref<2048x128xbf16, #tpu.memory_space<vmem>>, vector<128x128xbf16>,
    %c10 = arith.constant 10 : index
    %c0_48 = arith.constant 0 : index
    %c0_49 = arith.constant 0 : index
    %59 = vector.load %arg4[%c10, %c0_48, %c0_49] : memref<16x196x128xbf16, #tpu.memory_space<vmem>>, vector<1x196x128xbf16>
    %60 = vector.shape_cast %59 : vector<1x196x128xbf16> to vector<196x128xbf16>
    %cst_50 = arith.constant dense<0.000000e+00> : vector<128x128xf32>
    %61 = tpu.matmul %8, %60, %cst_50 {dimension_numbers = #tpu.dot_dimension_numbers<[1], [0], [0], [1], [0, 0, 1, 1], [], []>} : vector<128x196xbf16>, vector<196x128xbf16>, vector<128x128xf32> -> vector<128x128xf32>
    %62 = arith.truncf %61 : vector<128x128xf32> to vector<128x128xbf16>
    %c1280 = arith.constant 1280 : index
    %c0_51 = arith.constant 0 : index
    %63 = vector.load %arg10[%c1280, %c0_51] : memref<2048x128xbf16, #tpu.memory_space<vmem>>, vector<128x128xbf16>
    tpu.vector_store %arg10[%c1280, %c0_51], %62 {strides = array<i32>} : memref<2048x128xbf16, #tpu.memory_space<vmem>>, vector<128x128xbf16>,
    %c11 = arith.constant 11 : index
    %c0_52 = arith.constant 0 : index
    %c0_53 = arith.constant 0 : index
    %64 = vector.load %arg4[%c11, %c0_52, %c0_53] : memref<16x196x128xbf16, #tpu.memory_space<vmem>>, vector<1x196x128xbf16>
    %65 = vector.shape_cast %64 : vector<1x196x128xbf16> to vector<196x128xbf16>
    %cst_54 = arith.constant dense<0.000000e+00> : vector<128x128xf32>
    %66 = tpu.matmul %8, %65, %cst_54 {dimension_numbers = #tpu.dot_dimension_numbers<[1], [0], [0], [1], [0, 0, 1, 1], [], []>} : vector<128x196xbf16>, vector<196x128xbf16>, vector<128x128xf32> -> vector<128x128xf32>
    %67 = arith.truncf %66 : vector<128x128xf32> to vector<128x128xbf16>
    %c1408 = arith.constant 1408 : index
    %c0_55 = arith.constant 0 : index
    %68 = vector.load %arg10[%c1408, %c0_55] : memref<2048x128xbf16, #tpu.memory_space<vmem>>, vector<128x128xbf16>
    tpu.vector_store %arg10[%c1408, %c0_55], %67 {strides = array<i32>} : memref<2048x128xbf16, #tpu.memory_space<vmem>>, vector<128x128xbf16>,
    %c12 = arith.constant 12 : index
    %c0_56 = arith.constant 0 : index
    %c0_57 = arith.constant 0 : index
    %69 = vector.load %arg4[%c12, %c0_56, %c0_57] : memref<16x196x128xbf16, #tpu.memory_space<vmem>>, vector<1x196x128xbf16>
    %70 = vector.shape_cast %69 : vector<1x196x128xbf16> to vector<196x128xbf16>
    %cst_58 = arith.constant dense<0.000000e+00> : vector<128x128xf32>
    %71 = tpu.matmul %8, %70, %cst_58 {dimension_numbers = #tpu.dot_dimension_numbers<[1], [0], [0], [1], [0, 0, 1, 1], [], []>} : vector<128x196xbf16>, vector<196x128xbf16>, vector<128x128xf32> -> vector<128x128xf32>
    %72 = arith.truncf %71 : vector<128x128xf32> to vector<128x128xbf16>
    %c1536 = arith.constant 1536 : index
    %c0_59 = arith.constant 0 : index
    %73 = vector.load %arg10[%c1536, %c0_59] : memref<2048x128xbf16, #tpu.memory_space<vmem>>, vector<128x128xbf16>
    tpu.vector_store %arg10[%c1536, %c0_59], %72 {strides = array<i32>} : memref<2048x128xbf16, #tpu.memory_space<vmem>>, vector<128x128xbf16>,
    %c13 = arith.constant 13 : index
    %c0_60 = arith.constant 0 : index
    %c0_61 = arith.constant 0 : index
    %74 = vector.load %arg4[%c13, %c0_60, %c0_61] : memref<16x196x128xbf16, #tpu.memory_space<vmem>>, vector<1x196x128xbf16>
    %75 = vector.shape_cast %74 : vector<1x196x128xbf16> to vector<196x128xbf16>
    %cst_62 = arith.constant dense<0.000000e+00> : vector<128x128xf32>
    %76 = tpu.matmul %8, %75, %cst_62 {dimension_numbers = #tpu.dot_dimension_numbers<[1], [0], [0], [1], [0, 0, 1, 1], [], []>} : vector<128x196xbf16>, vector<196x128xbf16>, vector<128x128xf32> -> vector<128x128xf32>
    %77 = arith.truncf %76 : vector<128x128xf32> to vector<128x128xbf16>
    %c1664 = arith.constant 1664 : index
    %c0_63 = arith.constant 0 : index
    %78 = vector.load %arg10[%c1664, %c0_63] : memref<2048x128xbf16, #tpu.memory_space<vmem>>, vector<128x128xbf16>
    tpu.vector_store %arg10[%c1664, %c0_63], %77 {strides = array<i32>} : memref<2048x128xbf16, #tpu.memory_space<vmem>>, vector<128x128xbf16>,
    %c14 = arith.constant 14 : index
    %c0_64 = arith.constant 0 : index
    %c0_65 = arith.constant 0 : index
    %79 = vector.load %arg4[%c14, %c0_64, %c0_65] : memref<16x196x128xbf16, #tpu.memory_space<vmem>>, vector<1x196x128xbf16>
    %80 = vector.shape_cast %79 : vector<1x196x128xbf16> to vector<196x128xbf16>
    %cst_66 = arith.constant dense<0.000000e+00> : vector<128x128xf32>
    %81 = tpu.matmul %8, %80, %cst_66 {dimension_numbers = #tpu.dot_dimension_numbers<[1], [0], [0], [1], [0, 0, 1, 1], [], []>} : vector<128x196xbf16>, vector<196x128xbf16>, vector<128x128xf32> -> vector<128x128xf32>
    %82 = arith.truncf %81 : vector<128x128xf32> to vector<128x128xbf16>
    %c1792 = arith.constant 1792 : index
    %c0_67 = arith.constant 0 : index
    %83 = vector.load %arg10[%c1792, %c0_67] : memref<2048x128xbf16, #tpu.memory_space<vmem>>, vector<128x128xbf16>
    tpu.vector_store %arg10[%c1792, %c0_67], %82 {strides = array<i32>} : memref<2048x128xbf16, #tpu.memory_space<vmem>>, vector<128x128xbf16>,
    %c15 = arith.constant 15 : index
    %c0_68 = arith.constant 0 : index
    %c0_69 = arith.constant 0 : index
    %84 = vector.load %arg4[%c15, %c0_68, %c0_69] : memref<16x196x128xbf16, #tpu.memory_space<vmem>>, vector<1x196x128xbf16>
    %85 = vector.shape_cast %84 : vector<1x196x128xbf16> to vector<196x128xbf16>
    %cst_70 = arith.constant dense<0.000000e+00> : vector<128x128xf32>
    %86 = tpu.matmul %8, %85, %cst_70 {dimension_numbers = #tpu.dot_dimension_numbers<[1], [0], [0], [1], [0, 0, 1, 1], [], []>} : vector<128x196xbf16>, vector<196x128xbf16>, vector<128x128xf32> -> vector<128x128xf32>
    %87 = arith.truncf %86 : vector<128x128xf32> to vector<128x128xbf16>
    %c1920 = arith.constant 1920 : index
    %c0_71 = arith.constant 0 : index
    %88 = vector.load %arg10[%c1920, %c0_71] : memref<2048x128xbf16, #tpu.memory_space<vmem>>, vector<128x128xbf16>
    tpu.vector_store %arg10[%c1920, %c0_71], %87 {strides = array<i32>} : memref<2048x128xbf16, #tpu.memory_space<vmem>>, vector<128x128xbf16>,
    %c0_72 = arith.constant 0 : index
    %c0_73 = arith.constant 0 : index
    %89 = vector.load %arg5[%c0_72, %c0_73] : memref<256x2048xbf16, #tpu.memory_space<vmem>>, vector<256x2048xbf16>
    %c0_74 = arith.constant 0 : index
    %c0_75 = arith.constant 0 : index
    %90 = vector.load %arg10[%c0_74, %c0_75] : memref<2048x128xbf16, #tpu.memory_space<vmem>>, vector<2048x128xbf16>
    %cst_76 = arith.constant dense<0.000000e+00> : vector<256x128xf32>
    %91 = tpu.matmul %89, %90, %cst_76 {dimension_numbers = #tpu.dot_dimension_numbers<[1], [0], [0], [1], [0, 0, 1, 1], [], []>} : vector<256x2048xbf16>, vector<2048x128xbf16>, vector<256x128xf32> -> vector<256x128xf32>
    %c0_77 = arith.constant 0 : index
    %c0_78 = arith.constant 0 : index
    %92 = vector.load %arg6[%c0_77, %c0_78] : memref<256x1xf32, #tpu.memory_space<vmem>>, vector<256x1xf32>
    %93 = vector.broadcast %92 : vector<256x1xf32> to vector<256x128xf32>
    %94 = arith.addf %91, %93 : vector<256x128xf32>
    %cst_79 = arith.constant 0.000000e+00 : f32
    %95 = vector.broadcast %cst_79 : f32 to vector<256x128xf32>
    %96 = arith.maximumf %94, %95 : vector<256x128xf32>
    %97 = arith.truncf %96 : vector<256x128xf32> to vector<256x128xbf16>
    %98 = vector.extract_strided_slice %97 {offsets = [0, 0], sizes = [16, 128], strides = [1, 1]} : vector<256x128xbf16> to vector<16x128xbf16>
    %c0_80 = arith.constant 0 : index
    %c0_81 = arith.constant 0 : index
    %99 = vector.load %arg11[%c0_80, %c0_81] : memref<16x2048xbf16, #tpu.memory_space<vmem>>, vector<16x128xbf16>
    tpu.vector_store %arg11[%c0_80, %c0_81], %98 {strides = array<i32>} : memref<16x2048xbf16, #tpu.memory_space<vmem>>, vector<16x128xbf16>,
    %100 = vector.extract_strided_slice %97 {offsets = [16, 0], sizes = [16, 128], strides = [1, 1]} : vector<256x128xbf16> to vector<16x128xbf16>
    %c0_82 = arith.constant 0 : index
    %c128_83 = arith.constant 128 : index
    %101 = vector.load %arg11[%c0_82, %c128_83] : memref<16x2048xbf16, #tpu.memory_space<vmem>>, vector<16x128xbf16>
    tpu.vector_store %arg11[%c0_82, %c128_83], %100 {strides = array<i32>} : memref<16x2048xbf16, #tpu.memory_space<vmem>>, vector<16x128xbf16>,
    %102 = vector.extract_strided_slice %97 {offsets = [32, 0], sizes = [16, 128], strides = [1, 1]} : vector<256x128xbf16> to vector<16x128xbf16>
    %c0_84 = arith.constant 0 : index
    %c256_85 = arith.constant 256 : index
    %103 = vector.load %arg11[%c0_84, %c256_85] : memref<16x2048xbf16, #tpu.memory_space<vmem>>, vector<16x128xbf16>
    tpu.vector_store %arg11[%c0_84, %c256_85], %102 {strides = array<i32>} : memref<16x2048xbf16, #tpu.memory_space<vmem>>, vector<16x128xbf16>,
    %104 = vector.extract_strided_slice %97 {offsets = [48, 0], sizes = [16, 128], strides = [1, 1]} : vector<256x128xbf16> to vector<16x128xbf16>
    %c0_86 = arith.constant 0 : index
    %c384_87 = arith.constant 384 : index
    %105 = vector.load %arg11[%c0_86, %c384_87] : memref<16x2048xbf16, #tpu.memory_space<vmem>>, vector<16x128xbf16>
    tpu.vector_store %arg11[%c0_86, %c384_87], %104 {strides = array<i32>} : memref<16x2048xbf16, #tpu.memory_space<vmem>>, vector<16x128xbf16>,
    %106 = vector.extract_strided_slice %97 {offsets = [64, 0], sizes = [16, 128], strides = [1, 1]} : vector<256x128xbf16> to vector<16x128xbf16>
    %c0_88 = arith.constant 0 : index
    %c512_89 = arith.constant 512 : index
    %107 = vector.load %arg11[%c0_88, %c512_89] : memref<16x2048xbf16, #tpu.memory_space<vmem>>, vector<16x128xbf16>
    tpu.vector_store %arg11[%c0_88, %c512_89], %106 {strides = array<i32>} : memref<16x2048xbf16, #tpu.memory_space<vmem>>, vector<16x128xbf16>,
    %108 = vector.extract_strided_slice %97 {offsets = [80, 0], sizes = [16, 128], strides = [1, 1]} : vector<256x128xbf16> to vector<16x128xbf16>
    %c0_90 = arith.constant 0 : index
    %c640_91 = arith.constant 640 : index
    %109 = vector.load %arg11[%c0_90, %c640_91] : memref<16x2048xbf16, #tpu.memory_space<vmem>>, vector<16x128xbf16>
    tpu.vector_store %arg11[%c0_90, %c640_91], %108 {strides = array<i32>} : memref<16x2048xbf16, #tpu.memory_space<vmem>>, vector<16x128xbf16>,
    %110 = vector.extract_strided_slice %97 {offsets = [96, 0], sizes = [16, 128], strides = [1, 1]} : vector<256x128xbf16> to vector<16x128xbf16>
    %c0_92 = arith.constant 0 : index
    %c768_93 = arith.constant 768 : index
    %111 = vector.load %arg11[%c0_92, %c768_93] : memref<16x2048xbf16, #tpu.memory_space<vmem>>, vector<16x128xbf16>
    tpu.vector_store %arg11[%c0_92, %c768_93], %110 {strides = array<i32>} : memref<16x2048xbf16, #tpu.memory_space<vmem>>, vector<16x128xbf16>,
    %112 = vector.extract_strided_slice %97 {offsets = [112, 0], sizes = [16, 128], strides = [1, 1]} : vector<256x128xbf16> to vector<16x128xbf16>
    %c0_94 = arith.constant 0 : index
    %c896_95 = arith.constant 896 : index
    %113 = vector.load %arg11[%c0_94, %c896_95] : memref<16x2048xbf16, #tpu.memory_space<vmem>>, vector<16x128xbf16>
    tpu.vector_store %arg11[%c0_94, %c896_95], %112 {strides = array<i32>} : memref<16x2048xbf16, #tpu.memory_space<vmem>>, vector<16x128xbf16>,
    %114 = vector.extract_strided_slice %97 {offsets = [128, 0], sizes = [16, 128], strides = [1, 1]} : vector<256x128xbf16> to vector<16x128xbf16>
    %c0_96 = arith.constant 0 : index
    %c1024_97 = arith.constant 1024 : index
    %115 = vector.load %arg11[%c0_96, %c1024_97] : memref<16x2048xbf16, #tpu.memory_space<vmem>>, vector<16x128xbf16>
    tpu.vector_store %arg11[%c0_96, %c1024_97], %114 {strides = array<i32>} : memref<16x2048xbf16, #tpu.memory_space<vmem>>, vector<16x128xbf16>,
    %116 = vector.extract_strided_slice %97 {offsets = [144, 0], sizes = [16, 128], strides = [1, 1]} : vector<256x128xbf16> to vector<16x128xbf16>
    %c0_98 = arith.constant 0 : index
    %c1152_99 = arith.constant 1152 : index
    %117 = vector.load %arg11[%c0_98, %c1152_99] : memref<16x2048xbf16, #tpu.memory_space<vmem>>, vector<16x128xbf16>
    tpu.vector_store %arg11[%c0_98, %c1152_99], %116 {strides = array<i32>} : memref<16x2048xbf16, #tpu.memory_space<vmem>>, vector<16x128xbf16>,
    %118 = vector.extract_strided_slice %97 {offsets = [160, 0], sizes = [16, 128], strides = [1, 1]} : vector<256x128xbf16> to vector<16x128xbf16>
    %c0_100 = arith.constant 0 : index
    %c1280_101 = arith.constant 1280 : index
    %119 = vector.load %arg11[%c0_100, %c1280_101] : memref<16x2048xbf16, #tpu.memory_space<vmem>>, vector<16x128xbf16>
    tpu.vector_store %arg11[%c0_100, %c1280_101], %118 {strides = array<i32>} : memref<16x2048xbf16, #tpu.memory_space<vmem>>, vector<16x128xbf16>,
    %120 = vector.extract_strided_slice %97 {offsets = [176, 0], sizes = [16, 128], strides = [1, 1]} : vector<256x128xbf16> to vector<16x128xbf16>
    %c0_102 = arith.constant 0 : index
    %c1408_103 = arith.constant 1408 : index
    %121 = vector.load %arg11[%c0_102, %c1408_103] : memref<16x2048xbf16, #tpu.memory_space<vmem>>, vector<16x128xbf16>
    tpu.vector_store %arg11[%c0_102, %c1408_103], %120 {strides = array<i32>} : memref<16x2048xbf16, #tpu.memory_space<vmem>>, vector<16x128xbf16>,
    %122 = vector.extract_strided_slice %97 {offsets = [192, 0], sizes = [16, 128], strides = [1, 1]} : vector<256x128xbf16> to vector<16x128xbf16>
    %c0_104 = arith.constant 0 : index
    %c1536_105 = arith.constant 1536 : index
    %123 = vector.load %arg11[%c0_104, %c1536_105] : memref<16x2048xbf16, #tpu.memory_space<vmem>>, vector<16x128xbf16>
    tpu.vector_store %arg11[%c0_104, %c1536_105], %122 {strides = array<i32>} : memref<16x2048xbf16, #tpu.memory_space<vmem>>, vector<16x128xbf16>,
    %124 = vector.extract_strided_slice %97 {offsets = [208, 0], sizes = [16, 128], strides = [1, 1]} : vector<256x128xbf16> to vector<16x128xbf16>
    %c0_106 = arith.constant 0 : index
    %c1664_107 = arith.constant 1664 : index
    %125 = vector.load %arg11[%c0_106, %c1664_107] : memref<16x2048xbf16, #tpu.memory_space<vmem>>, vector<16x128xbf16>
    tpu.vector_store %arg11[%c0_106, %c1664_107], %124 {strides = array<i32>} : memref<16x2048xbf16, #tpu.memory_space<vmem>>, vector<16x128xbf16>,
    %126 = vector.extract_strided_slice %97 {offsets = [224, 0], sizes = [16, 128], strides = [1, 1]} : vector<256x128xbf16> to vector<16x128xbf16>
    %c0_108 = arith.constant 0 : index
    %c1792_109 = arith.constant 1792 : index
    %127 = vector.load %arg11[%c0_108, %c1792_109] : memref<16x2048xbf16, #tpu.memory_space<vmem>>, vector<16x128xbf16>
    tpu.vector_store %arg11[%c0_108, %c1792_109], %126 {strides = array<i32>} : memref<16x2048xbf16, #tpu.memory_space<vmem>>, vector<16x128xbf16>,
    %128 = vector.extract_strided_slice %97 {offsets = [240, 0], sizes = [16, 128], strides = [1, 1]} : vector<256x128xbf16> to vector<16x128xbf16>
    %c0_110 = arith.constant 0 : index
    %c1920_111 = arith.constant 1920 : index
    %129 = vector.load %arg11[%c0_110, %c1920_111] : memref<16x2048xbf16, #tpu.memory_space<vmem>>, vector<16x128xbf16>
    tpu.vector_store %arg11[%c0_110, %c1920_111], %128 {strides = array<i32>} : memref<16x2048xbf16, #tpu.memory_space<vmem>>, vector<16x128xbf16>,
    %c0_112 = arith.constant 0 : index
    %c0_113 = arith.constant 0 : index
    %130 = vector.load %arg11[%c0_112, %c0_113] : memref<16x2048xbf16, #tpu.memory_space<vmem>>, vector<16x2048xbf16>
    %c0_114 = arith.constant 0 : index
    %c0_115 = arith.constant 0 : index
    %131 = vector.load %arg7[%c0_114, %c0_115] : memref<2048x128xbf16, #tpu.memory_space<vmem>>, vector<2048x128xbf16>
    %cst_116 = arith.constant dense<0.000000e+00> : vector<16x128xf32>
    %132 = tpu.matmul %130, %131, %cst_116 {dimension_numbers = #tpu.dot_dimension_numbers<[1], [0], [0], [1], [0, 0, 1, 1], [], []>} : vector<16x2048xbf16>, vector<2048x128xbf16>, vector<16x128xf32> -> vector<16x128xf32>
    %c0_117 = arith.constant 0 : index
    %c0_118 = arith.constant 0 : index
    %133 = vector.load %arg8[%c0_117, %c0_118] : memref<1x128xf32, #tpu.memory_space<vmem>>, vector<1x128xf32>
    %134 = vector.broadcast %133 : vector<1x128xf32> to vector<16x128xf32>
    %135 = arith.addf %132, %134 : vector<16x128xf32>
    %c0_119 = arith.constant 0 : index
    %c0_120 = arith.constant 0 : index
    %136 = vector.load %arg9[%c0_119, %c0_120] : memref<16x128xf32, #tpu.memory_space<vmem>>, vector<16x128xf32>
    tpu.vector_store %arg9[%c0_119, %c0_120], %135 {strides = array<i32>} : memref<16x128xf32, #tpu.memory_space<vmem>>, vector<16x128xf32>,
    return
  }
  func.func @transform_0(%arg0: i32) -> (i32, i32) {
    %c0_i32 = arith.constant 0 : i32
    %c0_i32_0 = arith.constant 0 : i32
    return %arg0, %c0_i32 : i32, i32
  }
  func.func @transform_1(%arg0: i32) -> (i32, i32) {
    %c0_i32 = arith.constant 0 : i32
    %c0_i32_0 = arith.constant 0 : i32
    %c0_i32_1 = arith.constant 0 : i32
    return %c0_i32, %c0_i32_0 : i32, i32
  }
  func.func @transform_2(%arg0: i32) -> (i32, i32) {
    %c0_i32 = arith.constant 0 : i32
    %c0_i32_0 = arith.constant 0 : i32
    %c0_i32_1 = arith.constant 0 : i32
    return %c0_i32, %c0_i32_0 : i32, i32
  }
  func.func @transform_3(%arg0: i32) -> (i32, i32, i32) {
    %c0_i32 = arith.constant 0 : i32
    %c0_i32_0 = arith.constant 0 : i32
    %c0_i32_1 = arith.constant 0 : i32
    %c0_i32_2 = arith.constant 0 : i32
    return %c0_i32, %c0_i32_0, %c0_i32_1 : i32, i32, i32
  }
  func.func @transform_4(%arg0: i32) -> (i32, i32) {
    %c0_i32 = arith.constant 0 : i32
    %c0_i32_0 = arith.constant 0 : i32
    %c0_i32_1 = arith.constant 0 : i32
    return %c0_i32, %c0_i32_0 : i32, i32
  }
  func.func @transform_5(%arg0: i32) -> (i32, i32) {
    %c0_i32 = arith.constant 0 : i32
    %c0_i32_0 = arith.constant 0 : i32
    %c0_i32_1 = arith.constant 0 : i32
    return %c0_i32, %c0_i32_0 : i32, i32
  }
  func.func @transform_6(%arg0: i32) -> (i32, i32) {
    %c0_i32 = arith.constant 0 : i32
    %c0_i32_0 = arith.constant 0 : i32
    %c0_i32_1 = arith.constant 0 : i32
    return %c0_i32, %c0_i32_0 : i32, i32
  }
  func.func @transform_7(%arg0: i32) -> (i32, i32) {
    %c0_i32 = arith.constant 0 : i32
    %c0_i32_0 = arith.constant 0 : i32
    %c0_i32_1 = arith.constant 0 : i32
    return %c0_i32, %c0_i32_0 : i32, i32
  }
  func.func @transform_8(%arg0: i32) -> (i32, i32) {
    %c0_i32 = arith.constant 0 : i32
    %c0_i32_0 = arith.constant 0 : i32
    return %arg0, %c0_i32 : i32, i32
  }
}

</mosaic_0001>

<llo_original>
// kernel: encoder_forward.1
$region0: #{encoder_forward.1}
  #allocation0 [shape = 'u32[]', space=smem, size = 0x4, offset = 0x4, fixed_abs, tag = 'smem constant byte address 0x4 - core index']
  #allocation1 [shape = 'u32[72,128]{1,0:T(1,128)}', space=vmem, size = 0x9000, scoped, tag = 'internal scratch']
  #allocation2 [shape = 'bf16[2048,128]{1,0:T(8,128)(2,1)}', space=vmem, size = 0x80000, scoped, tag = 'scratch operand']
  #allocation3 [shape = 'bf16[16,2048]{1,0:T(8,128)(2,1)}', space=vmem, size = 0x10000, scoped, tag = 'scratch operand']
  %s0 = inlined_call_operand.vmem [shape: bf16[512,196], index: 0, kind: input, shape index: {}]
  %s1 = inlined_call_operand.vmem [shape: bf16[128,256], index: 1, kind: input, shape index: {}]
  %s2 = inlined_call_operand.vmem [shape: f32[128,1], index: 2, kind: input, shape index: {}]
  %s3 = inlined_call_operand.vmem [shape: bf16[16,196,128], index: 3, kind: input, shape index: {}]
  %s4 = inlined_call_operand.vmem [shape: bf16[256,2048], index: 4, kind: input, shape index: {}]
  %s5 = inlined_call_operand.vmem [shape: f32[256,1], index: 5, kind: input, shape index: {}]
  %s6 = inlined_call_operand.vmem [shape: bf16[2048,128], index: 6, kind: input, shape index: {}]
  %s7 = inlined_call_operand.vmem [shape: f32[1,128], index: 7, kind: input, shape index: {}]
  %s8 = inlined_call_operand.vmem [shape: f32[32,128], index: 8, kind: output, shape index: {}]
  %s9 = sld [smem:[#allocation0]]
  $region65: #{encoder_forward.1} parent=0
    _
  %s11 = ssub.s32 1, %s9
  %s12 = scalar_select 0, %s11, %s9
  loop: start=0, step=1, limit=4
  $region2: #{encoder_forward.1} parent=0 // loop_pre_header
    _
  $region3: #{encoder_forward.1} parent=0 // loop_header
    %s14 = sphi 0, %s18
    %p15 = scmp.ge.s32.totalorder %s14, 4
    %s24 = sphi 0, %s26
    %s27 = sphi 0, %s24
    %s28 = sphi 0, %s27
    %s44 = sphi 0, %s28
    %s48 = sphi 0, %s48
    %s50 = sphi 0, %s48
    %s51 = sphi 0, %s50
    %s65 = sphi 0, %s51
    %s69 = sphi 0, %s69
    %s71 = sphi 0, %s69
    %s72 = sphi 0, %s71
    %s86 = sphi 0, %s72
    %s90 = sphi 0, %s90
    %s92 = sphi 0, %s90
    %s93 = sphi 0, %s92
    %s107 = sphi 0, %s93
    %s111 = sphi 0, %s111
    %s113 = sphi 0, %s111
    %s114 = sphi 0, %s113
    %s128 = sphi 0, %s114
    %s132 = sphi 0, %s132
    %s134 = sphi 0, %s132
    %s135 = sphi 0, %s134
    %s149 = sphi 0, %s135
    %s153 = sphi 0, %s153
    %s155 = sphi 0, %s153
    %s156 = sphi 0, %s155
    %s170 = sphi 0, %s156
    %s174 = sphi 0, %s174
    %s176 = sphi 0, %s174
    %s177 = sphi 0, %s176
    %s191 = sphi 0, %s177
    %s197 = sphi 0, %s199
    %s200 = sphi 0, %s197
    %s201 = sphi 0, %s200
    %s217 = sphi 0, %s201
  $region4: #{encoder_forward.1} parent=0 // loop_header_branch
    %17 = sbr.rel (%p15) target = $region8
  $region5: #{encoder_forward.1} parent=0 // loop_body
    %s19 = ssub.s32 %s14, 1
    %s20 = ssub.s32 %s14, 2
    %s21 = sadd.s32 %s14, 1
    %s22 = ssub.s32 %s14, %s21
    %p23 = scmp.eq.s32.totalorder %s22, 0
    %s25 = sadd.s32 %s24, 1
    %s26 = scalar_select %p23, %s24, %s25
    %p29 = pneg %p23
    %p30 = scmp.eq.s32.totalorder %s14, 1
    %p31 = por %p29, %p30
    %p32 = scmp.ne.s32.totalorder %s24, %s27
    %p33 = scmp.eq.s32.totalorder %s14, 0
    %p34 = por %p32, %p33
    %p35 = scmp.ne.s32.totalorder %s24, %s27
    %p36 = scmp.eq.s32.totalorder %s19, 1
    %p37 = por %p35, %p36
    %p38 = scmp.ne.s32.totalorder %s27, %s28
    %p39 = scmp.eq.s32.totalorder %s19, 0
    %p40 = por %p38, %p39
    %p41 = scmp.ne.s32.totalorder %s27, %s28
    %p42 = scmp.eq.s32.totalorder %s20, 1
    %p43 = por %p41, %p42
    %p45 = scmp.ne.s32.totalorder %s28, %s44
    %p46 = scmp.eq.s32.totalorder %s20, 0
    %p47 = por %p45, %p46
    %s49 = sadd.s32 %s48, 1
    %p52 = scmp.eq.s32.totalorder %s14, 1
    %p53 = scmp.ne.s32.totalorder %s48, %s50
    %p54 = scmp.eq.s32.totalorder %s14, 0
    %p55 = por %p53, %p54
    %p56 = scmp.ne.s32.totalorder %s48, %s50
    %p57 = scmp.eq.s32.totalorder %s19, 1
    %p58 = por %p56, %p57
    %p59 = scmp.ne.s32.totalorder %s50, %s51
    %p60 = scmp.eq.s32.totalorder %s19, 0
    %p61 = por %p59, %p60
    %p62 = scmp.ne.s32.totalorder %s50, %s51
    %p63 = scmp.eq.s32.totalorder %s20, 1
    %p64 = por %p62, %p63
    %p66 = scmp.ne.s32.totalorder %s51, %s65
    %p67 = scmp.eq.s32.totalorder %s20, 0
    %p68 = por %p66, %p67
    %s70 = sadd.s32 %s69, 1
    %p73 = scmp.eq.s32.totalorder %s14, 1
    %p74 = scmp.ne.s32.totalorder %s69, %s71
    %p75 = scmp.eq.s32.totalorder %s14, 0
    %p76 = por %p74, %p75
    %p77 = scmp.ne.s32.totalorder %s69, %s71
    %p78 = scmp.eq.s32.totalorder %s19, 1
    %p79 = por %p77, %p78
    %p80 = scmp.ne.s32.totalorder %s71, %s72
    %p81 = scmp.eq.s32.totalorder %s19, 0
    %p82 = por %p80, %p81
    %p83 = scmp.ne.s32.totalorder %s71, %s72
    %p84 = scmp.eq.s32.totalorder %s20, 1
    %p85 = por %p83, %p84
    %p87 = scmp.ne.s32.totalorder %s72, %s86
    %p88 = scmp.eq.s32.totalorder %s20, 0
    %p89 = por %p87, %p88
    %s91 = sadd.s32 %s90, 1
    %p94 = scmp.eq.s32.totalorder %s14, 1
    %p95 = scmp.ne.s32.totalorder %s90, %s92
    %p96 = scmp.eq.s32.totalorder %s14, 0
    %p97 = por %p95, %p96
    %p98 = scmp.ne.s32.totalorder %s90, %s92
    %p99 = scmp.eq.s32.totalorder %s19, 1
    %p100 = por %p98, %p99
    %p101 = scmp.ne.s32.totalorder %s92, %s93
    %p102 = scmp.eq.s32.totalorder %s19, 0
    %p103 = por %p101, %p102
    %p104 = scmp.ne.s32.totalorder %s92, %s93
    %p105 = scmp.eq.s32.totalorder %s20, 1
    %p106 = por %p104, %p105
    %p108 = scmp.ne.s32.totalorder %s93, %s107
    %p109 = scmp.eq.s32.totalorder %s20, 0
    %p110 = por %p108, %p109
    %s112 = sadd.s32 %s111, 1
    %p115 = scmp.eq.s32.totalorder %s14, 1
    %p116 = scmp.ne.s32.totalorder %s111, %s113
    %p117 = scmp.eq.s32.totalorder %s14, 0
    %p118 = por %p116, %p117
    %p119 = scmp.ne.s32.totalorder %s111, %s113
    %p120 = scmp.eq.s32.totalorder %s19, 1
    %p121 = por %p119, %p120
    %p122 = scmp.ne.s32.totalorder %s113, %s114
    %p123 = scmp.eq.s32.totalorder %s19, 0
    %p124 = por %p122, %p123
    %p125 = scmp.ne.s32.totalorder %s113, %s114
    %p126 = scmp.eq.s32.totalorder %s20, 1
    %p127 = por %p125, %p126
    %p129 = scmp.ne.s32.totalorder %s114, %s128
    %p130 = scmp.eq.s32.totalorder %s20, 0
    %p131 = por %p129, %p130
    %s133 = sadd.s32 %s132, 1
    %p136 = scmp.eq.s32.totalorder %s14, 1
    %p137 = scmp.ne.s32.totalorder %s132, %s134
    %p138 = scmp.eq.s32.totalorder %s14, 0
    %p139 = por %p137, %p138
    %p140 = scmp.ne.s32.totalorder %s132, %s134
    %p141 = scmp.eq.s32.totalorder %s19, 1
    %p142 = por %p140, %p141
    %p143 = scmp.ne.s32.totalorder %s134, %s135
    %p144 = scmp.eq.s32.totalorder %s19, 0
    %p145 = por %p143, %p144
    %p146 = scmp.ne.s32.totalorder %s134, %s135
    %p147 = scmp.eq.s32.totalorder %s20, 1
    %p148 = por %p146, %p147
    %p150 = scmp.ne.s32.totalorder %s135, %s149
    %p151 = scmp.eq.s32.totalorder %s20, 0
    %p152 = por %p150, %p151
    %s154 = sadd.s32 %s153, 1
    %p157 = scmp.eq.s32.totalorder %s14, 1
    %p158 = scmp.ne.s32.totalorder %s153, %s155
    %p159 = scmp.eq.s32.totalorder %s14, 0
    %p160 = por %p158, %p159
    %p161 = scmp.ne.s32.totalorder %s153, %s155
    %p162 = scmp.eq.s32.totalorder %s19, 1
    %p163 = por %p161, %p162
    %p164 = scmp.ne.s32.totalorder %s155, %s156
    %p165 = scmp.eq.s32.totalorder %s19, 0
    %p166 = por %p164, %p165
    %p167 = scmp.ne.s32.totalorder %s155, %s156
    %p168 = scmp.eq.s32.totalorder %s20, 1
    %p169 = por %p167, %p168
    %p171 = scmp.ne.s32.totalorder %s156, %s170
    %p172 = scmp.eq.s32.totalorder %s20, 0
    %p173 = por %p171, %p172
    %s175 = sadd.s32 %s174, 1
    %p178 = scmp.eq.s32.totalorder %s14, 1
    %p179 = scmp.ne.s32.totalorder %s174, %s176
    %p180 = scmp.eq.s32.totalorder %s14, 0
    %p181 = por %p179, %p180
    %p182 = scmp.ne.s32.totalorder %s174, %s176
    %p183 = scmp.eq.s32.totalorder %s19, 1
    %p184 = por %p182, %p183
    %p185 = scmp.ne.s32.totalorder %s176, %s177
    %p186 = scmp.eq.s32.totalorder %s19, 0
    %p187 = por %p185, %p186
    %p188 = scmp.ne.s32.totalorder %s176, %s177
    %p189 = scmp.eq.s32.totalorder %s20, 1
    %p190 = por %p188, %p189
    %p192 = scmp.ne.s32.totalorder %s177, %s191
    %p193 = scmp.eq.s32.totalorder %s20, 0
    %p194 = por %p192, %p193
    %s195 = ssub.s32 %s14, %s21
    %p196 = scmp.eq.s32.totalorder %s195, 0
    %s198 = sadd.s32 %s197, 1
    %s199 = scalar_select %p196, %s197, %s198
    %p202 = pneg %p196
    %p203 = scmp.eq.s32.totalorder %s14, 1
    %p204 = por %p202, %p203
    %p205 = scmp.ne.s32.totalorder %s197, %s200
    %p206 = scmp.eq.s32.totalorder %s14, 0
    %p207 = por %p205, %p206
    %p208 = scmp.ne.s32.totalorder %s197, %s200
    %p209 = scmp.eq.s32.totalorder %s19, 1
    %p210 = por %p208, %p209
    %p211 = scmp.ne.s32.totalorder %s200, %s201
    %p212 = scmp.eq.s32.totalorder %s19, 0
    %p213 = por %p211, %p212
    %p214 = scmp.ne.s32.totalorder %s200, %s201
    %p215 = scmp.eq.s32.totalorder %s20, 1
    %p216 = por %p214, %p215
    %p218 = scmp.ne.s32.totalorder %s201, %s217
    %p219 = scmp.eq.s32.totalorder %s20, 0
    %p220 = por %p218, %p219
    %p221 = scmp.le.s32.totalorder 1, %s14
    %p222 = scmp.lt.s32.totalorder %s14, 3
    %p223 = pnand %p221, %p222
    %p224 = pneg %p223
    // Predicated region
    $region9: #{encoder_forward.1} parent=5 // pred_check
      _
    $region10: #{encoder_forward.1} parent=5 // pred_check_branch
      %226 = sbr.rel (%p223) target = $region12
    $region11: #{encoder_forward.1} parent=5 // pred_region
      %s227 = ssub.s32 %s14, 1
      // Predicated region
      $region13: #{encoder_forward.1} parent=11 // pred_check
        %p228 = pneg %p61
      $region14: #{encoder_forward.1} parent=11 // pred_check_branch
        %230 = sbr.rel (%p228) target = $region16
      $region15: #{encoder_forward.1} parent=11 // pred_region
        _
      $region16: #{encoder_forward.1} parent=11 // pred_fallthru
        _
      // Predicated region
      $region17: #{encoder_forward.1} parent=11 // pred_check
        %p231 = pneg %p82
      $region18: #{encoder_forward.1} parent=11 // pred_check_branch
        %233 = sbr.rel (%p231) target = $region20
      $region19: #{encoder_forward.1} parent=11 // pred_region
        _
      $region20: #{encoder_forward.1} parent=11 // pred_fallthru
        _
      // Predicated region
      $region21: #{encoder_forward.1} parent=11 // pred_check
        %p234 = pneg %p103
      $region22: #{encoder_forward.1} parent=11 // pred_check_branch
        %236 = sbr.rel (%p234) target = $region24
      $region23: #{encoder_forward.1} parent=11 // pred_region
        _
      $region24: #{encoder_forward.1} parent=11 // pred_fallthru
        _
      // Predicated region
      $region25: #{encoder_forward.1} parent=11 // pred_check
        %p237 = pneg %p124
      $region26: #{encoder_forward.1} parent=11 // pred_check_branch
        %239 = sbr.rel (%p237) target = $region28
      $region27: #{encoder_forward.1} parent=11 // pred_region
        _
      $region28: #{encoder_forward.1} parent=11 // pred_fallthru
        _
      // Predicated region
      $region29: #{encoder_forward.1} parent=11 // pred_check
        %p240 = pneg %p145
      $region30: #{encoder_forward.1} parent=11 // pred_check_branch
        %242 = sbr.rel (%p240) target = $region32
      $region31: #{encoder_forward.1} parent=11 // pred_region
        _
      $region32: #{encoder_forward.1} parent=11 // pred_fallthru
        _
      // Predicated region
      $region33: #{encoder_forward.1} parent=11 // pred_check
        %p243 = pneg %p166
      $region34: #{encoder_forward.1} parent=11 // pred_check_branch
        %245 = sbr.rel (%p243) target = $region36
      $region35: #{encoder_forward.1} parent=11 // pred_region
        _
      $region36: #{encoder_forward.1} parent=11 // pred_fallthru
        _
      // Predicated region
      $region37: #{encoder_forward.1} parent=11 // pred_check
        %p246 = pneg %p187
      $region38: #{encoder_forward.1} parent=11 // pred_check_branch
        %248 = sbr.rel (%p246) target = $region40
      $region39: #{encoder_forward.1} parent=11 // pred_region
        _
      $region40: #{encoder_forward.1} parent=11 // pred_fallthru
        _
    $region12: #{encoder_forward.1} parent=5 // pred_fallthru
      _
    %p249 = scmp.lt.s32.totalorder %s14, 2
    // Predicated region
    $region41: #{encoder_forward.1} parent=5 // pred_check
      %p250 = pneg %p249
    $region42: #{encoder_forward.1} parent=5 // pred_check_branch
      %252 = sbr.rel (%p250) target = $region44
    $region43: #{encoder_forward.1} parent=5 // pred_region
      // Predicated region
      $region45: #{encoder_forward.1} parent=43 // pred_check
        %p253 = pneg %p34
      $region46: #{encoder_forward.1} parent=43 // pred_check_branch
        %255 = sbr.rel (%p253) target = $region48
      $region47: #{encoder_forward.1} parent=43 // pred_region
        %s256 = smul.u32 32, %s14
        %p257 = scmp.lt.s32.totalorder %s256, 63
        %s258 = scalar_select %p257, %s256, 63
        %s259 = smul.addr %s258, 2
        %s260 = smul.addr %s259, 4
        %s261 = scalar_lea.vmem %s0, %s260
        %s262 = smul.u32 32, %s14
      $region48: #{encoder_forward.1} parent=43 // pred_fallthru
        _
    $region44: #{encoder_forward.1} parent=5 // pred_fallthru
      _
    %p263 = scmp.le.s32.totalorder 1, %s14
    %p264 = scmp.lt.s32.totalorder %s14, 3
    %p265 = pnand %p263, %p264
    %p266 = pneg %p265
    // Predicated region
    $region49: #{encoder_forward.1} parent=5 // pred_check
      _
    $region50: #{encoder_forward.1} parent=5 // pred_check_branch
      %268 = sbr.rel (%p265) target = $region52
    $region51: #{encoder_forward.1} parent=5 // pred_region
      %s269 = ssub.s32 %s14, 1
      %s270 = smul.u32 32, %s19
      %p271 = scmp.lt.s32.totalorder %s270, 63
      %s272 = scalar_select %p271, %s270, 63
      %s273 = smul.addr %s272, 2
      %s274 = smul.addr %s273, 4
      %s275 = scalar_lea.vmem %s0, %s274
      %p276 = pneg %p40
      %p277 = pneg %p37
      %p278 = pneg %p61
      %p279 = pneg %p58
      %p280 = pneg %p82
      %p281 = pneg %p79
      %p282 = pneg %p103
      %p283 = pneg %p100
      %p284 = pneg %p124
      %p285 = pneg %p121
      %p286 = pneg %p145
      %p287 = pneg %p142
      %p288 = pneg %p166
      %p289 = pneg %p163
      %p290 = pneg %p187
      %p291 = pneg %p184
      %p292 = pneg %p213
      %p293 = pneg %p210
      %s294 = smul.u32 2, %s19
      %p295 = scmp.lt.s32.totalorder %s294, 3
      %s296 = scalar_select %p295, %s294, 3
      %s297 = smul.addr %s296, 8
      %s298 = scalar_lea.vmem %s8, %s297
      %s299 = smul.u32 32, %s19
      %p300 = scmp.lt.s32.totalorder %s299, 63
      %s301 = scalar_select %p300, %s299, 63
      %s302 = smul.addr %s301, 2
      %s303 = smul.addr %s302, 4
      %s304 = scalar_lea.vmem %s0, %s303
      %s305 = smul.u32 32, %s19
      %s306 = smul.u32 2, %s19
      %p307 = scmp.lt.s32.totalorder %s306, 3
      %s308 = scalar_select %p307, %s306, 3
      %s309 = smul.addr %s308, 8
      %s310 = scalar_lea.vmem %s8, %s309
      %s311 = smul.u32 2, %s19
      %v313 = vld [vmem:[%s1] sm:$0xff]
      %v314 = vld [vmem:[%s1 + $0x8] sm:$0xff]
      %v315 = vld [vmem:[%s1 + $0x10] sm:$0xff]
      %v316 = vld [vmem:[%s1 + $0x18] sm:$0xff]
      %v317 = vld [vmem:[%s1 + $0x20] sm:$0xff]
      %v318 = vld [vmem:[%s1 + $0x28] sm:$0xff]
      %v319 = vld [vmem:[%s1 + $0x30] sm:$0xff]
      %v320 = vld [vmem:[%s1 + $0x38] sm:$0xff]
      %v321 = vld [vmem:[%s1 + $0x40] sm:$0xff]
      %v322 = vld [vmem:[%s1 + $0x48] sm:$0xff]
      %v323 = vld [vmem:[%s1 + $0x50] sm:$0xff]
      %v324 = vld [vmem:[%s1 + $0x58] sm:$0xff]
      %v325 = vld [vmem:[%s1 + $0x60] sm:$0xff]
      %v326 = vld [vmem:[%s1 + $0x68] sm:$0xff]
      %v327 = vld [vmem:[%s1 + $0x70] sm:$0xff]
      %v328 = vld [vmem:[%s1 + $0x78] sm:$0xff]
      %v329 = vld [vmem:[%s304] sm:$0xff]
      %v330 = vld [vmem:[%s304 + $0x8] sm:$0xff]
      %v331 = vld [vmem:[%s304 + $0x10] sm:$0xff]
      %v332 = vld [vmem:[%s304 + $0x18] sm:$0xff]
      %v333 = vld [vmem:[%s304 + $0x20] sm:$0xff]
      %v334 = vld [vmem:[%s304 + $0x28] sm:$0xff]
      %v335 = vld [vmem:[%s304 + $0x30] sm:$0xff]
      %v336 = vld [vmem:[%s304 + $0x38] sm:$0xff]
      %v337 = vld [vmem:[%s304 + $0x40] sm:$0xff]
      %v338 = vld [vmem:[%s304 + $0x48] sm:$0xff]
      %v339 = vld [vmem:[%s304 + $0x50] sm:$0xff]
      %v340 = vld [vmem:[%s304 + $0x58] sm:$0xff]
      %v341 = vld [vmem:[%s304 + $0x60] sm:$0xff]
      %v342 = vld [vmem:[%s304 + $0x68] sm:$0xff]
      %v343 = vld [vmem:[%s304 + $0x70] sm:$0xff]
      %v344 = vld [vmem:[%s304 + $0x78] sm:$0xff]
      %v345 = vld [vmem:[%s304 + $0x80] sm:$0xff]
      %v346 = vld [vmem:[%s304 + $0x88] sm:$0xff]
      %v347 = vld [vmem:[%s304 + $0x90] sm:$0xff]
      %v348 = vld [vmem:[%s304 + $0x98] sm:$0xff]
      %v349 = vld [vmem:[%s304 + $0xa0] sm:$0xff]
      %v350 = vld [vmem:[%s304 + $0xa8] sm:$0xff]
      %v351 = vld [vmem:[%s304 + $0xb0] sm:$0xff]
      %v352 = vld [vmem:[%s304 + $0xb8] sm:$0xff]
      %v353 = vld [vmem:[%s304 + $0xc0] sm:$0xff]
      %v354 = vld [vmem:[%s304 + $0xc8] sm:$0xff]
      %v355 = vld [vmem:[%s304 + $0xd0] sm:$0xff]
      %v356 = vld [vmem:[%s304 + $0xd8] sm:$0xff]
      %v357 = vld [vmem:[%s304 + $0xe0] sm:$0xff]
      %v358 = vld [vmem:[%s304 + $0xe8] sm:$0xff]
      %v359 = vld [vmem:[%s304 + $0xf0] sm:$0xff]
      %v360 = vld [vmem:[%s304 + $0xf8] sm:$0xff]
      %v361 = vld [vmem:[%s2] sm:$0xff]
      %v362 = vld [vmem:[%s2 + $0x8] sm:$0xff]
      %v363 = vld [vmem:[%s2 + $0x10] sm:$0xff]
      %v364 = vld [vmem:[%s2 + $0x18] sm:$0xff]
      %v365 = vld [vmem:[%s2 + $0x20] sm:$0xff]
      %v366 = vld [vmem:[%s2 + $0x28] sm:$0xff]
      %v367 = vld [vmem:[%s2 + $0x30] sm:$0xff]
      %v368 = vld [vmem:[%s2 + $0x38] sm:$0xff]
      %v369 = vld [vmem:[%s2 + $0x40] sm:$0xff]
      %v370 = vld [vmem:[%s2 + $0x48] sm:$0xff]
      %v371 = vld [vmem:[%s2 + $0x50] sm:$0xff]
      %v372 = vld [vmem:[%s2 + $0x58] sm:$0xff]
      %v373 = vld [vmem:[%s2 + $0x60] sm:$0xff]
      %v374 = vld [vmem:[%s2 + $0x68] sm:$0xff]
      %v375 = vld [vmem:[%s2 + $0x70] sm:$0xff]
      %v376 = vld [vmem:[%s2 + $0x78] sm:$0xff]
      %378 = vset.pattern.permute.xlu0 0
      %379 = vperm.xlu0 %378, %v361
      %v380 = vpop.permute.xlu0 %379
      %383 = vset.pattern.permute.xlu0 0
      %384 = vperm.xlu0 %383, %v362
      %v385 = vpop.permute.xlu0 %384
      %388 = vset.pattern.permute.xlu0 0
      %389 = vperm.xlu0 %388, %v363
      %v390 = vpop.permute.xlu0 %389
      %393 = vset.pattern.permute.xlu0 0
      %394 = vperm.xlu0 %393, %v364
      %v395 = vpop.permute.xlu0 %394
      %398 = vset.pattern.permute.xlu0 0
      %399 = vperm.xlu0 %398, %v365
      %v400 = vpop.permute.xlu0 %399
      %403 = vset.pattern.permute.xlu0 0
      %404 = vperm.xlu0 %403, %v366
      %v405 = vpop.permute.xlu0 %404
      %408 = vset.pattern.permute.xlu0 0
      %409 = vperm.xlu0 %408, %v367
      %v410 = vpop.permute.xlu0 %409
      %413 = vset.pattern.permute.xlu0 0
      %414 = vperm.xlu0 %413, %v368
      %v415 = vpop.permute.xlu0 %414
      %418 = vset.pattern.permute.xlu0 0
      %419 = vperm.xlu0 %418, %v369
      %v420 = vpop.permute.xlu0 %419
      %423 = vset.pattern.permute.xlu0 0
      %424 = vperm.xlu0 %423, %v370
      %v425 = vpop.permute.xlu0 %424
      %428 = vset.pattern.permute.xlu0 0
      %429 = vperm.xlu0 %428, %v371
      %v430 = vpop.permute.xlu0 %429
      %433 = vset.pattern.permute.xlu0 0
      %434 = vperm.xlu0 %433, %v372
      %v435 = vpop.permute.xlu0 %434
      %438 = vset.pattern.permute.xlu0 0
      %439 = vperm.xlu0 %438, %v373
      %v440 = vpop.permute.xlu0 %439
      %443 = vset.pattern.permute.xlu0 0
      %444 = vperm.xlu0 %443, %v374
      %v445 = vpop.permute.xlu0 %444
      %448 = vset.pattern.permute.xlu0 0
      %449 = vperm.xlu0 %448, %v375
      %v450 = vpop.permute.xlu0 %449
      %453 = vset.pattern.permute.xlu0 0
      %454 = vperm.xlu0 %453, %v376
      %v455 = vpop.permute.xlu0 %454
      %v473 = vunpack.c.l.b16 %v313
      %v474 = vunpack.c.h.b16 %v313
      %v475 = vunpack.c.l.b16 %v314
      %v476 = vunpack.c.h.b16 %v314
      %v477 = vunpack.c.l.b16 %v315
      %v478 = vunpack.c.h.b16 %v315
      %v479 = vunpack.c.l.b16 %v316
      %v480 = vunpack.c.h.b16 %v316
      %v481 = vunpack.c.l.b16 %v317
      %v482 = vunpack.c.h.b16 %v317
      %v483 = vunpack.c.l.b16 %v318
      %v484 = vunpack.c.h.b16 %v318
      %v485 = vunpack.c.l.b16 %v319
      %v486 = vunpack.c.h.b16 %v319
      %v487 = vunpack.c.l.b16 %v320
      %v488 = vunpack.c.h.b16 %v320
      %v489 = vunpack.c.l.b16 %v321
      %v490 = vunpack.c.h.b16 %v321
      %v491 = vunpack.c.l.b16 %v322
      %v492 = vunpack.c.h.b16 %v322
      %v493 = vunpack.c.l.b16 %v323
      %v494 = vunpack.c.h.b16 %v323
      %v495 = vunpack.c.l.b16 %v324
      %v496 = vunpack.c.h.b16 %v324
      %v497 = vunpack.c.l.b16 %v325
      %v498 = vunpack.c.h.b16 %v325
      %v499 = vunpack.c.l.b16 %v326
      %v500 = vunpack.c.h.b16 %v326
      %v501 = vunpack.c.l.b16 %v327
      %v502 = vunpack.c.h.b16 %v327
      %v503 = vunpack.c.l.b16 %v328
      %v504 = vunpack.c.h.b16 %v328
      %v505 = vpack.c.b16 %v475, %v473
      %v506 = vpack.c.b16 %v476, %v474
      %v507 = vpack.c.b16 %v479, %v477
      %v508 = vpack.c.b16 %v480, %v478
      %v509 = vpack.c.b16 %v483, %v481
      %v510 = vpack.c.b16 %v484, %v482
      %v511 = vpack.c.b16 %v487, %v485
      %v512 = vpack.c.b16 %v488, %v486
      %v513 = vpack.c.b16 %v491, %v489
      %v514 = vpack.c.b16 %v492, %v490
      %v515 = vpack.c.b16 %v495, %v493
      %v516 = vpack.c.b16 %v496, %v494
      %v517 = vpack.c.b16 %v499, %v497
      %v518 = vpack.c.b16 %v500, %v498
      %v519 = vpack.c.b16 %v503, %v501
      %v520 = vpack.c.b16 %v504, %v502
      %v569 = vunpack.c.l.b16 %v329
      %v570 = vunpack.c.h.b16 %v329
      %v571 = vunpack.c.l.b16 %v330
      %v572 = vunpack.c.h.b16 %v330
      %v573 = vunpack.c.l.b16 %v331
      %v574 = vunpack.c.h.b16 %v331
      %v575 = vunpack.c.l.b16 %v332
      %v576 = vunpack.c.h.b16 %v332
      %v577 = vunpack.c.l.b16 %v333
      %v578 = vunpack.c.h.b16 %v333
      %v579 = vunpack.c.l.b16 %v334
      %v580 = vunpack.c.h.b16 %v334
      %v581 = vunpack.c.l.b16 %v335
      %v582 = vunpack.c.h.b16 %v335
      %v583 = vunpack.c.l.b16 %v336
      %v584 = vunpack.c.h.b16 %v336
      %v585 = vunpack.c.l.b16 %v337
      %v586 = vunpack.c.h.b16 %v337
      %v587 = vunpack.c.l.b16 %v338
      %v588 = vunpack.c.h.b16 %v338
      %v589 = vunpack.c.l.b16 %v339
      %v590 = vunpack.c.h.b16 %v339
      %v591 = vunpack.c.l.b16 %v340
      %v592 = vunpack.c.h.b16 %v340
      %v593 = vunpack.c.l.b16 %v341
      %v594 = vunpack.c.h.b16 %v341
      %v595 = vunpack.c.l.b16 %v342
      %v596 = vunpack.c.h.b16 %v342
      %v597 = vunpack.c.l.b16 %v343
      %v598 = vunpack.c.h.b16 %v343
      %v599 = vunpack.c.l.b16 %v344
      %v600 = vunpack.c.h.b16 %v344
      %v601 = vunpack.c.l.b16 %v345
      %v602 = vunpack.c.h.b16 %v345
      %v603 = vunpack.c.l.b16 %v346
      %v604 = vunpack.c.h.b16 %v346
      %v605 = vunpack.c.l.b16 %v347
      %v606 = vunpack.c.h.b16 %v347
      %v607 = vunpack.c.l.b16 %v348
      %v608 = vunpack.c.h.b16 %v348
      %v609 = vunpack.c.l.b16 %v349
      %v610 = vunpack.c.h.b16 %v349
      %v611 = vunpack.c.l.b16 %v350
      %v612 = vunpack.c.h.b16 %v350
      %v613 = vunpack.c.l.b16 %v351
      %v614 = vunpack.c.h.b16 %v351
      %v615 = vunpack.c.l.b16 %v352
      %v616 = vunpack.c.h.b16 %v352
      %v617 = vunpack.c.l.b16 %v353
      %v618 = vunpack.c.h.b16 %v353
      %v619 = vunpack.c.l.b16 %v354
      %v620 = vunpack.c.h.b16 %v354
      %v621 = vunpack.c.l.b16 %v355
      %v622 = vunpack.c.h.b16 %v355
      %v623 = vunpack.c.l.b16 %v356
      %v624 = vunpack.c.h.b16 %v356
      %v625 = vunpack.c.l.b16 %v357
      %v626 = vunpack.c.h.b16 %v357
      %v627 = vunpack.c.l.b16 %v358
      %v628 = vunpack.c.h.b16 %v358
      %v629 = vunpack.c.l.b16 %v359
      %v630 = vunpack.c.h.b16 %v359
      %v631 = vunpack.c.l.b16 %v360
      %v632 = vunpack.c.h.b16 %v360
      %v633 = vpack.c.b16 %v571, %v569
      %v634 = vpack.c.b16 %v572, %v570
      %v635 = vpack.c.b16 %v575, %v573
      %v636 = vpack.c.b16 %v576, %v574
      %v637 = vpack.c.b16 %v579, %v577
      %v638 = vpack.c.b16 %v580, %v578
      %v639 = vpack.c.b16 %v583, %v581
      %v640 = vpack.c.b16 %v584, %v582
      %v641 = vpack.c.b16 %v587, %v585
      %v642 = vpack.c.b16 %v588, %v586
      %v643 = vpack.c.b16 %v591, %v589
      %v644 = vpack.c.b16 %v592, %v590
      %v645 = vpack.c.b16 %v595, %v593
      %v646 = vpack.c.b16 %v596, %v594
      %v647 = vpack.c.b16 %v599, %v597
      %v648 = vpack.c.b16 %v600, %v598
      %v649 = vpack.c.b16 %v603, %v601
      %v650 = vpack.c.b16 %v604, %v602
      %v651 = vpack.c.b16 %v607, %v605
      %v652 = vpack.c.b16 %v608, %v606
      %v653 = vpack.c.b16 %v611, %v609
      %v654 = vpack.c.b16 %v612, %v610
      %v655 = vpack.c.b16 %v615, %v613
      %v656 = vpack.c.b16 %v616, %v614
      %v657 = vpack.c.b16 %v619, %v617
      %v658 = vpack.c.b16 %v620, %v618
      %v659 = vpack.c.b16 %v623, %v621
      %v660 = vpack.c.b16 %v624, %v622
      %v661 = vpack.c.b16 %v627, %v625
      %v662 = vpack.c.b16 %v628, %v626
      %v663 = vpack.c.b16 %v631, %v629
      %v664 = vpack.c.b16 %v632, %v630
      %697 = vmatpush.bf16.msra.mxu0 %v647
      %698 = vmatpush.bf16.msra.mxu0 %v645
      %699 = vmatpush.bf16.msra.mxu0 %v643
      %700 = vmatpush.bf16.msra.mxu0 %v641
      %701 = vmatpush.bf16.msra.mxu0 %v639
      %702 = vmatpush.bf16.msra.mxu0 %v637
      %703 = vmatpush.bf16.msra.mxu0 %v635
      %704 = vmatpush.bf16.msra.mxu0 %v633
      %705 = vmatmul.bf16.gmra.mxu0 %v505
      %v706 = vpop.f32.mrf.mxu0
      %v707 = vadd.f32 %v380, %v706
      %v708 = vpop.f32.mrf.mxu0
      %v709 = vadd.f32 %v385, %v708
      %710 = vmatmul.bf16.gmra.mxu0 %v507
      %v711 = vpop.f32.mrf.mxu0
      %v712 = vadd.f32 %v390, %v711
      %v713 = vpop.f32.mrf.mxu0
      %v714 = vadd.f32 %v395, %v713
      %715 = vmatmul.bf16.gmra.mxu0 %v509
      %v716 = vpop.f32.mrf.mxu0
      %v717 = vadd.f32 %v400, %v716
      %v718 = vpop.f32.mrf.mxu0
      %v719 = vadd.f32 %v405, %v718
      %720 = vmatmul.bf16.gmra.mxu0 %v511
      %v721 = vpop.f32.mrf.mxu0
      %v722 = vadd.f32 %v410, %v721
      %v723 = vpop.f32.mrf.mxu0
      %v724 = vadd.f32 %v415, %v723
      %725 = vmatmul.bf16.gmra.mxu0 %v513
      %v726 = vpop.f32.mrf.mxu0
      %v727 = vadd.f32 %v420, %v726
      %v728 = vpop.f32.mrf.mxu0
      %v729 = vadd.f32 %v425, %v728
      %730 = vmatmul.bf16.gmra.mxu0 %v515
      %v731 = vpop.f32.mrf.mxu0
      %v732 = vadd.f32 %v430, %v731
      %v733 = vpop.f32.mrf.mxu0
      %v734 = vadd.f32 %v435, %v733
      %735 = vmatmul.bf16.gmra.mxu0 %v517
      %v736 = vpop.f32.mrf.mxu0
      %v737 = vadd.f32 %v440, %v736
      %v738 = vpop.f32.mrf.mxu0
      %v739 = vadd.f32 %v445, %v738
      %740 = vmatmul.bf16.gmra.mxu0 %v519
      %v741 = vpop.f32.mrf.mxu0
      %v742 = vadd.f32 %v450, %v741
      %v743 = vpop.f32.mrf.mxu0
      %v744 = vadd.f32 %v455, %v743
      %745 = vdwg.mxu0
      %746 = vmatpush.bf16.msra.mxu0 %v663
      %747 = vmatpush.bf16.msra.mxu0 %v661
      %748 = vmatpush.bf16.msra.mxu0 %v659
      %749 = vmatpush.bf16.msra.mxu0 %v657
      %750 = vmatpush.bf16.msra.mxu0 %v655
      %751 = vmatpush.bf16.msra.mxu0 %v653
      %752 = vmatpush.bf16.msra.mxu0 %v651
      %753 = vmatpush.bf16.msra.mxu0 %v649
      %754 = vmatmul.bf16.gmra.mxu0 %v506
      %v755 = vpop.f32.mrf.mxu0
      %v756 = vadd.f32 %v707, %v755
      %v757 = vpop.f32.mrf.mxu0
      %v758 = vadd.f32 %v709, %v757
      %759 = vmatmul.bf16.gmra.mxu0 %v508
      %v760 = vpop.f32.mrf.mxu0
      %v761 = vadd.f32 %v712, %v760
      %v762 = vpop.f32.mrf.mxu0
      %v763 = vadd.f32 %v714, %v762
      %764 = vmatmul.bf16.gmra.mxu0 %v510
      %v765 = vpop.f32.mrf.mxu0
      %v766 = vadd.f32 %v717, %v765
      %v767 = vpop.f32.mrf.mxu0
      %v768 = vadd.f32 %v719, %v767
      %769 = vmatmul.bf16.gmra.mxu0 %v512
      %v770 = vpop.f32.mrf.mxu0
      %v771 = vadd.f32 %v722, %v770
      %v772 = vpop.f32.mrf.mxu0
      %v773 = vadd.f32 %v724, %v772
      %774 = vmatmul.bf16.gmra.mxu0 %v514
      %v775 = vpop.f32.mrf.mxu0
      %v776 = vadd.f32 %v727, %v775
      %v777 = vpop.f32.mrf.mxu0
      %v778 = vadd.f32 %v729, %v777
      %779 = vmatmul.bf16.gmra.mxu0 %v516
      %v780 = vpop.f32.mrf.mxu0
      %v781 = vadd.f32 %v732, %v780
      %v782 = vpop.f32.mrf.mxu0
      %v783 = vadd.f32 %v734, %v782
      %784 = vmatmul.bf16.gmra.mxu0 %v518
      %v785 = vpop.f32.mrf.mxu0
      %v786 = vadd.f32 %v737, %v785
      %v787 = vpop.f32.mrf.mxu0
      %v788 = vadd.f32 %v739, %v787
      %789 = vmatmul.bf16.gmra.mxu0 %v520
      %v790 = vpop.f32.mrf.mxu0
      %v791 = vadd.f32 %v742, %v790
      %v792 = vpop.f32.mrf.mxu0
      %v793 = vadd.f32 %v744, %v792
      %794 = vdwg.mxu0
      %795 = vmatpush.bf16.msra.mxu0 %v648
      %796 = vmatpush.bf16.msra.mxu0 %v646
      %797 = vmatpush.bf16.msra.mxu0 %v644
      %798 = vmatpush.bf16.msra.mxu0 %v642
      %799 = vmatpush.bf16.msra.mxu0 %v640
      %800 = vmatpush.bf16.msra.mxu0 %v638
      %801 = vmatpush.bf16.msra.mxu0 %v636
      %802 = vmatpush.bf16.msra.mxu0 %v634
      %803 = vmatmul.bf16.gmra.mxu0 %v505
      %v804 = vpop.f32.mrf.mxu0
      %v805 = vadd.f32 %v380, %v804
      %v806 = vpop.f32.mrf.mxu0
      %v807 = vadd.f32 %v385, %v806
      %808 = vmatmul.bf16.gmra.mxu0 %v507
      %v809 = vpop.f32.mrf.mxu0
      %v810 = vadd.f32 %v390, %v809
      %v811 = vpop.f32.mrf.mxu0
      %v812 = vadd.f32 %v395, %v811
      %813 = vmatmul.bf16.gmra.mxu0 %v509
      %v814 = vpop.f32.mrf.mxu0
      %v815 = vadd.f32 %v400, %v814
      %v816 = vpop.f32.mrf.mxu0
      %v817 = vadd.f32 %v405, %v816
      %818 = vmatmul.bf16.gmra.mxu0 %v511
      %v819 = vpop.f32.mrf.mxu0
      %v820 = vadd.f32 %v410, %v819
      %v821 = vpop.f32.mrf.mxu0
      %v822 = vadd.f32 %v415, %v821
      %823 = vmatmul.bf16.gmra.mxu0 %v513
      %v824 = vpop.f32.mrf.mxu0
      %v825 = vadd.f32 %v420, %v824
      %v826 = vpop.f32.mrf.mxu0
      %v827 = vadd.f32 %v425, %v826
      %828 = vmatmul.bf16.gmra.mxu0 %v515
      %v829 = vpop.f32.mrf.mxu0
      %v830 = vadd.f32 %v430, %v829
      %v831 = vpop.f32.mrf.mxu0
      %v832 = vadd.f32 %v435, %v831
      %833 = vmatmul.bf16.gmra.mxu0 %v517
      %v834 = vpop.f32.mrf.mxu0
      %v835 = vadd.f32 %v440, %v834
      %v836 = vpop.f32.mrf.mxu0
      %v837 = vadd.f32 %v445, %v836
      %838 = vmatmul.bf16.gmra.mxu0 %v519
      %v839 = vpop.f32.mrf.mxu0
      %v840 = vadd.f32 %v450, %v839
      %v841 = vpop.f32.mrf.mxu0
      %v842 = vadd.f32 %v455, %v841
      %843 = vdwg.mxu0
      %844 = vmatpush.bf16.msra.mxu0 %v664
      %845 = vmatpush.bf16.msra.mxu0 %v662
      %846 = vmatpush.bf16.msra.mxu0 %v660
      %847 = vmatpush.bf16.msra.mxu0 %v658
      %848 = vmatpush.bf16.msra.mxu0 %v656
      %849 = vmatpush.bf16.msra.mxu0 %v654
      %850 = vmatpush.bf16.msra.mxu0 %v652
      %851 = vmatpush.bf16.msra.mxu0 %v650
      %852 = vmatmul.bf16.gmra.mxu0 %v506
      %v853 = vpop.f32.mrf.mxu0
      %v854 = vadd.f32 %v805, %v853
      %v855 = vpop.f32.mrf.mxu0
      %v856 = vadd.f32 %v807, %v855
      %857 = vmatmul.bf16.gmra.mxu0 %v508
      %v858 = vpop.f32.mrf.mxu0
      %v859 = vadd.f32 %v810, %v858
      %v860 = vpop.f32.mrf.mxu0
      %v861 = vadd.f32 %v812, %v860
      %862 = vmatmul.bf16.gmra.mxu0 %v510
      %v863 = vpop.f32.mrf.mxu0
      %v864 = vadd.f32 %v815, %v863
      %v865 = vpop.f32.mrf.mxu0
      %v866 = vadd.f32 %v817, %v865
      %867 = vmatmul.bf16.gmra.mxu0 %v512
      %v868 = vpop.f32.mrf.mxu0
      %v869 = vadd.f32 %v820, %v868
      %v870 = vpop.f32.mrf.mxu0
      %v871 = vadd.f32 %v822, %v870
      %872 = vmatmul.bf16.gmra.mxu0 %v514
      %v873 = vpop.f32.mrf.mxu0
      %v874 = vadd.f32 %v825, %v873
      %v875 = vpop.f32.mrf.mxu0
      %v876 = vadd.f32 %v827, %v875
      %877 = vmatmul.bf16.gmra.mxu0 %v516
      %v878 = vpop.f32.mrf.mxu0
      %v879 = vadd.f32 %v830, %v878
      %v880 = vpop.f32.mrf.mxu0
      %v881 = vadd.f32 %v832, %v880
      %882 = vmatmul.bf16.gmra.mxu0 %v518
      %v883 = vpop.f32.mrf.mxu0
      %v884 = vadd.f32 %v835, %v883
      %v885 = vpop.f32.mrf.mxu0
      %v886 = vadd.f32 %v837, %v885
      %887 = vmatmul.bf16.gmra.mxu0 %v520
      %v888 = vpop.f32.mrf.mxu0
      %v889 = vadd.f32 %v840, %v888
      %v890 = vpop.f32.mrf.mxu0
      %v891 = vadd.f32 %v842, %v890
      %892 = vdwg.mxu0
      %v893 = vmax.f32 %v756, 0.0
      %v894 = vmax.f32 %v854, 0.0
      %v895 = vmax.f32 %v758, 0.0
      %v896 = vmax.f32 %v856, 0.0
      %v897 = vmax.f32 %v761, 0.0
      %v898 = vmax.f32 %v859, 0.0
      %v899 = vmax.f32 %v763, 0.0
      %v900 = vmax.f32 %v861, 0.0
      %v901 = vmax.f32 %v766, 0.0
      %v902 = vmax.f32 %v864, 0.0
      %v903 = vmax.f32 %v768, 0.0
      %v904 = vmax.f32 %v866, 0.0
      %v905 = vmax.f32 %v771, 0.0
      %v906 = vmax.f32 %v869, 0.0
      %v907 = vmax.f32 %v773, 0.0
      %v908 = vmax.f32 %v871, 0.0
      %v909 = vmax.f32 %v776, 0.0
      %v910 = vmax.f32 %v874, 0.0
      %v911 = vmax.f32 %v778, 0.0
      %v912 = vmax.f32 %v876, 0.0
      %v913 = vmax.f32 %v781, 0.0
      %v914 = vmax.f32 %v879, 0.0
      %v915 = vmax.f32 %v783, 0.0
      %v916 = vmax.f32 %v881, 0.0
      %v917 = vmax.f32 %v786, 0.0
      %v918 = vmax.f32 %v884, 0.0
      %v919 = vmax.f32 %v788, 0.0
      %v920 = vmax.f32 %v886, 0.0
      %v921 = vmax.f32 %v791, 0.0
      %v922 = vmax.f32 %v889, 0.0
      %v923 = vmax.f32 %v793, 0.0
      %v924 = vmax.f32 %v891, 0.0
      %v925 = vpack.c.bf16 %v895, %v893
      %v926 = vpack.c.bf16 %v896, %v894
      %v927 = vpack.c.bf16 %v899, %v897
      %v928 = vpack.c.bf16 %v900, %v898
      %v929 = vpack.c.bf16 %v903, %v901
      %v930 = vpack.c.bf16 %v904, %v902
      %v931 = vpack.c.bf16 %v907, %v905
      %v932 = vpack.c.bf16 %v908, %v906
      %v933 = vpack.c.bf16 %v911, %v909
      %v934 = vpack.c.bf16 %v912, %v910
      %v935 = vpack.c.bf16 %v915, %v913
      %v936 = vpack.c.bf16 %v916, %v914
      %v937 = vpack.c.bf16 %v919, %v917
      %v938 = vpack.c.bf16 %v920, %v918
      %v939 = vpack.c.bf16 %v923, %v921
      %v940 = vpack.c.bf16 %v924, %v922
      %v941 = vld [vmem:[%s3] sm:$0xf]
      %v942 = vld [vmem:[%s3 + $0x4] sm:$0xf]
      %v943 = vld [vmem:[%s3 + $0x8] sm:$0xf]
      %v944 = vld [vmem:[%s3 + $0xc] sm:$0xf]
      %v945 = vld [vmem:[%s3 + $0x10] sm:$0xf]
      %v946 = vld [vmem:[%s3 + $0x14] sm:$0xf]
      %v947 = vld [vmem:[%s3 + $0x18] sm:$0xf]
      %v948 = vld [vmem:[%s3 + $0x1c] sm:$0xf]
      %v949 = vld [vmem:[%s3 + $0x20] sm:$0xf]
      %v950 = vld [vmem:[%s3 + $0x24] sm:$0xf]
      %v951 = vld [vmem:[%s3 + $0x28] sm:$0xf]
      %v952 = vld [vmem:[%s3 + $0x2c] sm:$0xf]
      %v953 = vld [vmem:[%s3 + $0x30] sm:$0xf]
      %v954 = vld [vmem:[%s3 + $0x34] sm:$0xf]
      %v955 = vld [vmem:[%s3 + $0x38] sm:$0xf]
      %v956 = vld [vmem:[%s3 + $0x3c] sm:$0xf]
      %v957 = vld [vmem:[%s3 + $0x40] sm:$0xf]
      %v958 = vld [vmem:[%s3 + $0x44] sm:$0xf]
      %v959 = vld [vmem:[%s3 + $0x48] sm:$0xf]
      %v960 = vld [vmem:[%s3 + $0x4c] sm:$0xf]
      %v961 = vld [vmem:[%s3 + $0x50] sm:$0xf]
      %v962 = vld [vmem:[%s3 + $0x54] sm:$0xf]
      %v963 = vld [vmem:[%s3 + $0x58] sm:$0xf]
      %v964 = vld [vmem:[%s3 + $0x5c] sm:$0xf]
      %v965 = vld [vmem:[%s3 + $0x60] sm:$0x3]
      %v991 = vunpack.c.l.b16 %v941
      %v992 = vunpack.c.l.b16 %v942
      %v993 = vunpack.c.l.b16 %v943
      %v994 = vunpack.c.l.b16 %v944
      %v995 = vunpack.c.l.b16 %v945
      %v996 = vunpack.c.l.b16 %v946
      %v997 = vunpack.c.l.b16 %v947
      %v998 = vunpack.c.l.b16 %v948
      %v999 = vunpack.c.l.b16 %v949
      %v1000 = vunpack.c.l.b16 %v950
      %v1001 = vunpack.c.l.b16 %v951
      %v1002 = vunpack.c.l.b16 %v952
      %v1003 = vunpack.c.l.b16 %v953
      %v1004 = vunpack.c.l.b16 %v954
      %v1005 = vunpack.c.l.b16 %v955
      %v1006 = vunpack.c.l.b16 %v956
      %v1007 = vunpack.c.l.b16 %v957
      %v1008 = vunpack.c.l.b16 %v958
      %v1009 = vunpack.c.l.b16 %v959
      %v1010 = vunpack.c.l.b16 %v960
      %v1011 = vunpack.c.l.b16 %v961
      %v1012 = vunpack.c.l.b16 %v962
      %v1013 = vunpack.c.l.b16 %v963
      %v1014 = vunpack.c.l.b16 %v964
      %v1015 = vunpack.c.l.b16 %v965
      %v1016 = vpack.c.b16 %v992, %v991
      %v1017 = vpack.c.b16 %v994, %v993
      %v1018 = vpack.c.b16 %v996, %v995
      %v1019 = vpack.c.b16 %v998, %v997
      %v1020 = vpack.c.b16 %v1000, %v999
      %v1021 = vpack.c.b16 %v1002, %v1001
      %v1022 = vpack.c.b16 %v1004, %v1003
      %v1023 = vpack.c.b16 %v1006, %v1005
      %v1024 = vpack.c.b16 %v1008, %v1007
      %v1025 = vpack.c.b16 %v1010, %v1009
      %v1026 = vpack.c.b16 %v1012, %v1011
      %v1027 = vpack.c.b16 %v1014, %v1013
      %v1028 = vpack.c.b16 %v1015, %v1015
      %vm1041 = vcmask 556032
      %v1043 = vsel %vm1041, %v926, 0
      %v1046 = vsel %vm1041, %v928, 0
      %v1049 = vsel %vm1041, %v930, 0
      %v1052 = vsel %vm1041, %v932, 0
      %v1055 = vsel %vm1041, %v934, 0
      %v1058 = vsel %vm1041, %v936, 0
      %v1061 = vsel %vm1041, %v938, 0
      %v1064 = vsel %vm1041, %v940, 0
      %vm1066 = vcmask 1041408
      %v1068 = vsel %vm1066, %v1028, 0
      %1070 = vmatpush.bf16.msra.mxu0 %v1023
      %1071 = vmatpush.bf16.msra.mxu0 %v1022
      %1072 = vmatpush.bf16.msra.mxu0 %v1021
      %1073 = vmatpush.bf16.msra.mxu0 %v1020
      %1074 = vmatpush.bf16.msra.mxu0 %v1019
      %1075 = vmatpush.bf16.msra.mxu0 %v1018
      %1076 = vmatpush.bf16.msra.mxu0 %v1017
      %1077 = vmatpush.bf16.msra.mxu0 %v1016
      %1078 = vmatmul.bf16.gmra.mxu0 %v925
      %v1079 = vpop.f32.mrf.mxu0
      %v1080 = vadd.f32 0.0, %v1079
      %v1081 = vpop.f32.mrf.mxu0
      %v1082 = vadd.f32 0.0, %v1081
      %1083 = vmatmul.bf16.gmra.mxu0 %v927
      %v1084 = vpop.f32.mrf.mxu0
      %v1085 = vadd.f32 0.0, %v1084
      %v1086 = vpop.f32.mrf.mxu0
      %v1087 = vadd.f32 0.0, %v1086
      %1088 = vmatmul.bf16.gmra.mxu0 %v929
      %v1089 = vpop.f32.mrf.mxu0
      %v1090 = vadd.f32 0.0, %v1089
      %v1091 = vpop.f32.mrf.mxu0
      %v1092 = vadd.f32 0.0, %v1091
      %1093 = vmatmul.bf16.gmra.mxu0 %v931
      %v1094 = vpop.f32.mrf.mxu0
      %v1095 = vadd.f32 0.0, %v1094
      %v1096 = vpop.f32.mrf.mxu0
      %v1097 = vadd.f32 0.0, %v1096
      %1098 = vmatmul.bf16.gmra.mxu0 %v933
      %v1099 = vpop.f32.mrf.mxu0
      %v1100 = vadd.f32 0.0, %v1099
      %v1101 = vpop.f32.mrf.mxu0
      %v1102 = vadd.f32 0.0, %v1101
      %1103 = vmatmul.bf16.gmra.mxu0 %v935
      %v1104 = vpop.f32.mrf.mxu0
      %v1105 = vadd.f32 0.0, %v1104
      %v1106 = vpop.f32.mrf.mxu0
      %v1107 = vadd.f32 0.0, %v1106
      %1108 = vmatmul.bf16.gmra.mxu0 %v937
      %v1109 = vpop.f32.mrf.mxu0
      %v1110 = vadd.f32 0.0, %v1109
      %v1111 = vpop.f32.mrf.mxu0
      %v1112 = vadd.f32 0.0, %v1111
      %1113 = vmatmul.bf16.gmra.mxu0 %v939
      %v1114 = vpop.f32.mrf.mxu0
      %v1115 = vadd.f32 0.0, %v1114
      %v1116 = vpop.f32.mrf.mxu0
      %v1117 = vadd.f32 0.0, %v1116
      %1118 = vdwg.mxu0
      %1119 = vmatpush.bf16.msra.mxu0 0
      %1120 = vmatpush.bf16.msra.mxu0 0
      %1121 = vmatpush.bf16.msra.mxu0 0
      %1122 = vmatpush.bf16.msra.mxu0 %v1068
      %1123 = vmatpush.bf16.msra.mxu0 %v1027
      %1124 = vmatpush.bf16.msra.mxu0 %v1026
      %1125 = vmatpush.bf16.msra.mxu0 %v1025
      %1126 = vmatpush.bf16.msra.mxu0 %v1024
      %1127 = vmatmul.bf16.gmra.mxu0 %v1043
      %v1128 = vpop.f32.mrf.mxu0
      %v1129 = vadd.f32 %v1080, %v1128
      %v1130 = vpop.f32.mrf.mxu0
      %v1131 = vadd.f32 %v1082, %v1130
      %1132 = vmatmul.bf16.gmra.mxu0 %v1046
      %v1133 = vpop.f32.mrf.mxu0
      %v1134 = vadd.f32 %v1085, %v1133
      %v1135 = vpop.f32.mrf.mxu0
      %v1136 = vadd.f32 %v1087, %v1135
      %1137 = vmatmul.bf16.gmra.mxu0 %v1049
      %v1138 = vpop.f32.mrf.mxu0
      %v1139 = vadd.f32 %v1090, %v1138
      %v1140 = vpop.f32.mrf.mxu0
      %v1141 = vadd.f32 %v1092, %v1140
      %1142 = vmatmul.bf16.gmra.mxu0 %v1052
      %v1143 = vpop.f32.mrf.mxu0
      %v1144 = vadd.f32 %v1095, %v1143
      %v1145 = vpop.f32.mrf.mxu0
      %v1146 = vadd.f32 %v1097, %v1145
      %1147 = vmatmul.bf16.gmra.mxu0 %v1055
      %v1148 = vpop.f32.mrf.mxu0
      %v1149 = vadd.f32 %v1100, %v1148
      %v1150 = vpop.f32.mrf.mxu0
      %v1151 = vadd.f32 %v1102, %v1150
      %1152 = vmatmul.bf16.gmra.mxu0 %v1058
      %v1153 = vpop.f32.mrf.mxu0
      %v1154 = vadd.f32 %v1105, %v1153
      %v1155 = vpop.f32.mrf.mxu0
      %v1156 = vadd.f32 %v1107, %v1155
      %1157 = vmatmul.bf16.gmra.mxu0 %v1061
      %v1158 = vpop.f32.mrf.mxu0
      %v1159 = vadd.f32 %v1110, %v1158
      %v1160 = vpop.f32.mrf.mxu0
      %v1161 = vadd.f32 %v1112, %v1160
      %1162 = vmatmul.bf16.gmra.mxu0 %v1064
      %v1163 = vpop.f32.mrf.mxu0
      %v1164 = vadd.f32 %v1115, %v1163
      %v1165 = vpop.f32.mrf.mxu0
      %v1166 = vadd.f32 %v1117, %v1165
      %1167 = vdwg.mxu0
      %v1168 = vpack.c.bf16 %v1129, %v1129
      %v1169 = vpack.c.bf16 %v1131, %v1131
      %v1170 = vpack.c.bf16 %v1134, %v1134
      %v1171 = vpack.c.bf16 %v1136, %v1136
      %v1172 = vpack.c.bf16 %v1139, %v1139
      %v1173 = vpack.c.bf16 %v1141, %v1141
      %v1174 = vpack.c.bf16 %v1144, %v1144
      %v1175 = vpack.c.bf16 %v1146, %v1146
      %v1176 = vpack.c.bf16 %v1149, %v1149
      %v1177 = vpack.c.bf16 %v1151, %v1151
      %v1178 = vpack.c.bf16 %v1154, %v1154
      %v1179 = vpack.c.bf16 %v1156, %v1156
      %v1180 = vpack.c.bf16 %v1159, %v1159
      %v1181 = vpack.c.bf16 %v1161, %v1161
      %v1182 = vpack.c.bf16 %v1164, %v1164
      %v1183 = vpack.c.bf16 %v1166, %v1166
      %1184 = vst [vmem:[#allocation2] sm:$0xf] %v1168
      %1185 = vst [vmem:[#allocation2 + $0x4] sm:$0xf] %v1169
      %1186 = vst [vmem:[#allocation2 + $0x8] sm:$0xf] %v1170
      %1187 = vst [vmem:[#allocation2 + $0xc] sm:$0xf] %v1171
      %1188 = vst [vmem:[#allocation2 + $0x10] sm:$0xf] %v1172
      %1189 = vst [vmem:[#allocation2 + $0x14] sm:$0xf] %v1173
      %1190 = vst [vmem:[#allocation2 + $0x18] sm:$0xf] %v1174
      %1191 = vst [vmem:[#allocation2 + $0x1c] sm:$0xf] %v1175
      %1192 = vst [vmem:[#allocation2 + $0x20] sm:$0xf] %v1176
      %1193 = vst [vmem:[#allocation2 + $0x24] sm:$0xf] %v1177
      %1194 = vst [vmem:[#allocation2 + $0x28] sm:$0xf] %v1178
      %1195 = vst [vmem:[#allocation2 + $0x2c] sm:$0xf] %v1179
      %1196 = vst [vmem:[#allocation2 + $0x30] sm:$0xf] %v1180
      %1197 = vst [vmem:[#allocation2 + $0x34] sm:$0xf] %v1181
      %1198 = vst [vmem:[#allocation2 + $0x38] sm:$0xf] %v1182
      %1199 = vst [vmem:[#allocation2 + $0x3c] sm:$0xf] %v1183
      %s1200 = scalar_lea.vmem %s3, 100
      %v1201 = vld [vmem:[%s1200] sm:$0xf]
      %v1202 = vld [vmem:[%s1200 + $0x4] sm:$0xf]
      %v1203 = vld [vmem:[%s1200 + $0x8] sm:$0xf]
      %v1204 = vld [vmem:[%s1200 + $0xc] sm:$0xf]
      %v1205 = vld [vmem:[%s1200 + $0x10] sm:$0xf]
      %v1206 = vld [vmem:[%s1200 + $0x14] sm:$0xf]
      %v1207 = vld [vmem:[%s1200 + $0x18] sm:$0xf]
      %v1208 = vld [vmem:[%s1200 + $0x1c] sm:$0xf]
      %v1209 = vld [vmem:[%s1200 + $0x20] sm:$0xf]
      %v1210 = vld [vmem:[%s1200 + $0x24] sm:$0xf]
      %v1211 = vld [vmem:[%s1200 + $0x28] sm:$0xf]
      %v1212 = vld [vmem:[%s1200 + $0x2c] sm:$0xf]
      %v1213 = vld [vmem:[%s1200 + $0x30] sm:$0xf]
      %v1214 = vld [vmem:[%s1200 + $0x34] sm:$0xf]
      %v1215 = vld [vmem:[%s1200 + $0x38] sm:$0xf]
      %v1216 = vld [vmem:[%s1200 + $0x3c] sm:$0xf]
      %v1217 = vld [vmem:[%s1200 + $0x40] sm:$0xf]
      %v1218 = vld [vmem:[%s1200 + $0x44] sm:$0xf]
      %v1219 = vld [vmem:[%s1200 + $0x48] sm:$0xf]
      %v1220 = vld [vmem:[%s1200 + $0x4c] sm:$0xf]
      %v1221 = vld [vmem:[%s1200 + $0x50] sm:$0xf]
      %v1222 = vld [vmem:[%s1200 + $0x54] sm:$0xf]
      %v1223 = vld [vmem:[%s1200 + $0x58] sm:$0xf]
      %v1224 = vld [vmem:[%s1200 + $0x5c] sm:$0xf]
      %v1225 = vld [vmem:[%s1200 + $0x60] sm:$0x3]
      %v1251 = vunpack.c.l.b16 %v1201
      %v1252 = vunpack.c.l.b16 %v1202
      %v1253 = vunpack.c.l.b16 %v1203
      %v1254 = vunpack.c.l.b16 %v1204
      %v1255 = vunpack.c.l.b16 %v1205
      %v1256 = vunpack.c.l.b16 %v1206
      %v1257 = vunpack.c.l.b16 %v1207
      %v1258 = vunpack.c.l.b16 %v1208
      %v1259 = vunpack.c.l.b16 %v1209
      %v1260 = vunpack.c.l.b16 %v1210
      %v1261 = vunpack.c.l.b16 %v1211
      %v1262 = vunpack.c.l.b16 %v1212
      %v1263 = vunpack.c.l.b16 %v1213
      %v1264 = vunpack.c.l.b16 %v1214
      %v1265 = vunpack.c.l.b16 %v1215
      %v1266 = vunpack.c.l.b16 %v1216
      %v1267 = vunpack.c.l.b16 %v1217
      %v1268 = vunpack.c.l.b16 %v1218
      %v1269 = vunpack.c.l.b16 %v1219
      %v1270 = vunpack.c.l.b16 %v1220
      %v1271 = vunpack.c.l.b16 %v1221
      %v1272 = vunpack.c.l.b16 %v1222
      %v1273 = vunpack.c.l.b16 %v1223
      %v1274 = vunpack.c.l.b16 %v1224
      %v1275 = vunpack.c.l.b16 %v1225
      %v1276 = vpack.c.b16 %v1252, %v1251
      %v1277 = vpack.c.b16 %v1254, %v1253
      %v1278 = vpack.c.b16 %v1256, %v1255
      %v1279 = vpack.c.b16 %v1258, %v1257
      %v1280 = vpack.c.b16 %v1260, %v1259
      %v1281 = vpack.c.b16 %v1262, %v1261
      %v1282 = vpack.c.b16 %v1264, %v1263
      %v1283 = vpack.c.b16 %v1266, %v1265
      %v1284 = vpack.c.b16 %v1268, %v1267
      %v1285 = vpack.c.b16 %v1270, %v1269
      %v1286 = vpack.c.b16 %v1272, %v1271
      %v1287 = vpack.c.b16 %v1274, %v1273
      %v1288 = vpack.c.b16 %v1275, %v1275
      %v1302 = vsel %vm1066, %v1288, 0
      %1304 = vmatpush.bf16.msra.mxu0 %v1283
      %1305 = vmatpush.bf16.msra.mxu0 %v1282
      %1306 = vmatpush.bf16.msra.mxu0 %v1281
      %1307 = vmatpush.bf16.msra.mxu0 %v1280
      %1308 = vmatpush.bf16.msra.mxu0 %v1279
      %1309 = vmatpush.bf16.msra.mxu0 %v1278
      %1310 = vmatpush.bf16.msra.mxu0 %v1277
      %1311 = vmatpush.bf16.msra.mxu0 %v1276
      %1312 = vmatmul.bf16.gmra.mxu0 %v925
      %v1313 = vpop.f32.mrf.mxu0
      %v1314 = vadd.f32 0.0, %v1313
      %v1315 = vpop.f32.mrf.mxu0
      %v1316 = vadd.f32 0.0, %v1315
      %1317 = vmatmul.bf16.gmra.mxu0 %v927
      %v1318 = vpop.f32.mrf.mxu0
      %v1319 = vadd.f32 0.0, %v1318
      %v1320 = vpop.f32.mrf.mxu0
      %v1321 = vadd.f32 0.0, %v1320
      %1322 = vmatmul.bf16.gmra.mxu0 %v929
      %v1323 = vpop.f32.mrf.mxu0
      %v1324 = vadd.f32 0.0, %v1323
      %v1325 = vpop.f32.mrf.mxu0
      %v1326 = vadd.f32 0.0, %v1325
      %1327 = vmatmul.bf16.gmra.mxu0 %v931
      %v1328 = vpop.f32.mrf.mxu0
      %v1329 = vadd.f32 0.0, %v1328
      %v1330 = vpop.f32.mrf.mxu0
      %v1331 = vadd.f32 0.0, %v1330
      %1332 = vmatmul.bf16.gmra.mxu0 %v933
      %v1333 = vpop.f32.mrf.mxu0
      %v1334 = vadd.f32 0.0, %v1333
      %v1335 = vpop.f32.mrf.mxu0
      %v1336 = vadd.f32 0.0, %v1335
      %1337 = vmatmul.bf16.gmra.mxu0 %v935
      %v1338 = vpop.f32.mrf.mxu0
      %v1339 = vadd.f32 0.0, %v1338
      %v1340 = vpop.f32.mrf.mxu0
      %v1341 = vadd.f32 0.0, %v1340
      %1342 = vmatmul.bf16.gmra.mxu0 %v937
      %v1343 = vpop.f32.mrf.mxu0
      %v1344 = vadd.f32 0.0, %v1343
      %v1345 = vpop.f32.mrf.mxu0
      %v1346 = vadd.f32 0.0, %v1345
      %1347 = vmatmul.bf16.gmra.mxu0 %v939
      %v1348 = vpop.f32.mrf.mxu0
      %v1349 = vadd.f32 0.0, %v1348
      %v1350 = vpop.f32.mrf.mxu0
      %v1351 = vadd.f32 0.0, %v1350
      %1352 = vdwg.mxu0
      %1353 = vmatpush.bf16.msra.mxu0 0
      %1354 = vmatpush.bf16.msra.mxu0 0
      %1355 = vmatpush.bf16.msra.mxu0 0
      %1356 = vmatpush.bf16.msra.mxu0 %v1302
      %1357 = vmatpush.bf16.msra.mxu0 %v1287
      %1358 = vmatpush.bf16.msra.mxu0 %v1286
      %1359 = vmatpush.bf16.msra.mxu0 %v1285
      %1360 = vmatpush.bf16.msra.mxu0 %v1284
      %1361 = vmatmul.bf16.gmra.mxu0 %v1043
      %v1362 = vpop.f32.mrf.mxu0
      %v1363 = vadd.f32 %v1314, %v1362
      %v1364 = vpop.f32.mrf.mxu0
      %v1365 = vadd.f32 %v1316, %v1364
      %1366 = vmatmul.bf16.gmra.mxu0 %v1046
      %v1367 = vpop.f32.mrf.mxu0
      %v1368 = vadd.f32 %v1319, %v1367
      %v1369 = vpop.f32.mrf.mxu0
      %v1370 = vadd.f32 %v1321, %v1369
      %1371 = vmatmul.bf16.gmra.mxu0 %v1049
      %v1372 = vpop.f32.mrf.mxu0
      %v1373 = vadd.f32 %v1324, %v1372
      %v1374 = vpop.f32.mrf.mxu0
      %v1375 = vadd.f32 %v1326, %v1374
      %1376 = vmatmul.bf16.gmra.mxu0 %v1052
      %v1377 = vpop.f32.mrf.mxu0
      %v1378 = vadd.f32 %v1329, %v1377
      %v1379 = vpop.f32.mrf.mxu0
      %v1380 = vadd.f32 %v1331, %v1379
      %1381 = vmatmul.bf16.gmra.mxu0 %v1055
      %v1382 = vpop.f32.mrf.mxu0
      %v1383 = vadd.f32 %v1334, %v1382
      %v1384 = vpop.f32.mrf.mxu0
      %v1385 = vadd.f32 %v1336, %v1384
      %1386 = vmatmul.bf16.gmra.mxu0 %v1058
      %v1387 = vpop.f32.mrf.mxu0
      %v1388 = vadd.f32 %v1339, %v1387
      %v1389 = vpop.f32.mrf.mxu0
      %v1390 = vadd.f32 %v1341, %v1389
      %1391 = vmatmul.bf16.gmra.mxu0 %v1061
      %v1392 = vpop.f32.mrf.mxu0
      %v1393 = vadd.f32 %v1344, %v1392
      %v1394 = vpop.f32.mrf.mxu0
      %v1395 = vadd.f32 %v1346, %v1394
      %1396 = vmatmul.bf16.gmra.mxu0 %v1064
      %v1397 = vpop.f32.mrf.mxu0
      %v1398 = vadd.f32 %v1349, %v1397
      %v1399 = vpop.f32.mrf.mxu0
      %v1400 = vadd.f32 %v1351, %v1399
      %1401 = vdwg.mxu0
      %v1402 = vpack.c.bf16 %v1363, %v1363
      %v1403 = vpack.c.bf16 %v1365, %v1365
      %v1404 = vpack.c.bf16 %v1368, %v1368
      %v1405 = vpack.c.bf16 %v1370, %v1370
      %v1406 = vpack.c.bf16 %v1373, %v1373
      %v1407 = vpack.c.bf16 %v1375, %v1375
      %v1408 = vpack.c.bf16 %v1378, %v1378
      %v1409 = vpack.c.bf16 %v1380, %v1380
      %v1410 = vpack.c.bf16 %v1383, %v1383
      %v1411 = vpack.c.bf16 %v1385, %v1385
      %v1412 = vpack.c.bf16 %v1388, %v1388
      %v1413 = vpack.c.bf16 %v1390, %v1390
      %v1414 = vpack.c.bf16 %v1393, %v1393
      %v1415 = vpack.c.bf16 %v1395, %v1395
      %v1416 = vpack.c.bf16 %v1398, %v1398
      %v1417 = vpack.c.bf16 %v1400, %v1400
      %1418 = vst [vmem:[#allocation2 + $0x40] sm:$0xf] %v1402
      %1419 = vst [vmem:[#allocation2 + $0x44] sm:$0xf] %v1403
      %1420 = vst [vmem:[#allocation2 + $0x48] sm:$0xf] %v1404
      %1421 = vst [vmem:[#allocation2 + $0x4c] sm:$0xf] %v1405
      %1422 = vst [vmem:[#allocation2 + $0x50] sm:$0xf] %v1406
      %1423 = vst [vmem:[#allocation2 + $0x54] sm:$0xf] %v1407
      %1424 = vst [vmem:[#allocation2 + $0x58] sm:$0xf] %v1408
      %1425 = vst [vmem:[#allocation2 + $0x5c] sm:$0xf] %v1409
      %1426 = vst [vmem:[#allocation2 + $0x60] sm:$0xf] %v1410
      %1427 = vst [vmem:[#allocation2 + $0x64] sm:$0xf] %v1411
      %1428 = vst [vmem:[#allocation2 + $0x68] sm:$0xf] %v1412
      %1429 = vst [vmem:[#allocation2 + $0x6c] sm:$0xf] %v1413
      %1430 = vst [vmem:[#allocation2 + $0x70] sm:$0xf] %v1414
      %1431 = vst [vmem:[#allocation2 + $0x74] sm:$0xf] %v1415
      %1432 = vst [vmem:[#allocation2 + $0x78] sm:$0xf] %v1416
      %1433 = vst [vmem:[#allocation2 + $0x7c] sm:$0xf] %v1417
      %s1434 = scalar_lea.vmem %s3, 200
      %v1435 = vld [vmem:[%s1434] sm:$0xf]
      %v1436 = vld [vmem:[%s1434 + $0x4] sm:$0xf]
      %v1437 = vld [vmem:[%s1434 + $0x8] sm:$0xf]
      %v1438 = vld [vmem:[%s1434 + $0xc] sm:$0xf]
      %v1439 = vld [vmem:[%s1434 + $0x10] sm:$0xf]
      %v1440 = vld [vmem:[%s1434 + $0x14] sm:$0xf]
      %v1441 = vld [vmem:[%s1434 + $0x18] sm:$0xf]
      %v1442 = vld [vmem:[%s1434 + $0x1c] sm:$0xf]
      %v1443 = vld [vmem:[%s1434 + $0x20] sm:$0xf]
      %v1444 = vld [vmem:[%s1434 + $0x24] sm:$0xf]
      %v1445 = vld [vmem:[%s1434 + $0x28] sm:$0xf]
      %v1446 = vld [vmem:[%s1434 + $0x2c] sm:$0xf]
      %v1447 = vld [vmem:[%s1434 + $0x30] sm:$0xf]
      %v1448 = vld [vmem:[%s1434 + $0x34] sm:$0xf]
      %v1449 = vld [vmem:[%s1434 + $0x38] sm:$0xf]
      %v1450 = vld [vmem:[%s1434 + $0x3c] sm:$0xf]
      %v1451 = vld [vmem:[%s1434 + $0x40] sm:$0xf]
      %v1452 = vld [vmem:[%s1434 + $0x44] sm:$0xf]
      %v1453 = vld [vmem:[%s1434 + $0x48] sm:$0xf]
      %v1454 = vld [vmem:[%s1434 + $0x4c] sm:$0xf]
      %v1455 = vld [vmem:[%s1434 + $0x50] sm:$0xf]
      %v1456 = vld [vmem:[%s1434 + $0x54] sm:$0xf]
      %v1457 = vld [vmem:[%s1434 + $0x58] sm:$0xf]
      %v1458 = vld [vmem:[%s1434 + $0x5c] sm:$0xf]
      %v1459 = vld [vmem:[%s1434 + $0x60] sm:$0x3]
      %v1485 = vunpack.c.l.b16 %v1435
      %v1486 = vunpack.c.l.b16 %v1436
      %v1487 = vunpack.c.l.b16 %v1437
      %v1488 = vunpack.c.l.b16 %v1438
      %v1489 = vunpack.c.l.b16 %v1439
      %v1490 = vunpack.c.l.b16 %v1440
      %v1491 = vunpack.c.l.b16 %v1441
      %v1492 = vunpack.c.l.b16 %v1442
      %v1493 = vunpack.c.l.b16 %v1443
      %v1494 = vunpack.c.l.b16 %v1444
      %v1495 = vunpack.c.l.b16 %v1445
      %v1496 = vunpack.c.l.b16 %v1446
      %v1497 = vunpack.c.l.b16 %v1447
      %v1498 = vunpack.c.l.b16 %v1448
      %v1499 = vunpack.c.l.b16 %v1449
      %v1500 = vunpack.c.l.b16 %v1450
      %v1501 = vunpack.c.l.b16 %v1451
      %v1502 = vunpack.c.l.b16 %v1452
      %v1503 = vunpack.c.l.b16 %v1453
      %v1504 = vunpack.c.l.b16 %v1454
      %v1505 = vunpack.c.l.b16 %v1455
      %v1506 = vunpack.c.l.b16 %v1456
      %v1507 = vunpack.c.l.b16 %v1457
      %v1508 = vunpack.c.l.b16 %v1458
      %v1509 = vunpack.c.l.b16 %v1459
      %v1510 = vpack.c.b16 %v1486, %v1485
      %v1511 = vpack.c.b16 %v1488, %v1487
      %v1512 = vpack.c.b16 %v1490, %v1489
      %v1513 = vpack.c.b16 %v1492, %v1491
      %v1514 = vpack.c.b16 %v1494, %v1493
      %v1515 = vpack.c.b16 %v1496, %v1495
      %v1516 = vpack.c.b16 %v1498, %v1497
      %v1517 = vpack.c.b16 %v1500, %v1499
      %v1518 = vpack.c.b16 %v1502, %v1501
      %v1519 = vpack.c.b16 %v1504, %v1503
      %v1520 = vpack.c.b16 %v1506, %v1505
      %v1521 = vpack.c.b16 %v1508, %v1507
      %v1522 = vpack.c.b16 %v1509, %v1509
      %v1536 = vsel %vm1066, %v1522, 0
      %1538 = vmatpush.bf16.msra.mxu0 %v1517
      %1539 = vmatpush.bf16.msra.mxu0 %v1516
      %1540 = vmatpush.bf16.msra.mxu0 %v1515
      %1541 = vmatpush.bf16.msra.mxu0 %v1514
      %1542 = vmatpush.bf16.msra.mxu0 %v1513
      %1543 = vmatpush.bf16.msra.mxu0 %v1512
      %1544 = vmatpush.bf16.msra.mxu0 %v1511
      %1545 = vmatpush.bf16.msra.mxu0 %v1510
      %1546 = vmatmul.bf16.gmra.mxu0 %v925
      %v1547 = vpop.f32.mrf.mxu0
      %v1548 = vadd.f32 0.0, %v1547
      %v1549 = vpop.f32.mrf.mxu0
      %v1550 = vadd.f32 0.0, %v1549
      %1551 = vmatmul.bf16.gmra.mxu0 %v927
      %v1552 = vpop.f32.mrf.mxu0
      %v1553 = vadd.f32 0.0, %v1552
      %v1554 = vpop.f32.mrf.mxu0
      %v1555 = vadd.f32 0.0, %v1554
      %1556 = vmatmul.bf16.gmra.mxu0 %v929
      %v1557 = vpop.f32.mrf.mxu0
      %v1558 = vadd.f32 0.0, %v1557
      %v1559 = vpop.f32.mrf.mxu0
      %v1560 = vadd.f32 0.0, %v1559
      %1561 = vmatmul.bf16.gmra.mxu0 %v931
      %v1562 = vpop.f32.mrf.mxu0
      %v1563 = vadd.f32 0.0, %v1562
      %v1564 = vpop.f32.mrf.mxu0
      %v1565 = vadd.f32 0.0, %v1564
      %1566 = vmatmul.bf16.gmra.mxu0 %v933
      %v1567 = vpop.f32.mrf.mxu0
      %v1568 = vadd.f32 0.0, %v1567
      %v1569 = vpop.f32.mrf.mxu0
      %v1570 = vadd.f32 0.0, %v1569
      %1571 = vmatmul.bf16.gmra.mxu0 %v935
      %v1572 = vpop.f32.mrf.mxu0
      %v1573 = vadd.f32 0.0, %v1572
      %v1574 = vpop.f32.mrf.mxu0
      %v1575 = vadd.f32 0.0, %v1574
      %1576 = vmatmul.bf16.gmra.mxu0 %v937
      %v1577 = vpop.f32.mrf.mxu0
      %v1578 = vadd.f32 0.0, %v1577
      %v1579 = vpop.f32.mrf.mxu0
      %v1580 = vadd.f32 0.0, %v1579
      %1581 = vmatmul.bf16.gmra.mxu0 %v939
      %v1582 = vpop.f32.mrf.mxu0
      %v1583 = vadd.f32 0.0, %v1582
      %v1584 = vpop.f32.mrf.mxu0
      %v1585 = vadd.f32 0.0, %v1584
      %1586 = vdwg.mxu0
      %1587 = vmatpush.bf16.msra.mxu0 0
      %1588 = vmatpush.bf16.msra.mxu0 0
      %1589 = vmatpush.bf16.msra.mxu0 0
      %1590 = vmatpush.bf16.msra.mxu0 %v1536
      %1591 = vmatpush.bf16.msra.mxu0 %v1521
      %1592 = vmatpush.bf16.msra.mxu0 %v1520
      %1593 = vmatpush.bf16.msra.mxu0 %v1519
      %1594 = vmatpush.bf16.msra.mxu0 %v1518
      %1595 = vmatmul.bf16.gmra.mxu0 %v1043
      %v1596 = vpop.f32.mrf.mxu0
      %v1597 = vadd.f32 %v1548, %v1596
      %v1598 = vpop.f32.mrf.mxu0
      %v1599 = vadd.f32 %v1550, %v1598
      %1600 = vmatmul.bf16.gmra.mxu0 %v1046
      %v1601 = vpop.f32.mrf.mxu0
      %v1602 = vadd.f32 %v1553, %v1601
      %v1603 = vpop.f32.mrf.mxu0
      %v1604 = vadd.f32 %v1555, %v1603
      %1605 = vmatmul.bf16.gmra.mxu0 %v1049
      %v1606 = vpop.f32.mrf.mxu0
      %v1607 = vadd.f32 %v1558, %v1606
      %v1608 = vpop.f32.mrf.mxu0
      %v1609 = vadd.f32 %v1560, %v1608
      %1610 = vmatmul.bf16.gmra.mxu0 %v1052
      %v1611 = vpop.f32.mrf.mxu0
      %v1612 = vadd.f32 %v1563, %v1611
      %v1613 = vpop.f32.mrf.mxu0
      %v1614 = vadd.f32 %v1565, %v1613
      %1615 = vmatmul.bf16.gmra.mxu0 %v1055
      %v1616 = vpop.f32.mrf.mxu0
      %v1617 = vadd.f32 %v1568, %v1616
      %v1618 = vpop.f32.mrf.mxu0
      %v1619 = vadd.f32 %v1570, %v1618
      %1620 = vmatmul.bf16.gmra.mxu0 %v1058
      %v1621 = vpop.f32.mrf.mxu0
      %v1622 = vadd.f32 %v1573, %v1621
      %v1623 = vpop.f32.mrf.mxu0
      %v1624 = vadd.f32 %v1575, %v1623
      %1625 = vmatmul.bf16.gmra.mxu0 %v1061
      %v1626 = vpop.f32.mrf.mxu0
      %v1627 = vadd.f32 %v1578, %v1626
      %v1628 = vpop.f32.mrf.mxu0
      %v1629 = vadd.f32 %v1580, %v1628
      %1630 = vmatmul.bf16.gmra.mxu0 %v1064
      %v1631 = vpop.f32.mrf.mxu0
      %v1632 = vadd.f32 %v1583, %v1631
      %v1633 = vpop.f32.mrf.mxu0
      %v1634 = vadd.f32 %v1585, %v1633
      %1635 = vdwg.mxu0
      %v1636 = vpack.c.bf16 %v1597, %v1597
      %v1637 = vpack.c.bf16 %v1599, %v1599
      %v1638 = vpack.c.bf16 %v1602, %v1602
      %v1639 = vpack.c.bf16 %v1604, %v1604
      %v1640 = vpack.c.bf16 %v1607, %v1607
      %v1641 = vpack.c.bf16 %v1609, %v1609
      %v1642 = vpack.c.bf16 %v1612, %v1612
      %v1643 = vpack.c.bf16 %v1614, %v1614
      %v1644 = vpack.c.bf16 %v1617, %v1617
      %v1645 = vpack.c.bf16 %v1619, %v1619
      %v1646 = vpack.c.bf16 %v1622, %v1622
      %v1647 = vpack.c.bf16 %v1624, %v1624
      %v1648 = vpack.c.bf16 %v1627, %v1627
      %v1649 = vpack.c.bf16 %v1629, %v1629
      %v1650 = vpack.c.bf16 %v1632, %v1632
      %v1651 = vpack.c.bf16 %v1634, %v1634
      %1652 = vst [vmem:[#allocation2 + $0x80] sm:$0xf] %v1636
      %1653 = vst [vmem:[#allocation2 + $0x84] sm:$0xf] %v1637
      %1654 = vst [vmem:[#allocation2 + $0x88] sm:$0xf] %v1638
      %1655 = vst [vmem:[#allocation2 + $0x8c] sm:$0xf] %v1639
      %1656 = vst [vmem:[#allocation2 + $0x90] sm:$0xf] %v1640
      %1657 = vst [vmem:[#allocation2 + $0x94] sm:$0xf] %v1641
      %1658 = vst [vmem:[#allocation2 + $0x98] sm:$0xf] %v1642
      %1659 = vst [vmem:[#allocation2 + $0x9c] sm:$0xf] %v1643
      %1660 = vst [vmem:[#allocation2 + $0xa0] sm:$0xf] %v1644
      %1661 = vst [vmem:[#allocation2 + $0xa4] sm:$0xf] %v1645
      %1662 = vst [vmem:[#allocation2 + $0xa8] sm:$0xf] %v1646
      %1663 = vst [vmem:[#allocation2 + $0xac] sm:$0xf] %v1647
      %1664 = vst [vmem:[#allocation2 + $0xb0] sm:$0xf] %v1648
      %1665 = vst [vmem:[#allocation2 + $0xb4] sm:$0xf] %v1649
      %1666 = vst [vmem:[#allocation2 + $0xb8] sm:$0xf] %v1650
      %1667 = vst [vmem:[#allocation2 + $0xbc] sm:$0xf] %v1651
      %s1668 = scalar_lea.vmem %s3, 300
      %v1669 = vld [vmem:[%s1668] sm:$0xf]
      %v1670 = vld [vmem:[%s1668 + $0x4] sm:$0xf]
      %v1671 = vld [vmem:[%s1668 + $0x8] sm:$0xf]
      %v1672 = vld [vmem:[%s1668 + $0xc] sm:$0xf]
      %v1673 = vld [vmem:[%s1668 + $0x10] sm:$0xf]
      %v1674 = vld [vmem:[%s1668 + $0x14] sm:$0xf]
      %v1675 = vld [vmem:[%s1668 + $0x18] sm:$0xf]
      %v1676 = vld [vmem:[%s1668 + $0x1c] sm:$0xf]
      %v1677 = vld [vmem:[%s1668 + $0x20] sm:$0xf]
      %v1678 = vld [vmem:[%s1668 + $0x24] sm:$0xf]
      %v1679 = vld [vmem:[%s1668 + $0x28] sm:$0xf]
      %v1680 = vld [vmem:[%s1668 + $0x2c] sm:$0xf]
      %v1681 = vld [vmem:[%s1668 + $0x30] sm:$0xf]
      %v1682 = vld [vmem:[%s1668 + $0x34] sm:$0xf]
      %v1683 = vld [vmem:[%s1668 + $0x38] sm:$0xf]
      %v1684 = vld [vmem:[%s1668 + $0x3c] sm:$0xf]
      %v1685 = vld [vmem:[%s1668 + $0x40] sm:$0xf]
      %v1686 = vld [vmem:[%s1668 + $0x44] sm:$0xf]
      %v1687 = vld [vmem:[%s1668 + $0x48] sm:$0xf]
      %v1688 = vld [vmem:[%s1668 + $0x4c] sm:$0xf]
      %v1689 = vld [vmem:[%s1668 + $0x50] sm:$0xf]
      %v1690 = vld [vmem:[%s1668 + $0x54] sm:$0xf]
      %v1691 = vld [vmem:[%s1668 + $0x58] sm:$0xf]
      %v1692 = vld [vmem:[%s1668 + $0x5c] sm:$0xf]
      %v1693 = vld [vmem:[%s1668 + $0x60] sm:$0x3]
      %v1719 = vunpack.c.l.b16 %v1669
      %v1720 = vunpack.c.l.b16 %v1670
      %v1721 = vunpack.c.l.b16 %v1671
      %v1722 = vunpack.c.l.b16 %v1672
      %v1723 = vunpack.c.l.b16 %v1673
      %v1724 = vunpack.c.l.b16 %v1674
      %v1725 = vunpack.c.l.b16 %v1675
      %v1726 = vunpack.c.l.b16 %v1676
      %v1727 = vunpack.c.l.b16 %v1677
      %v1728 = vunpack.c.l.b16 %v1678
      %v1729 = vunpack.c.l.b16 %v1679
      %v1730 = vunpack.c.l.b16 %v1680
      %v1731 = vunpack.c.l.b16 %v1681
      %v1732 = vunpack.c.l.b16 %v1682
      %v1733 = vunpack.c.l.b16 %v1683
      %v1734 = vunpack.c.l.b16 %v1684
      %v1735 = vunpack.c.l.b16 %v1685
      %v1736 = vunpack.c.l.b16 %v1686
      %v1737 = vunpack.c.l.b16 %v1687
      %v1738 = vunpack.c.l.b16 %v1688
      %v1739 = vunpack.c.l.b16 %v1689
      %v1740 = vunpack.c.l.b16 %v1690
      %v1741 = vunpack.c.l.b16 %v1691
      %v1742 = vunpack.c.l.b16 %v1692
      %v1743 = vunpack.c.l.b16 %v1693
      %v1744 = vpack.c.b16 %v1720, %v1719
      %v1745 = vpack.c.b16 %v1722, %v1721
      %v1746 = vpack.c.b16 %v1724, %v1723
      %v1747 = vpack.c.b16 %v1726, %v1725
      %v1748 = vpack.c.b16 %v1728, %v1727
      %v1749 = vpack.c.b16 %v1730, %v1729
      %v1750 = vpack.c.b16 %v1732, %v1731
      %v1751 = vpack.c.b16 %v1734, %v1733
      %v1752 = vpack.c.b16 %v1736, %v1735
      %v1753 = vpack.c.b16 %v1738, %v1737
      %v1754 = vpack.c.b16 %v1740, %v1739
      %v1755 = vpack.c.b16 %v1742, %v1741
      %v1756 = vpack.c.b16 %v1743, %v1743
      %v1770 = vsel %vm1066, %v1756, 0
      %1772 = vmatpush.bf16.msra.mxu0 %v1751
      %1773 = vmatpush.bf16.msra.mxu0 %v1750
      %1774 = vmatpush.bf16.msra.mxu0 %v1749
      %1775 = vmatpush.bf16.msra.mxu0 %v1748
      %1776 = vmatpush.bf16.msra.mxu0 %v1747
      %1777 = vmatpush.bf16.msra.mxu0 %v1746
      %1778 = vmatpush.bf16.msra.mxu0 %v1745
      %1779 = vmatpush.bf16.msra.mxu0 %v1744
      %1780 = vmatmul.bf16.gmra.mxu0 %v925
      %v1781 = vpop.f32.mrf.mxu0
      %v1782 = vadd.f32 0.0, %v1781
      %v1783 = vpop.f32.mrf.mxu0
      %v1784 = vadd.f32 0.0, %v1783
      %1785 = vmatmul.bf16.gmra.mxu0 %v927
      %v1786 = vpop.f32.mrf.mxu0
      %v1787 = vadd.f32 0.0, %v1786
      %v1788 = vpop.f32.mrf.mxu0
      %v1789 = vadd.f32 0.0, %v1788
      %1790 = vmatmul.bf16.gmra.mxu0 %v929
      %v1791 = vpop.f32.mrf.mxu0
      %v1792 = vadd.f32 0.0, %v1791
      %v1793 = vpop.f32.mrf.mxu0
      %v1794 = vadd.f32 0.0, %v1793
      %1795 = vmatmul.bf16.gmra.mxu0 %v931
      %v1796 = vpop.f32.mrf.mxu0
      %v1797 = vadd.f32 0.0, %v1796
      %v1798 = vpop.f32.mrf.mxu0
      %v1799 = vadd.f32 0.0, %v1798
      %1800 = vmatmul.bf16.gmra.mxu0 %v933
      %v1801 = vpop.f32.mrf.mxu0
      %v1802 = vadd.f32 0.0, %v1801
      %v1803 = vpop.f32.mrf.mxu0
      %v1804 = vadd.f32 0.0, %v1803
      %1805 = vmatmul.bf16.gmra.mxu0 %v935
      %v1806 = vpop.f32.mrf.mxu0
      %v1807 = vadd.f32 0.0, %v1806
      %v1808 = vpop.f32.mrf.mxu0
      %v1809 = vadd.f32 0.0, %v1808
      %1810 = vmatmul.bf16.gmra.mxu0 %v937
      %v1811 = vpop.f32.mrf.mxu0
      %v1812 = vadd.f32 0.0, %v1811
      %v1813 = vpop.f32.mrf.mxu0
      %v1814 = vadd.f32 0.0, %v1813
      %1815 = vmatmul.bf16.gmra.mxu0 %v939
      %v1816 = vpop.f32.mrf.mxu0
      %v1817 = vadd.f32 0.0, %v1816
      %v1818 = vpop.f32.mrf.mxu0
      %v1819 = vadd.f32 0.0, %v1818
      %1820 = vdwg.mxu0
      %1821 = vmatpush.bf16.msra.mxu0 0
      %1822 = vmatpush.bf16.msra.mxu0 0
      %1823 = vmatpush.bf16.msra.mxu0 0
      %1824 = vmatpush.bf16.msra.mxu0 %v1770
      %1825 = vmatpush.bf16.msra.mxu0 %v1755
      %1826 = vmatpush.bf16.msra.mxu0 %v1754
      %1827 = vmatpush.bf16.msra.mxu0 %v1753
      %1828 = vmatpush.bf16.msra.mxu0 %v1752
      %1829 = vmatmul.bf16.gmra.mxu0 %v1043
      %v1830 = vpop.f32.mrf.mxu0
      %v1831 = vadd.f32 %v1782, %v1830
      %v1832 = vpop.f32.mrf.mxu0
      %v1833 = vadd.f32 %v1784, %v1832
      %1834 = vmatmul.bf16.gmra.mxu0 %v1046
      %v1835 = vpop.f32.mrf.mxu0
      %v1836 = vadd.f32 %v1787, %v1835
      %v1837 = vpop.f32.mrf.mxu0
      %v1838 = vadd.f32 %v1789, %v1837
      %1839 = vmatmul.bf16.gmra.mxu0 %v1049
      %v1840 = vpop.f32.mrf.mxu0
      %v1841 = vadd.f32 %v1792, %v1840
      %v1842 = vpop.f32.mrf.mxu0
      %v1843 = vadd.f32 %v1794, %v1842
      %1844 = vmatmul.bf16.gmra.mxu0 %v1052
      %v1845 = vpop.f32.mrf.mxu0
      %v1846 = vadd.f32 %v1797, %v1845
      %v1847 = vpop.f32.mrf.mxu0
      %v1848 = vadd.f32 %v1799, %v1847
      %1849 = vmatmul.bf16.gmra.mxu0 %v1055
      %v1850 = vpop.f32.mrf.mxu0
      %v1851 = vadd.f32 %v1802, %v1850
      %v1852 = vpop.f32.mrf.mxu0
      %v1853 = vadd.f32 %v1804, %v1852
      %1854 = vmatmul.bf16.gmra.mxu0 %v1058
      %v1855 = vpop.f32.mrf.mxu0
      %v1856 = vadd.f32 %v1807, %v1855
      %v1857 = vpop.f32.mrf.mxu0
      %v1858 = vadd.f32 %v1809, %v1857
      %1859 = vmatmul.bf16.gmra.mxu0 %v1061
      %v1860 = vpop.f32.mrf.mxu0
      %v1861 = vadd.f32 %v1812, %v1860
      %v1862 = vpop.f32.mrf.mxu0
      %v1863 = vadd.f32 %v1814, %v1862
      %1864 = vmatmul.bf16.gmra.mxu0 %v1064
      %v1865 = vpop.f32.mrf.mxu0
      %v1866 = vadd.f32 %v1817, %v1865
      %v1867 = vpop.f32.mrf.mxu0
      %v1868 = vadd.f32 %v1819, %v1867
      %1869 = vdwg.mxu0
      %v1870 = vpack.c.bf16 %v1831, %v1831
      %v1871 = vpack.c.bf16 %v1833, %v1833
      %v1872 = vpack.c.bf16 %v1836, %v1836
      %v1873 = vpack.c.bf16 %v1838, %v1838
      %v1874 = vpack.c.bf16 %v1841, %v1841
      %v1875 = vpack.c.bf16 %v1843, %v1843
      %v1876 = vpack.c.bf16 %v1846, %v1846
      %v1877 = vpack.c.bf16 %v1848, %v1848
      %v1878 = vpack.c.bf16 %v1851, %v1851
      %v1879 = vpack.c.bf16 %v1853, %v1853
      %v1880 = vpack.c.bf16 %v1856, %v1856
      %v1881 = vpack.c.bf16 %v1858, %v1858
      %v1882 = vpack.c.bf16 %v1861, %v1861
      %v1883 = vpack.c.bf16 %v1863, %v1863
      %v1884 = vpack.c.bf16 %v1866, %v1866
      %v1885 = vpack.c.bf16 %v1868, %v1868
      %1886 = vst [vmem:[#allocation2 + $0xc0] sm:$0xf] %v1870
      %1887 = vst [vmem:[#allocation2 + $0xc4] sm:$0xf] %v1871
      %1888 = vst [vmem:[#allocation2 + $0xc8] sm:$0xf] %v1872
      %1889 = vst [vmem:[#allocation2 + $0xcc] sm:$0xf] %v1873
      %1890 = vst [vmem:[#allocation2 + $0xd0] sm:$0xf] %v1874
      %1891 = vst [vmem:[#allocation2 + $0xd4] sm:$0xf] %v1875
      %1892 = vst [vmem:[#allocation2 + $0xd8] sm:$0xf] %v1876
      %1893 = vst [vmem:[#allocation2 + $0xdc] sm:$0xf] %v1877
      %1894 = vst [vmem:[#allocation2 + $0xe0] sm:$0xf] %v1878
      %1895 = vst [vmem:[#allocation2 + $0xe4] sm:$0xf] %v1879
      %1896 = vst [vmem:[#allocation2 + $0xe8] sm:$0xf] %v1880
      %1897 = vst [vmem:[#allocation2 + $0xec] sm:$0xf] %v1881
      %1898 = vst [vmem:[#allocation2 + $0xf0] sm:$0xf] %v1882
      %1899 = vst [vmem:[#allocation2 + $0xf4] sm:$0xf] %v1883
      %1900 = vst [vmem:[#allocation2 + $0xf8] sm:$0xf] %v1884
      %1901 = vst [vmem:[#allocation2 + $0xfc] sm:$0xf] %v1885
      %s1902 = scalar_lea.vmem %s3, 400
      %v1903 = vld [vmem:[%s1902] sm:$0xf]
      %v1904 = vld [vmem:[%s1902 + $0x4] sm:$0xf]
      %v1905 = vld [vmem:[%s1902 + $0x8] sm:$0xf]
      %v1906 = vld [vmem:[%s1902 + $0xc] sm:$0xf]
      %v1907 = vld [vmem:[%s1902 + $0x10] sm:$0xf]
      %v1908 = vld [vmem:[%s1902 + $0x14] sm:$0xf]
      %v1909 = vld [vmem:[%s1902 + $0x18] sm:$0xf]
      %v1910 = vld [vmem:[%s1902 + $0x1c] sm:$0xf]
      %v1911 = vld [vmem:[%s1902 + $0x20] sm:$0xf]
      %v1912 = vld [vmem:[%s1902 + $0x24] sm:$0xf]
      %v1913 = vld [vmem:[%s1902 + $0x28] sm:$0xf]
      %v1914 = vld [vmem:[%s1902 + $0x2c] sm:$0xf]
      %v1915 = vld [vmem:[%s1902 + $0x30] sm:$0xf]
      %v1916 = vld [vmem:[%s1902 + $0x34] sm:$0xf]
      %v1917 = vld [vmem:[%s1902 + $0x38] sm:$0xf]
      %v1918 = vld [vmem:[%s1902 + $0x3c] sm:$0xf]
      %v1919 = vld [vmem:[%s1902 + $0x40] sm:$0xf]
      %v1920 = vld [vmem:[%s1902 + $0x44] sm:$0xf]
      %v1921 = vld [vmem:[%s1902 + $0x48] sm:$0xf]
      %v1922 = vld [vmem:[%s1902 + $0x4c] sm:$0xf]
      %v1923 = vld [vmem:[%s1902 + $0x50] sm:$0xf]
      %v1924 = vld [vmem:[%s1902 + $0x54] sm:$0xf]
      %v1925 = vld [vmem:[%s1902 + $0x58] sm:$0xf]
      %v1926 = vld [vmem:[%s1902 + $0x5c] sm:$0xf]
      %v1927 = vld [vmem:[%s1902 + $0x60] sm:$0x3]
      %v1953 = vunpack.c.l.b16 %v1903
      %v1954 = vunpack.c.l.b16 %v1904
      %v1955 = vunpack.c.l.b16 %v1905
      %v1956 = vunpack.c.l.b16 %v1906
      %v1957 = vunpack.c.l.b16 %v1907
      %v1958 = vunpack.c.l.b16 %v1908
      %v1959 = vunpack.c.l.b16 %v1909
      %v1960 = vunpack.c.l.b16 %v1910
      %v1961 = vunpack.c.l.b16 %v1911
      %v1962 = vunpack.c.l.b16 %v1912
      %v1963 = vunpack.c.l.b16 %v1913
      %v1964 = vunpack.c.l.b16 %v1914
      %v1965 = vunpack.c.l.b16 %v1915
      %v1966 = vunpack.c.l.b16 %v1916
      %v1967 = vunpack.c.l.b16 %v1917
      %v1968 = vunpack.c.l.b16 %v1918
      %v1969 = vunpack.c.l.b16 %v1919
      %v1970 = vunpack.c.l.b16 %v1920
      %v1971 = vunpack.c.l.b16 %v1921
      %v1972 = vunpack.c.l.b16 %v1922
      %v1973 = vunpack.c.l.b16 %v1923
      %v1974 = vunpack.c.l.b16 %v1924
      %v1975 = vunpack.c.l.b16 %v1925
      %v1976 = vunpack.c.l.b16 %v1926
      %v1977 = vunpack.c.l.b16 %v1927
      %v1978 = vpack.c.b16 %v1954, %v1953
      %v1979 = vpack.c.b16 %v1956, %v1955
      %v1980 = vpack.c.b16 %v1958, %v1957
      %v1981 = vpack.c.b16 %v1960, %v1959
      %v1982 = vpack.c.b16 %v1962, %v1961
      %v1983 = vpack.c.b16 %v1964, %v1963
      %v1984 = vpack.c.b16 %v1966, %v1965
      %v1985 = vpack.c.b16 %v1968, %v1967
      %v1986 = vpack.c.b16 %v1970, %v1969
      %v1987 = vpack.c.b16 %v1972, %v1971
      %v1988 = vpack.c.b16 %v1974, %v1973
      %v1989 = vpack.c.b16 %v1976, %v1975
      %v1990 = vpack.c.b16 %v1977, %v1977
      %v2004 = vsel %vm1066, %v1990, 0
      %2006 = vmatpush.bf16.msra.mxu0 %v1985
      %2007 = vmatpush.bf16.msra.mxu0 %v1984
      %2008 = vmatpush.bf16.msra.mxu0 %v1983
      %2009 = vmatpush.bf16.msra.mxu0 %v1982
      %2010 = vmatpush.bf16.msra.mxu0 %v1981
      %2011 = vmatpush.bf16.msra.mxu0 %v1980
      %2012 = vmatpush.bf16.msra.mxu0 %v1979
      %2013 = vmatpush.bf16.msra.mxu0 %v1978
      %2014 = vmatmul.bf16.gmra.mxu0 %v925
      %v2015 = vpop.f32.mrf.mxu0
      %v2016 = vadd.f32 0.0, %v2015
      %v2017 = vpop.f32.mrf.mxu0
      %v2018 = vadd.f32 0.0, %v2017
      %2019 = vmatmul.bf16.gmra.mxu0 %v927
      %v2020 = vpop.f32.mrf.mxu0
      %v2021 = vadd.f32 0.0, %v2020
      %v2022 = vpop.f32.mrf.mxu0
      %v2023 = vadd.f32 0.0, %v2022
      %2024 = vmatmul.bf16.gmra.mxu0 %v929
      %v2025 = vpop.f32.mrf.mxu0
      %v2026 = vadd.f32 0.0, %v2025
      %v2027 = vpop.f32.mrf.mxu0
      %v2028 = vadd.f32 0.0, %v2027
      %2029 = vmatmul.bf16.gmra.mxu0 %v931
      %v2030 = vpop.f32.mrf.mxu0
      %v2031 = vadd.f32 0.0, %v2030
      %v2032 = vpop.f32.mrf.mxu0
      %v2033 = vadd.f32 0.0, %v2032
      %2034 = vmatmul.bf16.gmra.mxu0 %v933
      %v2035 = vpop.f32.mrf.mxu0
      %v2036 = vadd.f32 0.0, %v2035
      %v2037 = vpop.f32.mrf.mxu0
      %v2038 = vadd.f32 0.0, %v2037
      %2039 = vmatmul.bf16.gmra.mxu0 %v935
      %v2040 = vpop.f32.mrf.mxu0
      %v2041 = vadd.f32 0.0, %v2040
      %v2042 = vpop.f32.mrf.mxu0
      %v2043 = vadd.f32 0.0, %v2042
      %2044 = vmatmul.bf16.gmra.mxu0 %v937
      %v2045 = vpop.f32.mrf.mxu0
      %v2046 = vadd.f32 0.0, %v2045
      %v2047 = vpop.f32.mrf.mxu0
      %v2048 = vadd.f32 0.0, %v2047
      %2049 = vmatmul.bf16.gmra.mxu0 %v939
      %v2050 = vpop.f32.mrf.mxu0
      %v2051 = vadd.f32 0.0, %v2050
      %v2052 = vpop.f32.mrf.mxu0
      %v2053 = vadd.f32 0.0, %v2052
      %2054 = vdwg.mxu0
      %2055 = vmatpush.bf16.msra.mxu0 0
      %2056 = vmatpush.bf16.msra.mxu0 0
      %2057 = vmatpush.bf16.msra.mxu0 0
      %2058 = vmatpush.bf16.msra.mxu0 %v2004
      %2059 = vmatpush.bf16.msra.mxu0 %v1989
      %2060 = vmatpush.bf16.msra.mxu0 %v1988
      %2061 = vmatpush.bf16.msra.mxu0 %v1987
      %2062 = vmatpush.bf16.msra.mxu0 %v1986
      %2063 = vmatmul.bf16.gmra.mxu0 %v1043
      %v2064 = vpop.f32.mrf.mxu0
      %v2065 = vadd.f32 %v2016, %v2064
      %v2066 = vpop.f32.mrf.mxu0
      %v2067 = vadd.f32 %v2018, %v2066
      %2068 = vmatmul.bf16.gmra.mxu0 %v1046
      %v2069 = vpop.f32.mrf.mxu0
      %v2070 = vadd.f32 %v2021, %v2069
      %v2071 = vpop.f32.mrf.mxu0
      %v2072 = vadd.f32 %v2023, %v2071
      %2073 = vmatmul.bf16.gmra.mxu0 %v1049
      %v2074 = vpop.f32.mrf.mxu0
      %v2075 = vadd.f32 %v2026, %v2074
      %v2076 = vpop.f32.mrf.mxu0
      %v2077 = vadd.f32 %v2028, %v2076
      %2078 = vmatmul.bf16.gmra.mxu0 %v1052
      %v2079 = vpop.f32.mrf.mxu0
      %v2080 = vadd.f32 %v2031, %v2079
      %v2081 = vpop.f32.mrf.mxu0
      %v2082 = vadd.f32 %v2033, %v2081
      %2083 = vmatmul.bf16.gmra.mxu0 %v1055
      %v2084 = vpop.f32.mrf.mxu0
      %v2085 = vadd.f32 %v2036, %v2084
      %v2086 = vpop.f32.mrf.mxu0
      %v2087 = vadd.f32 %v2038, %v2086
      %2088 = vmatmul.bf16.gmra.mxu0 %v1058
      %v2089 = vpop.f32.mrf.mxu0
      %v2090 = vadd.f32 %v2041, %v2089
      %v2091 = vpop.f32.mrf.mxu0
      %v2092 = vadd.f32 %v2043, %v2091
      %2093 = vmatmul.bf16.gmra.mxu0 %v1061
      %v2094 = vpop.f32.mrf.mxu0
      %v2095 = vadd.f32 %v2046, %v2094
      %v2096 = vpop.f32.mrf.mxu0
      %v2097 = vadd.f32 %v2048, %v2096
      %2098 = vmatmul.bf16.gmra.mxu0 %v1064
      %v2099 = vpop.f32.mrf.mxu0
      %v2100 = vadd.f32 %v2051, %v2099
      %v2101 = vpop.f32.mrf.mxu0
      %v2102 = vadd.f32 %v2053, %v2101
      %2103 = vdwg.mxu0
      %v2104 = vpack.c.bf16 %v2065, %v2065
      %v2105 = vpack.c.bf16 %v2067, %v2067
      %v2106 = vpack.c.bf16 %v2070, %v2070
      %v2107 = vpack.c.bf16 %v2072, %v2072
      %v2108 = vpack.c.bf16 %v2075, %v2075
      %v2109 = vpack.c.bf16 %v2077, %v2077
      %v2110 = vpack.c.bf16 %v2080, %v2080
      %v2111 = vpack.c.bf16 %v2082, %v2082
      %v2112 = vpack.c.bf16 %v2085, %v2085
      %v2113 = vpack.c.bf16 %v2087, %v2087
      %v2114 = vpack.c.bf16 %v2090, %v2090
      %v2115 = vpack.c.bf16 %v2092, %v2092
      %v2116 = vpack.c.bf16 %v2095, %v2095
      %v2117 = vpack.c.bf16 %v2097, %v2097
      %v2118 = vpack.c.bf16 %v2100, %v2100
      %v2119 = vpack.c.bf16 %v2102, %v2102
      %2120 = vst [vmem:[#allocation2 + $0x100] sm:$0xf] %v2104
      %2121 = vst [vmem:[#allocation2 + $0x104] sm:$0xf] %v2105
      %2122 = vst [vmem:[#allocation2 + $0x108] sm:$0xf] %v2106
      %2123 = vst [vmem:[#allocation2 + $0x10c] sm:$0xf] %v2107
      %2124 = vst [vmem:[#allocation2 + $0x110] sm:$0xf] %v2108
      %2125 = vst [vmem:[#allocation2 + $0x114] sm:$0xf] %v2109
      %2126 = vst [vmem:[#allocation2 + $0x118] sm:$0xf] %v2110
      %2127 = vst [vmem:[#allocation2 + $0x11c] sm:$0xf] %v2111
      %2128 = vst [vmem:[#allocation2 + $0x120] sm:$0xf] %v2112
      %2129 = vst [vmem:[#allocation2 + $0x124] sm:$0xf] %v2113
      %2130 = vst [vmem:[#allocation2 + $0x128] sm:$0xf] %v2114
      %2131 = vst [vmem:[#allocation2 + $0x12c] sm:$0xf] %v2115
      %2132 = vst [vmem:[#allocation2 + $0x130] sm:$0xf] %v2116
      %2133 = vst [vmem:[#allocation2 + $0x134] sm:$0xf] %v2117
      %2134 = vst [vmem:[#allocation2 + $0x138] sm:$0xf] %v2118
      %2135 = vst [vmem:[#allocation2 + $0x13c] sm:$0xf] %v2119
      %s2136 = scalar_lea.vmem %s3, 500
      %v2137 = vld [vmem:[%s2136] sm:$0xf]
      %v2138 = vld [vmem:[%s2136 + $0x4] sm:$0xf]
      %v2139 = vld [vmem:[%s2136 + $0x8] sm:$0xf]
      %v2140 = vld [vmem:[%s2136 + $0xc] sm:$0xf]
      %v2141 = vld [vmem:[%s2136 + $0x10] sm:$0xf]
      %v2142 = vld [vmem:[%s2136 + $0x14] sm:$0xf]
      %v2143 = vld [vmem:[%s2136 + $0x18] sm:$0xf]
      %v2144 = vld [vmem:[%s2136 + $0x1c] sm:$0xf]
      %v2145 = vld [vmem:[%s2136 + $0x20] sm:$0xf]
      %v2146 = vld [vmem:[%s2136 + $0x24] sm:$0xf]
      %v2147 = vld [vmem:[%s2136 + $0x28] sm:$0xf]
      %v2148 = vld [vmem:[%s2136 + $0x2c] sm:$0xf]
      %v2149 = vld [vmem:[%s2136 + $0x30] sm:$0xf]
      %v2150 = vld [vmem:[%s2136 + $0x34] sm:$0xf]
      %v2151 = vld [vmem:[%s2136 + $0x38] sm:$0xf]
      %v2152 = vld [vmem:[%s2136 + $0x3c] sm:$0xf]
      %v2153 = vld [vmem:[%s2136 + $0x40] sm:$0xf]
      %v2154 = vld [vmem:[%s2136 + $0x44] sm:$0xf]
      %v2155 = vld [vmem:[%s2136 + $0x48] sm:$0xf]
      %v2156 = vld [vmem:[%s2136 + $0x4c] sm:$0xf]
      %v2157 = vld [vmem:[%s2136 + $0x50] sm:$0xf]
      %v2158 = vld [vmem:[%s2136 + $0x54] sm:$0xf]
      %v2159 = vld [vmem:[%s2136 + $0x58] sm:$0xf]
      %v2160 = vld [vmem:[%s2136 + $0x5c] sm:$0xf]
      %v2161 = vld [vmem:[%s2136 + $0x60] sm:$0x3]
      %v2187 = vunpack.c.l.b16 %v2137
      %v2188 = vunpack.c.l.b16 %v2138
      %v2189 = vunpack.c.l.b16 %v2139
      %v2190 = vunpack.c.l.b16 %v2140
      %v2191 = vunpack.c.l.b16 %v2141
      %v2192 = vunpack.c.l.b16 %v2142
      %v2193 = vunpack.c.l.b16 %v2143
      %v2194 = vunpack.c.l.b16 %v2144
      %v2195 = vunpack.c.l.b16 %v2145
      %v2196 = vunpack.c.l.b16 %v2146
      %v2197 = vunpack.c.l.b16 %v2147
      %v2198 = vunpack.c.l.b16 %v2148
      %v2199 = vunpack.c.l.b16 %v2149
      %v2200 = vunpack.c.l.b16 %v2150
      %v2201 = vunpack.c.l.b16 %v2151
      %v2202 = vunpack.c.l.b16 %v2152
      %v2203 = vunpack.c.l.b16 %v2153
      %v2204 = vunpack.c.l.b16 %v2154
      %v2205 = vunpack.c.l.b16 %v2155
      %v2206 = vunpack.c.l.b16 %v2156
      %v2207 = vunpack.c.l.b16 %v2157
      %v2208 = vunpack.c.l.b16 %v2158
      %v2209 = vunpack.c.l.b16 %v2159
      %v2210 = vunpack.c.l.b16 %v2160
      %v2211 = vunpack.c.l.b16 %v2161
      %v2212 = vpack.c.b16 %v2188, %v2187
      %v2213 = vpack.c.b16 %v2190, %v2189
      %v2214 = vpack.c.b16 %v2192, %v2191
      %v2215 = vpack.c.b16 %v2194, %v2193
      %v2216 = vpack.c.b16 %v2196, %v2195
      %v2217 = vpack.c.b16 %v2198, %v2197
      %v2218 = vpack.c.b16 %v2200, %v2199
      %v2219 = vpack.c.b16 %v2202, %v2201
      %v2220 = vpack.c.b16 %v2204, %v2203
      %v2221 = vpack.c.b16 %v2206, %v2205
      %v2222 = vpack.c.b16 %v2208, %v2207
      %v2223 = vpack.c.b16 %v2210, %v2209
      %v2224 = vpack.c.b16 %v2211, %v2211
      %v2238 = vsel %vm1066, %v2224, 0
      %2240 = vmatpush.bf16.msra.mxu0 %v2219
      %2241 = vmatpush.bf16.msra.mxu0 %v2218
      %2242 = vmatpush.bf16.msra.mxu0 %v2217
      %2243 = vmatpush.bf16.msra.mxu0 %v2216
      %2244 = vmatpush.bf16.msra.mxu0 %v2215
      %2245 = vmatpush.bf16.msra.mxu0 %v2214
      %2246 = vmatpush.bf16.msra.mxu0 %v2213
      %2247 = vmatpush.bf16.msra.mxu0 %v2212
      %2248 = vmatmul.bf16.gmra.mxu0 %v925
      %v2249 = vpop.f32.mrf.mxu0
      %v2250 = vadd.f32 0.0, %v2249
      %v2251 = vpop.f32.mrf.mxu0
      %v2252 = vadd.f32 0.0, %v2251
      %2253 = vmatmul.bf16.gmra.mxu0 %v927
      %v2254 = vpop.f32.mrf.mxu0
      %v2255 = vadd.f32 0.0, %v2254
      %v2256 = vpop.f32.mrf.mxu0
      %v2257 = vadd.f32 0.0, %v2256
      %2258 = vmatmul.bf16.gmra.mxu0 %v929
      %v2259 = vpop.f32.mrf.mxu0
      %v2260 = vadd.f32 0.0, %v2259
      %v2261 = vpop.f32.mrf.mxu0
      %v2262 = vadd.f32 0.0, %v2261
      %2263 = vmatmul.bf16.gmra.mxu0 %v931
      %v2264 = vpop.f32.mrf.mxu0
      %v2265 = vadd.f32 0.0, %v2264
      %v2266 = vpop.f32.mrf.mxu0
      %v2267 = vadd.f32 0.0, %v2266
      %2268 = vmatmul.bf16.gmra.mxu0 %v933
      %v2269 = vpop.f32.mrf.mxu0
      %v2270 = vadd.f32 0.0, %v2269
      %v2271 = vpop.f32.mrf.mxu0
      %v2272 = vadd.f32 0.0, %v2271
      %2273 = vmatmul.bf16.gmra.mxu0 %v935
      %v2274 = vpop.f32.mrf.mxu0
      %v2275 = vadd.f32 0.0, %v2274
      %v2276 = vpop.f32.mrf.mxu0
      %v2277 = vadd.f32 0.0, %v2276
      %2278 = vmatmul.bf16.gmra.mxu0 %v937
      %v2279 = vpop.f32.mrf.mxu0
      %v2280 = vadd.f32 0.0, %v2279
      %v2281 = vpop.f32.mrf.mxu0
      %v2282 = vadd.f32 0.0, %v2281
      %2283 = vmatmul.bf16.gmra.mxu0 %v939
      %v2284 = vpop.f32.mrf.mxu0
      %v2285 = vadd.f32 0.0, %v2284
      %v2286 = vpop.f32.mrf.mxu0
      %v2287 = vadd.f32 0.0, %v2286
      %2288 = vdwg.mxu0
      %2289 = vmatpush.bf16.msra.mxu0 0
      %2290 = vmatpush.bf16.msra.mxu0 0
      %2291 = vmatpush.bf16.msra.mxu0 0
      %2292 = vmatpush.bf16.msra.mxu0 %v2238
      %2293 = vmatpush.bf16.msra.mxu0 %v2223
      %2294 = vmatpush.bf16.msra.mxu0 %v2222
      %2295 = vmatpush.bf16.msra.mxu0 %v2221
      %2296 = vmatpush.bf16.msra.mxu0 %v2220
      %2297 = vmatmul.bf16.gmra.mxu0 %v1043
      %v2298 = vpop.f32.mrf.mxu0
      %v2299 = vadd.f32 %v2250, %v2298
      %v2300 = vpop.f32.mrf.mxu0
      %v2301 = vadd.f32 %v2252, %v2300
      %2302 = vmatmul.bf16.gmra.mxu0 %v1046
      %v2303 = vpop.f32.mrf.mxu0
      %v2304 = vadd.f32 %v2255, %v2303
      %v2305 = vpop.f32.mrf.mxu0
      %v2306 = vadd.f32 %v2257, %v2305
      %2307 = vmatmul.bf16.gmra.mxu0 %v1049
      %v2308 = vpop.f32.mrf.mxu0
      %v2309 = vadd.f32 %v2260, %v2308
      %v2310 = vpop.f32.mrf.mxu0
      %v2311 = vadd.f32 %v2262, %v2310
      %2312 = vmatmul.bf16.gmra.mxu0 %v1052
      %v2313 = vpop.f32.mrf.mxu0
      %v2314 = vadd.f32 %v2265, %v2313
      %v2315 = vpop.f32.mrf.mxu0
      %v2316 = vadd.f32 %v2267, %v2315
      %2317 = vmatmul.bf16.gmra.mxu0 %v1055
      %v2318 = vpop.f32.mrf.mxu0
      %v2319 = vadd.f32 %v2270, %v2318
      %v2320 = vpop.f32.mrf.mxu0
      %v2321 = vadd.f32 %v2272, %v2320
      %2322 = vmatmul.bf16.gmra.mxu0 %v1058
      %v2323 = vpop.f32.mrf.mxu0
      %v2324 = vadd.f32 %v2275, %v2323
      %v2325 = vpop.f32.mrf.mxu0
      %v2326 = vadd.f32 %v2277, %v2325
      %2327 = vmatmul.bf16.gmra.mxu0 %v1061
      %v2328 = vpop.f32.mrf.mxu0
      %v2329 = vadd.f32 %v2280, %v2328
      %v2330 = vpop.f32.mrf.mxu0
      %v2331 = vadd.f32 %v2282, %v2330
      %2332 = vmatmul.bf16.gmra.mxu0 %v1064
      %v2333 = vpop.f32.mrf.mxu0
      %v2334 = vadd.f32 %v2285, %v2333
      %v2335 = vpop.f32.mrf.mxu0
      %v2336 = vadd.f32 %v2287, %v2335
      %2337 = vdwg.mxu0
      %v2338 = vpack.c.bf16 %v2299, %v2299
      %v2339 = vpack.c.bf16 %v2301, %v2301
      %v2340 = vpack.c.bf16 %v2304, %v2304
      %v2341 = vpack.c.bf16 %v2306, %v2306
      %v2342 = vpack.c.bf16 %v2309, %v2309
      %v2343 = vpack.c.bf16 %v2311, %v2311
      %v2344 = vpack.c.bf16 %v2314, %v2314
      %v2345 = vpack.c.bf16 %v2316, %v2316
      %v2346 = vpack.c.bf16 %v2319, %v2319
      %v2347 = vpack.c.bf16 %v2321, %v2321
      %v2348 = vpack.c.bf16 %v2324, %v2324
      %v2349 = vpack.c.bf16 %v2326, %v2326
      %v2350 = vpack.c.bf16 %v2329, %v2329
      %v2351 = vpack.c.bf16 %v2331, %v2331
      %v2352 = vpack.c.bf16 %v2334, %v2334
      %v2353 = vpack.c.bf16 %v2336, %v2336
      %2354 = vst [vmem:[#allocation2 + $0x140] sm:$0xf] %v2338
      %2355 = vst [vmem:[#allocation2 + $0x144] sm:$0xf] %v2339
      %2356 = vst [vmem:[#allocation2 + $0x148] sm:$0xf] %v2340
      %2357 = vst [vmem:[#allocation2 + $0x14c] sm:$0xf] %v2341
      %2358 = vst [vmem:[#allocation2 + $0x150] sm:$0xf] %v2342
      %2359 = vst [vmem:[#allocation2 + $0x154] sm:$0xf] %v2343
      %2360 = vst [vmem:[#allocation2 + $0x158] sm:$0xf] %v2344
      %2361 = vst [vmem:[#allocation2 + $0x15c] sm:$0xf] %v2345
      %2362 = vst [vmem:[#allocation2 + $0x160] sm:$0xf] %v2346
      %2363 = vst [vmem:[#allocation2 + $0x164] sm:$0xf] %v2347
      %2364 = vst [vmem:[#allocation2 + $0x168] sm:$0xf] %v2348
      %2365 = vst [vmem:[#allocation2 + $0x16c] sm:$0xf] %v2349
      %2366 = vst [vmem:[#allocation2 + $0x170] sm:$0xf] %v2350
      %2367 = vst [vmem:[#allocation2 + $0x174] sm:$0xf] %v2351
      %2368 = vst [vmem:[#allocation2 + $0x178] sm:$0xf] %v2352
      %2369 = vst [vmem:[#allocation2 + $0x17c] sm:$0xf] %v2353
      %s2370 = scalar_lea.vmem %s3, 600
      %v2371 = vld [vmem:[%s2370] sm:$0xf]
      %v2372 = vld [vmem:[%s2370 + $0x4] sm:$0xf]
      %v2373 = vld [vmem:[%s2370 + $0x8] sm:$0xf]
      %v2374 = vld [vmem:[%s2370 + $0xc] sm:$0xf]
      %v2375 = vld [vmem:[%s2370 + $0x10] sm:$0xf]
      %v2376 = vld [vmem:[%s2370 + $0x14] sm:$0xf]
      %v2377 = vld [vmem:[%s2370 + $0x18] sm:$0xf]
      %v2378 = vld [vmem:[%s2370 + $0x1c] sm:$0xf]
      %v2379 = vld [vmem:[%s2370 + $0x20] sm:$0xf]
      %v2380 = vld [vmem:[%s2370 + $0x24] sm:$0xf]
      %v2381 = vld [vmem:[%s2370 + $0x28] sm:$0xf]
      %v2382 = vld [vmem:[%s2370 + $0x2c] sm:$0xf]
      %v2383 = vld [vmem:[%s2370 + $0x30] sm:$0xf]
      %v2384 = vld [vmem:[%s2370 + $0x34] sm:$0xf]
      %v2385 = vld [vmem:[%s2370 + $0x38] sm:$0xf]
      %v2386 = vld [vmem:[%s2370 + $0x3c] sm:$0xf]
      %v2387 = vld [vmem:[%s2370 + $0x40] sm:$0xf]
      %v2388 = vld [vmem:[%s2370 + $0x44] sm:$0xf]
      %v2389 = vld [vmem:[%s2370 + $0x48] sm:$0xf]
      %v2390 = vld [vmem:[%s2370 + $0x4c] sm:$0xf]
      %v2391 = vld [vmem:[%s2370 + $0x50] sm:$0xf]
      %v2392 = vld [vmem:[%s2370 + $0x54] sm:$0xf]
      %v2393 = vld [vmem:[%s2370 + $0x58] sm:$0xf]
      %v2394 = vld [vmem:[%s2370 + $0x5c] sm:$0xf]
      %v2395 = vld [vmem:[%s2370 + $0x60] sm:$0x3]
      %v2421 = vunpack.c.l.b16 %v2371
      %v2422 = vunpack.c.l.b16 %v2372
      %v2423 = vunpack.c.l.b16 %v2373
      %v2424 = vunpack.c.l.b16 %v2374
      %v2425 = vunpack.c.l.b16 %v2375
      %v2426 = vunpack.c.l.b16 %v2376
      %v2427 = vunpack.c.l.b16 %v2377
      %v2428 = vunpack.c.l.b16 %v2378
      %v2429 = vunpack.c.l.b16 %v2379
      %v2430 = vunpack.c.l.b16 %v2380
      %v2431 = vunpack.c.l.b16 %v2381
      %v2432 = vunpack.c.l.b16 %v2382
      %v2433 = vunpack.c.l.b16 %v2383
      %v2434 = vunpack.c.l.b16 %v2384
      %v2435 = vunpack.c.l.b16 %v2385
      %v2436 = vunpack.c.l.b16 %v2386
      %v2437 = vunpack.c.l.b16 %v2387
      %v2438 = vunpack.c.l.b16 %v2388
      %v2439 = vunpack.c.l.b16 %v2389
      %v2440 = vunpack.c.l.b16 %v2390
      %v2441 = vunpack.c.l.b16 %v2391
      %v2442 = vunpack.c.l.b16 %v2392
      %v2443 = vunpack.c.l.b16 %v2393
      %v2444 = vunpack.c.l.b16 %v2394
      %v2445 = vunpack.c.l.b16 %v2395
      %v2446 = vpack.c.b16 %v2422, %v2421
      %v2447 = vpack.c.b16 %v2424, %v2423
      %v2448 = vpack.c.b16 %v2426, %v2425
      %v2449 = vpack.c.b16 %v2428, %v2427
      %v2450 = vpack.c.b16 %v2430, %v2429
      %v2451 = vpack.c.b16 %v2432, %v2431
      %v2452 = vpack.c.b16 %v2434, %v2433
      %v2453 = vpack.c.b16 %v2436, %v2435
      %v2454 = vpack.c.b16 %v2438, %v2437
      %v2455 = vpack.c.b16 %v2440, %v2439
      %v2456 = vpack.c.b16 %v2442, %v2441
      %v2457 = vpack.c.b16 %v2444, %v2443
      %v2458 = vpack.c.b16 %v2445, %v2445
      %v2472 = vsel %vm1066, %v2458, 0
      %2474 = vmatpush.bf16.msra.mxu0 %v2453
      %2475 = vmatpush.bf16.msra.mxu0 %v2452
      %2476 = vmatpush.bf16.msra.mxu0 %v2451
      %2477 = vmatpush.bf16.msra.mxu0 %v2450
      %2478 = vmatpush.bf16.msra.mxu0 %v2449
      %2479 = vmatpush.bf16.msra.mxu0 %v2448
      %2480 = vmatpush.bf16.msra.mxu0 %v2447
      %2481 = vmatpush.bf16.msra.mxu0 %v2446
      %2482 = vmatmul.bf16.gmra.mxu0 %v925
      %v2483 = vpop.f32.mrf.mxu0
      %v2484 = vadd.f32 0.0, %v2483
      %v2485 = vpop.f32.mrf.mxu0
      %v2486 = vadd.f32 0.0, %v2485
      %2487 = vmatmul.bf16.gmra.mxu0 %v927
      %v2488 = vpop.f32.mrf.mxu0
      %v2489 = vadd.f32 0.0, %v2488
      %v2490 = vpop.f32.mrf.mxu0
      %v2491 = vadd.f32 0.0, %v2490
      %2492 = vmatmul.bf16.gmra.mxu0 %v929
      %v2493 = vpop.f32.mrf.mxu0
      %v2494 = vadd.f32 0.0, %v2493
      %v2495 = vpop.f32.mrf.mxu0
      %v2496 = vadd.f32 0.0, %v2495
      %2497 = vmatmul.bf16.gmra.mxu0 %v931
      %v2498 = vpop.f32.mrf.mxu0
      %v2499 = vadd.f32 0.0, %v2498
      %v2500 = vpop.f32.mrf.mxu0
      %v2501 = vadd.f32 0.0, %v2500
      %2502 = vmatmul.bf16.gmra.mxu0 %v933
      %v2503 = vpop.f32.mrf.mxu0
      %v2504 = vadd.f32 0.0, %v2503
      %v2505 = vpop.f32.mrf.mxu0
      %v2506 = vadd.f32 0.0, %v2505
      %2507 = vmatmul.bf16.gmra.mxu0 %v935
      %v2508 = vpop.f32.mrf.mxu0
      %v2509 = vadd.f32 0.0, %v2508
      %v2510 = vpop.f32.mrf.mxu0
      %v2511 = vadd.f32 0.0, %v2510
      %2512 = vmatmul.bf16.gmra.mxu0 %v937
      %v2513 = vpop.f32.mrf.mxu0
      %v2514 = vadd.f32 0.0, %v2513
      %v2515 = vpop.f32.mrf.mxu0
      %v2516 = vadd.f32 0.0, %v2515
      %2517 = vmatmul.bf16.gmra.mxu0 %v939
      %v2518 = vpop.f32.mrf.mxu0
      %v2519 = vadd.f32 0.0, %v2518
      %v2520 = vpop.f32.mrf.mxu0
      %v2521 = vadd.f32 0.0, %v2520
      %2522 = vdwg.mxu0
      %2523 = vmatpush.bf16.msra.mxu0 0
      %2524 = vmatpush.bf16.msra.mxu0 0
      %2525 = vmatpush.bf16.msra.mxu0 0
      %2526 = vmatpush.bf16.msra.mxu0 %v2472
      %2527 = vmatpush.bf16.msra.mxu0 %v2457
      %2528 = vmatpush.bf16.msra.mxu0 %v2456
      %2529 = vmatpush.bf16.msra.mxu0 %v2455
      %2530 = vmatpush.bf16.msra.mxu0 %v2454
      %2531 = vmatmul.bf16.gmra.mxu0 %v1043
      %v2532 = vpop.f32.mrf.mxu0
      %v2533 = vadd.f32 %v2484, %v2532
      %v2534 = vpop.f32.mrf.mxu0
      %v2535 = vadd.f32 %v2486, %v2534
      %2536 = vmatmul.bf16.gmra.mxu0 %v1046
      %v2537 = vpop.f32.mrf.mxu0
      %v2538 = vadd.f32 %v2489, %v2537
      %v2539 = vpop.f32.mrf.mxu0
      %v2540 = vadd.f32 %v2491, %v2539
      %2541 = vmatmul.bf16.gmra.mxu0 %v1049
      %v2542 = vpop.f32.mrf.mxu0
      %v2543 = vadd.f32 %v2494, %v2542
      %v2544 = vpop.f32.mrf.mxu0
      %v2545 = vadd.f32 %v2496, %v2544
      %2546 = vmatmul.bf16.gmra.mxu0 %v1052
      %v2547 = vpop.f32.mrf.mxu0
      %v2548 = vadd.f32 %v2499, %v2547
      %v2549 = vpop.f32.mrf.mxu0
      %v2550 = vadd.f32 %v2501, %v2549
      %2551 = vmatmul.bf16.gmra.mxu0 %v1055
      %v2552 = vpop.f32.mrf.mxu0
      %v2553 = vadd.f32 %v2504, %v2552
      %v2554 = vpop.f32.mrf.mxu0
      %v2555 = vadd.f32 %v2506, %v2554
      %2556 = vmatmul.bf16.gmra.mxu0 %v1058
      %v2557 = vpop.f32.mrf.mxu0
      %v2558 = vadd.f32 %v2509, %v2557
      %v2559 = vpop.f32.mrf.mxu0
      %v2560 = vadd.f32 %v2511, %v2559
      %2561 = vmatmul.bf16.gmra.mxu0 %v1061
      %v2562 = vpop.f32.mrf.mxu0
      %v2563 = vadd.f32 %v2514, %v2562
      %v2564 = vpop.f32.mrf.mxu0
      %v2565 = vadd.f32 %v2516, %v2564
      %2566 = vmatmul.bf16.gmra.mxu0 %v1064
      %v2567 = vpop.f32.mrf.mxu0
      %v2568 = vadd.f32 %v2519, %v2567
      %v2569 = vpop.f32.mrf.mxu0
      %v2570 = vadd.f32 %v2521, %v2569
      %2571 = vdwg.mxu0
      %v2572 = vpack.c.bf16 %v2533, %v2533
      %v2573 = vpack.c.bf16 %v2535, %v2535
      %v2574 = vpack.c.bf16 %v2538, %v2538
      %v2575 = vpack.c.bf16 %v2540, %v2540
      %v2576 = vpack.c.bf16 %v2543, %v2543
      %v2577 = vpack.c.bf16 %v2545, %v2545
      %v2578 = vpack.c.bf16 %v2548, %v2548
      %v2579 = vpack.c.bf16 %v2550, %v2550
      %v2580 = vpack.c.bf16 %v2553, %v2553
      %v2581 = vpack.c.bf16 %v2555, %v2555
      %v2582 = vpack.c.bf16 %v2558, %v2558
      %v2583 = vpack.c.bf16 %v2560, %v2560
      %v2584 = vpack.c.bf16 %v2563, %v2563
      %v2585 = vpack.c.bf16 %v2565, %v2565
      %v2586 = vpack.c.bf16 %v2568, %v2568
      %v2587 = vpack.c.bf16 %v2570, %v2570
      %2588 = vst [vmem:[#allocation2 + $0x180] sm:$0xf] %v2572
      %2589 = vst [vmem:[#allocation2 + $0x184] sm:$0xf] %v2573
      %2590 = vst [vmem:[#allocation2 + $0x188] sm:$0xf] %v2574
      %2591 = vst [vmem:[#allocation2 + $0x18c] sm:$0xf] %v2575
      %2592 = vst [vmem:[#allocation2 + $0x190] sm:$0xf] %v2576
      %2593 = vst [vmem:[#allocation2 + $0x194] sm:$0xf] %v2577
      %2594 = vst [vmem:[#allocation2 + $0x198] sm:$0xf] %v2578
      %2595 = vst [vmem:[#allocation2 + $0x19c] sm:$0xf] %v2579
      %2596 = vst [vmem:[#allocation2 + $0x1a0] sm:$0xf] %v2580
      %2597 = vst [vmem:[#allocation2 + $0x1a4] sm:$0xf] %v2581
      %2598 = vst [vmem:[#allocation2 + $0x1a8] sm:$0xf] %v2582
      %2599 = vst [vmem:[#allocation2 + $0x1ac] sm:$0xf] %v2583
      %2600 = vst [vmem:[#allocation2 + $0x1b0] sm:$0xf] %v2584
      %2601 = vst [vmem:[#allocation2 + $0x1b4] sm:$0xf] %v2585
      %2602 = vst [vmem:[#allocation2 + $0x1b8] sm:$0xf] %v2586
      %2603 = vst [vmem:[#allocation2 + $0x1bc] sm:$0xf] %v2587
      %s2604 = scalar_lea.vmem %s3, 700
      %v2605 = vld [vmem:[%s2604] sm:$0xf]
      %v2606 = vld [vmem:[%s2604 + $0x4] sm:$0xf]
      %v2607 = vld [vmem:[%s2604 + $0x8] sm:$0xf]
      %v2608 = vld [vmem:[%s2604 + $0xc] sm:$0xf]
      %v2609 = vld [vmem:[%s2604 + $0x10] sm:$0xf]
      %v2610 = vld [vmem:[%s2604 + $0x14] sm:$0xf]
      %v2611 = vld [vmem:[%s2604 + $0x18] sm:$0xf]
      %v2612 = vld [vmem:[%s2604 + $0x1c] sm:$0xf]
      %v2613 = vld [vmem:[%s2604 + $0x20] sm:$0xf]
      %v2614 = vld [vmem:[%s2604 + $0x24] sm:$0xf]
      %v2615 = vld [vmem:[%s2604 + $0x28] sm:$0xf]
      %v2616 = vld [vmem:[%s2604 + $0x2c] sm:$0xf]
      %v2617 = vld [vmem:[%s2604 + $0x30] sm:$0xf]
      %v2618 = vld [vmem:[%s2604 + $0x34] sm:$0xf]
      %v2619 = vld [vmem:[%s2604 + $0x38] sm:$0xf]
      %v2620 = vld [vmem:[%s2604 + $0x3c] sm:$0xf]
      %v2621 = vld [vmem:[%s2604 + $0x40] sm:$0xf]
      %v2622 = vld [vmem:[%s2604 + $0x44] sm:$0xf]
      %v2623 = vld [vmem:[%s2604 + $0x48] sm:$0xf]
      %v2624 = vld [vmem:[%s2604 + $0x4c] sm:$0xf]
      %v2625 = vld [vmem:[%s2604 + $0x50] sm:$0xf]
      %v2626 = vld [vmem:[%s2604 + $0x54] sm:$0xf]
      %v2627 = vld [vmem:[%s2604 + $0x58] sm:$0xf]
      %v2628 = vld [vmem:[%s2604 + $0x5c] sm:$0xf]
      %v2629 = vld [vmem:[%s2604 + $0x60] sm:$0x3]
      %v2655 = vunpack.c.l.b16 %v2605
      %v2656 = vunpack.c.l.b16 %v2606
      %v2657 = vunpack.c.l.b16 %v2607
      %v2658 = vunpack.c.l.b16 %v2608
      %v2659 = vunpack.c.l.b16 %v2609
      %v2660 = vunpack.c.l.b16 %v2610
      %v2661 = vunpack.c.l.b16 %v2611
      %v2662 = vunpack.c.l.b16 %v2612
      %v2663 = vunpack.c.l.b16 %v2613
      %v2664 = vunpack.c.l.b16 %v2614
      %v2665 = vunpack.c.l.b16 %v2615
      %v2666 = vunpack.c.l.b16 %v2616
      %v2667 = vunpack.c.l.b16 %v2617
      %v2668 = vunpack.c.l.b16 %v2618
      %v2669 = vunpack.c.l.b16 %v2619
      %v2670 = vunpack.c.l.b16 %v2620
      %v2671 = vunpack.c.l.b16 %v2621
      %v2672 = vunpack.c.l.b16 %v2622
      %v2673 = vunpack.c.l.b16 %v2623
      %v2674 = vunpack.c.l.b16 %v2624
      %v2675 = vunpack.c.l.b16 %v2625
      %v2676 = vunpack.c.l.b16 %v2626
      %v2677 = vunpack.c.l.b16 %v2627
      %v2678 = vunpack.c.l.b16 %v2628
      %v2679 = vunpack.c.l.b16 %v2629
      %v2680 = vpack.c.b16 %v2656, %v2655
      %v2681 = vpack.c.b16 %v2658, %v2657
      %v2682 = vpack.c.b16 %v2660, %v2659
      %v2683 = vpack.c.b16 %v2662, %v2661
      %v2684 = vpack.c.b16 %v2664, %v2663
      %v2685 = vpack.c.b16 %v2666, %v2665
      %v2686 = vpack.c.b16 %v2668, %v2667
      %v2687 = vpack.c.b16 %v2670, %v2669
      %v2688 = vpack.c.b16 %v2672, %v2671
      %v2689 = vpack.c.b16 %v2674, %v2673
      %v2690 = vpack.c.b16 %v2676, %v2675
      %v2691 = vpack.c.b16 %v2678, %v2677
      %v2692 = vpack.c.b16 %v2679, %v2679
      %v2706 = vsel %vm1066, %v2692, 0
      %2708 = vmatpush.bf16.msra.mxu0 %v2687
      %2709 = vmatpush.bf16.msra.mxu0 %v2686
      %2710 = vmatpush.bf16.msra.mxu0 %v2685
      %2711 = vmatpush.bf16.msra.mxu0 %v2684
      %2712 = vmatpush.bf16.msra.mxu0 %v2683
      %2713 = vmatpush.bf16.msra.mxu0 %v2682
      %2714 = vmatpush.bf16.msra.mxu0 %v2681
      %2715 = vmatpush.bf16.msra.mxu0 %v2680
      %2716 = vmatmul.bf16.gmra.mxu0 %v925
      %v2717 = vpop.f32.mrf.mxu0
      %v2718 = vadd.f32 0.0, %v2717
      %v2719 = vpop.f32.mrf.mxu0
      %v2720 = vadd.f32 0.0, %v2719
      %2721 = vmatmul.bf16.gmra.mxu0 %v927
      %v2722 = vpop.f32.mrf.mxu0
      %v2723 = vadd.f32 0.0, %v2722
      %v2724 = vpop.f32.mrf.mxu0
      %v2725 = vadd.f32 0.0, %v2724
      %2726 = vmatmul.bf16.gmra.mxu0 %v929
      %v2727 = vpop.f32.mrf.mxu0
      %v2728 = vadd.f32 0.0, %v2727
      %v2729 = vpop.f32.mrf.mxu0
      %v2730 = vadd.f32 0.0, %v2729
      %2731 = vmatmul.bf16.gmra.mxu0 %v931
      %v2732 = vpop.f32.mrf.mxu0
      %v2733 = vadd.f32 0.0, %v2732
      %v2734 = vpop.f32.mrf.mxu0
      %v2735 = vadd.f32 0.0, %v2734
      %2736 = vmatmul.bf16.gmra.mxu0 %v933
      %v2737 = vpop.f32.mrf.mxu0
      %v2738 = vadd.f32 0.0, %v2737
      %v2739 = vpop.f32.mrf.mxu0
      %v2740 = vadd.f32 0.0, %v2739
      %2741 = vmatmul.bf16.gmra.mxu0 %v935
      %v2742 = vpop.f32.mrf.mxu0
      %v2743 = vadd.f32 0.0, %v2742
      %v2744 = vpop.f32.mrf.mxu0
      %v2745 = vadd.f32 0.0, %v2744
      %2746 = vmatmul.bf16.gmra.mxu0 %v937
      %v2747 = vpop.f32.mrf.mxu0
      %v2748 = vadd.f32 0.0, %v2747
      %v2749 = vpop.f32.mrf.mxu0
      %v2750 = vadd.f32 0.0, %v2749
      %2751 = vmatmul.bf16.gmra.mxu0 %v939
      %v2752 = vpop.f32.mrf.mxu0
      %v2753 = vadd.f32 0.0, %v2752
      %v2754 = vpop.f32.mrf.mxu0
      %v2755 = vadd.f32 0.0, %v2754
      %2756 = vdwg.mxu0
      %2757 = vmatpush.bf16.msra.mxu0 0
      %2758 = vmatpush.bf16.msra.mxu0 0
      %2759 = vmatpush.bf16.msra.mxu0 0
      %2760 = vmatpush.bf16.msra.mxu0 %v2706
      %2761 = vmatpush.bf16.msra.mxu0 %v2691
      %2762 = vmatpush.bf16.msra.mxu0 %v2690
      %2763 = vmatpush.bf16.msra.mxu0 %v2689
      %2764 = vmatpush.bf16.msra.mxu0 %v2688
      %2765 = vmatmul.bf16.gmra.mxu0 %v1043
      %v2766 = vpop.f32.mrf.mxu0
      %v2767 = vadd.f32 %v2718, %v2766
      %v2768 = vpop.f32.mrf.mxu0
      %v2769 = vadd.f32 %v2720, %v2768
      %2770 = vmatmul.bf16.gmra.mxu0 %v1046
      %v2771 = vpop.f32.mrf.mxu0
      %v2772 = vadd.f32 %v2723, %v2771
      %v2773 = vpop.f32.mrf.mxu0
      %v2774 = vadd.f32 %v2725, %v2773
      %2775 = vmatmul.bf16.gmra.mxu0 %v1049
      %v2776 = vpop.f32.mrf.mxu0
      %v2777 = vadd.f32 %v2728, %v2776
      %v2778 = vpop.f32.mrf.mxu0
      %v2779 = vadd.f32 %v2730, %v2778
      %2780 = vmatmul.bf16.gmra.mxu0 %v1052
      %v2781 = vpop.f32.mrf.mxu0
      %v2782 = vadd.f32 %v2733, %v2781
      %v2783 = vpop.f32.mrf.mxu0
      %v2784 = vadd.f32 %v2735, %v2783
      %2785 = vmatmul.bf16.gmra.mxu0 %v1055
      %v2786 = vpop.f32.mrf.mxu0
      %v2787 = vadd.f32 %v2738, %v2786
      %v2788 = vpop.f32.mrf.mxu0
      %v2789 = vadd.f32 %v2740, %v2788
      %2790 = vmatmul.bf16.gmra.mxu0 %v1058
      %v2791 = vpop.f32.mrf.mxu0
      %v2792 = vadd.f32 %v2743, %v2791
      %v2793 = vpop.f32.mrf.mxu0
      %v2794 = vadd.f32 %v2745, %v2793
      %2795 = vmatmul.bf16.gmra.mxu0 %v1061
      %v2796 = vpop.f32.mrf.mxu0
      %v2797 = vadd.f32 %v2748, %v2796
      %v2798 = vpop.f32.mrf.mxu0
      %v2799 = vadd.f32 %v2750, %v2798
      %2800 = vmatmul.bf16.gmra.mxu0 %v1064
      %v2801 = vpop.f32.mrf.mxu0
      %v2802 = vadd.f32 %v2753, %v2801
      %v2803 = vpop.f32.mrf.mxu0
      %v2804 = vadd.f32 %v2755, %v2803
      %2805 = vdwg.mxu0
      %v2806 = vpack.c.bf16 %v2767, %v2767
      %v2807 = vpack.c.bf16 %v2769, %v2769
      %v2808 = vpack.c.bf16 %v2772, %v2772
      %v2809 = vpack.c.bf16 %v2774, %v2774
      %v2810 = vpack.c.bf16 %v2777, %v2777
      %v2811 = vpack.c.bf16 %v2779, %v2779
      %v2812 = vpack.c.bf16 %v2782, %v2782
      %v2813 = vpack.c.bf16 %v2784, %v2784
      %v2814 = vpack.c.bf16 %v2787, %v2787
      %v2815 = vpack.c.bf16 %v2789, %v2789
      %v2816 = vpack.c.bf16 %v2792, %v2792
      %v2817 = vpack.c.bf16 %v2794, %v2794
      %v2818 = vpack.c.bf16 %v2797, %v2797
      %v2819 = vpack.c.bf16 %v2799, %v2799
      %v2820 = vpack.c.bf16 %v2802, %v2802
      %v2821 = vpack.c.bf16 %v2804, %v2804
      %2822 = vst [vmem:[#allocation2 + $0x1c0] sm:$0xf] %v2806
      %2823 = vst [vmem:[#allocation2 + $0x1c4] sm:$0xf] %v2807
      %2824 = vst [vmem:[#allocation2 + $0x1c8] sm:$0xf] %v2808
      %2825 = vst [vmem:[#allocation2 + $0x1cc] sm:$0xf] %v2809
      %2826 = vst [vmem:[#allocation2 + $0x1d0] sm:$0xf] %v2810
      %2827 = vst [vmem:[#allocation2 + $0x1d4] sm:$0xf] %v2811
      %2828 = vst [vmem:[#allocation2 + $0x1d8] sm:$0xf] %v2812
      %2829 = vst [vmem:[#allocation2 + $0x1dc] sm:$0xf] %v2813
      %2830 = vst [vmem:[#allocation2 + $0x1e0] sm:$0xf] %v2814
      %2831 = vst [vmem:[#allocation2 + $0x1e4] sm:$0xf] %v2815
      %2832 = vst [vmem:[#allocation2 + $0x1e8] sm:$0xf] %v2816
      %2833 = vst [vmem:[#allocation2 + $0x1ec] sm:$0xf] %v2817
      %2834 = vst [vmem:[#allocation2 + $0x1f0] sm:$0xf] %v2818
      %2835 = vst [vmem:[#allocation2 + $0x1f4] sm:$0xf] %v2819
      %2836 = vst [vmem:[#allocation2 + $0x1f8] sm:$0xf] %v2820
      %2837 = vst [vmem:[#allocation2 + $0x1fc] sm:$0xf] %v2821
      %s2838 = scalar_lea.vmem %s3, 800
      %v2839 = vld [vmem:[%s2838] sm:$0xf]
      %v2840 = vld [vmem:[%s2838 + $0x4] sm:$0xf]
      %v2841 = vld [vmem:[%s2838 + $0x8] sm:$0xf]
      %v2842 = vld [vmem:[%s2838 + $0xc] sm:$0xf]
      %v2843 = vld [vmem:[%s2838 + $0x10] sm:$0xf]
      %v2844 = vld [vmem:[%s2838 + $0x14] sm:$0xf]
      %v2845 = vld [vmem:[%s2838 + $0x18] sm:$0xf]
      %v2846 = vld [vmem:[%s2838 + $0x1c] sm:$0xf]
      %v2847 = vld [vmem:[%s2838 + $0x20] sm:$0xf]
      %v2848 = vld [vmem:[%s2838 + $0x24] sm:$0xf]
      %v2849 = vld [vmem:[%s2838 + $0x28] sm:$0xf]
      %v2850 = vld [vmem:[%s2838 + $0x2c] sm:$0xf]
      %v2851 = vld [vmem:[%s2838 + $0x30] sm:$0xf]
      %v2852 = vld [vmem:[%s2838 + $0x34] sm:$0xf]
      %v2853 = vld [vmem:[%s2838 + $0x38] sm:$0xf]
      %v2854 = vld [vmem:[%s2838 + $0x3c] sm:$0xf]
      %v2855 = vld [vmem:[%s2838 + $0x40] sm:$0xf]
      %v2856 = vld [vmem:[%s2838 + $0x44] sm:$0xf]
      %v2857 = vld [vmem:[%s2838 + $0x48] sm:$0xf]
      %v2858 = vld [vmem:[%s2838 + $0x4c] sm:$0xf]
      %v2859 = vld [vmem:[%s2838 + $0x50] sm:$0xf]
      %v2860 = vld [vmem:[%s2838 + $0x54] sm:$0xf]
      %v2861 = vld [vmem:[%s2838 + $0x58] sm:$0xf]
      %v2862 = vld [vmem:[%s2838 + $0x5c] sm:$0xf]
      %v2863 = vld [vmem:[%s2838 + $0x60] sm:$0x3]
      %v2889 = vunpack.c.l.b16 %v2839
      %v2890 = vunpack.c.l.b16 %v2840
      %v2891 = vunpack.c.l.b16 %v2841
      %v2892 = vunpack.c.l.b16 %v2842
      %v2893 = vunpack.c.l.b16 %v2843
      %v2894 = vunpack.c.l.b16 %v2844
      %v2895 = vunpack.c.l.b16 %v2845
      %v2896 = vunpack.c.l.b16 %v2846
      %v2897 = vunpack.c.l.b16 %v2847
      %v2898 = vunpack.c.l.b16 %v2848
      %v2899 = vunpack.c.l.b16 %v2849
      %v2900 = vunpack.c.l.b16 %v2850
      %v2901 = vunpack.c.l.b16 %v2851
      %v2902 = vunpack.c.l.b16 %v2852
      %v2903 = vunpack.c.l.b16 %v2853
      %v2904 = vunpack.c.l.b16 %v2854
      %v2905 = vunpack.c.l.b16 %v2855
      %v2906 = vunpack.c.l.b16 %v2856
      %v2907 = vunpack.c.l.b16 %v2857
      %v2908 = vunpack.c.l.b16 %v2858
      %v2909 = vunpack.c.l.b16 %v2859
      %v2910 = vunpack.c.l.b16 %v2860
      %v2911 = vunpack.c.l.b16 %v2861
      %v2912 = vunpack.c.l.b16 %v2862
      %v2913 = vunpack.c.l.b16 %v2863
      %v2914 = vpack.c.b16 %v2890, %v2889
      %v2915 = vpack.c.b16 %v2892, %v2891
      %v2916 = vpack.c.b16 %v2894, %v2893
      %v2917 = vpack.c.b16 %v2896, %v2895
      %v2918 = vpack.c.b16 %v2898, %v2897
      %v2919 = vpack.c.b16 %v2900, %v2899
      %v2920 = vpack.c.b16 %v2902, %v2901
      %v2921 = vpack.c.b16 %v2904, %v2903
      %v2922 = vpack.c.b16 %v2906, %v2905
      %v2923 = vpack.c.b16 %v2908, %v2907
      %v2924 = vpack.c.b16 %v2910, %v2909
      %v2925 = vpack.c.b16 %v2912, %v2911
      %v2926 = vpack.c.b16 %v2913, %v2913
      %v2940 = vsel %vm1066, %v2926, 0
      %2942 = vmatpush.bf16.msra.mxu0 %v2921
      %2943 = vmatpush.bf16.msra.mxu0 %v2920
      %2944 = vmatpush.bf16.msra.mxu0 %v2919
      %2945 = vmatpush.bf16.msra.mxu0 %v2918
      %2946 = vmatpush.bf16.msra.mxu0 %v2917
      %2947 = vmatpush.bf16.msra.mxu0 %v2916
      %2948 = vmatpush.bf16.msra.mxu0 %v2915
      %2949 = vmatpush.bf16.msra.mxu0 %v2914
      %2950 = vmatmul.bf16.gmra.mxu0 %v925
      %v2951 = vpop.f32.mrf.mxu0
      %v2952 = vadd.f32 0.0, %v2951
      %v2953 = vpop.f32.mrf.mxu0
      %v2954 = vadd.f32 0.0, %v2953
      %2955 = vmatmul.bf16.gmra.mxu0 %v927
      %v2956 = vpop.f32.mrf.mxu0
      %v2957 = vadd.f32 0.0, %v2956
      %v2958 = vpop.f32.mrf.mxu0
      %v2959 = vadd.f32 0.0, %v2958
      %2960 = vmatmul.bf16.gmra.mxu0 %v929
      %v2961 = vpop.f32.mrf.mxu0
      %v2962 = vadd.f32 0.0, %v2961
      %v2963 = vpop.f32.mrf.mxu0
      %v2964 = vadd.f32 0.0, %v2963
      %2965 = vmatmul.bf16.gmra.mxu0 %v931
      %v2966 = vpop.f32.mrf.mxu0
      %v2967 = vadd.f32 0.0, %v2966
      %v2968 = vpop.f32.mrf.mxu0
      %v2969 = vadd.f32 0.0, %v2968
      %2970 = vmatmul.bf16.gmra.mxu0 %v933
      %v2971 = vpop.f32.mrf.mxu0
      %v2972 = vadd.f32 0.0, %v2971
      %v2973 = vpop.f32.mrf.mxu0
      %v2974 = vadd.f32 0.0, %v2973
      %2975 = vmatmul.bf16.gmra.mxu0 %v935
      %v2976 = vpop.f32.mrf.mxu0
      %v2977 = vadd.f32 0.0, %v2976
      %v2978 = vpop.f32.mrf.mxu0
      %v2979 = vadd.f32 0.0, %v2978
      %2980 = vmatmul.bf16.gmra.mxu0 %v937
      %v2981 = vpop.f32.mrf.mxu0
      %v2982 = vadd.f32 0.0, %v2981
      %v2983 = vpop.f32.mrf.mxu0
      %v2984 = vadd.f32 0.0, %v2983
      %2985 = vmatmul.bf16.gmra.mxu0 %v939
      %v2986 = vpop.f32.mrf.mxu0
      %v2987 = vadd.f32 0.0, %v2986
      %v2988 = vpop.f32.mrf.mxu0
      %v2989 = vadd.f32 0.0, %v2988
      %2990 = vdwg.mxu0
      %2991 = vmatpush.bf16.msra.mxu0 0
      %2992 = vmatpush.bf16.msra.mxu0 0
      %2993 = vmatpush.bf16.msra.mxu0 0
      %2994 = vmatpush.bf16.msra.mxu0 %v2940
      %2995 = vmatpush.bf16.msra.mxu0 %v2925
      %2996 = vmatpush.bf16.msra.mxu0 %v2924
      %2997 = vmatpush.bf16.msra.mxu0 %v2923
      %2998 = vmatpush.bf16.msra.mxu0 %v2922
      %2999 = vmatmul.bf16.gmra.mxu0 %v1043
      %v3000 = vpop.f32.mrf.mxu0
      %v3001 = vadd.f32 %v2952, %v3000
      %v3002 = vpop.f32.mrf.mxu0
      %v3003 = vadd.f32 %v2954, %v3002
      %3004 = vmatmul.bf16.gmra.mxu0 %v1046
      %v3005 = vpop.f32.mrf.mxu0
      %v3006 = vadd.f32 %v2957, %v3005
      %v3007 = vpop.f32.mrf.mxu0
      %v3008 = vadd.f32 %v2959, %v3007
      %3009 = vmatmul.bf16.gmra.mxu0 %v1049
      %v3010 = vpop.f32.mrf.mxu0
      %v3011 = vadd.f32 %v2962, %v3010
      %v3012 = vpop.f32.mrf.mxu0
      %v3013 = vadd.f32 %v2964, %v3012
      %3014 = vmatmul.bf16.gmra.mxu0 %v1052
      %v3015 = vpop.f32.mrf.mxu0
      %v3016 = vadd.f32 %v2967, %v3015
      %v3017 = vpop.f32.mrf.mxu0
      %v3018 = vadd.f32 %v2969, %v3017
      %3019 = vmatmul.bf16.gmra.mxu0 %v1055
      %v3020 = vpop.f32.mrf.mxu0
      %v3021 = vadd.f32 %v2972, %v3020
      %v3022 = vpop.f32.mrf.mxu0
      %v3023 = vadd.f32 %v2974, %v3022
      %3024 = vmatmul.bf16.gmra.mxu0 %v1058
      %v3025 = vpop.f32.mrf.mxu0
      %v3026 = vadd.f32 %v2977, %v3025
      %v3027 = vpop.f32.mrf.mxu0
      %v3028 = vadd.f32 %v2979, %v3027
      %3029 = vmatmul.bf16.gmra.mxu0 %v1061
      %v3030 = vpop.f32.mrf.mxu0
      %v3031 = vadd.f32 %v2982, %v3030
      %v3032 = vpop.f32.mrf.mxu0
      %v3033 = vadd.f32 %v2984, %v3032
      %3034 = vmatmul.bf16.gmra.mxu0 %v1064
      %v3035 = vpop.f32.mrf.mxu0
      %v3036 = vadd.f32 %v2987, %v3035
      %v3037 = vpop.f32.mrf.mxu0
      %v3038 = vadd.f32 %v2989, %v3037
      %3039 = vdwg.mxu0
      %v3040 = vpack.c.bf16 %v3001, %v3001
      %v3041 = vpack.c.bf16 %v3003, %v3003
      %v3042 = vpack.c.bf16 %v3006, %v3006
      %v3043 = vpack.c.bf16 %v3008, %v3008
      %v3044 = vpack.c.bf16 %v3011, %v3011
      %v3045 = vpack.c.bf16 %v3013, %v3013
      %v3046 = vpack.c.bf16 %v3016, %v3016
      %v3047 = vpack.c.bf16 %v3018, %v3018
      %v3048 = vpack.c.bf16 %v3021, %v3021
      %v3049 = vpack.c.bf16 %v3023, %v3023
      %v3050 = vpack.c.bf16 %v3026, %v3026
      %v3051 = vpack.c.bf16 %v3028, %v3028
      %v3052 = vpack.c.bf16 %v3031, %v3031
      %v3053 = vpack.c.bf16 %v3033, %v3033
      %v3054 = vpack.c.bf16 %v3036, %v3036
      %v3055 = vpack.c.bf16 %v3038, %v3038
      %3056 = vst [vmem:[#allocation2 + $0x200] sm:$0xf] %v3040
      %3057 = vst [vmem:[#allocation2 + $0x204] sm:$0xf] %v3041
      %3058 = vst [vmem:[#allocation2 + $0x208] sm:$0xf] %v3042
      %3059 = vst [vmem:[#allocation2 + $0x20c] sm:$0xf] %v3043
      %3060 = vst [vmem:[#allocation2 + $0x210] sm:$0xf] %v3044
      %3061 = vst [vmem:[#allocation2 + $0x214] sm:$0xf] %v3045
      %3062 = vst [vmem:[#allocation2 + $0x218] sm:$0xf] %v3046
      %3063 = vst [vmem:[#allocation2 + $0x21c] sm:$0xf] %v3047
      %3064 = vst [vmem:[#allocation2 + $0x220] sm:$0xf] %v3048
      %3065 = vst [vmem:[#allocation2 + $0x224] sm:$0xf] %v3049
      %3066 = vst [vmem:[#allocation2 + $0x228] sm:$0xf] %v3050
      %3067 = vst [vmem:[#allocation2 + $0x22c] sm:$0xf] %v3051
      %3068 = vst [vmem:[#allocation2 + $0x230] sm:$0xf] %v3052
      %3069 = vst [vmem:[#allocation2 + $0x234] sm:$0xf] %v3053
      %3070 = vst [vmem:[#allocation2 + $0x238] sm:$0xf] %v3054
      %3071 = vst [vmem:[#allocation2 + $0x23c] sm:$0xf] %v3055
      %s3072 = scalar_lea.vmem %s3, 900
      %v3073 = vld [vmem:[%s3072] sm:$0xf]
      %v3074 = vld [vmem:[%s3072 + $0x4] sm:$0xf]
      %v3075 = vld [vmem:[%s3072 + $0x8] sm:$0xf]
      %v3076 = vld [vmem:[%s3072 + $0xc] sm:$0xf]
      %v3077 = vld [vmem:[%s3072 + $0x10] sm:$0xf]
      %v3078 = vld [vmem:[%s3072 + $0x14] sm:$0xf]
      %v3079 = vld [vmem:[%s3072 + $0x18] sm:$0xf]
      %v3080 = vld [vmem:[%s3072 + $0x1c] sm:$0xf]
      %v3081 = vld [vmem:[%s3072 + $0x20] sm:$0xf]
      %v3082 = vld [vmem:[%s3072 + $0x24] sm:$0xf]
      %v3083 = vld [vmem:[%s3072 + $0x28] sm:$0xf]
      %v3084 = vld [vmem:[%s3072 + $0x2c] sm:$0xf]
      %v3085 = vld [vmem:[%s3072 + $0x30] sm:$0xf]
      %v3086 = vld [vmem:[%s3072 + $0x34] sm:$0xf]
      %v3087 = vld [vmem:[%s3072 + $0x38] sm:$0xf]
      %v3088 = vld [vmem:[%s3072 + $0x3c] sm:$0xf]
      %v3089 = vld [vmem:[%s3072 + $0x40] sm:$0xf]
      %v3090 = vld [vmem:[%s3072 + $0x44] sm:$0xf]
      %v3091 = vld [vmem:[%s3072 + $0x48] sm:$0xf]
      %v3092 = vld [vmem:[%s3072 + $0x4c] sm:$0xf]
      %v3093 = vld [vmem:[%s3072 + $0x50] sm:$0xf]
      %v3094 = vld [vmem:[%s3072 + $0x54] sm:$0xf]
      %v3095 = vld [vmem:[%s3072 + $0x58] sm:$0xf]
      %v3096 = vld [vmem:[%s3072 + $0x5c] sm:$0xf]
      %v3097 = vld [vmem:[%s3072 + $0x60] sm:$0x3]
      %v3123 = vunpack.c.l.b16 %v3073
      %v3124 = vunpack.c.l.b16 %v3074
      %v3125 = vunpack.c.l.b16 %v3075
      %v3126 = vunpack.c.l.b16 %v3076
      %v3127 = vunpack.c.l.b16 %v3077
      %v3128 = vunpack.c.l.b16 %v3078
      %v3129 = vunpack.c.l.b16 %v3079
      %v3130 = vunpack.c.l.b16 %v3080
      %v3131 = vunpack.c.l.b16 %v3081
      %v3132 = vunpack.c.l.b16 %v3082
      %v3133 = vunpack.c.l.b16 %v3083
      %v3134 = vunpack.c.l.b16 %v3084
      %v3135 = vunpack.c.l.b16 %v3085
      %v3136 = vunpack.c.l.b16 %v3086
      %v3137 = vunpack.c.l.b16 %v3087
      %v3138 = vunpack.c.l.b16 %v3088
      %v3139 = vunpack.c.l.b16 %v3089
      %v3140 = vunpack.c.l.b16 %v3090
      %v3141 = vunpack.c.l.b16 %v3091
      %v3142 = vunpack.c.l.b16 %v3092
      %v3143 = vunpack.c.l.b16 %v3093
      %v3144 = vunpack.c.l.b16 %v3094
      %v3145 = vunpack.c.l.b16 %v3095
      %v3146 = vunpack.c.l.b16 %v3096
      %v3147 = vunpack.c.l.b16 %v3097
      %v3148 = vpack.c.b16 %v3124, %v3123
      %v3149 = vpack.c.b16 %v3126, %v3125
      %v3150 = vpack.c.b16 %v3128, %v3127
      %v3151 = vpack.c.b16 %v3130, %v3129
      %v3152 = vpack.c.b16 %v3132, %v3131
      %v3153 = vpack.c.b16 %v3134, %v3133
      %v3154 = vpack.c.b16 %v3136, %v3135
      %v3155 = vpack.c.b16 %v3138, %v3137
      %v3156 = vpack.c.b16 %v3140, %v3139
      %v3157 = vpack.c.b16 %v3142, %v3141
      %v3158 = vpack.c.b16 %v3144, %v3143
      %v3159 = vpack.c.b16 %v3146, %v3145
      %v3160 = vpack.c.b16 %v3147, %v3147
      %v3174 = vsel %vm1066, %v3160, 0
      %3176 = vmatpush.bf16.msra.mxu0 %v3155
      %3177 = vmatpush.bf16.msra.mxu0 %v3154
      %3178 = vmatpush.bf16.msra.mxu0 %v3153
      %3179 = vmatpush.bf16.msra.mxu0 %v3152
      %3180 = vmatpush.bf16.msra.mxu0 %v3151
      %3181 = vmatpush.bf16.msra.mxu0 %v3150
      %3182 = vmatpush.bf16.msra.mxu0 %v3149
      %3183 = vmatpush.bf16.msra.mxu0 %v3148
      %3184 = vmatmul.bf16.gmra.mxu0 %v925
      %v3185 = vpop.f32.mrf.mxu0
      %v3186 = vadd.f32 0.0, %v3185
      %v3187 = vpop.f32.mrf.mxu0
      %v3188 = vadd.f32 0.0, %v3187
      %3189 = vmatmul.bf16.gmra.mxu0 %v927
      %v3190 = vpop.f32.mrf.mxu0
      %v3191 = vadd.f32 0.0, %v3190
      %v3192 = vpop.f32.mrf.mxu0
      %v3193 = vadd.f32 0.0, %v3192
      %3194 = vmatmul.bf16.gmra.mxu0 %v929
      %v3195 = vpop.f32.mrf.mxu0
      %v3196 = vadd.f32 0.0, %v3195
      %v3197 = vpop.f32.mrf.mxu0
      %v3198 = vadd.f32 0.0, %v3197
      %3199 = vmatmul.bf16.gmra.mxu0 %v931
      %v3200 = vpop.f32.mrf.mxu0
      %v3201 = vadd.f32 0.0, %v3200
      %v3202 = vpop.f32.mrf.mxu0
      %v3203 = vadd.f32 0.0, %v3202
      %3204 = vmatmul.bf16.gmra.mxu0 %v933
      %v3205 = vpop.f32.mrf.mxu0
      %v3206 = vadd.f32 0.0, %v3205
      %v3207 = vpop.f32.mrf.mxu0
      %v3208 = vadd.f32 0.0, %v3207
      %3209 = vmatmul.bf16.gmra.mxu0 %v935
      %v3210 = vpop.f32.mrf.mxu0
      %v3211 = vadd.f32 0.0, %v3210
      %v3212 = vpop.f32.mrf.mxu0
      %v3213 = vadd.f32 0.0, %v3212
      %3214 = vmatmul.bf16.gmra.mxu0 %v937
      %v3215 = vpop.f32.mrf.mxu0
      %v3216 = vadd.f32 0.0, %v3215
      %v3217 = vpop.f32.mrf.mxu0
      %v3218 = vadd.f32 0.0, %v3217
      %3219 = vmatmul.bf16.gmra.mxu0 %v939
      %v3220 = vpop.f32.mrf.mxu0
      %v3221 = vadd.f32 0.0, %v3220
      %v3222 = vpop.f32.mrf.mxu0
      %v3223 = vadd.f32 0.0, %v3222
      %3224 = vdwg.mxu0
      %3225 = vmatpush.bf16.msra.mxu0 0
      %3226 = vmatpush.bf16.msra.mxu0 0
      %3227 = vmatpush.bf16.msra.mxu0 0
      %3228 = vmatpush.bf16.msra.mxu0 %v3174
      %3229 = vmatpush.bf16.msra.mxu0 %v3159
      %3230 = vmatpush.bf16.msra.mxu0 %v3158
      %3231 = vmatpush.bf16.msra.mxu0 %v3157
      %3232 = vmatpush.bf16.msra.mxu0 %v3156
      %3233 = vmatmul.bf16.gmra.mxu0 %v1043
      %v3234 = vpop.f32.mrf.mxu0
      %v3235 = vadd.f32 %v3186, %v3234
      %v3236 = vpop.f32.mrf.mxu0
      %v3237 = vadd.f32 %v3188, %v3236
      %3238 = vmatmul.bf16.gmra.mxu0 %v1046
      %v3239 = vpop.f32.mrf.mxu0
      %v3240 = vadd.f32 %v3191, %v3239
      %v3241 = vpop.f32.mrf.mxu0
      %v3242 = vadd.f32 %v3193, %v3241
      %3243 = vmatmul.bf16.gmra.mxu0 %v1049
      %v3244 = vpop.f32.mrf.mxu0
      %v3245 = vadd.f32 %v3196, %v3244
      %v3246 = vpop.f32.mrf.mxu0
      %v3247 = vadd.f32 %v3198, %v3246
      %3248 = vmatmul.bf16.gmra.mxu0 %v1052
      %v3249 = vpop.f32.mrf.mxu0
      %v3250 = vadd.f32 %v3201, %v3249
      %v3251 = vpop.f32.mrf.mxu0
      %v3252 = vadd.f32 %v3203, %v3251
      %3253 = vmatmul.bf16.gmra.mxu0 %v1055
      %v3254 = vpop.f32.mrf.mxu0
      %v3255 = vadd.f32 %v3206, %v3254
      %v3256 = vpop.f32.mrf.mxu0
      %v3257 = vadd.f32 %v3208, %v3256
      %3258 = vmatmul.bf16.gmra.mxu0 %v1058
      %v3259 = vpop.f32.mrf.mxu0
      %v3260 = vadd.f32 %v3211, %v3259
      %v3261 = vpop.f32.mrf.mxu0
      %v3262 = vadd.f32 %v3213, %v3261
      %3263 = vmatmul.bf16.gmra.mxu0 %v1061
      %v3264 = vpop.f32.mrf.mxu0
      %v3265 = vadd.f32 %v3216, %v3264
      %v3266 = vpop.f32.mrf.mxu0
      %v3267 = vadd.f32 %v3218, %v3266
      %3268 = vmatmul.bf16.gmra.mxu0 %v1064
      %v3269 = vpop.f32.mrf.mxu0
      %v3270 = vadd.f32 %v3221, %v3269
      %v3271 = vpop.f32.mrf.mxu0
      %v3272 = vadd.f32 %v3223, %v3271
      %3273 = vdwg.mxu0
      %v3274 = vpack.c.bf16 %v3235, %v3235
      %v3275 = vpack.c.bf16 %v3237, %v3237
      %v3276 = vpack.c.bf16 %v3240, %v3240
      %v3277 = vpack.c.bf16 %v3242, %v3242
      %v3278 = vpack.c.bf16 %v3245, %v3245
      %v3279 = vpack.c.bf16 %v3247, %v3247
      %v3280 = vpack.c.bf16 %v3250, %v3250
      %v3281 = vpack.c.bf16 %v3252, %v3252
      %v3282 = vpack.c.bf16 %v3255, %v3255
      %v3283 = vpack.c.bf16 %v3257, %v3257
      %v3284 = vpack.c.bf16 %v3260, %v3260
      %v3285 = vpack.c.bf16 %v3262, %v3262
      %v3286 = vpack.c.bf16 %v3265, %v3265
      %v3287 = vpack.c.bf16 %v3267, %v3267
      %v3288 = vpack.c.bf16 %v3270, %v3270
      %v3289 = vpack.c.bf16 %v3272, %v3272
      %3290 = vst [vmem:[#allocation2 + $0x240] sm:$0xf] %v3274
      %3291 = vst [vmem:[#allocation2 + $0x244] sm:$0xf] %v3275
      %3292 = vst [vmem:[#allocation2 + $0x248] sm:$0xf] %v3276
      %3293 = vst [vmem:[#allocation2 + $0x24c] sm:$0xf] %v3277
      %3294 = vst [vmem:[#allocation2 + $0x250] sm:$0xf] %v3278
      %3295 = vst [vmem:[#allocation2 + $0x254] sm:$0xf] %v3279
      %3296 = vst [vmem:[#allocation2 + $0x258] sm:$0xf] %v3280
      %3297 = vst [vmem:[#allocation2 + $0x25c] sm:$0xf] %v3281
      %3298 = vst [vmem:[#allocation2 + $0x260] sm:$0xf] %v3282
      %3299 = vst [vmem:[#allocation2 + $0x264] sm:$0xf] %v3283
      %3300 = vst [vmem:[#allocation2 + $0x268] sm:$0xf] %v3284
      %3301 = vst [vmem:[#allocation2 + $0x26c] sm:$0xf] %v3285
      %3302 = vst [vmem:[#allocation2 + $0x270] sm:$0xf] %v3286
      %3303 = vst [vmem:[#allocation2 + $0x274] sm:$0xf] %v3287
      %3304 = vst [vmem:[#allocation2 + $0x278] sm:$0xf] %v3288
      %3305 = vst [vmem:[#allocation2 + $0x27c] sm:$0xf] %v3289
      %s3306 = scalar_lea.vmem %s3, 1000
      %v3307 = vld [vmem:[%s3306] sm:$0xf]
      %v3308 = vld [vmem:[%s3306 + $0x4] sm:$0xf]
      %v3309 = vld [vmem:[%s3306 + $0x8] sm:$0xf]
      %v3310 = vld [vmem:[%s3306 + $0xc] sm:$0xf]
      %v3311 = vld [vmem:[%s3306 + $0x10] sm:$0xf]
      %v3312 = vld [vmem:[%s3306 + $0x14] sm:$0xf]
      %v3313 = vld [vmem:[%s3306 + $0x18] sm:$0xf]
      %v3314 = vld [vmem:[%s3306 + $0x1c] sm:$0xf]
      %v3315 = vld [vmem:[%s3306 + $0x20] sm:$0xf]
      %v3316 = vld [vmem:[%s3306 + $0x24] sm:$0xf]
      %v3317 = vld [vmem:[%s3306 + $0x28] sm:$0xf]
      %v3318 = vld [vmem:[%s3306 + $0x2c] sm:$0xf]
      %v3319 = vld [vmem:[%s3306 + $0x30] sm:$0xf]
      %v3320 = vld [vmem:[%s3306 + $0x34] sm:$0xf]
      %v3321 = vld [vmem:[%s3306 + $0x38] sm:$0xf]
      %v3322 = vld [vmem:[%s3306 + $0x3c] sm:$0xf]
      %v3323 = vld [vmem:[%s3306 + $0x40] sm:$0xf]
      %v3324 = vld [vmem:[%s3306 + $0x44] sm:$0xf]
      %v3325 = vld [vmem:[%s3306 + $0x48] sm:$0xf]
      %v3326 = vld [vmem:[%s3306 + $0x4c] sm:$0xf]
      %v3327 = vld [vmem:[%s3306 + $0x50] sm:$0xf]
      %v3328 = vld [vmem:[%s3306 + $0x54] sm:$0xf]
      %v3329 = vld [vmem:[%s3306 + $0x58] sm:$0xf]
      %v3330 = vld [vmem:[%s3306 + $0x5c] sm:$0xf]
      %v3331 = vld [vmem:[%s3306 + $0x60] sm:$0x3]
      %v3357 = vunpack.c.l.b16 %v3307
      %v3358 = vunpack.c.l.b16 %v3308
      %v3359 = vunpack.c.l.b16 %v3309
      %v3360 = vunpack.c.l.b16 %v3310
      %v3361 = vunpack.c.l.b16 %v3311
      %v3362 = vunpack.c.l.b16 %v3312
      %v3363 = vunpack.c.l.b16 %v3313
      %v3364 = vunpack.c.l.b16 %v3314
      %v3365 = vunpack.c.l.b16 %v3315
      %v3366 = vunpack.c.l.b16 %v3316
      %v3367 = vunpack.c.l.b16 %v3317
      %v3368 = vunpack.c.l.b16 %v3318
      %v3369 = vunpack.c.l.b16 %v3319
      %v3370 = vunpack.c.l.b16 %v3320
      %v3371 = vunpack.c.l.b16 %v3321
      %v3372 = vunpack.c.l.b16 %v3322
      %v3373 = vunpack.c.l.b16 %v3323
      %v3374 = vunpack.c.l.b16 %v3324
      %v3375 = vunpack.c.l.b16 %v3325
      %v3376 = vunpack.c.l.b16 %v3326
      %v3377 = vunpack.c.l.b16 %v3327
      %v3378 = vunpack.c.l.b16 %v3328
      %v3379 = vunpack.c.l.b16 %v3329
      %v3380 = vunpack.c.l.b16 %v3330
      %v3381 = vunpack.c.l.b16 %v3331
      %v3382 = vpack.c.b16 %v3358, %v3357
      %v3383 = vpack.c.b16 %v3360, %v3359
      %v3384 = vpack.c.b16 %v3362, %v3361
      %v3385 = vpack.c.b16 %v3364, %v3363
      %v3386 = vpack.c.b16 %v3366, %v3365
      %v3387 = vpack.c.b16 %v3368, %v3367
      %v3388 = vpack.c.b16 %v3370, %v3369
      %v3389 = vpack.c.b16 %v3372, %v3371
      %v3390 = vpack.c.b16 %v3374, %v3373
      %v3391 = vpack.c.b16 %v3376, %v3375
      %v3392 = vpack.c.b16 %v3378, %v3377
      %v3393 = vpack.c.b16 %v3380, %v3379
      %v3394 = vpack.c.b16 %v3381, %v3381
      %v3408 = vsel %vm1066, %v3394, 0
      %3410 = vmatpush.bf16.msra.mxu0 %v3389
      %3411 = vmatpush.bf16.msra.mxu0 %v3388
      %3412 = vmatpush.bf16.msra.mxu0 %v3387
      %3413 = vmatpush.bf16.msra.mxu0 %v3386
      %3414 = vmatpush.bf16.msra.mxu0 %v3385
      %3415 = vmatpush.bf16.msra.mxu0 %v3384
      %3416 = vmatpush.bf16.msra.mxu0 %v3383
      %3417 = vmatpush.bf16.msra.mxu0 %v3382
      %3418 = vmatmul.bf16.gmra.mxu0 %v925
      %v3419 = vpop.f32.mrf.mxu0
      %v3420 = vadd.f32 0.0, %v3419
      %v3421 = vpop.f32.mrf.mxu0
      %v3422 = vadd.f32 0.0, %v3421
      %3423 = vmatmul.bf16.gmra.mxu0 %v927
      %v3424 = vpop.f32.mrf.mxu0
      %v3425 = vadd.f32 0.0, %v3424
      %v3426 = vpop.f32.mrf.mxu0
      %v3427 = vadd.f32 0.0, %v3426
      %3428 = vmatmul.bf16.gmra.mxu0 %v929
      %v3429 = vpop.f32.mrf.mxu0
      %v3430 = vadd.f32 0.0, %v3429
      %v3431 = vpop.f32.mrf.mxu0
      %v3432 = vadd.f32 0.0, %v3431
      %3433 = vmatmul.bf16.gmra.mxu0 %v931
      %v3434 = vpop.f32.mrf.mxu0
      %v3435 = vadd.f32 0.0, %v3434
      %v3436 = vpop.f32.mrf.mxu0
      %v3437 = vadd.f32 0.0, %v3436
      %3438 = vmatmul.bf16.gmra.mxu0 %v933
      %v3439 = vpop.f32.mrf.mxu0
      %v3440 = vadd.f32 0.0, %v3439
      %v3441 = vpop.f32.mrf.mxu0
      %v3442 = vadd.f32 0.0, %v3441
      %3443 = vmatmul.bf16.gmra.mxu0 %v935
      %v3444 = vpop.f32.mrf.mxu0
      %v3445 = vadd.f32 0.0, %v3444
      %v3446 = vpop.f32.mrf.mxu0
      %v3447 = vadd.f32 0.0, %v3446
      %3448 = vmatmul.bf16.gmra.mxu0 %v937
      %v3449 = vpop.f32.mrf.mxu0
      %v3450 = vadd.f32 0.0, %v3449
      %v3451 = vpop.f32.mrf.mxu0
      %v3452 = vadd.f32 0.0, %v3451
      %3453 = vmatmul.bf16.gmra.mxu0 %v939
      %v3454 = vpop.f32.mrf.mxu0
      %v3455 = vadd.f32 0.0, %v3454
      %v3456 = vpop.f32.mrf.mxu0
      %v3457 = vadd.f32 0.0, %v3456
      %3458 = vdwg.mxu0
      %3459 = vmatpush.bf16.msra.mxu0 0
      %3460 = vmatpush.bf16.msra.mxu0 0
      %3461 = vmatpush.bf16.msra.mxu0 0
      %3462 = vmatpush.bf16.msra.mxu0 %v3408
      %3463 = vmatpush.bf16.msra.mxu0 %v3393
      %3464 = vmatpush.bf16.msra.mxu0 %v3392
      %3465 = vmatpush.bf16.msra.mxu0 %v3391
      %3466 = vmatpush.bf16.msra.mxu0 %v3390
      %3467 = vmatmul.bf16.gmra.mxu0 %v1043
      %v3468 = vpop.f32.mrf.mxu0
      %v3469 = vadd.f32 %v3420, %v3468
      %v3470 = vpop.f32.mrf.mxu0
      %v3471 = vadd.f32 %v3422, %v3470
      %3472 = vmatmul.bf16.gmra.mxu0 %v1046
      %v3473 = vpop.f32.mrf.mxu0
      %v3474 = vadd.f32 %v3425, %v3473
      %v3475 = vpop.f32.mrf.mxu0
      %v3476 = vadd.f32 %v3427, %v3475
      %3477 = vmatmul.bf16.gmra.mxu0 %v1049
      %v3478 = vpop.f32.mrf.mxu0
      %v3479 = vadd.f32 %v3430, %v3478
      %v3480 = vpop.f32.mrf.mxu0
      %v3481 = vadd.f32 %v3432, %v3480
      %3482 = vmatmul.bf16.gmra.mxu0 %v1052
      %v3483 = vpop.f32.mrf.mxu0
      %v3484 = vadd.f32 %v3435, %v3483
      %v3485 = vpop.f32.mrf.mxu0
      %v3486 = vadd.f32 %v3437, %v3485
      %3487 = vmatmul.bf16.gmra.mxu0 %v1055
      %v3488 = vpop.f32.mrf.mxu0
      %v3489 = vadd.f32 %v3440, %v3488
      %v3490 = vpop.f32.mrf.mxu0
      %v3491 = vadd.f32 %v3442, %v3490
      %3492 = vmatmul.bf16.gmra.mxu0 %v1058
      %v3493 = vpop.f32.mrf.mxu0
      %v3494 = vadd.f32 %v3445, %v3493
      %v3495 = vpop.f32.mrf.mxu0
      %v3496 = vadd.f32 %v3447, %v3495
      %3497 = vmatmul.bf16.gmra.mxu0 %v1061
      %v3498 = vpop.f32.mrf.mxu0
      %v3499 = vadd.f32 %v3450, %v3498
      %v3500 = vpop.f32.mrf.mxu0
      %v3501 = vadd.f32 %v3452, %v3500
      %3502 = vmatmul.bf16.gmra.mxu0 %v1064
      %v3503 = vpop.f32.mrf.mxu0
      %v3504 = vadd.f32 %v3455, %v3503
      %v3505 = vpop.f32.mrf.mxu0
      %v3506 = vadd.f32 %v3457, %v3505
      %3507 = vdwg.mxu0
      %v3508 = vpack.c.bf16 %v3469, %v3469
      %v3509 = vpack.c.bf16 %v3471, %v3471
      %v3510 = vpack.c.bf16 %v3474, %v3474
      %v3511 = vpack.c.bf16 %v3476, %v3476
      %v3512 = vpack.c.bf16 %v3479, %v3479
      %v3513 = vpack.c.bf16 %v3481, %v3481
      %v3514 = vpack.c.bf16 %v3484, %v3484
      %v3515 = vpack.c.bf16 %v3486, %v3486
      %v3516 = vpack.c.bf16 %v3489, %v3489
      %v3517 = vpack.c.bf16 %v3491, %v3491
      %v3518 = vpack.c.bf16 %v3494, %v3494
      %v3519 = vpack.c.bf16 %v3496, %v3496
      %v3520 = vpack.c.bf16 %v3499, %v3499
      %v3521 = vpack.c.bf16 %v3501, %v3501
      %v3522 = vpack.c.bf16 %v3504, %v3504
      %v3523 = vpack.c.bf16 %v3506, %v3506
      %3524 = vst [vmem:[#allocation2 + $0x280] sm:$0xf] %v3508
      %3525 = vst [vmem:[#allocation2 + $0x284] sm:$0xf] %v3509
      %3526 = vst [vmem:[#allocation2 + $0x288] sm:$0xf] %v3510
      %3527 = vst [vmem:[#allocation2 + $0x28c] sm:$0xf] %v3511
      %3528 = vst [vmem:[#allocation2 + $0x290] sm:$0xf] %v3512
      %3529 = vst [vmem:[#allocation2 + $0x294] sm:$0xf] %v3513
      %3530 = vst [vmem:[#allocation2 + $0x298] sm:$0xf] %v3514
      %3531 = vst [vmem:[#allocation2 + $0x29c] sm:$0xf] %v3515
      %3532 = vst [vmem:[#allocation2 + $0x2a0] sm:$0xf] %v3516
      %3533 = vst [vmem:[#allocation2 + $0x2a4] sm:$0xf] %v3517
      %3534 = vst [vmem:[#allocation2 + $0x2a8] sm:$0xf] %v3518
      %3535 = vst [vmem:[#allocation2 + $0x2ac] sm:$0xf] %v3519
      %3536 = vst [vmem:[#allocation2 + $0x2b0] sm:$0xf] %v3520
      %3537 = vst [vmem:[#allocation2 + $0x2b4] sm:$0xf] %v3521
      %3538 = vst [vmem:[#allocation2 + $0x2b8] sm:$0xf] %v3522
      %3539 = vst [vmem:[#allocation2 + $0x2bc] sm:$0xf] %v3523
      %s3540 = scalar_lea.vmem %s3, 1100
      %v3541 = vld [vmem:[%s3540] sm:$0xf]
      %v3542 = vld [vmem:[%s3540 + $0x4] sm:$0xf]
      %v3543 = vld [vmem:[%s3540 + $0x8] sm:$0xf]
      %v3544 = vld [vmem:[%s3540 + $0xc] sm:$0xf]
      %v3545 = vld [vmem:[%s3540 + $0x10] sm:$0xf]
      %v3546 = vld [vmem:[%s3540 + $0x14] sm:$0xf]
      %v3547 = vld [vmem:[%s3540 + $0x18] sm:$0xf]
      %v3548 = vld [vmem:[%s3540 + $0x1c] sm:$0xf]
      %v3549 = vld [vmem:[%s3540 + $0x20] sm:$0xf]
      %v3550 = vld [vmem:[%s3540 + $0x24] sm:$0xf]
      %v3551 = vld [vmem:[%s3540 + $0x28] sm:$0xf]
      %v3552 = vld [vmem:[%s3540 + $0x2c] sm:$0xf]
      %v3553 = vld [vmem:[%s3540 + $0x30] sm:$0xf]
      %v3554 = vld [vmem:[%s3540 + $0x34] sm:$0xf]
      %v3555 = vld [vmem:[%s3540 + $0x38] sm:$0xf]
      %v3556 = vld [vmem:[%s3540 + $0x3c] sm:$0xf]
      %v3557 = vld [vmem:[%s3540 + $0x40] sm:$0xf]
      %v3558 = vld [vmem:[%s3540 + $0x44] sm:$0xf]
      %v3559 = vld [vmem:[%s3540 + $0x48] sm:$0xf]
      %v3560 = vld [vmem:[%s3540 + $0x4c] sm:$0xf]
      %v3561 = vld [vmem:[%s3540 + $0x50] sm:$0xf]
      %v3562 = vld [vmem:[%s3540 + $0x54] sm:$0xf]
      %v3563 = vld [vmem:[%s3540 + $0x58] sm:$0xf]
      %v3564 = vld [vmem:[%s3540 + $0x5c] sm:$0xf]
      %v3565 = vld [vmem:[%s3540 + $0x60] sm:$0x3]
      %v3591 = vunpack.c.l.b16 %v3541
      %v3592 = vunpack.c.l.b16 %v3542
      %v3593 = vunpack.c.l.b16 %v3543
      %v3594 = vunpack.c.l.b16 %v3544
      %v3595 = vunpack.c.l.b16 %v3545
      %v3596 = vunpack.c.l.b16 %v3546
      %v3597 = vunpack.c.l.b16 %v3547
      %v3598 = vunpack.c.l.b16 %v3548
      %v3599 = vunpack.c.l.b16 %v3549
      %v3600 = vunpack.c.l.b16 %v3550
      %v3601 = vunpack.c.l.b16 %v3551
      %v3602 = vunpack.c.l.b16 %v3552
      %v3603 = vunpack.c.l.b16 %v3553
      %v3604 = vunpack.c.l.b16 %v3554
      %v3605 = vunpack.c.l.b16 %v3555
      %v3606 = vunpack.c.l.b16 %v3556
      %v3607 = vunpack.c.l.b16 %v3557
      %v3608 = vunpack.c.l.b16 %v3558
      %v3609 = vunpack.c.l.b16 %v3559
      %v3610 = vunpack.c.l.b16 %v3560
      %v3611 = vunpack.c.l.b16 %v3561
      %v3612 = vunpack.c.l.b16 %v3562
      %v3613 = vunpack.c.l.b16 %v3563
      %v3614 = vunpack.c.l.b16 %v3564
      %v3615 = vunpack.c.l.b16 %v3565
      %v3616 = vpack.c.b16 %v3592, %v3591
      %v3617 = vpack.c.b16 %v3594, %v3593
      %v3618 = vpack.c.b16 %v3596, %v3595
      %v3619 = vpack.c.b16 %v3598, %v3597
      %v3620 = vpack.c.b16 %v3600, %v3599
      %v3621 = vpack.c.b16 %v3602, %v3601
      %v3622 = vpack.c.b16 %v3604, %v3603
      %v3623 = vpack.c.b16 %v3606, %v3605
      %v3624 = vpack.c.b16 %v3608, %v3607
      %v3625 = vpack.c.b16 %v3610, %v3609
      %v3626 = vpack.c.b16 %v3612, %v3611
      %v3627 = vpack.c.b16 %v3614, %v3613
      %v3628 = vpack.c.b16 %v3615, %v3615
      %v3642 = vsel %vm1066, %v3628, 0
      %3644 = vmatpush.bf16.msra.mxu0 %v3623
      %3645 = vmatpush.bf16.msra.mxu0 %v3622
      %3646 = vmatpush.bf16.msra.mxu0 %v3621
      %3647 = vmatpush.bf16.msra.mxu0 %v3620
      %3648 = vmatpush.bf16.msra.mxu0 %v3619
      %3649 = vmatpush.bf16.msra.mxu0 %v3618
      %3650 = vmatpush.bf16.msra.mxu0 %v3617
      %3651 = vmatpush.bf16.msra.mxu0 %v3616
      %3652 = vmatmul.bf16.gmra.mxu0 %v925
      %v3653 = vpop.f32.mrf.mxu0
      %v3654 = vadd.f32 0.0, %v3653
      %v3655 = vpop.f32.mrf.mxu0
      %v3656 = vadd.f32 0.0, %v3655
      %3657 = vmatmul.bf16.gmra.mxu0 %v927
      %v3658 = vpop.f32.mrf.mxu0
      %v3659 = vadd.f32 0.0, %v3658
      %v3660 = vpop.f32.mrf.mxu0
      %v3661 = vadd.f32 0.0, %v3660
      %3662 = vmatmul.bf16.gmra.mxu0 %v929
      %v3663 = vpop.f32.mrf.mxu0
      %v3664 = vadd.f32 0.0, %v3663
      %v3665 = vpop.f32.mrf.mxu0
      %v3666 = vadd.f32 0.0, %v3665
      %3667 = vmatmul.bf16.gmra.mxu0 %v931
      %v3668 = vpop.f32.mrf.mxu0
      %v3669 = vadd.f32 0.0, %v3668
      %v3670 = vpop.f32.mrf.mxu0
      %v3671 = vadd.f32 0.0, %v3670
      %3672 = vmatmul.bf16.gmra.mxu0 %v933
      %v3673 = vpop.f32.mrf.mxu0
      %v3674 = vadd.f32 0.0, %v3673
      %v3675 = vpop.f32.mrf.mxu0
      %v3676 = vadd.f32 0.0, %v3675
      %3677 = vmatmul.bf16.gmra.mxu0 %v935
      %v3678 = vpop.f32.mrf.mxu0
      %v3679 = vadd.f32 0.0, %v3678
      %v3680 = vpop.f32.mrf.mxu0
      %v3681 = vadd.f32 0.0, %v3680
      %3682 = vmatmul.bf16.gmra.mxu0 %v937
      %v3683 = vpop.f32.mrf.mxu0
      %v3684 = vadd.f32 0.0, %v3683
      %v3685 = vpop.f32.mrf.mxu0
      %v3686 = vadd.f32 0.0, %v3685
      %3687 = vmatmul.bf16.gmra.mxu0 %v939
      %v3688 = vpop.f32.mrf.mxu0
      %v3689 = vadd.f32 0.0, %v3688
      %v3690 = vpop.f32.mrf.mxu0
      %v3691 = vadd.f32 0.0, %v3690
      %3692 = vdwg.mxu0
      %3693 = vmatpush.bf16.msra.mxu0 0
      %3694 = vmatpush.bf16.msra.mxu0 0
      %3695 = vmatpush.bf16.msra.mxu0 0
      %3696 = vmatpush.bf16.msra.mxu0 %v3642
      %3697 = vmatpush.bf16.msra.mxu0 %v3627
      %3698 = vmatpush.bf16.msra.mxu0 %v3626
      %3699 = vmatpush.bf16.msra.mxu0 %v3625
      %3700 = vmatpush.bf16.msra.mxu0 %v3624
      %3701 = vmatmul.bf16.gmra.mxu0 %v1043
      %v3702 = vpop.f32.mrf.mxu0
      %v3703 = vadd.f32 %v3654, %v3702
      %v3704 = vpop.f32.mrf.mxu0
      %v3705 = vadd.f32 %v3656, %v3704
      %3706 = vmatmul.bf16.gmra.mxu0 %v1046
      %v3707 = vpop.f32.mrf.mxu0
      %v3708 = vadd.f32 %v3659, %v3707
      %v3709 = vpop.f32.mrf.mxu0
      %v3710 = vadd.f32 %v3661, %v3709
      %3711 = vmatmul.bf16.gmra.mxu0 %v1049
      %v3712 = vpop.f32.mrf.mxu0
      %v3713 = vadd.f32 %v3664, %v3712
      %v3714 = vpop.f32.mrf.mxu0
      %v3715 = vadd.f32 %v3666, %v3714
      %3716 = vmatmul.bf16.gmra.mxu0 %v1052
      %v3717 = vpop.f32.mrf.mxu0
      %v3718 = vadd.f32 %v3669, %v3717
      %v3719 = vpop.f32.mrf.mxu0
      %v3720 = vadd.f32 %v3671, %v3719
      %3721 = vmatmul.bf16.gmra.mxu0 %v1055
      %v3722 = vpop.f32.mrf.mxu0
      %v3723 = vadd.f32 %v3674, %v3722
      %v3724 = vpop.f32.mrf.mxu0
      %v3725 = vadd.f32 %v3676, %v3724
      %3726 = vmatmul.bf16.gmra.mxu0 %v1058
      %v3727 = vpop.f32.mrf.mxu0
      %v3728 = vadd.f32 %v3679, %v3727
      %v3729 = vpop.f32.mrf.mxu0
      %v3730 = vadd.f32 %v3681, %v3729
      %3731 = vmatmul.bf16.gmra.mxu0 %v1061
      %v3732 = vpop.f32.mrf.mxu0
      %v3733 = vadd.f32 %v3684, %v3732
      %v3734 = vpop.f32.mrf.mxu0
      %v3735 = vadd.f32 %v3686, %v3734
      %3736 = vmatmul.bf16.gmra.mxu0 %v1064
      %v3737 = vpop.f32.mrf.mxu0
      %v3738 = vadd.f32 %v3689, %v3737
      %v3739 = vpop.f32.mrf.mxu0
      %v3740 = vadd.f32 %v3691, %v3739
      %3741 = vdwg.mxu0
      %v3742 = vpack.c.bf16 %v3703, %v3703
      %v3743 = vpack.c.bf16 %v3705, %v3705
      %v3744 = vpack.c.bf16 %v3708, %v3708
      %v3745 = vpack.c.bf16 %v3710, %v3710
      %v3746 = vpack.c.bf16 %v3713, %v3713
      %v3747 = vpack.c.bf16 %v3715, %v3715
      %v3748 = vpack.c.bf16 %v3718, %v3718
      %v3749 = vpack.c.bf16 %v3720, %v3720
      %v3750 = vpack.c.bf16 %v3723, %v3723
      %v3751 = vpack.c.bf16 %v3725, %v3725
      %v3752 = vpack.c.bf16 %v3728, %v3728
      %v3753 = vpack.c.bf16 %v3730, %v3730
      %v3754 = vpack.c.bf16 %v3733, %v3733
      %v3755 = vpack.c.bf16 %v3735, %v3735
      %v3756 = vpack.c.bf16 %v3738, %v3738
      %v3757 = vpack.c.bf16 %v3740, %v3740
      %3758 = vst [vmem:[#allocation2 + $0x2c0] sm:$0xf] %v3742
      %3759 = vst [vmem:[#allocation2 + $0x2c4] sm:$0xf] %v3743
      %3760 = vst [vmem:[#allocation2 + $0x2c8] sm:$0xf] %v3744
      %3761 = vst [vmem:[#allocation2 + $0x2cc] sm:$0xf] %v3745
      %3762 = vst [vmem:[#allocation2 + $0x2d0] sm:$0xf] %v3746
      %3763 = vst [vmem:[#allocation2 + $0x2d4] sm:$0xf] %v3747
      %3764 = vst [vmem:[#allocation2 + $0x2d8] sm:$0xf] %v3748
      %3765 = vst [vmem:[#allocation2 + $0x2dc] sm:$0xf] %v3749
      %3766 = vst [vmem:[#allocation2 + $0x2e0] sm:$0xf] %v3750
      %3767 = vst [vmem:[#allocation2 + $0x2e4] sm:$0xf] %v3751
      %3768 = vst [vmem:[#allocation2 + $0x2e8] sm:$0xf] %v3752
      %3769 = vst [vmem:[#allocation2 + $0x2ec] sm:$0xf] %v3753
      %3770 = vst [vmem:[#allocation2 + $0x2f0] sm:$0xf] %v3754
      %3771 = vst [vmem:[#allocation2 + $0x2f4] sm:$0xf] %v3755
      %3772 = vst [vmem:[#allocation2 + $0x2f8] sm:$0xf] %v3756
      %3773 = vst [vmem:[#allocation2 + $0x2fc] sm:$0xf] %v3757
      %s3774 = scalar_lea.vmem %s3, 1200
      %v3775 = vld [vmem:[%s3774] sm:$0xf]
      %v3776 = vld [vmem:[%s3774 + $0x4] sm:$0xf]
      %v3777 = vld [vmem:[%s3774 + $0x8] sm:$0xf]
      %v3778 = vld [vmem:[%s3774 + $0xc] sm:$0xf]
      %v3779 = vld [vmem:[%s3774 + $0x10] sm:$0xf]
      %v3780 = vld [vmem:[%s3774 + $0x14] sm:$0xf]
      %v3781 = vld [vmem:[%s3774 + $0x18] sm:$0xf]
      %v3782 = vld [vmem:[%s3774 + $0x1c] sm:$0xf]
      %v3783 = vld [vmem:[%s3774 + $0x20] sm:$0xf]
      %v3784 = vld [vmem:[%s3774 + $0x24] sm:$0xf]
      %v3785 = vld [vmem:[%s3774 + $0x28] sm:$0xf]
      %v3786 = vld [vmem:[%s3774 + $0x2c] sm:$0xf]
      %v3787 = vld [vmem:[%s3774 + $0x30] sm:$0xf]
      %v3788 = vld [vmem:[%s3774 + $0x34] sm:$0xf]
      %v3789 = vld [vmem:[%s3774 + $0x38] sm:$0xf]
      %v3790 = vld [vmem:[%s3774 + $0x3c] sm:$0xf]
      %v3791 = vld [vmem:[%s3774 + $0x40] sm:$0xf]
      %v3792 = vld [vmem:[%s3774 + $0x44] sm:$0xf]
      %v3793 = vld [vmem:[%s3774 + $0x48] sm:$0xf]
      %v3794 = vld [vmem:[%s3774 + $0x4c] sm:$0xf]
      %v3795 = vld [vmem:[%s3774 + $0x50] sm:$0xf]
      %v3796 = vld [vmem:[%s3774 + $0x54] sm:$0xf]
      %v3797 = vld [vmem:[%s3774 + $0x58] sm:$0xf]
      %v3798 = vld [vmem:[%s3774 + $0x5c] sm:$0xf]
      %v3799 = vld [vmem:[%s3774 + $0x60] sm:$0x3]
      %v3825 = vunpack.c.l.b16 %v3775
      %v3826 = vunpack.c.l.b16 %v3776
      %v3827 = vunpack.c.l.b16 %v3777
      %v3828 = vunpack.c.l.b16 %v3778
      %v3829 = vunpack.c.l.b16 %v3779
      %v3830 = vunpack.c.l.b16 %v3780
      %v3831 = vunpack.c.l.b16 %v3781
      %v3832 = vunpack.c.l.b16 %v3782
      %v3833 = vunpack.c.l.b16 %v3783
      %v3834 = vunpack.c.l.b16 %v3784
      %v3835 = vunpack.c.l.b16 %v3785
      %v3836 = vunpack.c.l.b16 %v3786
      %v3837 = vunpack.c.l.b16 %v3787
      %v3838 = vunpack.c.l.b16 %v3788
      %v3839 = vunpack.c.l.b16 %v3789
      %v3840 = vunpack.c.l.b16 %v3790
      %v3841 = vunpack.c.l.b16 %v3791
      %v3842 = vunpack.c.l.b16 %v3792
      %v3843 = vunpack.c.l.b16 %v3793
      %v3844 = vunpack.c.l.b16 %v3794
      %v3845 = vunpack.c.l.b16 %v3795
      %v3846 = vunpack.c.l.b16 %v3796
      %v3847 = vunpack.c.l.b16 %v3797
      %v3848 = vunpack.c.l.b16 %v3798
      %v3849 = vunpack.c.l.b16 %v3799
      %v3850 = vpack.c.b16 %v3826, %v3825
      %v3851 = vpack.c.b16 %v3828, %v3827
      %v3852 = vpack.c.b16 %v3830, %v3829
      %v3853 = vpack.c.b16 %v3832, %v3831
      %v3854 = vpack.c.b16 %v3834, %v3833
      %v3855 = vpack.c.b16 %v3836, %v3835
      %v3856 = vpack.c.b16 %v3838, %v3837
      %v3857 = vpack.c.b16 %v3840, %v3839
      %v3858 = vpack.c.b16 %v3842, %v3841
      %v3859 = vpack.c.b16 %v3844, %v3843
      %v3860 = vpack.c.b16 %v3846, %v3845
      %v3861 = vpack.c.b16 %v3848, %v3847
      %v3862 = vpack.c.b16 %v3849, %v3849
      %v3876 = vsel %vm1066, %v3862, 0
      %3878 = vmatpush.bf16.msra.mxu0 %v3857
      %3879 = vmatpush.bf16.msra.mxu0 %v3856
      %3880 = vmatpush.bf16.msra.mxu0 %v3855
      %3881 = vmatpush.bf16.msra.mxu0 %v3854
      %3882 = vmatpush.bf16.msra.mxu0 %v3853
      %3883 = vmatpush.bf16.msra.mxu0 %v3852
      %3884 = vmatpush.bf16.msra.mxu0 %v3851
      %3885 = vmatpush.bf16.msra.mxu0 %v3850
      %3886 = vmatmul.bf16.gmra.mxu0 %v925
      %v3887 = vpop.f32.mrf.mxu0
      %v3888 = vadd.f32 0.0, %v3887
      %v3889 = vpop.f32.mrf.mxu0
      %v3890 = vadd.f32 0.0, %v3889
      %3891 = vmatmul.bf16.gmra.mxu0 %v927
      %v3892 = vpop.f32.mrf.mxu0
      %v3893 = vadd.f32 0.0, %v3892
      %v3894 = vpop.f32.mrf.mxu0
      %v3895 = vadd.f32 0.0, %v3894
      %3896 = vmatmul.bf16.gmra.mxu0 %v929
      %v3897 = vpop.f32.mrf.mxu0
      %v3898 = vadd.f32 0.0, %v3897
      %v3899 = vpop.f32.mrf.mxu0
      %v3900 = vadd.f32 0.0, %v3899
      %3901 = vmatmul.bf16.gmra.mxu0 %v931
      %v3902 = vpop.f32.mrf.mxu0
      %v3903 = vadd.f32 0.0, %v3902
      %v3904 = vpop.f32.mrf.mxu0
      %v3905 = vadd.f32 0.0, %v3904
      %3906 = vmatmul.bf16.gmra.mxu0 %v933
      %v3907 = vpop.f32.mrf.mxu0
      %v3908 = vadd.f32 0.0, %v3907
      %v3909 = vpop.f32.mrf.mxu0
      %v3910 = vadd.f32 0.0, %v3909
      %3911 = vmatmul.bf16.gmra.mxu0 %v935
      %v3912 = vpop.f32.mrf.mxu0
      %v3913 = vadd.f32 0.0, %v3912
      %v3914 = vpop.f32.mrf.mxu0
      %v3915 = vadd.f32 0.0, %v3914
      %3916 = vmatmul.bf16.gmra.mxu0 %v937
      %v3917 = vpop.f32.mrf.mxu0
      %v3918 = vadd.f32 0.0, %v3917
      %v3919 = vpop.f32.mrf.mxu0
      %v3920 = vadd.f32 0.0, %v3919
      %3921 = vmatmul.bf16.gmra.mxu0 %v939
      %v3922 = vpop.f32.mrf.mxu0
      %v3923 = vadd.f32 0.0, %v3922
      %v3924 = vpop.f32.mrf.mxu0
      %v3925 = vadd.f32 0.0, %v3924
      %3926 = vdwg.mxu0
      %3927 = vmatpush.bf16.msra.mxu0 0
      %3928 = vmatpush.bf16.msra.mxu0 0
      %3929 = vmatpush.bf16.msra.mxu0 0
      %3930 = vmatpush.bf16.msra.mxu0 %v3876
      %3931 = vmatpush.bf16.msra.mxu0 %v3861
      %3932 = vmatpush.bf16.msra.mxu0 %v3860
      %3933 = vmatpush.bf16.msra.mxu0 %v3859
      %3934 = vmatpush.bf16.msra.mxu0 %v3858
      %3935 = vmatmul.bf16.gmra.mxu0 %v1043
      %v3936 = vpop.f32.mrf.mxu0
      %v3937 = vadd.f32 %v3888, %v3936
      %v3938 = vpop.f32.mrf.mxu0
      %v3939 = vadd.f32 %v3890, %v3938
      %3940 = vmatmul.bf16.gmra.mxu0 %v1046
      %v3941 = vpop.f32.mrf.mxu0
      %v3942 = vadd.f32 %v3893, %v3941
      %v3943 = vpop.f32.mrf.mxu0
      %v3944 = vadd.f32 %v3895, %v3943
      %3945 = vmatmul.bf16.gmra.mxu0 %v1049
      %v3946 = vpop.f32.mrf.mxu0
      %v3947 = vadd.f32 %v3898, %v3946
      %v3948 = vpop.f32.mrf.mxu0
      %v3949 = vadd.f32 %v3900, %v3948
      %3950 = vmatmul.bf16.gmra.mxu0 %v1052
      %v3951 = vpop.f32.mrf.mxu0
      %v3952 = vadd.f32 %v3903, %v3951
      %v3953 = vpop.f32.mrf.mxu0
      %v3954 = vadd.f32 %v3905, %v3953
      %3955 = vmatmul.bf16.gmra.mxu0 %v1055
      %v3956 = vpop.f32.mrf.mxu0
      %v3957 = vadd.f32 %v3908, %v3956
      %v3958 = vpop.f32.mrf.mxu0
      %v3959 = vadd.f32 %v3910, %v3958
      %3960 = vmatmul.bf16.gmra.mxu0 %v1058
      %v3961 = vpop.f32.mrf.mxu0
      %v3962 = vadd.f32 %v3913, %v3961
      %v3963 = vpop.f32.mrf.mxu0
      %v3964 = vadd.f32 %v3915, %v3963
      %3965 = vmatmul.bf16.gmra.mxu0 %v1061
      %v3966 = vpop.f32.mrf.mxu0
      %v3967 = vadd.f32 %v3918, %v3966
      %v3968 = vpop.f32.mrf.mxu0
      %v3969 = vadd.f32 %v3920, %v3968
      %3970 = vmatmul.bf16.gmra.mxu0 %v1064
      %v3971 = vpop.f32.mrf.mxu0
      %v3972 = vadd.f32 %v3923, %v3971
      %v3973 = vpop.f32.mrf.mxu0
      %v3974 = vadd.f32 %v3925, %v3973
      %3975 = vdwg.mxu0
      %v3976 = vpack.c.bf16 %v3937, %v3937
      %v3977 = vpack.c.bf16 %v3939, %v3939
      %v3978 = vpack.c.bf16 %v3942, %v3942
      %v3979 = vpack.c.bf16 %v3944, %v3944
      %v3980 = vpack.c.bf16 %v3947, %v3947
      %v3981 = vpack.c.bf16 %v3949, %v3949
      %v3982 = vpack.c.bf16 %v3952, %v3952
      %v3983 = vpack.c.bf16 %v3954, %v3954
      %v3984 = vpack.c.bf16 %v3957, %v3957
      %v3985 = vpack.c.bf16 %v3959, %v3959
      %v3986 = vpack.c.bf16 %v3962, %v3962
      %v3987 = vpack.c.bf16 %v3964, %v3964
      %v3988 = vpack.c.bf16 %v3967, %v3967
      %v3989 = vpack.c.bf16 %v3969, %v3969
      %v3990 = vpack.c.bf16 %v3972, %v3972
      %v3991 = vpack.c.bf16 %v3974, %v3974
      %3992 = vst [vmem:[#allocation2 + $0x300] sm:$0xf] %v3976
      %3993 = vst [vmem:[#allocation2 + $0x304] sm:$0xf] %v3977
      %3994 = vst [vmem:[#allocation2 + $0x308] sm:$0xf] %v3978
      %3995 = vst [vmem:[#allocation2 + $0x30c] sm:$0xf] %v3979
      %3996 = vst [vmem:[#allocation2 + $0x310] sm:$0xf] %v3980
      %3997 = vst [vmem:[#allocation2 + $0x314] sm:$0xf] %v3981
      %3998 = vst [vmem:[#allocation2 + $0x318] sm:$0xf] %v3982
      %3999 = vst [vmem:[#allocation2 + $0x31c] sm:$0xf] %v3983
      %4000 = vst [vmem:[#allocation2 + $0x320] sm:$0xf] %v3984
      %4001 = vst [vmem:[#allocation2 + $0x324] sm:$0xf] %v3985
      %4002 = vst [vmem:[#allocation2 + $0x328] sm:$0xf] %v3986
      %4003 = vst [vmem:[#allocation2 + $0x32c] sm:$0xf] %v3987
      %4004 = vst [vmem:[#allocation2 + $0x330] sm:$0xf] %v3988
      %4005 = vst [vmem:[#allocation2 + $0x334] sm:$0xf] %v3989
      %4006 = vst [vmem:[#allocation2 + $0x338] sm:$0xf] %v3990
      %4007 = vst [vmem:[#allocation2 + $0x33c] sm:$0xf] %v3991
      %s4008 = scalar_lea.vmem %s3, 1300
      %v4009 = vld [vmem:[%s4008] sm:$0xf]
      %v4010 = vld [vmem:[%s4008 + $0x4] sm:$0xf]
      %v4011 = vld [vmem:[%s4008 + $0x8] sm:$0xf]
      %v4012 = vld [vmem:[%s4008 + $0xc] sm:$0xf]
      %v4013 = vld [vmem:[%s4008 + $0x10] sm:$0xf]
      %v4014 = vld [vmem:[%s4008 + $0x14] sm:$0xf]
      %v4015 = vld [vmem:[%s4008 + $0x18] sm:$0xf]
      %v4016 = vld [vmem:[%s4008 + $0x1c] sm:$0xf]
      %v4017 = vld [vmem:[%s4008 + $0x20] sm:$0xf]
      %v4018 = vld [vmem:[%s4008 + $0x24] sm:$0xf]
      %v4019 = vld [vmem:[%s4008 + $0x28] sm:$0xf]
      %v4020 = vld [vmem:[%s4008 + $0x2c] sm:$0xf]
      %v4021 = vld [vmem:[%s4008 + $0x30] sm:$0xf]
      %v4022 = vld [vmem:[%s4008 + $0x34] sm:$0xf]
      %v4023 = vld [vmem:[%s4008 + $0x38] sm:$0xf]
      %v4024 = vld [vmem:[%s4008 + $0x3c] sm:$0xf]
      %v4025 = vld [vmem:[%s4008 + $0x40] sm:$0xf]
      %v4026 = vld [vmem:[%s4008 + $0x44] sm:$0xf]
      %v4027 = vld [vmem:[%s4008 + $0x48] sm:$0xf]
      %v4028 = vld [vmem:[%s4008 + $0x4c] sm:$0xf]
      %v4029 = vld [vmem:[%s4008 + $0x50] sm:$0xf]
      %v4030 = vld [vmem:[%s4008 + $0x54] sm:$0xf]
      %v4031 = vld [vmem:[%s4008 + $0x58] sm:$0xf]
      %v4032 = vld [vmem:[%s4008 + $0x5c] sm:$0xf]
      %v4033 = vld [vmem:[%s4008 + $0x60] sm:$0x3]
      %v4059 = vunpack.c.l.b16 %v4009
      %v4060 = vunpack.c.l.b16 %v4010
      %v4061 = vunpack.c.l.b16 %v4011
      %v4062 = vunpack.c.l.b16 %v4012
      %v4063 = vunpack.c.l.b16 %v4013
      %v4064 = vunpack.c.l.b16 %v4014
      %v4065 = vunpack.c.l.b16 %v4015
      %v4066 = vunpack.c.l.b16 %v4016
      %v4067 = vunpack.c.l.b16 %v4017
      %v4068 = vunpack.c.l.b16 %v4018
      %v4069 = vunpack.c.l.b16 %v4019
      %v4070 = vunpack.c.l.b16 %v4020
      %v4071 = vunpack.c.l.b16 %v4021
      %v4072 = vunpack.c.l.b16 %v4022
      %v4073 = vunpack.c.l.b16 %v4023
      %v4074 = vunpack.c.l.b16 %v4024
      %v4075 = vunpack.c.l.b16 %v4025
      %v4076 = vunpack.c.l.b16 %v4026
      %v4077 = vunpack.c.l.b16 %v4027
      %v4078 = vunpack.c.l.b16 %v4028
      %v4079 = vunpack.c.l.b16 %v4029
      %v4080 = vunpack.c.l.b16 %v4030
      %v4081 = vunpack.c.l.b16 %v4031
      %v4082 = vunpack.c.l.b16 %v4032
      %v4083 = vunpack.c.l.b16 %v4033
      %v4084 = vpack.c.b16 %v4060, %v4059
      %v4085 = vpack.c.b16 %v4062, %v4061
      %v4086 = vpack.c.b16 %v4064, %v4063
      %v4087 = vpack.c.b16 %v4066, %v4065
      %v4088 = vpack.c.b16 %v4068, %v4067
      %v4089 = vpack.c.b16 %v4070, %v4069
      %v4090 = vpack.c.b16 %v4072, %v4071
      %v4091 = vpack.c.b16 %v4074, %v4073
      %v4092 = vpack.c.b16 %v4076, %v4075
      %v4093 = vpack.c.b16 %v4078, %v4077
      %v4094 = vpack.c.b16 %v4080, %v4079
      %v4095 = vpack.c.b16 %v4082, %v4081
      %v4096 = vpack.c.b16 %v4083, %v4083
      %v4110 = vsel %vm1066, %v4096, 0
      %4112 = vmatpush.bf16.msra.mxu0 %v4091
      %4113 = vmatpush.bf16.msra.mxu0 %v4090
      %4114 = vmatpush.bf16.msra.mxu0 %v4089
      %4115 = vmatpush.bf16.msra.mxu0 %v4088
      %4116 = vmatpush.bf16.msra.mxu0 %v4087
      %4117 = vmatpush.bf16.msra.mxu0 %v4086
      %4118 = vmatpush.bf16.msra.mxu0 %v4085
      %4119 = vmatpush.bf16.msra.mxu0 %v4084
      %4120 = vmatmul.bf16.gmra.mxu0 %v925
      %v4121 = vpop.f32.mrf.mxu0
      %v4122 = vadd.f32 0.0, %v4121
      %v4123 = vpop.f32.mrf.mxu0
      %v4124 = vadd.f32 0.0, %v4123
      %4125 = vmatmul.bf16.gmra.mxu0 %v927
      %v4126 = vpop.f32.mrf.mxu0
      %v4127 = vadd.f32 0.0, %v4126
      %v4128 = vpop.f32.mrf.mxu0
      %v4129 = vadd.f32 0.0, %v4128
      %4130 = vmatmul.bf16.gmra.mxu0 %v929
      %v4131 = vpop.f32.mrf.mxu0
      %v4132 = vadd.f32 0.0, %v4131
      %v4133 = vpop.f32.mrf.mxu0
      %v4134 = vadd.f32 0.0, %v4133
      %4135 = vmatmul.bf16.gmra.mxu0 %v931
      %v4136 = vpop.f32.mrf.mxu0
      %v4137 = vadd.f32 0.0, %v4136
      %v4138 = vpop.f32.mrf.mxu0
      %v4139 = vadd.f32 0.0, %v4138
      %4140 = vmatmul.bf16.gmra.mxu0 %v933
      %v4141 = vpop.f32.mrf.mxu0
      %v4142 = vadd.f32 0.0, %v4141
      %v4143 = vpop.f32.mrf.mxu0
      %v4144 = vadd.f32 0.0, %v4143
      %4145 = vmatmul.bf16.gmra.mxu0 %v935
      %v4146 = vpop.f32.mrf.mxu0
      %v4147 = vadd.f32 0.0, %v4146
      %v4148 = vpop.f32.mrf.mxu0
      %v4149 = vadd.f32 0.0, %v4148
      %4150 = vmatmul.bf16.gmra.mxu0 %v937
      %v4151 = vpop.f32.mrf.mxu0
      %v4152 = vadd.f32 0.0, %v4151
      %v4153 = vpop.f32.mrf.mxu0
      %v4154 = vadd.f32 0.0, %v4153
      %4155 = vmatmul.bf16.gmra.mxu0 %v939
      %v4156 = vpop.f32.mrf.mxu0
      %v4157 = vadd.f32 0.0, %v4156
      %v4158 = vpop.f32.mrf.mxu0
      %v4159 = vadd.f32 0.0, %v4158
      %4160 = vdwg.mxu0
      %4161 = vmatpush.bf16.msra.mxu0 0
      %4162 = vmatpush.bf16.msra.mxu0 0
      %4163 = vmatpush.bf16.msra.mxu0 0
      %4164 = vmatpush.bf16.msra.mxu0 %v4110
      %4165 = vmatpush.bf16.msra.mxu0 %v4095
      %4166 = vmatpush.bf16.msra.mxu0 %v4094
      %4167 = vmatpush.bf16.msra.mxu0 %v4093
      %4168 = vmatpush.bf16.msra.mxu0 %v4092
      %4169 = vmatmul.bf16.gmra.mxu0 %v1043
      %v4170 = vpop.f32.mrf.mxu0
      %v4171 = vadd.f32 %v4122, %v4170
      %v4172 = vpop.f32.mrf.mxu0
      %v4173 = vadd.f32 %v4124, %v4172
      %4174 = vmatmul.bf16.gmra.mxu0 %v1046
      %v4175 = vpop.f32.mrf.mxu0
      %v4176 = vadd.f32 %v4127, %v4175
      %v4177 = vpop.f32.mrf.mxu0
      %v4178 = vadd.f32 %v4129, %v4177
      %4179 = vmatmul.bf16.gmra.mxu0 %v1049
      %v4180 = vpop.f32.mrf.mxu0
      %v4181 = vadd.f32 %v4132, %v4180
      %v4182 = vpop.f32.mrf.mxu0
      %v4183 = vadd.f32 %v4134, %v4182
      %4184 = vmatmul.bf16.gmra.mxu0 %v1052
      %v4185 = vpop.f32.mrf.mxu0
      %v4186 = vadd.f32 %v4137, %v4185
      %v4187 = vpop.f32.mrf.mxu0
      %v4188 = vadd.f32 %v4139, %v4187
      %4189 = vmatmul.bf16.gmra.mxu0 %v1055
      %v4190 = vpop.f32.mrf.mxu0
      %v4191 = vadd.f32 %v4142, %v4190
      %v4192 = vpop.f32.mrf.mxu0
      %v4193 = vadd.f32 %v4144, %v4192
      %4194 = vmatmul.bf16.gmra.mxu0 %v1058
      %v4195 = vpop.f32.mrf.mxu0
      %v4196 = vadd.f32 %v4147, %v4195
      %v4197 = vpop.f32.mrf.mxu0
      %v4198 = vadd.f32 %v4149, %v4197
      %4199 = vmatmul.bf16.gmra.mxu0 %v1061
      %v4200 = vpop.f32.mrf.mxu0
      %v4201 = vadd.f32 %v4152, %v4200
      %v4202 = vpop.f32.mrf.mxu0
      %v4203 = vadd.f32 %v4154, %v4202
      %4204 = vmatmul.bf16.gmra.mxu0 %v1064
      %v4205 = vpop.f32.mrf.mxu0
      %v4206 = vadd.f32 %v4157, %v4205
      %v4207 = vpop.f32.mrf.mxu0
      %v4208 = vadd.f32 %v4159, %v4207
      %4209 = vdwg.mxu0
      %v4210 = vpack.c.bf16 %v4171, %v4171
      %v4211 = vpack.c.bf16 %v4173, %v4173
      %v4212 = vpack.c.bf16 %v4176, %v4176
      %v4213 = vpack.c.bf16 %v4178, %v4178
      %v4214 = vpack.c.bf16 %v4181, %v4181
      %v4215 = vpack.c.bf16 %v4183, %v4183
      %v4216 = vpack.c.bf16 %v4186, %v4186
      %v4217 = vpack.c.bf16 %v4188, %v4188
      %v4218 = vpack.c.bf16 %v4191, %v4191
      %v4219 = vpack.c.bf16 %v4193, %v4193
      %v4220 = vpack.c.bf16 %v4196, %v4196
      %v4221 = vpack.c.bf16 %v4198, %v4198
      %v4222 = vpack.c.bf16 %v4201, %v4201
      %v4223 = vpack.c.bf16 %v4203, %v4203
      %v4224 = vpack.c.bf16 %v4206, %v4206
      %v4225 = vpack.c.bf16 %v4208, %v4208
      %4226 = vst [vmem:[#allocation2 + $0x340] sm:$0xf] %v4210
      %4227 = vst [vmem:[#allocation2 + $0x344] sm:$0xf] %v4211
      %4228 = vst [vmem:[#allocation2 + $0x348] sm:$0xf] %v4212
      %4229 = vst [vmem:[#allocation2 + $0x34c] sm:$0xf] %v4213
      %4230 = vst [vmem:[#allocation2 + $0x350] sm:$0xf] %v4214
      %4231 = vst [vmem:[#allocation2 + $0x354] sm:$0xf] %v4215
      %4232 = vst [vmem:[#allocation2 + $0x358] sm:$0xf] %v4216
      %4233 = vst [vmem:[#allocation2 + $0x35c] sm:$0xf] %v4217
      %4234 = vst [vmem:[#allocation2 + $0x360] sm:$0xf] %v4218
      %4235 = vst [vmem:[#allocation2 + $0x364] sm:$0xf] %v4219
      %4236 = vst [vmem:[#allocation2 + $0x368] sm:$0xf] %v4220
      %4237 = vst [vmem:[#allocation2 + $0x36c] sm:$0xf] %v4221
      %4238 = vst [vmem:[#allocation2 + $0x370] sm:$0xf] %v4222
      %4239 = vst [vmem:[#allocation2 + $0x374] sm:$0xf] %v4223
      %4240 = vst [vmem:[#allocation2 + $0x378] sm:$0xf] %v4224
      %4241 = vst [vmem:[#allocation2 + $0x37c] sm:$0xf] %v4225
      %s4242 = scalar_lea.vmem %s3, 1400
      %v4243 = vld [vmem:[%s4242] sm:$0xf]
      %v4244 = vld [vmem:[%s4242 + $0x4] sm:$0xf]
      %v4245 = vld [vmem:[%s4242 + $0x8] sm:$0xf]
      %v4246 = vld [vmem:[%s4242 + $0xc] sm:$0xf]
      %v4247 = vld [vmem:[%s4242 + $0x10] sm:$0xf]
      %v4248 = vld [vmem:[%s4242 + $0x14] sm:$0xf]
      %v4249 = vld [vmem:[%s4242 + $0x18] sm:$0xf]
      %v4250 = vld [vmem:[%s4242 + $0x1c] sm:$0xf]
      %v4251 = vld [vmem:[%s4242 + $0x20] sm:$0xf]
      %v4252 = vld [vmem:[%s4242 + $0x24] sm:$0xf]
      %v4253 = vld [vmem:[%s4242 + $0x28] sm:$0xf]
      %v4254 = vld [vmem:[%s4242 + $0x2c] sm:$0xf]
      %v4255 = vld [vmem:[%s4242 + $0x30] sm:$0xf]
      %v4256 = vld [vmem:[%s4242 + $0x34] sm:$0xf]
      %v4257 = vld [vmem:[%s4242 + $0x38] sm:$0xf]
      %v4258 = vld [vmem:[%s4242 + $0x3c] sm:$0xf]
      %v4259 = vld [vmem:[%s4242 + $0x40] sm:$0xf]
      %v4260 = vld [vmem:[%s4242 + $0x44] sm:$0xf]
      %v4261 = vld [vmem:[%s4242 + $0x48] sm:$0xf]
      %v4262 = vld [vmem:[%s4242 + $0x4c] sm:$0xf]
      %v4263 = vld [vmem:[%s4242 + $0x50] sm:$0xf]
      %v4264 = vld [vmem:[%s4242 + $0x54] sm:$0xf]
      %v4265 = vld [vmem:[%s4242 + $0x58] sm:$0xf]
      %v4266 = vld [vmem:[%s4242 + $0x5c] sm:$0xf]
      %v4267 = vld [vmem:[%s4242 + $0x60] sm:$0x3]
      %v4293 = vunpack.c.l.b16 %v4243
      %v4294 = vunpack.c.l.b16 %v4244
      %v4295 = vunpack.c.l.b16 %v4245
      %v4296 = vunpack.c.l.b16 %v4246
      %v4297 = vunpack.c.l.b16 %v4247
      %v4298 = vunpack.c.l.b16 %v4248
      %v4299 = vunpack.c.l.b16 %v4249
      %v4300 = vunpack.c.l.b16 %v4250
      %v4301 = vunpack.c.l.b16 %v4251
      %v4302 = vunpack.c.l.b16 %v4252
      %v4303 = vunpack.c.l.b16 %v4253
      %v4304 = vunpack.c.l.b16 %v4254
      %v4305 = vunpack.c.l.b16 %v4255
      %v4306 = vunpack.c.l.b16 %v4256
      %v4307 = vunpack.c.l.b16 %v4257
      %v4308 = vunpack.c.l.b16 %v4258
      %v4309 = vunpack.c.l.b16 %v4259
      %v4310 = vunpack.c.l.b16 %v4260
      %v4311 = vunpack.c.l.b16 %v4261
      %v4312 = vunpack.c.l.b16 %v4262
      %v4313 = vunpack.c.l.b16 %v4263
      %v4314 = vunpack.c.l.b16 %v4264
      %v4315 = vunpack.c.l.b16 %v4265
      %v4316 = vunpack.c.l.b16 %v4266
      %v4317 = vunpack.c.l.b16 %v4267
      %v4318 = vpack.c.b16 %v4294, %v4293
      %v4319 = vpack.c.b16 %v4296, %v4295
      %v4320 = vpack.c.b16 %v4298, %v4297
      %v4321 = vpack.c.b16 %v4300, %v4299
      %v4322 = vpack.c.b16 %v4302, %v4301
      %v4323 = vpack.c.b16 %v4304, %v4303
      %v4324 = vpack.c.b16 %v4306, %v4305
      %v4325 = vpack.c.b16 %v4308, %v4307
      %v4326 = vpack.c.b16 %v4310, %v4309
      %v4327 = vpack.c.b16 %v4312, %v4311
      %v4328 = vpack.c.b16 %v4314, %v4313
      %v4329 = vpack.c.b16 %v4316, %v4315
      %v4330 = vpack.c.b16 %v4317, %v4317
      %v4344 = vsel %vm1066, %v4330, 0
      %4346 = vmatpush.bf16.msra.mxu0 %v4325
      %4347 = vmatpush.bf16.msra.mxu0 %v4324
      %4348 = vmatpush.bf16.msra.mxu0 %v4323
      %4349 = vmatpush.bf16.msra.mxu0 %v4322
      %4350 = vmatpush.bf16.msra.mxu0 %v4321
      %4351 = vmatpush.bf16.msra.mxu0 %v4320
      %4352 = vmatpush.bf16.msra.mxu0 %v4319
      %4353 = vmatpush.bf16.msra.mxu0 %v4318
      %4354 = vmatmul.bf16.gmra.mxu0 %v925
      %v4355 = vpop.f32.mrf.mxu0
      %v4356 = vadd.f32 0.0, %v4355
      %v4357 = vpop.f32.mrf.mxu0
      %v4358 = vadd.f32 0.0, %v4357
      %4359 = vmatmul.bf16.gmra.mxu0 %v927
      %v4360 = vpop.f32.mrf.mxu0
      %v4361 = vadd.f32 0.0, %v4360
      %v4362 = vpop.f32.mrf.mxu0
      %v4363 = vadd.f32 0.0, %v4362
      %4364 = vmatmul.bf16.gmra.mxu0 %v929
      %v4365 = vpop.f32.mrf.mxu0
      %v4366 = vadd.f32 0.0, %v4365
      %v4367 = vpop.f32.mrf.mxu0
      %v4368 = vadd.f32 0.0, %v4367
      %4369 = vmatmul.bf16.gmra.mxu0 %v931
      %v4370 = vpop.f32.mrf.mxu0
      %v4371 = vadd.f32 0.0, %v4370
      %v4372 = vpop.f32.mrf.mxu0
      %v4373 = vadd.f32 0.0, %v4372
      %4374 = vmatmul.bf16.gmra.mxu0 %v933
      %v4375 = vpop.f32.mrf.mxu0
      %v4376 = vadd.f32 0.0, %v4375
      %v4377 = vpop.f32.mrf.mxu0
      %v4378 = vadd.f32 0.0, %v4377
      %4379 = vmatmul.bf16.gmra.mxu0 %v935
      %v4380 = vpop.f32.mrf.mxu0
      %v4381 = vadd.f32 0.0, %v4380
      %v4382 = vpop.f32.mrf.mxu0
      %v4383 = vadd.f32 0.0, %v4382
      %4384 = vmatmul.bf16.gmra.mxu0 %v937
      %v4385 = vpop.f32.mrf.mxu0
      %v4386 = vadd.f32 0.0, %v4385
      %v4387 = vpop.f32.mrf.mxu0
      %v4388 = vadd.f32 0.0, %v4387
      %4389 = vmatmul.bf16.gmra.mxu0 %v939
      %v4390 = vpop.f32.mrf.mxu0
      %v4391 = vadd.f32 0.0, %v4390
      %v4392 = vpop.f32.mrf.mxu0
      %v4393 = vadd.f32 0.0, %v4392
      %4394 = vdwg.mxu0
      %4395 = vmatpush.bf16.msra.mxu0 0
      %4396 = vmatpush.bf16.msra.mxu0 0
      %4397 = vmatpush.bf16.msra.mxu0 0
      %4398 = vmatpush.bf16.msra.mxu0 %v4344
      %4399 = vmatpush.bf16.msra.mxu0 %v4329
      %4400 = vmatpush.bf16.msra.mxu0 %v4328
      %4401 = vmatpush.bf16.msra.mxu0 %v4327
      %4402 = vmatpush.bf16.msra.mxu0 %v4326
      %4403 = vmatmul.bf16.gmra.mxu0 %v1043
      %v4404 = vpop.f32.mrf.mxu0
      %v4405 = vadd.f32 %v4356, %v4404
      %v4406 = vpop.f32.mrf.mxu0
      %v4407 = vadd.f32 %v4358, %v4406
      %4408 = vmatmul.bf16.gmra.mxu0 %v1046
      %v4409 = vpop.f32.mrf.mxu0
      %v4410 = vadd.f32 %v4361, %v4409
      %v4411 = vpop.f32.mrf.mxu0
      %v4412 = vadd.f32 %v4363, %v4411
      %4413 = vmatmul.bf16.gmra.mxu0 %v1049
      %v4414 = vpop.f32.mrf.mxu0
      %v4415 = vadd.f32 %v4366, %v4414
      %v4416 = vpop.f32.mrf.mxu0
      %v4417 = vadd.f32 %v4368, %v4416
      %4418 = vmatmul.bf16.gmra.mxu0 %v1052
      %v4419 = vpop.f32.mrf.mxu0
      %v4420 = vadd.f32 %v4371, %v4419
      %v4421 = vpop.f32.mrf.mxu0
      %v4422 = vadd.f32 %v4373, %v4421
      %4423 = vmatmul.bf16.gmra.mxu0 %v1055
      %v4424 = vpop.f32.mrf.mxu0
      %v4425 = vadd.f32 %v4376, %v4424
      %v4426 = vpop.f32.mrf.mxu0
      %v4427 = vadd.f32 %v4378, %v4426
      %4428 = vmatmul.bf16.gmra.mxu0 %v1058
      %v4429 = vpop.f32.mrf.mxu0
      %v4430 = vadd.f32 %v4381, %v4429
      %v4431 = vpop.f32.mrf.mxu0
      %v4432 = vadd.f32 %v4383, %v4431
      %4433 = vmatmul.bf16.gmra.mxu0 %v1061
      %v4434 = vpop.f32.mrf.mxu0
      %v4435 = vadd.f32 %v4386, %v4434
      %v4436 = vpop.f32.mrf.mxu0
      %v4437 = vadd.f32 %v4388, %v4436
      %4438 = vmatmul.bf16.gmra.mxu0 %v1064
      %v4439 = vpop.f32.mrf.mxu0
      %v4440 = vadd.f32 %v4391, %v4439
      %v4441 = vpop.f32.mrf.mxu0
      %v4442 = vadd.f32 %v4393, %v4441
      %4443 = vdwg.mxu0
      %v4444 = vpack.c.bf16 %v4405, %v4405
      %v4445 = vpack.c.bf16 %v4407, %v4407
      %v4446 = vpack.c.bf16 %v4410, %v4410
      %v4447 = vpack.c.bf16 %v4412, %v4412
      %v4448 = vpack.c.bf16 %v4415, %v4415
      %v4449 = vpack.c.bf16 %v4417, %v4417
      %v4450 = vpack.c.bf16 %v4420, %v4420
      %v4451 = vpack.c.bf16 %v4422, %v4422
      %v4452 = vpack.c.bf16 %v4425, %v4425
      %v4453 = vpack.c.bf16 %v4427, %v4427
      %v4454 = vpack.c.bf16 %v4430, %v4430
      %v4455 = vpack.c.bf16 %v4432, %v4432
      %v4456 = vpack.c.bf16 %v4435, %v4435
      %v4457 = vpack.c.bf16 %v4437, %v4437
      %v4458 = vpack.c.bf16 %v4440, %v4440
      %v4459 = vpack.c.bf16 %v4442, %v4442
      %4460 = vst [vmem:[#allocation2 + $0x380] sm:$0xf] %v4444
      %4461 = vst [vmem:[#allocation2 + $0x384] sm:$0xf] %v4445
      %4462 = vst [vmem:[#allocation2 + $0x388] sm:$0xf] %v4446
      %4463 = vst [vmem:[#allocation2 + $0x38c] sm:$0xf] %v4447
      %4464 = vst [vmem:[#allocation2 + $0x390] sm:$0xf] %v4448
      %4465 = vst [vmem:[#allocation2 + $0x394] sm:$0xf] %v4449
      %4466 = vst [vmem:[#allocation2 + $0x398] sm:$0xf] %v4450
      %4467 = vst [vmem:[#allocation2 + $0x39c] sm:$0xf] %v4451
      %4468 = vst [vmem:[#allocation2 + $0x3a0] sm:$0xf] %v4452
      %4469 = vst [vmem:[#allocation2 + $0x3a4] sm:$0xf] %v4453
      %4470 = vst [vmem:[#allocation2 + $0x3a8] sm:$0xf] %v4454
      %4471 = vst [vmem:[#allocation2 + $0x3ac] sm:$0xf] %v4455
      %4472 = vst [vmem:[#allocation2 + $0x3b0] sm:$0xf] %v4456
      %4473 = vst [vmem:[#allocation2 + $0x3b4] sm:$0xf] %v4457
      %4474 = vst [vmem:[#allocation2 + $0x3b8] sm:$0xf] %v4458
      %4475 = vst [vmem:[#allocation2 + $0x3bc] sm:$0xf] %v4459
      %s4476 = scalar_lea.vmem %s3, 1500
      %v4477 = vld [vmem:[%s4476] sm:$0xf]
      %v4478 = vld [vmem:[%s4476 + $0x4] sm:$0xf]
      %v4479 = vld [vmem:[%s4476 + $0x8] sm:$0xf]
      %v4480 = vld [vmem:[%s4476 + $0xc] sm:$0xf]
      %v4481 = vld [vmem:[%s4476 + $0x10] sm:$0xf]
      %v4482 = vld [vmem:[%s4476 + $0x14] sm:$0xf]
      %v4483 = vld [vmem:[%s4476 + $0x18] sm:$0xf]
      %v4484 = vld [vmem:[%s4476 + $0x1c] sm:$0xf]
      %v4485 = vld [vmem:[%s4476 + $0x20] sm:$0xf]
      %v4486 = vld [vmem:[%s4476 + $0x24] sm:$0xf]
      %v4487 = vld [vmem:[%s4476 + $0x28] sm:$0xf]
      %v4488 = vld [vmem:[%s4476 + $0x2c] sm:$0xf]
      %v4489 = vld [vmem:[%s4476 + $0x30] sm:$0xf]
      %v4490 = vld [vmem:[%s4476 + $0x34] sm:$0xf]
      %v4491 = vld [vmem:[%s4476 + $0x38] sm:$0xf]
      %v4492 = vld [vmem:[%s4476 + $0x3c] sm:$0xf]
      %v4493 = vld [vmem:[%s4476 + $0x40] sm:$0xf]
      %v4494 = vld [vmem:[%s4476 + $0x44] sm:$0xf]
      %v4495 = vld [vmem:[%s4476 + $0x48] sm:$0xf]
      %v4496 = vld [vmem:[%s4476 + $0x4c] sm:$0xf]
      %v4497 = vld [vmem:[%s4476 + $0x50] sm:$0xf]
      %v4498 = vld [vmem:[%s4476 + $0x54] sm:$0xf]
      %v4499 = vld [vmem:[%s4476 + $0x58] sm:$0xf]
      %v4500 = vld [vmem:[%s4476 + $0x5c] sm:$0xf]
      %v4501 = vld [vmem:[%s4476 + $0x60] sm:$0x3]
      %v4527 = vunpack.c.l.b16 %v4477
      %v4528 = vunpack.c.l.b16 %v4478
      %v4529 = vunpack.c.l.b16 %v4479
      %v4530 = vunpack.c.l.b16 %v4480
      %v4531 = vunpack.c.l.b16 %v4481
      %v4532 = vunpack.c.l.b16 %v4482
      %v4533 = vunpack.c.l.b16 %v4483
      %v4534 = vunpack.c.l.b16 %v4484
      %v4535 = vunpack.c.l.b16 %v4485
      %v4536 = vunpack.c.l.b16 %v4486
      %v4537 = vunpack.c.l.b16 %v4487
      %v4538 = vunpack.c.l.b16 %v4488
      %v4539 = vunpack.c.l.b16 %v4489
      %v4540 = vunpack.c.l.b16 %v4490
      %v4541 = vunpack.c.l.b16 %v4491
      %v4542 = vunpack.c.l.b16 %v4492
      %v4543 = vunpack.c.l.b16 %v4493
      %v4544 = vunpack.c.l.b16 %v4494
      %v4545 = vunpack.c.l.b16 %v4495
      %v4546 = vunpack.c.l.b16 %v4496
      %v4547 = vunpack.c.l.b16 %v4497
      %v4548 = vunpack.c.l.b16 %v4498
      %v4549 = vunpack.c.l.b16 %v4499
      %v4550 = vunpack.c.l.b16 %v4500
      %v4551 = vunpack.c.l.b16 %v4501
      %v4552 = vpack.c.b16 %v4528, %v4527
      %v4553 = vpack.c.b16 %v4530, %v4529
      %v4554 = vpack.c.b16 %v4532, %v4531
      %v4555 = vpack.c.b16 %v4534, %v4533
      %v4556 = vpack.c.b16 %v4536, %v4535
      %v4557 = vpack.c.b16 %v4538, %v4537
      %v4558 = vpack.c.b16 %v4540, %v4539
      %v4559 = vpack.c.b16 %v4542, %v4541
      %v4560 = vpack.c.b16 %v4544, %v4543
      %v4561 = vpack.c.b16 %v4546, %v4545
      %v4562 = vpack.c.b16 %v4548, %v4547
      %v4563 = vpack.c.b16 %v4550, %v4549
      %v4564 = vpack.c.b16 %v4551, %v4551
      %v4578 = vsel %vm1066, %v4564, 0
      %4580 = vmatpush.bf16.msra.mxu0 %v4559
      %4581 = vmatpush.bf16.msra.mxu0 %v4558
      %4582 = vmatpush.bf16.msra.mxu0 %v4557
      %4583 = vmatpush.bf16.msra.mxu0 %v4556
      %4584 = vmatpush.bf16.msra.mxu0 %v4555
      %4585 = vmatpush.bf16.msra.mxu0 %v4554
      %4586 = vmatpush.bf16.msra.mxu0 %v4553
      %4587 = vmatpush.bf16.msra.mxu0 %v4552
      %4588 = vmatmul.bf16.gmra.mxu0 %v925
      %v4589 = vpop.f32.mrf.mxu0
      %v4590 = vadd.f32 0.0, %v4589
      %v4591 = vpop.f32.mrf.mxu0
      %v4592 = vadd.f32 0.0, %v4591
      %4593 = vmatmul.bf16.gmra.mxu0 %v927
      %v4594 = vpop.f32.mrf.mxu0
      %v4595 = vadd.f32 0.0, %v4594
      %v4596 = vpop.f32.mrf.mxu0
      %v4597 = vadd.f32 0.0, %v4596
      %4598 = vmatmul.bf16.gmra.mxu0 %v929
      %v4599 = vpop.f32.mrf.mxu0
      %v4600 = vadd.f32 0.0, %v4599
      %v4601 = vpop.f32.mrf.mxu0
      %v4602 = vadd.f32 0.0, %v4601
      %4603 = vmatmul.bf16.gmra.mxu0 %v931
      %v4604 = vpop.f32.mrf.mxu0
      %v4605 = vadd.f32 0.0, %v4604
      %v4606 = vpop.f32.mrf.mxu0
      %v4607 = vadd.f32 0.0, %v4606
      %4608 = vmatmul.bf16.gmra.mxu0 %v933
      %v4609 = vpop.f32.mrf.mxu0
      %v4610 = vadd.f32 0.0, %v4609
      %v4611 = vpop.f32.mrf.mxu0
      %v4612 = vadd.f32 0.0, %v4611
      %4613 = vmatmul.bf16.gmra.mxu0 %v935
      %v4614 = vpop.f32.mrf.mxu0
      %v4615 = vadd.f32 0.0, %v4614
      %v4616 = vpop.f32.mrf.mxu0
      %v4617 = vadd.f32 0.0, %v4616
      %4618 = vmatmul.bf16.gmra.mxu0 %v937
      %v4619 = vpop.f32.mrf.mxu0
      %v4620 = vadd.f32 0.0, %v4619
      %v4621 = vpop.f32.mrf.mxu0
      %v4622 = vadd.f32 0.0, %v4621
      %4623 = vmatmul.bf16.gmra.mxu0 %v939
      %v4624 = vpop.f32.mrf.mxu0
      %v4625 = vadd.f32 0.0, %v4624
      %v4626 = vpop.f32.mrf.mxu0
      %v4627 = vadd.f32 0.0, %v4626
      %4628 = vdwg.mxu0
      %4629 = vmatpush.bf16.msra.mxu0 0
      %4630 = vmatpush.bf16.msra.mxu0 0
      %4631 = vmatpush.bf16.msra.mxu0 0
      %4632 = vmatpush.bf16.msra.mxu0 %v4578
      %4633 = vmatpush.bf16.msra.mxu0 %v4563
      %4634 = vmatpush.bf16.msra.mxu0 %v4562
      %4635 = vmatpush.bf16.msra.mxu0 %v4561
      %4636 = vmatpush.bf16.msra.mxu0 %v4560
      %4637 = vmatmul.bf16.gmra.mxu0 %v1043
      %v4638 = vpop.f32.mrf.mxu0
      %v4639 = vadd.f32 %v4590, %v4638
      %v4640 = vpop.f32.mrf.mxu0
      %v4641 = vadd.f32 %v4592, %v4640
      %4642 = vmatmul.bf16.gmra.mxu0 %v1046
      %v4643 = vpop.f32.mrf.mxu0
      %v4644 = vadd.f32 %v4595, %v4643
      %v4645 = vpop.f32.mrf.mxu0
      %v4646 = vadd.f32 %v4597, %v4645
      %4647 = vmatmul.bf16.gmra.mxu0 %v1049
      %v4648 = vpop.f32.mrf.mxu0
      %v4649 = vadd.f32 %v4600, %v4648
      %v4650 = vpop.f32.mrf.mxu0
      %v4651 = vadd.f32 %v4602, %v4650
      %4652 = vmatmul.bf16.gmra.mxu0 %v1052
      %v4653 = vpop.f32.mrf.mxu0
      %v4654 = vadd.f32 %v4605, %v4653
      %v4655 = vpop.f32.mrf.mxu0
      %v4656 = vadd.f32 %v4607, %v4655
      %4657 = vmatmul.bf16.gmra.mxu0 %v1055
      %v4658 = vpop.f32.mrf.mxu0
      %v4659 = vadd.f32 %v4610, %v4658
      %v4660 = vpop.f32.mrf.mxu0
      %v4661 = vadd.f32 %v4612, %v4660
      %4662 = vmatmul.bf16.gmra.mxu0 %v1058
      %v4663 = vpop.f32.mrf.mxu0
      %v4664 = vadd.f32 %v4615, %v4663
      %v4665 = vpop.f32.mrf.mxu0
      %v4666 = vadd.f32 %v4617, %v4665
      %4667 = vmatmul.bf16.gmra.mxu0 %v1061
      %v4668 = vpop.f32.mrf.mxu0
      %v4669 = vadd.f32 %v4620, %v4668
      %v4670 = vpop.f32.mrf.mxu0
      %v4671 = vadd.f32 %v4622, %v4670
      %4672 = vmatmul.bf16.gmra.mxu0 %v1064
      %v4673 = vpop.f32.mrf.mxu0
      %v4674 = vadd.f32 %v4625, %v4673
      %v4675 = vpop.f32.mrf.mxu0
      %v4676 = vadd.f32 %v4627, %v4675
      %4677 = vdwg.mxu0
      %v4678 = vpack.c.bf16 %v4639, %v4639
      %v4679 = vpack.c.bf16 %v4641, %v4641
      %v4680 = vpack.c.bf16 %v4644, %v4644
      %v4681 = vpack.c.bf16 %v4646, %v4646
      %v4682 = vpack.c.bf16 %v4649, %v4649
      %v4683 = vpack.c.bf16 %v4651, %v4651
      %v4684 = vpack.c.bf16 %v4654, %v4654
      %v4685 = vpack.c.bf16 %v4656, %v4656
      %v4686 = vpack.c.bf16 %v4659, %v4659
      %v4687 = vpack.c.bf16 %v4661, %v4661
      %v4688 = vpack.c.bf16 %v4664, %v4664
      %v4689 = vpack.c.bf16 %v4666, %v4666
      %v4690 = vpack.c.bf16 %v4669, %v4669
      %v4691 = vpack.c.bf16 %v4671, %v4671
      %v4692 = vpack.c.bf16 %v4674, %v4674
      %v4693 = vpack.c.bf16 %v4676, %v4676
      %4694 = vst [vmem:[#allocation2 + $0x3c0] sm:$0xf] %v4678
      %4695 = vst [vmem:[#allocation2 + $0x3c4] sm:$0xf] %v4679
      %4696 = vst [vmem:[#allocation2 + $0x3c8] sm:$0xf] %v4680
      %4697 = vst [vmem:[#allocation2 + $0x3cc] sm:$0xf] %v4681
      %4698 = vst [vmem:[#allocation2 + $0x3d0] sm:$0xf] %v4682
      %4699 = vst [vmem:[#allocation2 + $0x3d4] sm:$0xf] %v4683
      %4700 = vst [vmem:[#allocation2 + $0x3d8] sm:$0xf] %v4684
      %4701 = vst [vmem:[#allocation2 + $0x3dc] sm:$0xf] %v4685
      %4702 = vst [vmem:[#allocation2 + $0x3e0] sm:$0xf] %v4686
      %4703 = vst [vmem:[#allocation2 + $0x3e4] sm:$0xf] %v4687
      %4704 = vst [vmem:[#allocation2 + $0x3e8] sm:$0xf] %v4688
      %4705 = vst [vmem:[#allocation2 + $0x3ec] sm:$0xf] %v4689
      %4706 = vst [vmem:[#allocation2 + $0x3f0] sm:$0xf] %v4690
      %4707 = vst [vmem:[#allocation2 + $0x3f4] sm:$0xf] %v4691
      %4708 = vst [vmem:[#allocation2 + $0x3f8] sm:$0xf] %v4692
      %4709 = vst [vmem:[#allocation2 + $0x3fc] sm:$0xf] %v4693
      %v4710 = vld [vmem:[%s4] sm:$0xff]
      %v4711 = vld [vmem:[%s4 + $0x8] sm:$0xff]
      %v4712 = vld [vmem:[%s4 + $0x10] sm:$0xff]
      %v4713 = vld [vmem:[%s4 + $0x18] sm:$0xff]
      %v4714 = vld [vmem:[%s4 + $0x20] sm:$0xff]
      %v4715 = vld [vmem:[%s4 + $0x28] sm:$0xff]
      %v4716 = vld [vmem:[%s4 + $0x30] sm:$0xff]
      %v4717 = vld [vmem:[%s4 + $0x38] sm:$0xff]
      %v4718 = vld [vmem:[%s4 + $0x40] sm:$0xff]
      %v4719 = vld [vmem:[%s4 + $0x48] sm:$0xff]
      %v4720 = vld [vmem:[%s4 + $0x50] sm:$0xff]
      %v4721 = vld [vmem:[%s4 + $0x58] sm:$0xff]
      %v4722 = vld [vmem:[%s4 + $0x60] sm:$0xff]
      %v4723 = vld [vmem:[%s4 + $0x68] sm:$0xff]
      %v4724 = vld [vmem:[%s4 + $0x70] sm:$0xff]
      %v4725 = vld [vmem:[%s4 + $0x78] sm:$0xff]
      %v4726 = vld [vmem:[%s4 + $0x80] sm:$0xff]
      %v4727 = vld [vmem:[%s4 + $0x88] sm:$0xff]
      %v4728 = vld [vmem:[%s4 + $0x90] sm:$0xff]
      %v4729 = vld [vmem:[%s4 + $0x98] sm:$0xff]
      %v4730 = vld [vmem:[%s4 + $0xa0] sm:$0xff]
      %v4731 = vld [vmem:[%s4 + $0xa8] sm:$0xff]
      %v4732 = vld [vmem:[%s4 + $0xb0] sm:$0xff]
      %v4733 = vld [vmem:[%s4 + $0xb8] sm:$0xff]
      %v4734 = vld [vmem:[%s4 + $0xc0] sm:$0xff]
      %v4735 = vld [vmem:[%s4 + $0xc8] sm:$0xff]
      %v4736 = vld [vmem:[%s4 + $0xd0] sm:$0xff]
      %v4737 = vld [vmem:[%s4 + $0xd8] sm:$0xff]
      %v4738 = vld [vmem:[%s4 + $0xe0] sm:$0xff]
      %v4739 = vld [vmem:[%s4 + $0xe8] sm:$0xff]
      %v4740 = vld [vmem:[%s4 + $0xf0] sm:$0xff]
      %v4741 = vld [vmem:[%s4 + $0xf8] sm:$0xff]
      %v4742 = vld [vmem:[%s4 + $0x100] sm:$0xff]
      %v4743 = vld [vmem:[%s4 + $0x108] sm:$0xff]
      %v4744 = vld [vmem:[%s4 + $0x110] sm:$0xff]
      %v4745 = vld [vmem:[%s4 + $0x118] sm:$0xff]
      %v4746 = vld [vmem:[%s4 + $0x120] sm:$0xff]
      %v4747 = vld [vmem:[%s4 + $0x128] sm:$0xff]
      %v4748 = vld [vmem:[%s4 + $0x130] sm:$0xff]
      %v4749 = vld [vmem:[%s4 + $0x138] sm:$0xff]
      %v4750 = vld [vmem:[%s4 + $0x140] sm:$0xff]
      %v4751 = vld [vmem:[%s4 + $0x148] sm:$0xff]
      %v4752 = vld [vmem:[%s4 + $0x150] sm:$0xff]
      %v4753 = vld [vmem:[%s4 + $0x158] sm:$0xff]
      %v4754 = vld [vmem:[%s4 + $0x160] sm:$0xff]
      %v4755 = vld [vmem:[%s4 + $0x168] sm:$0xff]
      %v4756 = vld [vmem:[%s4 + $0x170] sm:$0xff]
      %v4757 = vld [vmem:[%s4 + $0x178] sm:$0xff]
      %v4758 = vld [vmem:[%s4 + $0x180] sm:$0xff]
      %v4759 = vld [vmem:[%s4 + $0x188] sm:$0xff]
      %v4760 = vld [vmem:[%s4 + $0x190] sm:$0xff]
      %v4761 = vld [vmem:[%s4 + $0x198] sm:$0xff]
      %v4762 = vld [vmem:[%s4 + $0x1a0] sm:$0xff]
      %v4763 = vld [vmem:[%s4 + $0x1a8] sm:$0xff]
      %v4764 = vld [vmem:[%s4 + $0x1b0] sm:$0xff]
      %v4765 = vld [vmem:[%s4 + $0x1b8] sm:$0xff]
      %v4766 = vld [vmem:[%s4 + $0x1c0] sm:$0xff]
      %v4767 = vld [vmem:[%s4 + $0x1c8] sm:$0xff]
      %v4768 = vld [vmem:[%s4 + $0x1d0] sm:$0xff]
      %v4769 = vld [vmem:[%s4 + $0x1d8] sm:$0xff]
      %v4770 = vld [vmem:[%s4 + $0x1e0] sm:$0xff]
      %v4771 = vld [vmem:[%s4 + $0x1e8] sm:$0xff]
      %v4772 = vld [vmem:[%s4 + $0x1f0] sm:$0xff]
      %v4773 = vld [vmem:[%s4 + $0x1f8] sm:$0xff]
      %v4774 = vld [vmem:[%s4 + $0x200] sm:$0xff]
      %v4775 = vld [vmem:[%s4 + $0x208] sm:$0xff]
      %v4776 = vld [vmem:[%s4 + $0x210] sm:$0xff]
      %v4777 = vld [vmem:[%s4 + $0x218] sm:$0xff]
      %v4778 = vld [vmem:[%s4 + $0x220] sm:$0xff]
      %v4779 = vld [vmem:[%s4 + $0x228] sm:$0xff]
      %v4780 = vld [vmem:[%s4 + $0x230] sm:$0xff]
      %v4781 = vld [vmem:[%s4 + $0x238] sm:$0xff]
      %v4782 = vld [vmem:[%s4 + $0x240] sm:$0xff]
      %v4783 = vld [vmem:[%s4 + $0x248] sm:$0xff]
      %v4784 = vld [vmem:[%s4 + $0x250] sm:$0xff]
      %v4785 = vld [vmem:[%s4 + $0x258] sm:$0xff]
      %v4786 = vld [vmem:[%s4 + $0x260] sm:$0xff]
      %v4787 = vld [vmem:[%s4 + $0x268] sm:$0xff]
      %v4788 = vld [vmem:[%s4 + $0x270] sm:$0xff]
      %v4789 = vld [vmem:[%s4 + $0x278] sm:$0xff]
      %v4790 = vld [vmem:[%s4 + $0x280] sm:$0xff]
      %v4791 = vld [vmem:[%s4 + $0x288] sm:$0xff]
      %v4792 = vld [vmem:[%s4 + $0x290] sm:$0xff]
      %v4793 = vld [vmem:[%s4 + $0x298] sm:$0xff]
      %v4794 = vld [vmem:[%s4 + $0x2a0] sm:$0xff]
      %v4795 = vld [vmem:[%s4 + $0x2a8] sm:$0xff]
      %v4796 = vld [vmem:[%s4 + $0x2b0] sm:$0xff]
      %v4797 = vld [vmem:[%s4 + $0x2b8] sm:$0xff]
      %v4798 = vld [vmem:[%s4 + $0x2c0] sm:$0xff]
      %v4799 = vld [vmem:[%s4 + $0x2c8] sm:$0xff]
      %v4800 = vld [vmem:[%s4 + $0x2d0] sm:$0xff]
      %v4801 = vld [vmem:[%s4 + $0x2d8] sm:$0xff]
      %v4802 = vld [vmem:[%s4 + $0x2e0] sm:$0xff]
      %v4803 = vld [vmem:[%s4 + $0x2e8] sm:$0xff]
      %v4804 = vld [vmem:[%s4 + $0x2f0] sm:$0xff]
      %v4805 = vld [vmem:[%s4 + $0x2f8] sm:$0xff]
      %v4806 = vld [vmem:[%s4 + $0x300] sm:$0xff]
      %v4807 = vld [vmem:[%s4 + $0x308] sm:$0xff]
      %v4808 = vld [vmem:[%s4 + $0x310] sm:$0xff]
      %v4809 = vld [vmem:[%s4 + $0x318] sm:$0xff]
      %v4810 = vld [vmem:[%s4 + $0x320] sm:$0xff]
      %v4811 = vld [vmem:[%s4 + $0x328] sm:$0xff]
      %v4812 = vld [vmem:[%s4 + $0x330] sm:$0xff]
      %v4813 = vld [vmem:[%s4 + $0x338] sm:$0xff]
      %v4814 = vld [vmem:[%s4 + $0x340] sm:$0xff]
      %v4815 = vld [vmem:[%s4 + $0x348] sm:$0xff]
      %v4816 = vld [vmem:[%s4 + $0x350] sm:$0xff]
      %v4817 = vld [vmem:[%s4 + $0x358] sm:$0xff]
      %v4818 = vld [vmem:[%s4 + $0x360] sm:$0xff]
      %v4819 = vld [vmem:[%s4 + $0x368] sm:$0xff]
      %v4820 = vld [vmem:[%s4 + $0x370] sm:$0xff]
      %v4821 = vld [vmem:[%s4 + $0x378] sm:$0xff]
      %v4822 = vld [vmem:[%s4 + $0x380] sm:$0xff]
      %v4823 = vld [vmem:[%s4 + $0x388] sm:$0xff]
      %v4824 = vld [vmem:[%s4 + $0x390] sm:$0xff]
      %v4825 = vld [vmem:[%s4 + $0x398] sm:$0xff]
      %v4826 = vld [vmem:[%s4 + $0x3a0] sm:$0xff]
      %v4827 = vld [vmem:[%s4 + $0x3a8] sm:$0xff]
      %v4828 = vld [vmem:[%s4 + $0x3b0] sm:$0xff]
      %v4829 = vld [vmem:[%s4 + $0x3b8] sm:$0xff]
      %v4830 = vld [vmem:[%s4 + $0x3c0] sm:$0xff]
      %v4831 = vld [vmem:[%s4 + $0x3c8] sm:$0xff]
      %v4832 = vld [vmem:[%s4 + $0x3d0] sm:$0xff]
      %v4833 = vld [vmem:[%s4 + $0x3d8] sm:$0xff]
      %v4834 = vld [vmem:[%s4 + $0x3e0] sm:$0xff]
      %v4835 = vld [vmem:[%s4 + $0x3e8] sm:$0xff]
      %v4836 = vld [vmem:[%s4 + $0x3f0] sm:$0xff]
      %v4837 = vld [vmem:[%s4 + $0x3f8] sm:$0xff]
      %v4838 = vld [vmem:[%s4 + $0x400] sm:$0xff]
      %v4839 = vld [vmem:[%s4 + $0x408] sm:$0xff]
      %v4840 = vld [vmem:[%s4 + $0x410] sm:$0xff]
      %v4841 = vld [vmem:[%s4 + $0x418] sm:$0xff]
      %v4842 = vld [vmem:[%s4 + $0x420] sm:$0xff]
      %v4843 = vld [vmem:[%s4 + $0x428] sm:$0xff]
      %v4844 = vld [vmem:[%s4 + $0x430] sm:$0xff]
      %v4845 = vld [vmem:[%s4 + $0x438] sm:$0xff]
      %v4846 = vld [vmem:[%s4 + $0x440] sm:$0xff]
      %v4847 = vld [vmem:[%s4 + $0x448] sm:$0xff]
      %v4848 = vld [vmem:[%s4 + $0x450] sm:$0xff]
      %v4849 = vld [vmem:[%s4 + $0x458] sm:$0xff]
      %v4850 = vld [vmem:[%s4 + $0x460] sm:$0xff]
      %v4851 = vld [vmem:[%s4 + $0x468] sm:$0xff]
      %v4852 = vld [vmem:[%s4 + $0x470] sm:$0xff]
      %v4853 = vld [vmem:[%s4 + $0x478] sm:$0xff]
      %v4854 = vld [vmem:[%s4 + $0x480] sm:$0xff]
      %v4855 = vld [vmem:[%s4 + $0x488] sm:$0xff]
      %v4856 = vld [vmem:[%s4 + $0x490] sm:$0xff]
      %v4857 = vld [vmem:[%s4 + $0x498] sm:$0xff]
      %v4858 = vld [vmem:[%s4 + $0x4a0] sm:$0xff]
      %v4859 = vld [vmem:[%s4 + $0x4a8] sm:$0xff]
      %v4860 = vld [vmem:[%s4 + $0x4b0] sm:$0xff]
      %v4861 = vld [vmem:[%s4 + $0x4b8] sm:$0xff]
      %v4862 = vld [vmem:[%s4 + $0x4c0] sm:$0xff]
      %v4863 = vld [vmem:[%s4 + $0x4c8] sm:$0xff]
      %v4864 = vld [vmem:[%s4 + $0x4d0] sm:$0xff]
      %v4865 = vld [vmem:[%s4 + $0x4d8] sm:$0xff]
      %v4866 = vld [vmem:[%s4 + $0x4e0] sm:$0xff]
      %v4867 = vld [vmem:[%s4 + $0x4e8] sm:$0xff]
      %v4868 = vld [vmem:[%s4 + $0x4f0] sm:$0xff]
      %v4869 = vld [vmem:[%s4 + $0x4f8] sm:$0xff]
      %v4870 = vld [vmem:[%s4 + $0x500] sm:$0xff]
      %v4871 = vld [vmem:[%s4 + $0x508] sm:$0xff]
      %v4872 = vld [vmem:[%s4 + $0x510] sm:$0xff]
      %v4873 = vld [vmem:[%s4 + $0x518] sm:$0xff]
      %v4874 = vld [vmem:[%s4 + $0x520] sm:$0xff]
      %v4875 = vld [vmem:[%s4 + $0x528] sm:$0xff]
      %v4876 = vld [vmem:[%s4 + $0x530] sm:$0xff]
      %v4877 = vld [vmem:[%s4 + $0x538] sm:$0xff]
      %v4878 = vld [vmem:[%s4 + $0x540] sm:$0xff]
      %v4879 = vld [vmem:[%s4 + $0x548] sm:$0xff]
      %v4880 = vld [vmem:[%s4 + $0x550] sm:$0xff]
      %v4881 = vld [vmem:[%s4 + $0x558] sm:$0xff]
      %v4882 = vld [vmem:[%s4 + $0x560] sm:$0xff]
      %v4883 = vld [vmem:[%s4 + $0x568] sm:$0xff]
      %v4884 = vld [vmem:[%s4 + $0x570] sm:$0xff]
      %v4885 = vld [vmem:[%s4 + $0x578] sm:$0xff]
      %v4886 = vld [vmem:[%s4 + $0x580] sm:$0xff]
      %v4887 = vld [vmem:[%s4 + $0x588] sm:$0xff]
      %v4888 = vld [vmem:[%s4 + $0x590] sm:$0xff]
      %v4889 = vld [vmem:[%s4 + $0x598] sm:$0xff]
      %v4890 = vld [vmem:[%s4 + $0x5a0] sm:$0xff]
      %v4891 = vld [vmem:[%s4 + $0x5a8] sm:$0xff]
      %v4892 = vld [vmem:[%s4 + $0x5b0] sm:$0xff]
      %v4893 = vld [vmem:[%s4 + $0x5b8] sm:$0xff]
      %v4894 = vld [vmem:[%s4 + $0x5c0] sm:$0xff]
      %v4895 = vld [vmem:[%s4 + $0x5c8] sm:$0xff]
      %v4896 = vld [vmem:[%s4 + $0x5d0] sm:$0xff]
      %v4897 = vld [vmem:[%s4 + $0x5d8] sm:$0xff]
      %v4898 = vld [vmem:[%s4 + $0x5e0] sm:$0xff]
      %v4899 = vld [vmem:[%s4 + $0x5e8] sm:$0xff]
      %v4900 = vld [vmem:[%s4 + $0x5f0] sm:$0xff]
      %v4901 = vld [vmem:[%s4 + $0x5f8] sm:$0xff]
      %v4902 = vld [vmem:[%s4 + $0x600] sm:$0xff]
      %v4903 = vld [vmem:[%s4 + $0x608] sm:$0xff]
      %v4904 = vld [vmem:[%s4 + $0x610] sm:$0xff]
      %v4905 = vld [vmem:[%s4 + $0x618] sm:$0xff]
      %v4906 = vld [vmem:[%s4 + $0x620] sm:$0xff]
      %v4907 = vld [vmem:[%s4 + $0x628] sm:$0xff]
      %v4908 = vld [vmem:[%s4 + $0x630] sm:$0xff]
      %v4909 = vld [vmem:[%s4 + $0x638] sm:$0xff]
      %v4910 = vld [vmem:[%s4 + $0x640] sm:$0xff]
      %v4911 = vld [vmem:[%s4 + $0x648] sm:$0xff]
      %v4912 = vld [vmem:[%s4 + $0x650] sm:$0xff]
      %v4913 = vld [vmem:[%s4 + $0x658] sm:$0xff]
      %v4914 = vld [vmem:[%s4 + $0x660] sm:$0xff]
      %v4915 = vld [vmem:[%s4 + $0x668] sm:$0xff]
      %v4916 = vld [vmem:[%s4 + $0x670] sm:$0xff]
      %v4917 = vld [vmem:[%s4 + $0x678] sm:$0xff]
      %v4918 = vld [vmem:[%s4 + $0x680] sm:$0xff]
      %v4919 = vld [vmem:[%s4 + $0x688] sm:$0xff]
      %v4920 = vld [vmem:[%s4 + $0x690] sm:$0xff]
      %v4921 = vld [vmem:[%s4 + $0x698] sm:$0xff]
      %v4922 = vld [vmem:[%s4 + $0x6a0] sm:$0xff]
      %v4923 = vld [vmem:[%s4 + $0x6a8] sm:$0xff]
      %v4924 = vld [vmem:[%s4 + $0x6b0] sm:$0xff]
      %v4925 = vld [vmem:[%s4 + $0x6b8] sm:$0xff]
      %v4926 = vld [vmem:[%s4 + $0x6c0] sm:$0xff]
      %v4927 = vld [vmem:[%s4 + $0x6c8] sm:$0xff]
      %v4928 = vld [vmem:[%s4 + $0x6d0] sm:$0xff]
      %v4929 = vld [vmem:[%s4 + $0x6d8] sm:$0xff]
      %v4930 = vld [vmem:[%s4 + $0x6e0] sm:$0xff]
      %v4931 = vld [vmem:[%s4 + $0x6e8] sm:$0xff]
      %v4932 = vld [vmem:[%s4 + $0x6f0] sm:$0xff]
      %v4933 = vld [vmem:[%s4 + $0x6f8] sm:$0xff]
      %v4934 = vld [vmem:[%s4 + $0x700] sm:$0xff]
      %v4935 = vld [vmem:[%s4 + $0x708] sm:$0xff]
      %v4936 = vld [vmem:[%s4 + $0x710] sm:$0xff]
      %v4937 = vld [vmem:[%s4 + $0x718] sm:$0xff]
      %v4938 = vld [vmem:[%s4 + $0x720] sm:$0xff]
      %v4939 = vld [vmem:[%s4 + $0x728] sm:$0xff]
      %v4940 = vld [vmem:[%s4 + $0x730] sm:$0xff]
      %v4941 = vld [vmem:[%s4 + $0x738] sm:$0xff]
      %v4942 = vld [vmem:[%s4 + $0x740] sm:$0xff]
      %v4943 = vld [vmem:[%s4 + $0x748] sm:$0xff]
      %v4944 = vld [vmem:[%s4 + $0x750] sm:$0xff]
      %v4945 = vld [vmem:[%s4 + $0x758] sm:$0xff]
      %v4946 = vld [vmem:[%s4 + $0x760] sm:$0xff]
      %v4947 = vld [vmem:[%s4 + $0x768] sm:$0xff]
      %v4948 = vld [vmem:[%s4 + $0x770] sm:$0xff]
      %v4949 = vld [vmem:[%s4 + $0x778] sm:$0xff]
      %v4950 = vld [vmem:[%s4 + $0x780] sm:$0xff]
      %v4951 = vld [vmem:[%s4 + $0x788] sm:$0xff]
      %v4952 = vld [vmem:[%s4 + $0x790] sm:$0xff]
      %v4953 = vld [vmem:[%s4 + $0x798] sm:$0xff]
      %v4954 = vld [vmem:[%s4 + $0x7a0] sm:$0xff]
      %v4955 = vld [vmem:[%s4 + $0x7a8] sm:$0xff]
      %v4956 = vld [vmem:[%s4 + $0x7b0] sm:$0xff]
      %v4957 = vld [vmem:[%s4 + $0x7b8] sm:$0xff]
      %v4958 = vld [vmem:[%s4 + $0x7c0] sm:$0xff]
      %v4959 = vld [vmem:[%s4 + $0x7c8] sm:$0xff]
      %v4960 = vld [vmem:[%s4 + $0x7d0] sm:$0xff]
      %v4961 = vld [vmem:[%s4 + $0x7d8] sm:$0xff]
      %v4962 = vld [vmem:[%s4 + $0x7e0] sm:$0xff]
      %v4963 = vld [vmem:[%s4 + $0x7e8] sm:$0xff]
      %v4964 = vld [vmem:[%s4 + $0x7f0] sm:$0xff]
      %v4965 = vld [vmem:[%s4 + $0x7f8] sm:$0xff]
      %v4966 = vld [vmem:[#allocation2] sm:$0xf]
      %v4967 = vld [vmem:[#allocation2 + $0x4] sm:$0xf]
      %v4968 = vld [vmem:[#allocation2 + $0x8] sm:$0xf]
      %v4969 = vld [vmem:[#allocation2 + $0xc] sm:$0xf]
      %v4970 = vld [vmem:[#allocation2 + $0x10] sm:$0xf]
      %v4971 = vld [vmem:[#allocation2 + $0x14] sm:$0xf]
      %v4972 = vld [vmem:[#allocation2 + $0x18] sm:$0xf]
      %v4973 = vld [vmem:[#allocation2 + $0x1c] sm:$0xf]
      %v4974 = vld [vmem:[#allocation2 + $0x20] sm:$0xf]
      %v4975 = vld [vmem:[#allocation2 + $0x24] sm:$0xf]
      %v4976 = vld [vmem:[#allocation2 + $0x28] sm:$0xf]
      %v4977 = vld [vmem:[#allocation2 + $0x2c] sm:$0xf]
      %v4978 = vld [vmem:[#allocation2 + $0x30] sm:$0xf]
      %v4979 = vld [vmem:[#allocation2 + $0x34] sm:$0xf]
      %v4980 = vld [vmem:[#allocation2 + $0x38] sm:$0xf]
      %v4981 = vld [vmem:[#allocation2 + $0x3c] sm:$0xf]
      %v4982 = vld [vmem:[#allocation2 + $0x40] sm:$0xf]
      %v4983 = vld [vmem:[#allocation2 + $0x44] sm:$0xf]
      %v4984 = vld [vmem:[#allocation2 + $0x48] sm:$0xf]
      %v4985 = vld [vmem:[#allocation2 + $0x4c] sm:$0xf]
      %v4986 = vld [vmem:[#allocation2 + $0x50] sm:$0xf]
      %v4987 = vld [vmem:[#allocation2 + $0x54] sm:$0xf]
      %v4988 = vld [vmem:[#allocation2 + $0x58] sm:$0xf]
      %v4989 = vld [vmem:[#allocation2 + $0x5c] sm:$0xf]
      %v4990 = vld [vmem:[#allocation2 + $0x60] sm:$0xf]
      %v4991 = vld [vmem:[#allocation2 + $0x64] sm:$0xf]
      %v4992 = vld [vmem:[#allocation2 + $0x68] sm:$0xf]
      %v4993 = vld [vmem:[#allocation2 + $0x6c] sm:$0xf]
      %v4994 = vld [vmem:[#allocation2 + $0x70] sm:$0xf]
      %v4995 = vld [vmem:[#allocation2 + $0x74] sm:$0xf]
      %v4996 = vld [vmem:[#allocation2 + $0x78] sm:$0xf]
      %v4997 = vld [vmem:[#allocation2 + $0x7c] sm:$0xf]
      %v4998 = vld [vmem:[#allocation2 + $0x80] sm:$0xf]
      %v4999 = vld [vmem:[#allocation2 + $0x84] sm:$0xf]
      %v5000 = vld [vmem:[#allocation2 + $0x88] sm:$0xf]
      %v5001 = vld [vmem:[#allocation2 + $0x8c] sm:$0xf]
      %v5002 = vld [vmem:[#allocation2 + $0x90] sm:$0xf]
      %v5003 = vld [vmem:[#allocation2 + $0x94] sm:$0xf]
      %v5004 = vld [vmem:[#allocation2 + $0x98] sm:$0xf]
      %v5005 = vld [vmem:[#allocation2 + $0x9c] sm:$0xf]
      %v5006 = vld [vmem:[#allocation2 + $0xa0] sm:$0xf]
      %v5007 = vld [vmem:[#allocation2 + $0xa4] sm:$0xf]
      %v5008 = vld [vmem:[#allocation2 + $0xa8] sm:$0xf]
      %v5009 = vld [vmem:[#allocation2 + $0xac] sm:$0xf]
      %v5010 = vld [vmem:[#allocation2 + $0xb0] sm:$0xf]
      %v5011 = vld [vmem:[#allocation2 + $0xb4] sm:$0xf]
      %v5012 = vld [vmem:[#allocation2 + $0xb8] sm:$0xf]
      %v5013 = vld [vmem:[#allocation2 + $0xbc] sm:$0xf]
      %v5014 = vld [vmem:[#allocation2 + $0xc0] sm:$0xf]
      %v5015 = vld [vmem:[#allocation2 + $0xc4] sm:$0xf]
      %v5016 = vld [vmem:[#allocation2 + $0xc8] sm:$0xf]
      %v5017 = vld [vmem:[#allocation2 + $0xcc] sm:$0xf]
      %v5018 = vld [vmem:[#allocation2 + $0xd0] sm:$0xf]
      %v5019 = vld [vmem:[#allocation2 + $0xd4] sm:$0xf]
      %v5020 = vld [vmem:[#allocation2 + $0xd8] sm:$0xf]
      %v5021 = vld [vmem:[#allocation2 + $0xdc] sm:$0xf]
      %v5022 = vld [vmem:[#allocation2 + $0xe0] sm:$0xf]
      %v5023 = vld [vmem:[#allocation2 + $0xe4] sm:$0xf]
      %v5024 = vld [vmem:[#allocation2 + $0xe8] sm:$0xf]
      %v5025 = vld [vmem:[#allocation2 + $0xec] sm:$0xf]
      %v5026 = vld [vmem:[#allocation2 + $0xf0] sm:$0xf]
      %v5027 = vld [vmem:[#allocation2 + $0xf4] sm:$0xf]
      %v5028 = vld [vmem:[#allocation2 + $0xf8] sm:$0xf]
      %v5029 = vld [vmem:[#allocation2 + $0xfc] sm:$0xf]
      %v5030 = vld [vmem:[#allocation2 + $0x100] sm:$0xf]
      %v5031 = vld [vmem:[#allocation2 + $0x104] sm:$0xf]
      %v5032 = vld [vmem:[#allocation2 + $0x108] sm:$0xf]
      %v5033 = vld [vmem:[#allocation2 + $0x10c] sm:$0xf]
      %v5034 = vld [vmem:[#allocation2 + $0x110] sm:$0xf]
      %v5035 = vld [vmem:[#allocation2 + $0x114] sm:$0xf]
      %v5036 = vld [vmem:[#allocation2 + $0x118] sm:$0xf]
      %v5037 = vld [vmem:[#allocation2 + $0x11c] sm:$0xf]
      %v5038 = vld [vmem:[#allocation2 + $0x120] sm:$0xf]
      %v5039 = vld [vmem:[#allocation2 + $0x124] sm:$0xf]
      %v5040 = vld [vmem:[#allocation2 + $0x128] sm:$0xf]
      %v5041 = vld [vmem:[#allocation2 + $0x12c] sm:$0xf]
      %v5042 = vld [vmem:[#allocation2 + $0x130] sm:$0xf]
      %v5043 = vld [vmem:[#allocation2 + $0x134] sm:$0xf]
      %v5044 = vld [vmem:[#allocation2 + $0x138] sm:$0xf]
      %v5045 = vld [vmem:[#allocation2 + $0x13c] sm:$0xf]
      %v5046 = vld [vmem:[#allocation2 + $0x140] sm:$0xf]
      %v5047 = vld [vmem:[#allocation2 + $0x144] sm:$0xf]
      %v5048 = vld [vmem:[#allocation2 + $0x148] sm:$0xf]
      %v5049 = vld [vmem:[#allocation2 + $0x14c] sm:$0xf]
      %v5050 = vld [vmem:[#allocation2 + $0x150] sm:$0xf]
      %v5051 = vld [vmem:[#allocation2 + $0x154] sm:$0xf]
      %v5052 = vld [vmem:[#allocation2 + $0x158] sm:$0xf]
      %v5053 = vld [vmem:[#allocation2 + $0x15c] sm:$0xf]
      %v5054 = vld [vmem:[#allocation2 + $0x160] sm:$0xf]
      %v5055 = vld [vmem:[#allocation2 + $0x164] sm:$0xf]
      %v5056 = vld [vmem:[#allocation2 + $0x168] sm:$0xf]
      %v5057 = vld [vmem:[#allocation2 + $0x16c] sm:$0xf]
      %v5058 = vld [vmem:[#allocation2 + $0x170] sm:$0xf]
      %v5059 = vld [vmem:[#allocation2 + $0x174] sm:$0xf]
      %v5060 = vld [vmem:[#allocation2 + $0x178] sm:$0xf]
      %v5061 = vld [vmem:[#allocation2 + $0x17c] sm:$0xf]
      %v5062 = vld [vmem:[#allocation2 + $0x180] sm:$0xf]
      %v5063 = vld [vmem:[#allocation2 + $0x184] sm:$0xf]
      %v5064 = vld [vmem:[#allocation2 + $0x188] sm:$0xf]
      %v5065 = vld [vmem:[#allocation2 + $0x18c] sm:$0xf]
      %v5066 = vld [vmem:[#allocation2 + $0x190] sm:$0xf]
      %v5067 = vld [vmem:[#allocation2 + $0x194] sm:$0xf]
      %v5068 = vld [vmem:[#allocation2 + $0x198] sm:$0xf]
      %v5069 = vld [vmem:[#allocation2 + $0x19c] sm:$0xf]
      %v5070 = vld [vmem:[#allocation2 + $0x1a0] sm:$0xf]
      %v5071 = vld [vmem:[#allocation2 + $0x1a4] sm:$0xf]
      %v5072 = vld [vmem:[#allocation2 + $0x1a8] sm:$0xf]
      %v5073 = vld [vmem:[#allocation2 + $0x1ac] sm:$0xf]
      %v5074 = vld [vmem:[#allocation2 + $0x1b0] sm:$0xf]
      %v5075 = vld [vmem:[#allocation2 + $0x1b4] sm:$0xf]
      %v5076 = vld [vmem:[#allocation2 + $0x1b8] sm:$0xf]
      %v5077 = vld [vmem:[#allocation2 + $0x1bc] sm:$0xf]
      %v5078 = vld [vmem:[#allocation2 + $0x1c0] sm:$0xf]
      %v5079 = vld [vmem:[#allocation2 + $0x1c4] sm:$0xf]
      %v5080 = vld [vmem:[#allocation2 + $0x1c8] sm:$0xf]
      %v5081 = vld [vmem:[#allocation2 + $0x1cc] sm:$0xf]
      %v5082 = vld [vmem:[#allocation2 + $0x1d0] sm:$0xf]
      %v5083 = vld [vmem:[#allocation2 + $0x1d4] sm:$0xf]
      %v5084 = vld [vmem:[#allocation2 + $0x1d8] sm:$0xf]
      %v5085 = vld [vmem:[#allocation2 + $0x1dc] sm:$0xf]
      %v5086 = vld [vmem:[#allocation2 + $0x1e0] sm:$0xf]
      %v5087 = vld [vmem:[#allocation2 + $0x1e4] sm:$0xf]
      %v5088 = vld [vmem:[#allocation2 + $0x1e8] sm:$0xf]
      %v5089 = vld [vmem:[#allocation2 + $0x1ec] sm:$0xf]
      %v5090 = vld [vmem:[#allocation2 + $0x1f0] sm:$0xf]
      %v5091 = vld [vmem:[#allocation2 + $0x1f4] sm:$0xf]
      %v5092 = vld [vmem:[#allocation2 + $0x1f8] sm:$0xf]
      %v5093 = vld [vmem:[#allocation2 + $0x1fc] sm:$0xf]
      %v5094 = vld [vmem:[#allocation2 + $0x200] sm:$0xf]
      %v5095 = vld [vmem:[#allocation2 + $0x204] sm:$0xf]
      %v5096 = vld [vmem:[#allocation2 + $0x208] sm:$0xf]
      %v5097 = vld [vmem:[#allocation2 + $0x20c] sm:$0xf]
      %v5098 = vld [vmem:[#allocation2 + $0x210] sm:$0xf]
      %v5099 = vld [vmem:[#allocation2 + $0x214] sm:$0xf]
      %v5100 = vld [vmem:[#allocation2 + $0x218] sm:$0xf]
      %v5101 = vld [vmem:[#allocation2 + $0x21c] sm:$0xf]
      %v5102 = vld [vmem:[#allocation2 + $0x220] sm:$0xf]
      %v5103 = vld [vmem:[#allocation2 + $0x224] sm:$0xf]
      %v5104 = vld [vmem:[#allocation2 + $0x228] sm:$0xf]
      %v5105 = vld [vmem:[#allocation2 + $0x22c] sm:$0xf]
      %v5106 = vld [vmem:[#allocation2 + $0x230] sm:$0xf]
      %v5107 = vld [vmem:[#allocation2 + $0x234] sm:$0xf]
      %v5108 = vld [vmem:[#allocation2 + $0x238] sm:$0xf]
      %v5109 = vld [vmem:[#allocation2 + $0x23c] sm:$0xf]
      %v5110 = vld [vmem:[#allocation2 + $0x240] sm:$0xf]
      %v5111 = vld [vmem:[#allocation2 + $0x244] sm:$0xf]
      %v5112 = vld [vmem:[#allocation2 + $0x248] sm:$0xf]
      %v5113 = vld [vmem:[#allocation2 + $0x24c] sm:$0xf]
      %v5114 = vld [vmem:[#allocation2 + $0x250] sm:$0xf]
      %v5115 = vld [vmem:[#allocation2 + $0x254] sm:$0xf]
      %v5116 = vld [vmem:[#allocation2 + $0x258] sm:$0xf]
      %v5117 = vld [vmem:[#allocation2 + $0x25c] sm:$0xf]
      %v5118 = vld [vmem:[#allocation2 + $0x260] sm:$0xf]
      %v5119 = vld [vmem:[#allocation2 + $0x264] sm:$0xf]
      %v5120 = vld [vmem:[#allocation2 + $0x268] sm:$0xf]
      %v5121 = vld [vmem:[#allocation2 + $0x26c] sm:$0xf]
      %v5122 = vld [vmem:[#allocation2 + $0x270] sm:$0xf]
      %v5123 = vld [vmem:[#allocation2 + $0x274] sm:$0xf]
      %v5124 = vld [vmem:[#allocation2 + $0x278] sm:$0xf]
      %v5125 = vld [vmem:[#allocation2 + $0x27c] sm:$0xf]
      %v5126 = vld [vmem:[#allocation2 + $0x280] sm:$0xf]
      %v5127 = vld [vmem:[#allocation2 + $0x284] sm:$0xf]
      %v5128 = vld [vmem:[#allocation2 + $0x288] sm:$0xf]
      %v5129 = vld [vmem:[#allocation2 + $0x28c] sm:$0xf]
      %v5130 = vld [vmem:[#allocation2 + $0x290] sm:$0xf]
      %v5131 = vld [vmem:[#allocation2 + $0x294] sm:$0xf]
      %v5132 = vld [vmem:[#allocation2 + $0x298] sm:$0xf]
      %v5133 = vld [vmem:[#allocation2 + $0x29c] sm:$0xf]
      %v5134 = vld [vmem:[#allocation2 + $0x2a0] sm:$0xf]
      %v5135 = vld [vmem:[#allocation2 + $0x2a4] sm:$0xf]
      %v5136 = vld [vmem:[#allocation2 + $0x2a8] sm:$0xf]
      %v5137 = vld [vmem:[#allocation2 + $0x2ac] sm:$0xf]
      %v5138 = vld [vmem:[#allocation2 + $0x2b0] sm:$0xf]
      %v5139 = vld [vmem:[#allocation2 + $0x2b4] sm:$0xf]
      %v5140 = vld [vmem:[#allocation2 + $0x2b8] sm:$0xf]
      %v5141 = vld [vmem:[#allocation2 + $0x2bc] sm:$0xf]
      %v5142 = vld [vmem:[#allocation2 + $0x2c0] sm:$0xf]
      %v5143 = vld [vmem:[#allocation2 + $0x2c4] sm:$0xf]
      %v5144 = vld [vmem:[#allocation2 + $0x2c8] sm:$0xf]
      %v5145 = vld [vmem:[#allocation2 + $0x2cc] sm:$0xf]
      %v5146 = vld [vmem:[#allocation2 + $0x2d0] sm:$0xf]
      %v5147 = vld [vmem:[#allocation2 + $0x2d4] sm:$0xf]
      %v5148 = vld [vmem:[#allocation2 + $0x2d8] sm:$0xf]
      %v5149 = vld [vmem:[#allocation2 + $0x2dc] sm:$0xf]
      %v5150 = vld [vmem:[#allocation2 + $0x2e0] sm:$0xf]
      %v5151 = vld [vmem:[#allocation2 + $0x2e4] sm:$0xf]
      %v5152 = vld [vmem:[#allocation2 + $0x2e8] sm:$0xf]
      %v5153 = vld [vmem:[#allocation2 + $0x2ec] sm:$0xf]
      %v5154 = vld [vmem:[#allocation2 + $0x2f0] sm:$0xf]
      %v5155 = vld [vmem:[#allocation2 + $0x2f4] sm:$0xf]
      %v5156 = vld [vmem:[#allocation2 + $0x2f8] sm:$0xf]
      %v5157 = vld [vmem:[#allocation2 + $0x2fc] sm:$0xf]
      %v5158 = vld [vmem:[#allocation2 + $0x300] sm:$0xf]
      %v5159 = vld [vmem:[#allocation2 + $0x304] sm:$0xf]
      %v5160 = vld [vmem:[#allocation2 + $0x308] sm:$0xf]
      %v5161 = vld [vmem:[#allocation2 + $0x30c] sm:$0xf]
      %v5162 = vld [vmem:[#allocation2 + $0x310] sm:$0xf]
      %v5163 = vld [vmem:[#allocation2 + $0x314] sm:$0xf]
      %v5164 = vld [vmem:[#allocation2 + $0x318] sm:$0xf]
      %v5165 = vld [vmem:[#allocation2 + $0x31c] sm:$0xf]
      %v5166 = vld [vmem:[#allocation2 + $0x320] sm:$0xf]
      %v5167 = vld [vmem:[#allocation2 + $0x324] sm:$0xf]
      %v5168 = vld [vmem:[#allocation2 + $0x328] sm:$0xf]
      %v5169 = vld [vmem:[#allocation2 + $0x32c] sm:$0xf]
      %v5170 = vld [vmem:[#allocation2 + $0x330] sm:$0xf]
      %v5171 = vld [vmem:[#allocation2 + $0x334] sm:$0xf]
      %v5172 = vld [vmem:[#allocation2 + $0x338] sm:$0xf]
      %v5173 = vld [vmem:[#allocation2 + $0x33c] sm:$0xf]
      %v5174 = vld [vmem:[#allocation2 + $0x340] sm:$0xf]
      %v5175 = vld [vmem:[#allocation2 + $0x344] sm:$0xf]
      %v5176 = vld [vmem:[#allocation2 + $0x348] sm:$0xf]
      %v5177 = vld [vmem:[#allocation2 + $0x34c] sm:$0xf]
      %v5178 = vld [vmem:[#allocation2 + $0x350] sm:$0xf]
      %v5179 = vld [vmem:[#allocation2 + $0x354] sm:$0xf]
      %v5180 = vld [vmem:[#allocation2 + $0x358] sm:$0xf]
      %v5181 = vld [vmem:[#allocation2 + $0x35c] sm:$0xf]
      %v5182 = vld [vmem:[#allocation2 + $0x360] sm:$0xf]
      %v5183 = vld [vmem:[#allocation2 + $0x364] sm:$0xf]
      %v5184 = vld [vmem:[#allocation2 + $0x368] sm:$0xf]
      %v5185 = vld [vmem:[#allocation2 + $0x36c] sm:$0xf]
      %v5186 = vld [vmem:[#allocation2 + $0x370] sm:$0xf]
      %v5187 = vld [vmem:[#allocation2 + $0x374] sm:$0xf]
      %v5188 = vld [vmem:[#allocation2 + $0x378] sm:$0xf]
      %v5189 = vld [vmem:[#allocation2 + $0x37c] sm:$0xf]
      %v5190 = vld [vmem:[#allocation2 + $0x380] sm:$0xf]
      %v5191 = vld [vmem:[#allocation2 + $0x384] sm:$0xf]
      %v5192 = vld [vmem:[#allocation2 + $0x388] sm:$0xf]
      %v5193 = vld [vmem:[#allocation2 + $0x38c] sm:$0xf]
      %v5194 = vld [vmem:[#allocation2 + $0x390] sm:$0xf]
      %v5195 = vld [vmem:[#allocation2 + $0x394] sm:$0xf]
      %v5196 = vld [vmem:[#allocation2 + $0x398] sm:$0xf]
      %v5197 = vld [vmem:[#allocation2 + $0x39c] sm:$0xf]
      %v5198 = vld [vmem:[#allocation2 + $0x3a0] sm:$0xf]
      %v5199 = vld [vmem:[#allocation2 + $0x3a4] sm:$0xf]
      %v5200 = vld [vmem:[#allocation2 + $0x3a8] sm:$0xf]
      %v5201 = vld [vmem:[#allocation2 + $0x3ac] sm:$0xf]
      %v5202 = vld [vmem:[#allocation2 + $0x3b0] sm:$0xf]
      %v5203 = vld [vmem:[#allocation2 + $0x3b4] sm:$0xf]
      %v5204 = vld [vmem:[#allocation2 + $0x3b8] sm:$0xf]
      %v5205 = vld [vmem:[#allocation2 + $0x3bc] sm:$0xf]
      %v5206 = vld [vmem:[#allocation2 + $0x3c0] sm:$0xf]
      %v5207 = vld [vmem:[#allocation2 + $0x3c4] sm:$0xf]
      %v5208 = vld [vmem:[#allocation2 + $0x3c8] sm:$0xf]
      %v5209 = vld [vmem:[#allocation2 + $0x3cc] sm:$0xf]
      %v5210 = vld [vmem:[#allocation2 + $0x3d0] sm:$0xf]
      %v5211 = vld [vmem:[#allocation2 + $0x3d4] sm:$0xf]
      %v5212 = vld [vmem:[#allocation2 + $0x3d8] sm:$0xf]
      %v5213 = vld [vmem:[#allocation2 + $0x3dc] sm:$0xf]
      %v5214 = vld [vmem:[#allocation2 + $0x3e0] sm:$0xf]
      %v5215 = vld [vmem:[#allocation2 + $0x3e4] sm:$0xf]
      %v5216 = vld [vmem:[#allocation2 + $0x3e8] sm:$0xf]
      %v5217 = vld [vmem:[#allocation2 + $0x3ec] sm:$0xf]
      %v5218 = vld [vmem:[#allocation2 + $0x3f0] sm:$0xf]
      %v5219 = vld [vmem:[#allocation2 + $0x3f4] sm:$0xf]
      %v5220 = vld [vmem:[#allocation2 + $0x3f8] sm:$0xf]
      %v5221 = vld [vmem:[#allocation2 + $0x3fc] sm:$0xf]
      %v5222 = vld [vmem:[%s5] sm:$0xff]
      %v5223 = vld [vmem:[%s5 + $0x8] sm:$0xff]
      %v5224 = vld [vmem:[%s5 + $0x10] sm:$0xff]
      %v5225 = vld [vmem:[%s5 + $0x18] sm:$0xff]
      %v5226 = vld [vmem:[%s5 + $0x20] sm:$0xff]
      %v5227 = vld [vmem:[%s5 + $0x28] sm:$0xff]
      %v5228 = vld [vmem:[%s5 + $0x30] sm:$0xff]
      %v5229 = vld [vmem:[%s5 + $0x38] sm:$0xff]
      %v5230 = vld [vmem:[%s5 + $0x40] sm:$0xff]
      %v5231 = vld [vmem:[%s5 + $0x48] sm:$0xff]
      %v5232 = vld [vmem:[%s5 + $0x50] sm:$0xff]
      %v5233 = vld [vmem:[%s5 + $0x58] sm:$0xff]
      %v5234 = vld [vmem:[%s5 + $0x60] sm:$0xff]
      %v5235 = vld [vmem:[%s5 + $0x68] sm:$0xff]
      %v5236 = vld [vmem:[%s5 + $0x70] sm:$0xff]
      %v5237 = vld [vmem:[%s5 + $0x78] sm:$0xff]
      %v5238 = vld [vmem:[%s5 + $0x80] sm:$0xff]
      %v5239 = vld [vmem:[%s5 + $0x88] sm:$0xff]
      %v5240 = vld [vmem:[%s5 + $0x90] sm:$0xff]
      %v5241 = vld [vmem:[%s5 + $0x98] sm:$0xff]
      %v5242 = vld [vmem:[%s5 + $0xa0] sm:$0xff]
      %v5243 = vld [vmem:[%s5 + $0xa8] sm:$0xff]
      %v5244 = vld [vmem:[%s5 + $0xb0] sm:$0xff]
      %v5245 = vld [vmem:[%s5 + $0xb8] sm:$0xff]
      %v5246 = vld [vmem:[%s5 + $0xc0] sm:$0xff]
      %v5247 = vld [vmem:[%s5 + $0xc8] sm:$0xff]
      %v5248 = vld [vmem:[%s5 + $0xd0] sm:$0xff]
      %v5249 = vld [vmem:[%s5 + $0xd8] sm:$0xff]
      %v5250 = vld [vmem:[%s5 + $0xe0] sm:$0xff]
      %v5251 = vld [vmem:[%s5 + $0xe8] sm:$0xff]
      %v5252 = vld [vmem:[%s5 + $0xf0] sm:$0xff]
      %v5253 = vld [vmem:[%s5 + $0xf8] sm:$0xff]
      %5255 = vset.pattern.permute.xlu0 0
      %5256 = vperm.xlu0 %5255, %v5222
      %v5257 = vpop.permute.xlu0 %5256
      %5260 = vset.pattern.permute.xlu0 0
      %5261 = vperm.xlu0 %5260, %v5223
      %v5262 = vpop.permute.xlu0 %5261
      %5265 = vset.pattern.permute.xlu0 0
      %5266 = vperm.xlu0 %5265, %v5224
      %v5267 = vpop.permute.xlu0 %5266
      %5270 = vset.pattern.permute.xlu0 0
      %5271 = vperm.xlu0 %5270, %v5225
      %v5272 = vpop.permute.xlu0 %5271
      %5275 = vset.pattern.permute.xlu0 0
      %5276 = vperm.xlu0 %5275, %v5226
      %v5277 = vpop.permute.xlu0 %5276
      %5280 = vset.pattern.permute.xlu0 0
      %5281 = vperm.xlu0 %5280, %v5227
      %v5282 = vpop.permute.xlu0 %5281
      %5285 = vset.pattern.permute.xlu0 0
      %5286 = vperm.xlu0 %5285, %v5228
      %v5287 = vpop.permute.xlu0 %5286
      %5290 = vset.pattern.permute.xlu0 0
      %5291 = vperm.xlu0 %5290, %v5229
      %v5292 = vpop.permute.xlu0 %5291
      %5295 = vset.pattern.permute.xlu0 0
      %5296 = vperm.xlu0 %5295, %v5230
      %v5297 = vpop.permute.xlu0 %5296
      %5300 = vset.pattern.permute.xlu0 0
      %5301 = vperm.xlu0 %5300, %v5231
      %v5302 = vpop.permute.xlu0 %5301
      %5305 = vset.pattern.permute.xlu0 0
      %5306 = vperm.xlu0 %5305, %v5232
      %v5307 = vpop.permute.xlu0 %5306
      %5310 = vset.pattern.permute.xlu0 0
      %5311 = vperm.xlu0 %5310, %v5233
      %v5312 = vpop.permute.xlu0 %5311
      %5315 = vset.pattern.permute.xlu0 0
      %5316 = vperm.xlu0 %5315, %v5234
      %v5317 = vpop.permute.xlu0 %5316
      %5320 = vset.pattern.permute.xlu0 0
      %5321 = vperm.xlu0 %5320, %v5235
      %v5322 = vpop.permute.xlu0 %5321
      %5325 = vset.pattern.permute.xlu0 0
      %5326 = vperm.xlu0 %5325, %v5236
      %v5327 = vpop.permute.xlu0 %5326
      %5330 = vset.pattern.permute.xlu0 0
      %5331 = vperm.xlu0 %5330, %v5237
      %v5332 = vpop.permute.xlu0 %5331
      %5335 = vset.pattern.permute.xlu0 0
      %5336 = vperm.xlu0 %5335, %v5238
      %v5337 = vpop.permute.xlu0 %5336
      %5340 = vset.pattern.permute.xlu0 0
      %5341 = vperm.xlu0 %5340, %v5239
      %v5342 = vpop.permute.xlu0 %5341
      %5345 = vset.pattern.permute.xlu0 0
      %5346 = vperm.xlu0 %5345, %v5240
      %v5347 = vpop.permute.xlu0 %5346
      %5350 = vset.pattern.permute.xlu0 0
      %5351 = vperm.xlu0 %5350, %v5241
      %v5352 = vpop.permute.xlu0 %5351
      %5355 = vset.pattern.permute.xlu0 0
      %5356 = vperm.xlu0 %5355, %v5242
      %v5357 = vpop.permute.xlu0 %5356
      %5360 = vset.pattern.permute.xlu0 0
      %5361 = vperm.xlu0 %5360, %v5243
      %v5362 = vpop.permute.xlu0 %5361
      %5365 = vset.pattern.permute.xlu0 0
      %5366 = vperm.xlu0 %5365, %v5244
      %v5367 = vpop.permute.xlu0 %5366
      %5370 = vset.pattern.permute.xlu0 0
      %5371 = vperm.xlu0 %5370, %v5245
      %v5372 = vpop.permute.xlu0 %5371
      %5375 = vset.pattern.permute.xlu0 0
      %5376 = vperm.xlu0 %5375, %v5246
      %v5377 = vpop.permute.xlu0 %5376
      %5380 = vset.pattern.permute.xlu0 0
      %5381 = vperm.xlu0 %5380, %v5247
      %v5382 = vpop.permute.xlu0 %5381
      %5385 = vset.pattern.permute.xlu0 0
      %5386 = vperm.xlu0 %5385, %v5248
      %v5387 = vpop.permute.xlu0 %5386
      %5390 = vset.pattern.permute.xlu0 0
      %5391 = vperm.xlu0 %5390, %v5249
      %v5392 = vpop.permute.xlu0 %5391
      %5395 = vset.pattern.permute.xlu0 0
      %5396 = vperm.xlu0 %5395, %v5250
      %v5397 = vpop.permute.xlu0 %5396
      %5400 = vset.pattern.permute.xlu0 0
      %5401 = vperm.xlu0 %5400, %v5251
      %v5402 = vpop.permute.xlu0 %5401
      %5405 = vset.pattern.permute.xlu0 0
      %5406 = vperm.xlu0 %5405, %v5252
      %v5407 = vpop.permute.xlu0 %5406
      %5410 = vset.pattern.permute.xlu0 0
      %5411 = vperm.xlu0 %5410, %v5253
      %v5412 = vpop.permute.xlu0 %5411
      %v5670 = vunpack.c.l.b16 %v4710
      %v5671 = vunpack.c.h.b16 %v4710
      %v5672 = vunpack.c.l.b16 %v4711
      %v5673 = vunpack.c.h.b16 %v4711
      %v5674 = vunpack.c.l.b16 %v4712
      %v5675 = vunpack.c.h.b16 %v4712
      %v5676 = vunpack.c.l.b16 %v4713
      %v5677 = vunpack.c.h.b16 %v4713
      %v5678 = vunpack.c.l.b16 %v4714
      %v5679 = vunpack.c.h.b16 %v4714
      %v5680 = vunpack.c.l.b16 %v4715
      %v5681 = vunpack.c.h.b16 %v4715
      %v5682 = vunpack.c.l.b16 %v4716
      %v5683 = vunpack.c.h.b16 %v4716
      %v5684 = vunpack.c.l.b16 %v4717
      %v5685 = vunpack.c.h.b16 %v4717
      %v5686 = vunpack.c.l.b16 %v4718
      %v5687 = vunpack.c.h.b16 %v4718
      %v5688 = vunpack.c.l.b16 %v4719
      %v5689 = vunpack.c.h.b16 %v4719
      %v5690 = vunpack.c.l.b16 %v4720
      %v5691 = vunpack.c.h.b16 %v4720
      %v5692 = vunpack.c.l.b16 %v4721
      %v5693 = vunpack.c.h.b16 %v4721
      %v5694 = vunpack.c.l.b16 %v4722
      %v5695 = vunpack.c.h.b16 %v4722
      %v5696 = vunpack.c.l.b16 %v4723
      %v5697 = vunpack.c.h.b16 %v4723
      %v5698 = vunpack.c.l.b16 %v4724
      %v5699 = vunpack.c.h.b16 %v4724
      %v5700 = vunpack.c.l.b16 %v4725
      %v5701 = vunpack.c.h.b16 %v4725
      %v5702 = vunpack.c.l.b16 %v4726
      %v5703 = vunpack.c.h.b16 %v4726
      %v5704 = vunpack.c.l.b16 %v4727
      %v5705 = vunpack.c.h.b16 %v4727
      %v5706 = vunpack.c.l.b16 %v4728
      %v5707 = vunpack.c.h.b16 %v4728
      %v5708 = vunpack.c.l.b16 %v4729
      %v5709 = vunpack.c.h.b16 %v4729
      %v5710 = vunpack.c.l.b16 %v4730
      %v5711 = vunpack.c.h.b16 %v4730
      %v5712 = vunpack.c.l.b16 %v4731
      %v5713 = vunpack.c.h.b16 %v4731
      %v5714 = vunpack.c.l.b16 %v4732
      %v5715 = vunpack.c.h.b16 %v4732
      %v5716 = vunpack.c.l.b16 %v4733
      %v5717 = vunpack.c.h.b16 %v4733
      %v5718 = vunpack.c.l.b16 %v4734
      %v5719 = vunpack.c.h.b16 %v4734
      %v5720 = vunpack.c.l.b16 %v4735
      %v5721 = vunpack.c.h.b16 %v4735
      %v5722 = vunpack.c.l.b16 %v4736
      %v5723 = vunpack.c.h.b16 %v4736
      %v5724 = vunpack.c.l.b16 %v4737
      %v5725 = vunpack.c.h.b16 %v4737
      %v5726 = vunpack.c.l.b16 %v4738
      %v5727 = vunpack.c.h.b16 %v4738
      %v5728 = vunpack.c.l.b16 %v4739
      %v5729 = vunpack.c.h.b16 %v4739
      %v5730 = vunpack.c.l.b16 %v4740
      %v5731 = vunpack.c.h.b16 %v4740
      %v5732 = vunpack.c.l.b16 %v4741
      %v5733 = vunpack.c.h.b16 %v4741
      %v5734 = vunpack.c.l.b16 %v4742
      %v5735 = vunpack.c.h.b16 %v4742
      %v5736 = vunpack.c.l.b16 %v4743
      %v5737 = vunpack.c.h.b16 %v4743
      %v5738 = vunpack.c.l.b16 %v4744
      %v5739 = vunpack.c.h.b16 %v4744
      %v5740 = vunpack.c.l.b16 %v4745
      %v5741 = vunpack.c.h.b16 %v4745
      %v5742 = vunpack.c.l.b16 %v4746
      %v5743 = vunpack.c.h.b16 %v4746
      %v5744 = vunpack.c.l.b16 %v4747
      %v5745 = vunpack.c.h.b16 %v4747
      %v5746 = vunpack.c.l.b16 %v4748
      %v5747 = vunpack.c.h.b16 %v4748
      %v5748 = vunpack.c.l.b16 %v4749
      %v5749 = vunpack.c.h.b16 %v4749
      %v5750 = vunpack.c.l.b16 %v4750
      %v5751 = vunpack.c.h.b16 %v4750
      %v5752 = vunpack.c.l.b16 %v4751
      %v5753 = vunpack.c.h.b16 %v4751
      %v5754 = vunpack.c.l.b16 %v4752
      %v5755 = vunpack.c.h.b16 %v4752
      %v5756 = vunpack.c.l.b16 %v4753
      %v5757 = vunpack.c.h.b16 %v4753
      %v5758 = vunpack.c.l.b16 %v4754
      %v5759 = vunpack.c.h.b16 %v4754
      %v5760 = vunpack.c.l.b16 %v4755
      %v5761 = vunpack.c.h.b16 %v4755
      %v5762 = vunpack.c.l.b16 %v4756
      %v5763 = vunpack.c.h.b16 %v4756
      %v5764 = vunpack.c.l.b16 %v4757
      %v5765 = vunpack.c.h.b16 %v4757
      %v5766 = vunpack.c.l.b16 %v4758
      %v5767 = vunpack.c.h.b16 %v4758
      %v5768 = vunpack.c.l.b16 %v4759
      %v5769 = vunpack.c.h.b16 %v4759
      %v5770 = vunpack.c.l.b16 %v4760
      %v5771 = vunpack.c.h.b16 %v4760
      %v5772 = vunpack.c.l.b16 %v4761
      %v5773 = vunpack.c.h.b16 %v4761
      %v5774 = vunpack.c.l.b16 %v4762
      %v5775 = vunpack.c.h.b16 %v4762
      %v5776 = vunpack.c.l.b16 %v4763
      %v5777 = vunpack.c.h.b16 %v4763
      %v5778 = vunpack.c.l.b16 %v4764
      %v5779 = vunpack.c.h.b16 %v4764
      %v5780 = vunpack.c.l.b16 %v4765
      %v5781 = vunpack.c.h.b16 %v4765
      %v5782 = vunpack.c.l.b16 %v4766
      %v5783 = vunpack.c.h.b16 %v4766
      %v5784 = vunpack.c.l.b16 %v4767
      %v5785 = vunpack.c.h.b16 %v4767
      %v5786 = vunpack.c.l.b16 %v4768
      %v5787 = vunpack.c.h.b16 %v4768
      %v5788 = vunpack.c.l.b16 %v4769
      %v5789 = vunpack.c.h.b16 %v4769
      %v5790 = vunpack.c.l.b16 %v4770
      %v5791 = vunpack.c.h.b16 %v4770
      %v5792 = vunpack.c.l.b16 %v4771
      %v5793 = vunpack.c.h.b16 %v4771
      %v5794 = vunpack.c.l.b16 %v4772
      %v5795 = vunpack.c.h.b16 %v4772
      %v5796 = vunpack.c.l.b16 %v4773
      %v5797 = vunpack.c.h.b16 %v4773
      %v5798 = vunpack.c.l.b16 %v4774
      %v5799 = vunpack.c.h.b16 %v4774
      %v5800 = vunpack.c.l.b16 %v4775
      %v5801 = vunpack.c.h.b16 %v4775
      %v5802 = vunpack.c.l.b16 %v4776
      %v5803 = vunpack.c.h.b16 %v4776
      %v5804 = vunpack.c.l.b16 %v4777
      %v5805 = vunpack.c.h.b16 %v4777
      %v5806 = vunpack.c.l.b16 %v4778
      %v5807 = vunpack.c.h.b16 %v4778
      %v5808 = vunpack.c.l.b16 %v4779
      %v5809 = vunpack.c.h.b16 %v4779
      %v5810 = vunpack.c.l.b16 %v4780
      %v5811 = vunpack.c.h.b16 %v4780
      %v5812 = vunpack.c.l.b16 %v4781
      %v5813 = vunpack.c.h.b16 %v4781
      %v5814 = vunpack.c.l.b16 %v4782
      %v5815 = vunpack.c.h.b16 %v4782
      %v5816 = vunpack.c.l.b16 %v4783
      %v5817 = vunpack.c.h.b16 %v4783
      %v5818 = vunpack.c.l.b16 %v4784
      %v5819 = vunpack.c.h.b16 %v4784
      %v5820 = vunpack.c.l.b16 %v4785
      %v5821 = vunpack.c.h.b16 %v4785
      %v5822 = vunpack.c.l.b16 %v4786
      %v5823 = vunpack.c.h.b16 %v4786
      %v5824 = vunpack.c.l.b16 %v4787
      %v5825 = vunpack.c.h.b16 %v4787
      %v5826 = vunpack.c.l.b16 %v4788
      %v5827 = vunpack.c.h.b16 %v4788
      %v5828 = vunpack.c.l.b16 %v4789
      %v5829 = vunpack.c.h.b16 %v4789
      %v5830 = vunpack.c.l.b16 %v4790
      %v5831 = vunpack.c.h.b16 %v4790
      %v5832 = vunpack.c.l.b16 %v4791
      %v5833 = vunpack.c.h.b16 %v4791
      %v5834 = vunpack.c.l.b16 %v4792
      %v5835 = vunpack.c.h.b16 %v4792
      %v5836 = vunpack.c.l.b16 %v4793
      %v5837 = vunpack.c.h.b16 %v4793
      %v5838 = vunpack.c.l.b16 %v4794
      %v5839 = vunpack.c.h.b16 %v4794
      %v5840 = vunpack.c.l.b16 %v4795
      %v5841 = vunpack.c.h.b16 %v4795
      %v5842 = vunpack.c.l.b16 %v4796
      %v5843 = vunpack.c.h.b16 %v4796
      %v5844 = vunpack.c.l.b16 %v4797
      %v5845 = vunpack.c.h.b16 %v4797
      %v5846 = vunpack.c.l.b16 %v4798
      %v5847 = vunpack.c.h.b16 %v4798
      %v5848 = vunpack.c.l.b16 %v4799
      %v5849 = vunpack.c.h.b16 %v4799
      %v5850 = vunpack.c.l.b16 %v4800
      %v5851 = vunpack.c.h.b16 %v4800
      %v5852 = vunpack.c.l.b16 %v4801
      %v5853 = vunpack.c.h.b16 %v4801
      %v5854 = vunpack.c.l.b16 %v4802
      %v5855 = vunpack.c.h.b16 %v4802
      %v5856 = vunpack.c.l.b16 %v4803
      %v5857 = vunpack.c.h.b16 %v4803
      %v5858 = vunpack.c.l.b16 %v4804
      %v5859 = vunpack.c.h.b16 %v4804
      %v5860 = vunpack.c.l.b16 %v4805
      %v5861 = vunpack.c.h.b16 %v4805
      %v5862 = vunpack.c.l.b16 %v4806
      %v5863 = vunpack.c.h.b16 %v4806
      %v5864 = vunpack.c.l.b16 %v4807
      %v5865 = vunpack.c.h.b16 %v4807
      %v5866 = vunpack.c.l.b16 %v4808
      %v5867 = vunpack.c.h.b16 %v4808
      %v5868 = vunpack.c.l.b16 %v4809
      %v5869 = vunpack.c.h.b16 %v4809
      %v5870 = vunpack.c.l.b16 %v4810
      %v5871 = vunpack.c.h.b16 %v4810
      %v5872 = vunpack.c.l.b16 %v4811
      %v5873 = vunpack.c.h.b16 %v4811
      %v5874 = vunpack.c.l.b16 %v4812
      %v5875 = vunpack.c.h.b16 %v4812
      %v5876 = vunpack.c.l.b16 %v4813
      %v5877 = vunpack.c.h.b16 %v4813
      %v5878 = vunpack.c.l.b16 %v4814
      %v5879 = vunpack.c.h.b16 %v4814
      %v5880 = vunpack.c.l.b16 %v4815
      %v5881 = vunpack.c.h.b16 %v4815
      %v5882 = vunpack.c.l.b16 %v4816
      %v5883 = vunpack.c.h.b16 %v4816
      %v5884 = vunpack.c.l.b16 %v4817
      %v5885 = vunpack.c.h.b16 %v4817
      %v5886 = vunpack.c.l.b16 %v4818
      %v5887 = vunpack.c.h.b16 %v4818
      %v5888 = vunpack.c.l.b16 %v4819
      %v5889 = vunpack.c.h.b16 %v4819
      %v5890 = vunpack.c.l.b16 %v4820
      %v5891 = vunpack.c.h.b16 %v4820
      %v5892 = vunpack.c.l.b16 %v4821
      %v5893 = vunpack.c.h.b16 %v4821
      %v5894 = vunpack.c.l.b16 %v4822
      %v5895 = vunpack.c.h.b16 %v4822
      %v5896 = vunpack.c.l.b16 %v4823
      %v5897 = vunpack.c.h.b16 %v4823
      %v5898 = vunpack.c.l.b16 %v4824
      %v5899 = vunpack.c.h.b16 %v4824
      %v5900 = vunpack.c.l.b16 %v4825
      %v5901 = vunpack.c.h.b16 %v4825
      %v5902 = vunpack.c.l.b16 %v4826
      %v5903 = vunpack.c.h.b16 %v4826
      %v5904 = vunpack.c.l.b16 %v4827
      %v5905 = vunpack.c.h.b16 %v4827
      %v5906 = vunpack.c.l.b16 %v4828
      %v5907 = vunpack.c.h.b16 %v4828
      %v5908 = vunpack.c.l.b16 %v4829
      %v5909 = vunpack.c.h.b16 %v4829
      %v5910 = vunpack.c.l.b16 %v4830
      %v5911 = vunpack.c.h.b16 %v4830
      %v5912 = vunpack.c.l.b16 %v4831
      %v5913 = vunpack.c.h.b16 %v4831
      %v5914 = vunpack.c.l.b16 %v4832
      %v5915 = vunpack.c.h.b16 %v4832
      %v5916 = vunpack.c.l.b16 %v4833
      %v5917 = vunpack.c.h.b16 %v4833
      %v5918 = vunpack.c.l.b16 %v4834
      %v5919 = vunpack.c.h.b16 %v4834
      %v5920 = vunpack.c.l.b16 %v4835
      %v5921 = vunpack.c.h.b16 %v4835
      %v5922 = vunpack.c.l.b16 %v4836
      %v5923 = vunpack.c.h.b16 %v4836
      %v5924 = vunpack.c.l.b16 %v4837
      %v5925 = vunpack.c.h.b16 %v4837
      %v5926 = vunpack.c.l.b16 %v4838
      %v5927 = vunpack.c.h.b16 %v4838
      %v5928 = vunpack.c.l.b16 %v4839
      %v5929 = vunpack.c.h.b16 %v4839
      %v5930 = vunpack.c.l.b16 %v4840
      %v5931 = vunpack.c.h.b16 %v4840
      %v5932 = vunpack.c.l.b16 %v4841
      %v5933 = vunpack.c.h.b16 %v4841
      %v5934 = vunpack.c.l.b16 %v4842
      %v5935 = vunpack.c.h.b16 %v4842
      %v5936 = vunpack.c.l.b16 %v4843
      %v5937 = vunpack.c.h.b16 %v4843
      %v5938 = vunpack.c.l.b16 %v4844
      %v5939 = vunpack.c.h.b16 %v4844
      %v5940 = vunpack.c.l.b16 %v4845
      %v5941 = vunpack.c.h.b16 %v4845
      %v5942 = vunpack.c.l.b16 %v4846
      %v5943 = vunpack.c.h.b16 %v4846
      %v5944 = vunpack.c.l.b16 %v4847
      %v5945 = vunpack.c.h.b16 %v4847
      %v5946 = vunpack.c.l.b16 %v4848
      %v5947 = vunpack.c.h.b16 %v4848
      %v5948 = vunpack.c.l.b16 %v4849
      %v5949 = vunpack.c.h.b16 %v4849
      %v5950 = vunpack.c.l.b16 %v4850
      %v5951 = vunpack.c.h.b16 %v4850
      %v5952 = vunpack.c.l.b16 %v4851
      %v5953 = vunpack.c.h.b16 %v4851
      %v5954 = vunpack.c.l.b16 %v4852
      %v5955 = vunpack.c.h.b16 %v4852
      %v5956 = vunpack.c.l.b16 %v4853
      %v5957 = vunpack.c.h.b16 %v4853
      %v5958 = vunpack.c.l.b16 %v4854
      %v5959 = vunpack.c.h.b16 %v4854
      %v5960 = vunpack.c.l.b16 %v4855
      %v5961 = vunpack.c.h.b16 %v4855
      %v5962 = vunpack.c.l.b16 %v4856
      %v5963 = vunpack.c.h.b16 %v4856
      %v5964 = vunpack.c.l.b16 %v4857
      %v5965 = vunpack.c.h.b16 %v4857
      %v5966 = vunpack.c.l.b16 %v4858
      %v5967 = vunpack.c.h.b16 %v4858
      %v5968 = vunpack.c.l.b16 %v4859
      %v5969 = vunpack.c.h.b16 %v4859
      %v5970 = vunpack.c.l.b16 %v4860
      %v5971 = vunpack.c.h.b16 %v4860
      %v5972 = vunpack.c.l.b16 %v4861
      %v5973 = vunpack.c.h.b16 %v4861
      %v5974 = vunpack.c.l.b16 %v4862
      %v5975 = vunpack.c.h.b16 %v4862
      %v5976 = vunpack.c.l.b16 %v4863
      %v5977 = vunpack.c.h.b16 %v4863
      %v5978 = vunpack.c.l.b16 %v4864
      %v5979 = vunpack.c.h.b16 %v4864
      %v5980 = vunpack.c.l.b16 %v4865
      %v5981 = vunpack.c.h.b16 %v4865
      %v5982 = vunpack.c.l.b16 %v4866
      %v5983 = vunpack.c.h.b16 %v4866
      %v5984 = vunpack.c.l.b16 %v4867
      %v5985 = vunpack.c.h.b16 %v4867
      %v5986 = vunpack.c.l.b16 %v4868
      %v5987 = vunpack.c.h.b16 %v4868
      %v5988 = vunpack.c.l.b16 %v4869
      %v5989 = vunpack.c.h.b16 %v4869
      %v5990 = vunpack.c.l.b16 %v4870
      %v5991 = vunpack.c.h.b16 %v4870
      %v5992 = vunpack.c.l.b16 %v4871
      %v5993 = vunpack.c.h.b16 %v4871
      %v5994 = vunpack.c.l.b16 %v4872
      %v5995 = vunpack.c.h.b16 %v4872
      %v5996 = vunpack.c.l.b16 %v4873
      %v5997 = vunpack.c.h.b16 %v4873
      %v5998 = vunpack.c.l.b16 %v4874
      %v5999 = vunpack.c.h.b16 %v4874
      %v6000 = vunpack.c.l.b16 %v4875
      %v6001 = vunpack.c.h.b16 %v4875
      %v6002 = vunpack.c.l.b16 %v4876
      %v6003 = vunpack.c.h.b16 %v4876
      %v6004 = vunpack.c.l.b16 %v4877
      %v6005 = vunpack.c.h.b16 %v4877
      %v6006 = vunpack.c.l.b16 %v4878
      %v6007 = vunpack.c.h.b16 %v4878
      %v6008 = vunpack.c.l.b16 %v4879
      %v6009 = vunpack.c.h.b16 %v4879
      %v6010 = vunpack.c.l.b16 %v4880
      %v6011 = vunpack.c.h.b16 %v4880
      %v6012 = vunpack.c.l.b16 %v4881
      %v6013 = vunpack.c.h.b16 %v4881
      %v6014 = vunpack.c.l.b16 %v4882
      %v6015 = vunpack.c.h.b16 %v4882
      %v6016 = vunpack.c.l.b16 %v4883
      %v6017 = vunpack.c.h.b16 %v4883
      %v6018 = vunpack.c.l.b16 %v4884
      %v6019 = vunpack.c.h.b16 %v4884
      %v6020 = vunpack.c.l.b16 %v4885
      %v6021 = vunpack.c.h.b16 %v4885
      %v6022 = vunpack.c.l.b16 %v4886
      %v6023 = vunpack.c.h.b16 %v4886
      %v6024 = vunpack.c.l.b16 %v4887
      %v6025 = vunpack.c.h.b16 %v4887
      %v6026 = vunpack.c.l.b16 %v4888
      %v6027 = vunpack.c.h.b16 %v4888
      %v6028 = vunpack.c.l.b16 %v4889
      %v6029 = vunpack.c.h.b16 %v4889
      %v6030 = vunpack.c.l.b16 %v4890
      %v6031 = vunpack.c.h.b16 %v4890
      %v6032 = vunpack.c.l.b16 %v4891
      %v6033 = vunpack.c.h.b16 %v4891
      %v6034 = vunpack.c.l.b16 %v4892
      %v6035 = vunpack.c.h.b16 %v4892
      %v6036 = vunpack.c.l.b16 %v4893
      %v6037 = vunpack.c.h.b16 %v4893
      %v6038 = vunpack.c.l.b16 %v4894
      %v6039 = vunpack.c.h.b16 %v4894
      %v6040 = vunpack.c.l.b16 %v4895
      %v6041 = vunpack.c.h.b16 %v4895
      %v6042 = vunpack.c.l.b16 %v4896
      %v6043 = vunpack.c.h.b16 %v4896
      %v6044 = vunpack.c.l.b16 %v4897
      %v6045 = vunpack.c.h.b16 %v4897
      %v6046 = vunpack.c.l.b16 %v4898
      %v6047 = vunpack.c.h.b16 %v4898
      %v6048 = vunpack.c.l.b16 %v4899
      %v6049 = vunpack.c.h.b16 %v4899
      %v6050 = vunpack.c.l.b16 %v4900
      %v6051 = vunpack.c.h.b16 %v4900
      %v6052 = vunpack.c.l.b16 %v4901
      %v6053 = vunpack.c.h.b16 %v4901
      %v6054 = vunpack.c.l.b16 %v4902
      %v6055 = vunpack.c.h.b16 %v4902
      %v6056 = vunpack.c.l.b16 %v4903
      %v6057 = vunpack.c.h.b16 %v4903
      %v6058 = vunpack.c.l.b16 %v4904
      %v6059 = vunpack.c.h.b16 %v4904
      %v6060 = vunpack.c.l.b16 %v4905
      %v6061 = vunpack.c.h.b16 %v4905
      %v6062 = vunpack.c.l.b16 %v4906
      %v6063 = vunpack.c.h.b16 %v4906
      %v6064 = vunpack.c.l.b16 %v4907
      %v6065 = vunpack.c.h.b16 %v4907
      %v6066 = vunpack.c.l.b16 %v4908
      %v6067 = vunpack.c.h.b16 %v4908
      %v6068 = vunpack.c.l.b16 %v4909
      %v6069 = vunpack.c.h.b16 %v4909
      %v6070 = vunpack.c.l.b16 %v4910
      %v6071 = vunpack.c.h.b16 %v4910
      %v6072 = vunpack.c.l.b16 %v4911
      %v6073 = vunpack.c.h.b16 %v4911
      %v6074 = vunpack.c.l.b16 %v4912
      %v6075 = vunpack.c.h.b16 %v4912
      %v6076 = vunpack.c.l.b16 %v4913
      %v6077 = vunpack.c.h.b16 %v4913
      %v6078 = vunpack.c.l.b16 %v4914
      %v6079 = vunpack.c.h.b16 %v4914
      %v6080 = vunpack.c.l.b16 %v4915
      %v6081 = vunpack.c.h.b16 %v4915
      %v6082 = vunpack.c.l.b16 %v4916
      %v6083 = vunpack.c.h.b16 %v4916
      %v6084 = vunpack.c.l.b16 %v4917
      %v6085 = vunpack.c.h.b16 %v4917
      %v6086 = vunpack.c.l.b16 %v4918
      %v6087 = vunpack.c.h.b16 %v4918
      %v6088 = vunpack.c.l.b16 %v4919
      %v6089 = vunpack.c.h.b16 %v4919
      %v6090 = vunpack.c.l.b16 %v4920
      %v6091 = vunpack.c.h.b16 %v4920
      %v6092 = vunpack.c.l.b16 %v4921
      %v6093 = vunpack.c.h.b16 %v4921
      %v6094 = vunpack.c.l.b16 %v4922
      %v6095 = vunpack.c.h.b16 %v4922
      %v6096 = vunpack.c.l.b16 %v4923
      %v6097 = vunpack.c.h.b16 %v4923
      %v6098 = vunpack.c.l.b16 %v4924
      %v6099 = vunpack.c.h.b16 %v4924
      %v6100 = vunpack.c.l.b16 %v4925
      %v6101 = vunpack.c.h.b16 %v4925
      %v6102 = vunpack.c.l.b16 %v4926
      %v6103 = vunpack.c.h.b16 %v4926
      %v6104 = vunpack.c.l.b16 %v4927
      %v6105 = vunpack.c.h.b16 %v4927
      %v6106 = vunpack.c.l.b16 %v4928
      %v6107 = vunpack.c.h.b16 %v4928
      %v6108 = vunpack.c.l.b16 %v4929
      %v6109 = vunpack.c.h.b16 %v4929
      %v6110 = vunpack.c.l.b16 %v4930
      %v6111 = vunpack.c.h.b16 %v4930
      %v6112 = vunpack.c.l.b16 %v4931
      %v6113 = vunpack.c.h.b16 %v4931
      %v6114 = vunpack.c.l.b16 %v4932
      %v6115 = vunpack.c.h.b16 %v4932
      %v6116 = vunpack.c.l.b16 %v4933
      %v6117 = vunpack.c.h.b16 %v4933
      %v6118 = vunpack.c.l.b16 %v4934
      %v6119 = vunpack.c.h.b16 %v4934
      %v6120 = vunpack.c.l.b16 %v4935
      %v6121 = vunpack.c.h.b16 %v4935
      %v6122 = vunpack.c.l.b16 %v4936
      %v6123 = vunpack.c.h.b16 %v4936
      %v6124 = vunpack.c.l.b16 %v4937
      %v6125 = vunpack.c.h.b16 %v4937
      %v6126 = vunpack.c.l.b16 %v4938
      %v6127 = vunpack.c.h.b16 %v4938
      %v6128 = vunpack.c.l.b16 %v4939
      %v6129 = vunpack.c.h.b16 %v4939
      %v6130 = vunpack.c.l.b16 %v4940
      %v6131 = vunpack.c.h.b16 %v4940
      %v6132 = vunpack.c.l.b16 %v4941
      %v6133 = vunpack.c.h.b16 %v4941
      %v6134 = vunpack.c.l.b16 %v4942
      %v6135 = vunpack.c.h.b16 %v4942
      %v6136 = vunpack.c.l.b16 %v4943
      %v6137 = vunpack.c.h.b16 %v4943
      %v6138 = vunpack.c.l.b16 %v4944
      %v6139 = vunpack.c.h.b16 %v4944
      %v6140 = vunpack.c.l.b16 %v4945
      %v6141 = vunpack.c.h.b16 %v4945
      %v6142 = vunpack.c.l.b16 %v4946
      %v6143 = vunpack.c.h.b16 %v4946
      %v6144 = vunpack.c.l.b16 %v4947
      %v6145 = vunpack.c.h.b16 %v4947
      %v6146 = vunpack.c.l.b16 %v4948
      %v6147 = vunpack.c.h.b16 %v4948
      %v6148 = vunpack.c.l.b16 %v4949
      %v6149 = vunpack.c.h.b16 %v4949
      %v6150 = vunpack.c.l.b16 %v4950
      %v6151 = vunpack.c.h.b16 %v4950
      %v6152 = vunpack.c.l.b16 %v4951
      %v6153 = vunpack.c.h.b16 %v4951
      %v6154 = vunpack.c.l.b16 %v4952
      %v6155 = vunpack.c.h.b16 %v4952
      %v6156 = vunpack.c.l.b16 %v4953
      %v6157 = vunpack.c.h.b16 %v4953
      %v6158 = vunpack.c.l.b16 %v4954
      %v6159 = vunpack.c.h.b16 %v4954
      %v6160 = vunpack.c.l.b16 %v4955
      %v6161 = vunpack.c.h.b16 %v4955
      %v6162 = vunpack.c.l.b16 %v4956
      %v6163 = vunpack.c.h.b16 %v4956
      %v6164 = vunpack.c.l.b16 %v4957
      %v6165 = vunpack.c.h.b16 %v4957
      %v6166 = vunpack.c.l.b16 %v4958
      %v6167 = vunpack.c.h.b16 %v4958
      %v6168 = vunpack.c.l.b16 %v4959
      %v6169 = vunpack.c.h.b16 %v4959
      %v6170 = vunpack.c.l.b16 %v4960
      %v6171 = vunpack.c.h.b16 %v4960
      %v6172 = vunpack.c.l.b16 %v4961
      %v6173 = vunpack.c.h.b16 %v4961
      %v6174 = vunpack.c.l.b16 %v4962
      %v6175 = vunpack.c.h.b16 %v4962
      %v6176 = vunpack.c.l.b16 %v4963
      %v6177 = vunpack.c.h.b16 %v4963
      %v6178 = vunpack.c.l.b16 %v4964
      %v6179 = vunpack.c.h.b16 %v4964
      %v6180 = vunpack.c.l.b16 %v4965
      %v6181 = vunpack.c.h.b16 %v4965
      %v6182 = vpack.c.b16 %v5686, %v5670
      %v6183 = vpack.c.b16 %v5687, %v5671
      %v6184 = vpack.c.b16 %v5688, %v5672
      %v6185 = vpack.c.b16 %v5689, %v5673
      %v6186 = vpack.c.b16 %v5690, %v5674
      %v6187 = vpack.c.b16 %v5691, %v5675
      %v6188 = vpack.c.b16 %v5692, %v5676
      %v6189 = vpack.c.b16 %v5693, %v5677
      %v6190 = vpack.c.b16 %v5694, %v5678
      %v6191 = vpack.c.b16 %v5695, %v5679
      %v6192 = vpack.c.b16 %v5696, %v5680
      %v6193 = vpack.c.b16 %v5697, %v5681
      %v6194 = vpack.c.b16 %v5698, %v5682
      %v6195 = vpack.c.b16 %v5699, %v5683
      %v6196 = vpack.c.b16 %v5700, %v5684
      %v6197 = vpack.c.b16 %v5701, %v5685
      %v6198 = vpack.c.b16 %v5718, %v5702
      %v6199 = vpack.c.b16 %v5719, %v5703
      %v6200 = vpack.c.b16 %v5720, %v5704
      %v6201 = vpack.c.b16 %v5721, %v5705
      %v6202 = vpack.c.b16 %v5722, %v5706
      %v6203 = vpack.c.b16 %v5723, %v5707
      %v6204 = vpack.c.b16 %v5724, %v5708
      %v6205 = vpack.c.b16 %v5725, %v5709
      %v6206 = vpack.c.b16 %v5726, %v5710
      %v6207 = vpack.c.b16 %v5727, %v5711
      %v6208 = vpack.c.b16 %v5728, %v5712
      %v6209 = vpack.c.b16 %v5729, %v5713
      %v6210 = vpack.c.b16 %v5730, %v5714
      %v6211 = vpack.c.b16 %v5731, %v5715
      %v6212 = vpack.c.b16 %v5732, %v5716
      %v6213 = vpack.c.b16 %v5733, %v5717
      %v6214 = vpack.c.b16 %v5750, %v5734
      %v6215 = vpack.c.b16 %v5751, %v5735
      %v6216 = vpack.c.b16 %v5752, %v5736
      %v6217 = vpack.c.b16 %v5753, %v5737
      %v6218 = vpack.c.b16 %v5754, %v5738
      %v6219 = vpack.c.b16 %v5755, %v5739
      %v6220 = vpack.c.b16 %v5756, %v5740
      %v6221 = vpack.c.b16 %v5757, %v5741
      %v6222 = vpack.c.b16 %v5758, %v5742
      %v6223 = vpack.c.b16 %v5759, %v5743
      %v6224 = vpack.c.b16 %v5760, %v5744
      %v6225 = vpack.c.b16 %v5761, %v5745
      %v6226 = vpack.c.b16 %v5762, %v5746
      %v6227 = vpack.c.b16 %v5763, %v5747
      %v6228 = vpack.c.b16 %v5764, %v5748
      %v6229 = vpack.c.b16 %v5765, %v5749
      %v6230 = vpack.c.b16 %v5782, %v5766
      %v6231 = vpack.c.b16 %v5783, %v5767
      %v6232 = vpack.c.b16 %v5784, %v5768
      %v6233 = vpack.c.b16 %v5785, %v5769
      %v6234 = vpack.c.b16 %v5786, %v5770
      %v6235 = vpack.c.b16 %v5787, %v5771
      %v6236 = vpack.c.b16 %v5788, %v5772
      %v6237 = vpack.c.b16 %v5789, %v5773
      %v6238 = vpack.c.b16 %v5790, %v5774
      %v6239 = vpack.c.b16 %v5791, %v5775
      %v6240 = vpack.c.b16 %v5792, %v5776
      %v6241 = vpack.c.b16 %v5793, %v5777
      %v6242 = vpack.c.b16 %v5794, %v5778
      %v6243 = vpack.c.b16 %v5795, %v5779
      %v6244 = vpack.c.b16 %v5796, %v5780
      %v6245 = vpack.c.b16 %v5797, %v5781
      %v6246 = vpack.c.b16 %v5814, %v5798
      %v6247 = vpack.c.b16 %v5815, %v5799
      %v6248 = vpack.c.b16 %v5816, %v5800
      %v6249 = vpack.c.b16 %v5817, %v5801
      %v6250 = vpack.c.b16 %v5818, %v5802
      %v6251 = vpack.c.b16 %v5819, %v5803
      %v6252 = vpack.c.b16 %v5820, %v5804
      %v6253 = vpack.c.b16 %v5821, %v5805
      %v6254 = vpack.c.b16 %v5822, %v5806
      %v6255 = vpack.c.b16 %v5823, %v5807
      %v6256 = vpack.c.b16 %v5824, %v5808
      %v6257 = vpack.c.b16 %v5825, %v5809
      %v6258 = vpack.c.b16 %v5826, %v5810
      %v6259 = vpack.c.b16 %v5827, %v5811
      %v6260 = vpack.c.b16 %v5828, %v5812
      %v6261 = vpack.c.b16 %v5829, %v5813
      %v6262 = vpack.c.b16 %v5846, %v5830
      %v6263 = vpack.c.b16 %v5847, %v5831
      %v6264 = vpack.c.b16 %v5848, %v5832
      %v6265 = vpack.c.b16 %v5849, %v5833
      %v6266 = vpack.c.b16 %v5850, %v5834
      %v6267 = vpack.c.b16 %v5851, %v5835
      %v6268 = vpack.c.b16 %v5852, %v5836
      %v6269 = vpack.c.b16 %v5853, %v5837
      %v6270 = vpack.c.b16 %v5854, %v5838
      %v6271 = vpack.c.b16 %v5855, %v5839
      %v6272 = vpack.c.b16 %v5856, %v5840
      %v6273 = vpack.c.b16 %v5857, %v5841
      %v6274 = vpack.c.b16 %v5858, %v5842
      %v6275 = vpack.c.b16 %v5859, %v5843
      %v6276 = vpack.c.b16 %v5860, %v5844
      %v6277 = vpack.c.b16 %v5861, %v5845
      %v6278 = vpack.c.b16 %v5878, %v5862
      %v6279 = vpack.c.b16 %v5879, %v5863
      %v6280 = vpack.c.b16 %v5880, %v5864
      %v6281 = vpack.c.b16 %v5881, %v5865
      %v6282 = vpack.c.b16 %v5882, %v5866
      %v6283 = vpack.c.b16 %v5883, %v5867
      %v6284 = vpack.c.b16 %v5884, %v5868
      %v6285 = vpack.c.b16 %v5885, %v5869
      %v6286 = vpack.c.b16 %v5886, %v5870
      %v6287 = vpack.c.b16 %v5887, %v5871
      %v6288 = vpack.c.b16 %v5888, %v5872
      %v6289 = vpack.c.b16 %v5889, %v5873
      %v6290 = vpack.c.b16 %v5890, %v5874
      %v6291 = vpack.c.b16 %v5891, %v5875
      %v6292 = vpack.c.b16 %v5892, %v5876
      %v6293 = vpack.c.b16 %v5893, %v5877
      %v6294 = vpack.c.b16 %v5910, %v5894
      %v6295 = vpack.c.b16 %v5911, %v5895
      %v6296 = vpack.c.b16 %v5912, %v5896
      %v6297 = vpack.c.b16 %v5913, %v5897
      %v6298 = vpack.c.b16 %v5914, %v5898
      %v6299 = vpack.c.b16 %v5915, %v5899
      %v6300 = vpack.c.b16 %v5916, %v5900
      %v6301 = vpack.c.b16 %v5917, %v5901
      %v6302 = vpack.c.b16 %v5918, %v5902
      %v6303 = vpack.c.b16 %v5919, %v5903
      %v6304 = vpack.c.b16 %v5920, %v5904
      %v6305 = vpack.c.b16 %v5921, %v5905
      %v6306 = vpack.c.b16 %v5922, %v5906
      %v6307 = vpack.c.b16 %v5923, %v5907
      %v6308 = vpack.c.b16 %v5924, %v5908
      %v6309 = vpack.c.b16 %v5925, %v5909
      %v6310 = vpack.c.b16 %v5942, %v5926
      %v6311 = vpack.c.b16 %v5943, %v5927
      %v6312 = vpack.c.b16 %v5944, %v5928
      %v6313 = vpack.c.b16 %v5945, %v5929
      %v6314 = vpack.c.b16 %v5946, %v5930
      %v6315 = vpack.c.b16 %v5947, %v5931
      %v6316 = vpack.c.b16 %v5948, %v5932
      %v6317 = vpack.c.b16 %v5949, %v5933
      %v6318 = vpack.c.b16 %v5950, %v5934
      %v6319 = vpack.c.b16 %v5951, %v5935
      %v6320 = vpack.c.b16 %v5952, %v5936
      %v6321 = vpack.c.b16 %v5953, %v5937
      %v6322 = vpack.c.b16 %v5954, %v5938
      %v6323 = vpack.c.b16 %v5955, %v5939
      %v6324 = vpack.c.b16 %v5956, %v5940
      %v6325 = vpack.c.b16 %v5957, %v5941
      %v6326 = vpack.c.b16 %v5974, %v5958
      %v6327 = vpack.c.b16 %v5975, %v5959
      %v6328 = vpack.c.b16 %v5976, %v5960
      %v6329 = vpack.c.b16 %v5977, %v5961
      %v6330 = vpack.c.b16 %v5978, %v5962
      %v6331 = vpack.c.b16 %v5979, %v5963
      %v6332 = vpack.c.b16 %v5980, %v5964
      %v6333 = vpack.c.b16 %v5981, %v5965
      %v6334 = vpack.c.b16 %v5982, %v5966
      %v6335 = vpack.c.b16 %v5983, %v5967
      %v6336 = vpack.c.b16 %v5984, %v5968
      %v6337 = vpack.c.b16 %v5985, %v5969
      %v6338 = vpack.c.b16 %v5986, %v5970
      %v6339 = vpack.c.b16 %v5987, %v5971
      %v6340 = vpack.c.b16 %v5988, %v5972
      %v6341 = vpack.c.b16 %v5989, %v5973
      %v6342 = vpack.c.b16 %v6006, %v5990
      %v6343 = vpack.c.b16 %v6007, %v5991
      %v6344 = vpack.c.b16 %v6008, %v5992
      %v6345 = vpack.c.b16 %v6009, %v5993
      %v6346 = vpack.c.b16 %v6010, %v5994
      %v6347 = vpack.c.b16 %v6011, %v5995
      %v6348 = vpack.c.b16 %v6012, %v5996
      %v6349 = vpack.c.b16 %v6013, %v5997
      %v6350 = vpack.c.b16 %v6014, %v5998
      %v6351 = vpack.c.b16 %v6015, %v5999
      %v6352 = vpack.c.b16 %v6016, %v6000
      %v6353 = vpack.c.b16 %v6017, %v6001
      %v6354 = vpack.c.b16 %v6018, %v6002
      %v6355 = vpack.c.b16 %v6019, %v6003
      %v6356 = vpack.c.b16 %v6020, %v6004
      %v6357 = vpack.c.b16 %v6021, %v6005
      %v6358 = vpack.c.b16 %v6038, %v6022
      %v6359 = vpack.c.b16 %v6039, %v6023
      %v6360 = vpack.c.b16 %v6040, %v6024
      %v6361 = vpack.c.b16 %v6041, %v6025
      %v6362 = vpack.c.b16 %v6042, %v6026
      %v6363 = vpack.c.b16 %v6043, %v6027
      %v6364 = vpack.c.b16 %v6044, %v6028
      %v6365 = vpack.c.b16 %v6045, %v6029
      %v6366 = vpack.c.b16 %v6046, %v6030
      %v6367 = vpack.c.b16 %v6047, %v6031
      %v6368 = vpack.c.b16 %v6048, %v6032
      %v6369 = vpack.c.b16 %v6049, %v6033
      %v6370 = vpack.c.b16 %v6050, %v6034
      %v6371 = vpack.c.b16 %v6051, %v6035
      %v6372 = vpack.c.b16 %v6052, %v6036
      %v6373 = vpack.c.b16 %v6053, %v6037
      %v6374 = vpack.c.b16 %v6070, %v6054
      %v6375 = vpack.c.b16 %v6071, %v6055
      %v6376 = vpack.c.b16 %v6072, %v6056
      %v6377 = vpack.c.b16 %v6073, %v6057
      %v6378 = vpack.c.b16 %v6074, %v6058
      %v6379 = vpack.c.b16 %v6075, %v6059
      %v6380 = vpack.c.b16 %v6076, %v6060
      %v6381 = vpack.c.b16 %v6077, %v6061
      %v6382 = vpack.c.b16 %v6078, %v6062
      %v6383 = vpack.c.b16 %v6079, %v6063
      %v6384 = vpack.c.b16 %v6080, %v6064
      %v6385 = vpack.c.b16 %v6081, %v6065
      %v6386 = vpack.c.b16 %v6082, %v6066
      %v6387 = vpack.c.b16 %v6083, %v6067
      %v6388 = vpack.c.b16 %v6084, %v6068
      %v6389 = vpack.c.b16 %v6085, %v6069
      %v6390 = vpack.c.b16 %v6102, %v6086
      %v6391 = vpack.c.b16 %v6103, %v6087
      %v6392 = vpack.c.b16 %v6104, %v6088
      %v6393 = vpack.c.b16 %v6105, %v6089
      %v6394 = vpack.c.b16 %v6106, %v6090
      %v6395 = vpack.c.b16 %v6107, %v6091
      %v6396 = vpack.c.b16 %v6108, %v6092
      %v6397 = vpack.c.b16 %v6109, %v6093
      %v6398 = vpack.c.b16 %v6110, %v6094
      %v6399 = vpack.c.b16 %v6111, %v6095
      %v6400 = vpack.c.b16 %v6112, %v6096
      %v6401 = vpack.c.b16 %v6113, %v6097
      %v6402 = vpack.c.b16 %v6114, %v6098
      %v6403 = vpack.c.b16 %v6115, %v6099
      %v6404 = vpack.c.b16 %v6116, %v6100
      %v6405 = vpack.c.b16 %v6117, %v6101
      %v6406 = vpack.c.b16 %v6134, %v6118
      %v6407 = vpack.c.b16 %v6135, %v6119
      %v6408 = vpack.c.b16 %v6136, %v6120
      %v6409 = vpack.c.b16 %v6137, %v6121
      %v6410 = vpack.c.b16 %v6138, %v6122
      %v6411 = vpack.c.b16 %v6139, %v6123
      %v6412 = vpack.c.b16 %v6140, %v6124
      %v6413 = vpack.c.b16 %v6141, %v6125
      %v6414 = vpack.c.b16 %v6142, %v6126
      %v6415 = vpack.c.b16 %v6143, %v6127
      %v6416 = vpack.c.b16 %v6144, %v6128
      %v6417 = vpack.c.b16 %v6145, %v6129
      %v6418 = vpack.c.b16 %v6146, %v6130
      %v6419 = vpack.c.b16 %v6147, %v6131
      %v6420 = vpack.c.b16 %v6148, %v6132
      %v6421 = vpack.c.b16 %v6149, %v6133
      %v6422 = vpack.c.b16 %v6166, %v6150
      %v6423 = vpack.c.b16 %v6167, %v6151
      %v6424 = vpack.c.b16 %v6168, %v6152
      %v6425 = vpack.c.b16 %v6169, %v6153
      %v6426 = vpack.c.b16 %v6170, %v6154
      %v6427 = vpack.c.b16 %v6171, %v6155
      %v6428 = vpack.c.b16 %v6172, %v6156
      %v6429 = vpack.c.b16 %v6173, %v6157
      %v6430 = vpack.c.b16 %v6174, %v6158
      %v6431 = vpack.c.b16 %v6175, %v6159
      %v6432 = vpack.c.b16 %v6176, %v6160
      %v6433 = vpack.c.b16 %v6177, %v6161
      %v6434 = vpack.c.b16 %v6178, %v6162
      %v6435 = vpack.c.b16 %v6179, %v6163
      %v6436 = vpack.c.b16 %v6180, %v6164
      %v6437 = vpack.c.b16 %v6181, %v6165
      %v6950 = vunpack.c.l.b16 %v4966
      %v6951 = vunpack.c.l.b16 %v4967
      %v6952 = vunpack.c.l.b16 %v4968
      %v6953 = vunpack.c.l.b16 %v4969
      %v6954 = vunpack.c.l.b16 %v4970
      %v6955 = vunpack.c.l.b16 %v4971
      %v6956 = vunpack.c.l.b16 %v4972
      %v6957 = vunpack.c.l.b16 %v4973
      %v6958 = vunpack.c.l.b16 %v4974
      %v6959 = vunpack.c.l.b16 %v4975
      %v6960 = vunpack.c.l.b16 %v4976
      %v6961 = vunpack.c.l.b16 %v4977
      %v6962 = vunpack.c.l.b16 %v4978
      %v6963 = vunpack.c.l.b16 %v4979
      %v6964 = vunpack.c.l.b16 %v4980
      %v6965 = vunpack.c.l.b16 %v4981
      %v6966 = vunpack.c.l.b16 %v4982
      %v6967 = vunpack.c.l.b16 %v4983
      %v6968 = vunpack.c.l.b16 %v4984
      %v6969 = vunpack.c.l.b16 %v4985
      %v6970 = vunpack.c.l.b16 %v4986
      %v6971 = vunpack.c.l.b16 %v4987
      %v6972 = vunpack.c.l.b16 %v4988
      %v6973 = vunpack.c.l.b16 %v4989
      %v6974 = vunpack.c.l.b16 %v4990
      %v6975 = vunpack.c.l.b16 %v4991
      %v6976 = vunpack.c.l.b16 %v4992
      %v6977 = vunpack.c.l.b16 %v4993
      %v6978 = vunpack.c.l.b16 %v4994
      %v6979 = vunpack.c.l.b16 %v4995
      %v6980 = vunpack.c.l.b16 %v4996
      %v6981 = vunpack.c.l.b16 %v4997
      %v6982 = vunpack.c.l.b16 %v4998
      %v6983 = vunpack.c.l.b16 %v4999
      %v6984 = vunpack.c.l.b16 %v5000
      %v6985 = vunpack.c.l.b16 %v5001
      %v6986 = vunpack.c.l.b16 %v5002
      %v6987 = vunpack.c.l.b16 %v5003
      %v6988 = vunpack.c.l.b16 %v5004
      %v6989 = vunpack.c.l.b16 %v5005
      %v6990 = vunpack.c.l.b16 %v5006
      %v6991 = vunpack.c.l.b16 %v5007
      %v6992 = vunpack.c.l.b16 %v5008
      %v6993 = vunpack.c.l.b16 %v5009
      %v6994 = vunpack.c.l.b16 %v5010
      %v6995 = vunpack.c.l.b16 %v5011
      %v6996 = vunpack.c.l.b16 %v5012
      %v6997 = vunpack.c.l.b16 %v5013
      %v6998 = vunpack.c.l.b16 %v5014
      %v6999 = vunpack.c.l.b16 %v5015
      %v7000 = vunpack.c.l.b16 %v5016
      %v7001 = vunpack.c.l.b16 %v5017
      %v7002 = vunpack.c.l.b16 %v5018
      %v7003 = vunpack.c.l.b16 %v5019
      %v7004 = vunpack.c.l.b16 %v5020
      %v7005 = vunpack.c.l.b16 %v5021
      %v7006 = vunpack.c.l.b16 %v5022
      %v7007 = vunpack.c.l.b16 %v5023
      %v7008 = vunpack.c.l.b16 %v5024
      %v7009 = vunpack.c.l.b16 %v5025
      %v7010 = vunpack.c.l.b16 %v5026
      %v7011 = vunpack.c.l.b16 %v5027
      %v7012 = vunpack.c.l.b16 %v5028
      %v7013 = vunpack.c.l.b16 %v5029
      %v7014 = vunpack.c.l.b16 %v5030
      %v7015 = vunpack.c.l.b16 %v5031
      %v7016 = vunpack.c.l.b16 %v5032
      %v7017 = vunpack.c.l.b16 %v5033
      %v7018 = vunpack.c.l.b16 %v5034
      %v7019 = vunpack.c.l.b16 %v5035
      %v7020 = vunpack.c.l.b16 %v5036
      %v7021 = vunpack.c.l.b16 %v5037
      %v7022 = vunpack.c.l.b16 %v5038
      %v7023 = vunpack.c.l.b16 %v5039
      %v7024 = vunpack.c.l.b16 %v5040
      %v7025 = vunpack.c.l.b16 %v5041
      %v7026 = vunpack.c.l.b16 %v5042
      %v7027 = vunpack.c.l.b16 %v5043
      %v7028 = vunpack.c.l.b16 %v5044
      %v7029 = vunpack.c.l.b16 %v5045
      %v7030 = vunpack.c.l.b16 %v5046
      %v7031 = vunpack.c.l.b16 %v5047
      %v7032 = vunpack.c.l.b16 %v5048
      %v7033 = vunpack.c.l.b16 %v5049
      %v7034 = vunpack.c.l.b16 %v5050
      %v7035 = vunpack.c.l.b16 %v5051
      %v7036 = vunpack.c.l.b16 %v5052
      %v7037 = vunpack.c.l.b16 %v5053
      %v7038 = vunpack.c.l.b16 %v5054
      %v7039 = vunpack.c.l.b16 %v5055
      %v7040 = vunpack.c.l.b16 %v5056
      %v7041 = vunpack.c.l.b16 %v5057
      %v7042 = vunpack.c.l.b16 %v5058
      %v7043 = vunpack.c.l.b16 %v5059
      %v7044 = vunpack.c.l.b16 %v5060
      %v7045 = vunpack.c.l.b16 %v5061
      %v7046 = vunpack.c.l.b16 %v5062
      %v7047 = vunpack.c.l.b16 %v5063
      %v7048 = vunpack.c.l.b16 %v5064
      %v7049 = vunpack.c.l.b16 %v5065
      %v7050 = vunpack.c.l.b16 %v5066
      %v7051 = vunpack.c.l.b16 %v5067
      %v7052 = vunpack.c.l.b16 %v5068
      %v7053 = vunpack.c.l.b16 %v5069
      %v7054 = vunpack.c.l.b16 %v5070
      %v7055 = vunpack.c.l.b16 %v5071
      %v7056 = vunpack.c.l.b16 %v5072
      %v7057 = vunpack.c.l.b16 %v5073
      %v7058 = vunpack.c.l.b16 %v5074
      %v7059 = vunpack.c.l.b16 %v5075
      %v7060 = vunpack.c.l.b16 %v5076
      %v7061 = vunpack.c.l.b16 %v5077
      %v7062 = vunpack.c.l.b16 %v5078
      %v7063 = vunpack.c.l.b16 %v5079
      %v7064 = vunpack.c.l.b16 %v5080
      %v7065 = vunpack.c.l.b16 %v5081
      %v7066 = vunpack.c.l.b16 %v5082
      %v7067 = vunpack.c.l.b16 %v5083
      %v7068 = vunpack.c.l.b16 %v5084
      %v7069 = vunpack.c.l.b16 %v5085
      %v7070 = vunpack.c.l.b16 %v5086
      %v7071 = vunpack.c.l.b16 %v5087
      %v7072 = vunpack.c.l.b16 %v5088
      %v7073 = vunpack.c.l.b16 %v5089
      %v7074 = vunpack.c.l.b16 %v5090
      %v7075 = vunpack.c.l.b16 %v5091
      %v7076 = vunpack.c.l.b16 %v5092
      %v7077 = vunpack.c.l.b16 %v5093
      %v7078 = vunpack.c.l.b16 %v5094
      %v7079 = vunpack.c.l.b16 %v5095
      %v7080 = vunpack.c.l.b16 %v5096
      %v7081 = vunpack.c.l.b16 %v5097
      %v7082 = vunpack.c.l.b16 %v5098
      %v7083 = vunpack.c.l.b16 %v5099
      %v7084 = vunpack.c.l.b16 %v5100
      %v7085 = vunpack.c.l.b16 %v5101
      %v7086 = vunpack.c.l.b16 %v5102
      %v7087 = vunpack.c.l.b16 %v5103
      %v7088 = vunpack.c.l.b16 %v5104
      %v7089 = vunpack.c.l.b16 %v5105
      %v7090 = vunpack.c.l.b16 %v5106
      %v7091 = vunpack.c.l.b16 %v5107
      %v7092 = vunpack.c.l.b16 %v5108
      %v7093 = vunpack.c.l.b16 %v5109
      %v7094 = vunpack.c.l.b16 %v5110
      %v7095 = vunpack.c.l.b16 %v5111
      %v7096 = vunpack.c.l.b16 %v5112
      %v7097 = vunpack.c.l.b16 %v5113
      %v7098 = vunpack.c.l.b16 %v5114
      %v7099 = vunpack.c.l.b16 %v5115
      %v7100 = vunpack.c.l.b16 %v5116
      %v7101 = vunpack.c.l.b16 %v5117
      %v7102 = vunpack.c.l.b16 %v5118
      %v7103 = vunpack.c.l.b16 %v5119
      %v7104 = vunpack.c.l.b16 %v5120
      %v7105 = vunpack.c.l.b16 %v5121
      %v7106 = vunpack.c.l.b16 %v5122
      %v7107 = vunpack.c.l.b16 %v5123
      %v7108 = vunpack.c.l.b16 %v5124
      %v7109 = vunpack.c.l.b16 %v5125
      %v7110 = vunpack.c.l.b16 %v5126
      %v7111 = vunpack.c.l.b16 %v5127
      %v7112 = vunpack.c.l.b16 %v5128
      %v7113 = vunpack.c.l.b16 %v5129
      %v7114 = vunpack.c.l.b16 %v5130
      %v7115 = vunpack.c.l.b16 %v5131
      %v7116 = vunpack.c.l.b16 %v5132
      %v7117 = vunpack.c.l.b16 %v5133
      %v7118 = vunpack.c.l.b16 %v5134
      %v7119 = vunpack.c.l.b16 %v5135
      %v7120 = vunpack.c.l.b16 %v5136
      %v7121 = vunpack.c.l.b16 %v5137
      %v7122 = vunpack.c.l.b16 %v5138
      %v7123 = vunpack.c.l.b16 %v5139
      %v7124 = vunpack.c.l.b16 %v5140
      %v7125 = vunpack.c.l.b16 %v5141
      %v7126 = vunpack.c.l.b16 %v5142
      %v7127 = vunpack.c.l.b16 %v5143
      %v7128 = vunpack.c.l.b16 %v5144
      %v7129 = vunpack.c.l.b16 %v5145
      %v7130 = vunpack.c.l.b16 %v5146
      %v7131 = vunpack.c.l.b16 %v5147
      %v7132 = vunpack.c.l.b16 %v5148
      %v7133 = vunpack.c.l.b16 %v5149
      %v7134 = vunpack.c.l.b16 %v5150
      %v7135 = vunpack.c.l.b16 %v5151
      %v7136 = vunpack.c.l.b16 %v5152
      %v7137 = vunpack.c.l.b16 %v5153
      %v7138 = vunpack.c.l.b16 %v5154
      %v7139 = vunpack.c.l.b16 %v5155
      %v7140 = vunpack.c.l.b16 %v5156
      %v7141 = vunpack.c.l.b16 %v5157
      %v7142 = vunpack.c.l.b16 %v5158
      %v7143 = vunpack.c.l.b16 %v5159
      %v7144 = vunpack.c.l.b16 %v5160
      %v7145 = vunpack.c.l.b16 %v5161
      %v7146 = vunpack.c.l.b16 %v5162
      %v7147 = vunpack.c.l.b16 %v5163
      %v7148 = vunpack.c.l.b16 %v5164
      %v7149 = vunpack.c.l.b16 %v5165
      %v7150 = vunpack.c.l.b16 %v5166
      %v7151 = vunpack.c.l.b16 %v5167
      %v7152 = vunpack.c.l.b16 %v5168
      %v7153 = vunpack.c.l.b16 %v5169
      %v7154 = vunpack.c.l.b16 %v5170
      %v7155 = vunpack.c.l.b16 %v5171
      %v7156 = vunpack.c.l.b16 %v5172
      %v7157 = vunpack.c.l.b16 %v5173
      %v7158 = vunpack.c.l.b16 %v5174
      %v7159 = vunpack.c.l.b16 %v5175
      %v7160 = vunpack.c.l.b16 %v5176
      %v7161 = vunpack.c.l.b16 %v5177
      %v7162 = vunpack.c.l.b16 %v5178
      %v7163 = vunpack.c.l.b16 %v5179
      %v7164 = vunpack.c.l.b16 %v5180
      %v7165 = vunpack.c.l.b16 %v5181
      %v7166 = vunpack.c.l.b16 %v5182
      %v7167 = vunpack.c.l.b16 %v5183
      %v7168 = vunpack.c.l.b16 %v5184
      %v7169 = vunpack.c.l.b16 %v5185
      %v7170 = vunpack.c.l.b16 %v5186
      %v7171 = vunpack.c.l.b16 %v5187
      %v7172 = vunpack.c.l.b16 %v5188
      %v7173 = vunpack.c.l.b16 %v5189
      %v7174 = vunpack.c.l.b16 %v5190
      %v7175 = vunpack.c.l.b16 %v5191
      %v7176 = vunpack.c.l.b16 %v5192
      %v7177 = vunpack.c.l.b16 %v5193
      %v7178 = vunpack.c.l.b16 %v5194
      %v7179 = vunpack.c.l.b16 %v5195
      %v7180 = vunpack.c.l.b16 %v5196
      %v7181 = vunpack.c.l.b16 %v5197
      %v7182 = vunpack.c.l.b16 %v5198
      %v7183 = vunpack.c.l.b16 %v5199
      %v7184 = vunpack.c.l.b16 %v5200
      %v7185 = vunpack.c.l.b16 %v5201
      %v7186 = vunpack.c.l.b16 %v5202
      %v7187 = vunpack.c.l.b16 %v5203
      %v7188 = vunpack.c.l.b16 %v5204
      %v7189 = vunpack.c.l.b16 %v5205
      %v7190 = vunpack.c.l.b16 %v5206
      %v7191 = vunpack.c.l.b16 %v5207
      %v7192 = vunpack.c.l.b16 %v5208
      %v7193 = vunpack.c.l.b16 %v5209
      %v7194 = vunpack.c.l.b16 %v5210
      %v7195 = vunpack.c.l.b16 %v5211
      %v7196 = vunpack.c.l.b16 %v5212
      %v7197 = vunpack.c.l.b16 %v5213
      %v7198 = vunpack.c.l.b16 %v5214
      %v7199 = vunpack.c.l.b16 %v5215
      %v7200 = vunpack.c.l.b16 %v5216
      %v7201 = vunpack.c.l.b16 %v5217
      %v7202 = vunpack.c.l.b16 %v5218
      %v7203 = vunpack.c.l.b16 %v5219
      %v7204 = vunpack.c.l.b16 %v5220
      %v7205 = vunpack.c.l.b16 %v5221
      %v7206 = vpack.c.b16 %v6951, %v6950
      %v7207 = vpack.c.b16 %v6953, %v6952
      %v7208 = vpack.c.b16 %v6955, %v6954
      %v7209 = vpack.c.b16 %v6957, %v6956
      %v7210 = vpack.c.b16 %v6959, %v6958
      %v7211 = vpack.c.b16 %v6961, %v6960
      %v7212 = vpack.c.b16 %v6963, %v6962
      %v7213 = vpack.c.b16 %v6965, %v6964
      %v7214 = vpack.c.b16 %v6967, %v6966
      %v7215 = vpack.c.b16 %v6969, %v6968
      %v7216 = vpack.c.b16 %v6971, %v6970
      %v7217 = vpack.c.b16 %v6973, %v6972
      %v7218 = vpack.c.b16 %v6975, %v6974
      %v7219 = vpack.c.b16 %v6977, %v6976
      %v7220 = vpack.c.b16 %v6979, %v6978
      %v7221 = vpack.c.b16 %v6981, %v6980
      %v7222 = vpack.c.b16 %v6983, %v6982
      %v7223 = vpack.c.b16 %v6985, %v6984
      %v7224 = vpack.c.b16 %v6987, %v6986
      %v7225 = vpack.c.b16 %v6989, %v6988
      %v7226 = vpack.c.b16 %v6991, %v6990
      %v7227 = vpack.c.b16 %v6993, %v6992
      %v7228 = vpack.c.b16 %v6995, %v6994
      %v7229 = vpack.c.b16 %v6997, %v6996
      %v7230 = vpack.c.b16 %v6999, %v6998
      %v7231 = vpack.c.b16 %v7001, %v7000
      %v7232 = vpack.c.b16 %v7003, %v7002
      %v7233 = vpack.c.b16 %v7005, %v7004
      %v7234 = vpack.c.b16 %v7007, %v7006
      %v7235 = vpack.c.b16 %v7009, %v7008
      %v7236 = vpack.c.b16 %v7011, %v7010
      %v7237 = vpack.c.b16 %v7013, %v7012
      %v7238 = vpack.c.b16 %v7015, %v7014
      %v7239 = vpack.c.b16 %v7017, %v7016
      %v7240 = vpack.c.b16 %v7019, %v7018
      %v7241 = vpack.c.b16 %v7021, %v7020
      %v7242 = vpack.c.b16 %v7023, %v7022
      %v7243 = vpack.c.b16 %v7025, %v7024
      %v7244 = vpack.c.b16 %v7027, %v7026
      %v7245 = vpack.c.b16 %v7029, %v7028
      %v7246 = vpack.c.b16 %v7031, %v7030
      %v7247 = vpack.c.b16 %v7033, %v7032
      %v7248 = vpack.c.b16 %v7035, %v7034
      %v7249 = vpack.c.b16 %v7037, %v7036
      %v7250 = vpack.c.b16 %v7039, %v7038
      %v7251 = vpack.c.b16 %v7041, %v7040
      %v7252 = vpack.c.b16 %v7043, %v7042
      %v7253 = vpack.c.b16 %v7045, %v7044
      %v7254 = vpack.c.b16 %v7047, %v7046
      %v7255 = vpack.c.b16 %v7049, %v7048
      %v7256 = vpack.c.b16 %v7051, %v7050
      %v7257 = vpack.c.b16 %v7053, %v7052
      %v7258 = vpack.c.b16 %v7055, %v7054
      %v7259 = vpack.c.b16 %v7057, %v7056
      %v7260 = vpack.c.b16 %v7059, %v7058
      %v7261 = vpack.c.b16 %v7061, %v7060
      %v7262 = vpack.c.b16 %v7063, %v7062
      %v7263 = vpack.c.b16 %v7065, %v7064
      %v7264 = vpack.c.b16 %v7067, %v7066
      %v7265 = vpack.c.b16 %v7069, %v7068
      %v7266 = vpack.c.b16 %v7071, %v7070
      %v7267 = vpack.c.b16 %v7073, %v7072
      %v7268 = vpack.c.b16 %v7075, %v7074
      %v7269 = vpack.c.b16 %v7077, %v7076
      %v7270 = vpack.c.b16 %v7079, %v7078
      %v7271 = vpack.c.b16 %v7081, %v7080
      %v7272 = vpack.c.b16 %v7083, %v7082
      %v7273 = vpack.c.b16 %v7085, %v7084
      %v7274 = vpack.c.b16 %v7087, %v7086
      %v7275 = vpack.c.b16 %v7089, %v7088
      %v7276 = vpack.c.b16 %v7091, %v7090
      %v7277 = vpack.c.b16 %v7093, %v7092
      %v7278 = vpack.c.b16 %v7095, %v7094
      %v7279 = vpack.c.b16 %v7097, %v7096
      %v7280 = vpack.c.b16 %v7099, %v7098
      %v7281 = vpack.c.b16 %v7101, %v7100
      %v7282 = vpack.c.b16 %v7103, %v7102
      %v7283 = vpack.c.b16 %v7105, %v7104
      %v7284 = vpack.c.b16 %v7107, %v7106
      %v7285 = vpack.c.b16 %v7109, %v7108
      %v7286 = vpack.c.b16 %v7111, %v7110
      %v7287 = vpack.c.b16 %v7113, %v7112
      %v7288 = vpack.c.b16 %v7115, %v7114
      %v7289 = vpack.c.b16 %v7117, %v7116
      %v7290 = vpack.c.b16 %v7119, %v7118
      %v7291 = vpack.c.b16 %v7121, %v7120
      %v7292 = vpack.c.b16 %v7123, %v7122
      %v7293 = vpack.c.b16 %v7125, %v7124
      %v7294 = vpack.c.b16 %v7127, %v7126
      %v7295 = vpack.c.b16 %v7129, %v7128
      %v7296 = vpack.c.b16 %v7131, %v7130
      %v7297 = vpack.c.b16 %v7133, %v7132
      %v7298 = vpack.c.b16 %v7135, %v7134
      %v7299 = vpack.c.b16 %v7137, %v7136
      %v7300 = vpack.c.b16 %v7139, %v7138
      %v7301 = vpack.c.b16 %v7141, %v7140
      %v7302 = vpack.c.b16 %v7143, %v7142
      %v7303 = vpack.c.b16 %v7145, %v7144
      %v7304 = vpack.c.b16 %v7147, %v7146
      %v7305 = vpack.c.b16 %v7149, %v7148
      %v7306 = vpack.c.b16 %v7151, %v7150
      %v7307 = vpack.c.b16 %v7153, %v7152
      %v7308 = vpack.c.b16 %v7155, %v7154
      %v7309 = vpack.c.b16 %v7157, %v7156
      %v7310 = vpack.c.b16 %v7159, %v7158
      %v7311 = vpack.c.b16 %v7161, %v7160
      %v7312 = vpack.c.b16 %v7163, %v7162
      %v7313 = vpack.c.b16 %v7165, %v7164
      %v7314 = vpack.c.b16 %v7167, %v7166
      %v7315 = vpack.c.b16 %v7169, %v7168
      %v7316 = vpack.c.b16 %v7171, %v7170
      %v7317 = vpack.c.b16 %v7173, %v7172
      %v7318 = vpack.c.b16 %v7175, %v7174
      %v7319 = vpack.c.b16 %v7177, %v7176
      %v7320 = vpack.c.b16 %v7179, %v7178
      %v7321 = vpack.c.b16 %v7181, %v7180
      %v7322 = vpack.c.b16 %v7183, %v7182
      %v7323 = vpack.c.b16 %v7185, %v7184
      %v7324 = vpack.c.b16 %v7187, %v7186
      %v7325 = vpack.c.b16 %v7189, %v7188
      %v7326 = vpack.c.b16 %v7191, %v7190
      %v7327 = vpack.c.b16 %v7193, %v7192
      %v7328 = vpack.c.b16 %v7195, %v7194
      %v7329 = vpack.c.b16 %v7197, %v7196
      %v7330 = vpack.c.b16 %v7199, %v7198
      %v7331 = vpack.c.b16 %v7201, %v7200
      %v7332 = vpack.c.b16 %v7203, %v7202
      %v7333 = vpack.c.b16 %v7205, %v7204
      %7462 = vmatpush.bf16.msra.mxu0 %v7213
      %7463 = vmatpush.bf16.msra.mxu0 %v7212
      %7464 = vmatpush.bf16.msra.mxu0 %v7211
      %7465 = vmatpush.bf16.msra.mxu0 %v7210
      %7466 = vmatpush.bf16.msra.mxu0 %v7209
      %7467 = vmatpush.bf16.msra.mxu0 %v7208
      %7468 = vmatpush.bf16.msra.mxu0 %v7207
      %7469 = vmatpush.bf16.msra.mxu0 %v7206
      %7470 = vmatmul.bf16.gmra.mxu0 %v6182
      %v7471 = vpop.f32.mrf.mxu0
      %v7472 = vadd.f32 %v5257, %v7471
      %v7473 = vpop.f32.mrf.mxu0
      %v7474 = vadd.f32 %v5262, %v7473
      %7475 = vmatmul.bf16.gmra.mxu0 %v6198
      %v7476 = vpop.f32.mrf.mxu0
      %v7477 = vadd.f32 %v5267, %v7476
      %v7478 = vpop.f32.mrf.mxu0
      %v7479 = vadd.f32 %v5272, %v7478
      %7480 = vmatmul.bf16.gmra.mxu0 %v6214
      %v7481 = vpop.f32.mrf.mxu0
      %v7482 = vadd.f32 %v5277, %v7481
      %v7483 = vpop.f32.mrf.mxu0
      %v7484 = vadd.f32 %v5282, %v7483
      %7485 = vmatmul.bf16.gmra.mxu0 %v6230
      %v7486 = vpop.f32.mrf.mxu0
      %v7487 = vadd.f32 %v5287, %v7486
      %v7488 = vpop.f32.mrf.mxu0
      %v7489 = vadd.f32 %v5292, %v7488
      %7490 = vmatmul.bf16.gmra.mxu0 %v6246
      %v7491 = vpop.f32.mrf.mxu0
      %v7492 = vadd.f32 %v5297, %v7491
      %v7493 = vpop.f32.mrf.mxu0
      %v7494 = vadd.f32 %v5302, %v7493
      %7495 = vmatmul.bf16.gmra.mxu0 %v6262
      %v7496 = vpop.f32.mrf.mxu0
      %v7497 = vadd.f32 %v5307, %v7496
      %v7498 = vpop.f32.mrf.mxu0
      %v7499 = vadd.f32 %v5312, %v7498
      %7500 = vmatmul.bf16.gmra.mxu0 %v6278
      %v7501 = vpop.f32.mrf.mxu0
      %v7502 = vadd.f32 %v5317, %v7501
      %v7503 = vpop.f32.mrf.mxu0
      %v7504 = vadd.f32 %v5322, %v7503
      %7505 = vmatmul.bf16.gmra.mxu0 %v6294
      %v7506 = vpop.f32.mrf.mxu0
      %v7507 = vadd.f32 %v5327, %v7506
      %v7508 = vpop.f32.mrf.mxu0
      %v7509 = vadd.f32 %v5332, %v7508
      %7510 = vmatmul.bf16.gmra.mxu0 %v6310
      %v7511 = vpop.f32.mrf.mxu0
      %v7512 = vadd.f32 %v5337, %v7511
      %v7513 = vpop.f32.mrf.mxu0
      %v7514 = vadd.f32 %v5342, %v7513
      %7515 = vmatmul.bf16.gmra.mxu0 %v6326
      %v7516 = vpop.f32.mrf.mxu0
      %v7517 = vadd.f32 %v5347, %v7516
      %v7518 = vpop.f32.mrf.mxu0
      %v7519 = vadd.f32 %v5352, %v7518
      %7520 = vmatmul.bf16.gmra.mxu0 %v6342
      %v7521 = vpop.f32.mrf.mxu0
      %v7522 = vadd.f32 %v5357, %v7521
      %v7523 = vpop.f32.mrf.mxu0
      %v7524 = vadd.f32 %v5362, %v7523
      %7525 = vmatmul.bf16.gmra.mxu0 %v6358
      %v7526 = vpop.f32.mrf.mxu0
      %v7527 = vadd.f32 %v5367, %v7526
      %v7528 = vpop.f32.mrf.mxu0
      %v7529 = vadd.f32 %v5372, %v7528
      %7530 = vmatmul.bf16.gmra.mxu0 %v6374
      %v7531 = vpop.f32.mrf.mxu0
      %v7532 = vadd.f32 %v5377, %v7531
      %v7533 = vpop.f32.mrf.mxu0
      %v7534 = vadd.f32 %v5382, %v7533
      %7535 = vmatmul.bf16.gmra.mxu0 %v6390
      %v7536 = vpop.f32.mrf.mxu0
      %v7537 = vadd.f32 %v5387, %v7536
      %v7538 = vpop.f32.mrf.mxu0
      %v7539 = vadd.f32 %v5392, %v7538
      %7540 = vmatmul.bf16.gmra.mxu0 %v6406
      %v7541 = vpop.f32.mrf.mxu0
      %v7542 = vadd.f32 %v5397, %v7541
      %v7543 = vpop.f32.mrf.mxu0
      %v7544 = vadd.f32 %v5402, %v7543
      %7545 = vmatmul.bf16.gmra.mxu0 %v6422
      %v7546 = vpop.f32.mrf.mxu0
      %v7547 = vadd.f32 %v5407, %v7546
      %v7548 = vpop.f32.mrf.mxu0
      %v7549 = vadd.f32 %v5412, %v7548
      %7550 = vdwg.mxu0
      %7551 = vmatpush.bf16.msra.mxu0 %v7221
      %7552 = vmatpush.bf16.msra.mxu0 %v7220
      %7553 = vmatpush.bf16.msra.mxu0 %v7219
      %7554 = vmatpush.bf16.msra.mxu0 %v7218
      %7555 = vmatpush.bf16.msra.mxu0 %v7217
      %7556 = vmatpush.bf16.msra.mxu0 %v7216
      %7557 = vmatpush.bf16.msra.mxu0 %v7215
      %7558 = vmatpush.bf16.msra.mxu0 %v7214
      %7559 = vmatmul.bf16.gmra.mxu0 %v6183
      %v7560 = vpop.f32.mrf.mxu0
      %v7561 = vadd.f32 %v7472, %v7560
      %v7562 = vpop.f32.mrf.mxu0
      %v7563 = vadd.f32 %v7474, %v7562
      %7564 = vmatmul.bf16.gmra.mxu0 %v6199
      %v7565 = vpop.f32.mrf.mxu0
      %v7566 = vadd.f32 %v7477, %v7565
      %v7567 = vpop.f32.mrf.mxu0
      %v7568 = vadd.f32 %v7479, %v7567
      %7569 = vmatmul.bf16.gmra.mxu0 %v6215
      %v7570 = vpop.f32.mrf.mxu0
      %v7571 = vadd.f32 %v7482, %v7570
      %v7572 = vpop.f32.mrf.mxu0
      %v7573 = vadd.f32 %v7484, %v7572
      %7574 = vmatmul.bf16.gmra.mxu0 %v6231
      %v7575 = vpop.f32.mrf.mxu0
      %v7576 = vadd.f32 %v7487, %v7575
      %v7577 = vpop.f32.mrf.mxu0
      %v7578 = vadd.f32 %v7489, %v7577
      %7579 = vmatmul.bf16.gmra.mxu0 %v6247
      %v7580 = vpop.f32.mrf.mxu0
      %v7581 = vadd.f32 %v7492, %v7580
      %v7582 = vpop.f32.mrf.mxu0
      %v7583 = vadd.f32 %v7494, %v7582
      %7584 = vmatmul.bf16.gmra.mxu0 %v6263
      %v7585 = vpop.f32.mrf.mxu0
      %v7586 = vadd.f32 %v7497, %v7585
      %v7587 = vpop.f32.mrf.mxu0
      %v7588 = vadd.f32 %v7499, %v7587
      %7589 = vmatmul.bf16.gmra.mxu0 %v6279
      %v7590 = vpop.f32.mrf.mxu0
      %v7591 = vadd.f32 %v7502, %v7590
      %v7592 = vpop.f32.mrf.mxu0
      %v7593 = vadd.f32 %v7504, %v7592
      %7594 = vmatmul.bf16.gmra.mxu0 %v6295
      %v7595 = vpop.f32.mrf.mxu0
      %v7596 = vadd.f32 %v7507, %v7595
      %v7597 = vpop.f32.mrf.mxu0
      %v7598 = vadd.f32 %v7509, %v7597
      %7599 = vmatmul.bf16.gmra.mxu0 %v6311
      %v7600 = vpop.f32.mrf.mxu0
      %v7601 = vadd.f32 %v7512, %v7600
      %v7602 = vpop.f32.mrf.mxu0
      %v7603 = vadd.f32 %v7514, %v7602
      %7604 = vmatmul.bf16.gmra.mxu0 %v6327
      %v7605 = vpop.f32.mrf.mxu0
      %v7606 = vadd.f32 %v7517, %v7605
      %v7607 = vpop.f32.mrf.mxu0
      %v7608 = vadd.f32 %v7519, %v7607
      %7609 = vmatmul.bf16.gmra.mxu0 %v6343
      %v7610 = vpop.f32.mrf.mxu0
      %v7611 = vadd.f32 %v7522, %v7610
      %v7612 = vpop.f32.mrf.mxu0
      %v7613 = vadd.f32 %v7524, %v7612
      %7614 = vmatmul.bf16.gmra.mxu0 %v6359
      %v7615 = vpop.f32.mrf.mxu0
      %v7616 = vadd.f32 %v7527, %v7615
      %v7617 = vpop.f32.mrf.mxu0
      %v7618 = vadd.f32 %v7529, %v7617
      %7619 = vmatmul.bf16.gmra.mxu0 %v6375
      %v7620 = vpop.f32.mrf.mxu0
      %v7621 = vadd.f32 %v7532, %v7620
      %v7622 = vpop.f32.mrf.mxu0
      %v7623 = vadd.f32 %v7534, %v7622
      %7624 = vmatmul.bf16.gmra.mxu0 %v6391
      %v7625 = vpop.f32.mrf.mxu0
      %v7626 = vadd.f32 %v7537, %v7625
      %v7627 = vpop.f32.mrf.mxu0
      %v7628 = vadd.f32 %v7539, %v7627
      %7629 = vmatmul.bf16.gmra.mxu0 %v6407
      %v7630 = vpop.f32.mrf.mxu0
      %v7631 = vadd.f32 %v7542, %v7630
      %v7632 = vpop.f32.mrf.mxu0
      %v7633 = vadd.f32 %v7544, %v7632
      %7634 = vmatmul.bf16.gmra.mxu0 %v6423
      %v7635 = vpop.f32.mrf.mxu0
      %v7636 = vadd.f32 %v7547, %v7635
      %v7637 = vpop.f32.mrf.mxu0
      %v7638 = vadd.f32 %v7549, %v7637
      %7639 = vdwg.mxu0
      %7640 = vmatpush.bf16.msra.mxu0 %v7229
      %7641 = vmatpush.bf16.msra.mxu0 %v7228
      %7642 = vmatpush.bf16.msra.mxu0 %v7227
      %7643 = vmatpush.bf16.msra.mxu0 %v7226
      %7644 = vmatpush.bf16.msra.mxu0 %v7225
      %7645 = vmatpush.bf16.msra.mxu0 %v7224
      %7646 = vmatpush.bf16.msra.mxu0 %v7223
      %7647 = vmatpush.bf16.msra.mxu0 %v7222
      %7648 = vmatmul.bf16.gmra.mxu0 %v6184
      %v7649 = vpop.f32.mrf.mxu0
      %v7650 = vadd.f32 %v7561, %v7649
      %v7651 = vpop.f32.mrf.mxu0
      %v7652 = vadd.f32 %v7563, %v7651
      %7653 = vmatmul.bf16.gmra.mxu0 %v6200
      %v7654 = vpop.f32.mrf.mxu0
      %v7655 = vadd.f32 %v7566, %v7654
      %v7656 = vpop.f32.mrf.mxu0
      %v7657 = vadd.f32 %v7568, %v7656
      %7658 = vmatmul.bf16.gmra.mxu0 %v6216
      %v7659 = vpop.f32.mrf.mxu0
      %v7660 = vadd.f32 %v7571, %v7659
      %v7661 = vpop.f32.mrf.mxu0
      %v7662 = vadd.f32 %v7573, %v7661
      %7663 = vmatmul.bf16.gmra.mxu0 %v6232
      %v7664 = vpop.f32.mrf.mxu0
      %v7665 = vadd.f32 %v7576, %v7664
      %v7666 = vpop.f32.mrf.mxu0
      %v7667 = vadd.f32 %v7578, %v7666
      %7668 = vmatmul.bf16.gmra.mxu0 %v6248
      %v7669 = vpop.f32.mrf.mxu0
      %v7670 = vadd.f32 %v7581, %v7669
      %v7671 = vpop.f32.mrf.mxu0
      %v7672 = vadd.f32 %v7583, %v7671
      %7673 = vmatmul.bf16.gmra.mxu0 %v6264
      %v7674 = vpop.f32.mrf.mxu0
      %v7675 = vadd.f32 %v7586, %v7674
      %v7676 = vpop.f32.mrf.mxu0
      %v7677 = vadd.f32 %v7588, %v7676
      %7678 = vmatmul.bf16.gmra.mxu0 %v6280
      %v7679 = vpop.f32.mrf.mxu0
      %v7680 = vadd.f32 %v7591, %v7679
      %v7681 = vpop.f32.mrf.mxu0
      %v7682 = vadd.f32 %v7593, %v7681
      %7683 = vmatmul.bf16.gmra.mxu0 %v6296
      %v7684 = vpop.f32.mrf.mxu0
      %v7685 = vadd.f32 %v7596, %v7684
      %v7686 = vpop.f32.mrf.mxu0
      %v7687 = vadd.f32 %v7598, %v7686
      %7688 = vmatmul.bf16.gmra.mxu0 %v6312
      %v7689 = vpop.f32.mrf.mxu0
      %v7690 = vadd.f32 %v7601, %v7689
      %v7691 = vpop.f32.mrf.mxu0
      %v7692 = vadd.f32 %v7603, %v7691
      %7693 = vmatmul.bf16.gmra.mxu0 %v6328
      %v7694 = vpop.f32.mrf.mxu0
      %v7695 = vadd.f32 %v7606, %v7694
      %v7696 = vpop.f32.mrf.mxu0
      %v7697 = vadd.f32 %v7608, %v7696
      %7698 = vmatmul.bf16.gmra.mxu0 %v6344
      %v7699 = vpop.f32.mrf.mxu0
      %v7700 = vadd.f32 %v7611, %v7699
      %v7701 = vpop.f32.mrf.mxu0
      %v7702 = vadd.f32 %v7613, %v7701
      %7703 = vmatmul.bf16.gmra.mxu0 %v6360
      %v7704 = vpop.f32.mrf.mxu0
      %v7705 = vadd.f32 %v7616, %v7704
      %v7706 = vpop.f32.mrf.mxu0
      %v7707 = vadd.f32 %v7618, %v7706
      %7708 = vmatmul.bf16.gmra.mxu0 %v6376
      %v7709 = vpop.f32.mrf.mxu0
      %v7710 = vadd.f32 %v7621, %v7709
      %v7711 = vpop.f32.mrf.mxu0
      %v7712 = vadd.f32 %v7623, %v7711
      %7713 = vmatmul.bf16.gmra.mxu0 %v6392
      %v7714 = vpop.f32.mrf.mxu0
      %v7715 = vadd.f32 %v7626, %v7714
      %v7716 = vpop.f32.mrf.mxu0
      %v7717 = vadd.f32 %v7628, %v7716
      %7718 = vmatmul.bf16.gmra.mxu0 %v6408
      %v7719 = vpop.f32.mrf.mxu0
      %v7720 = vadd.f32 %v7631, %v7719
      %v7721 = vpop.f32.mrf.mxu0
      %v7722 = vadd.f32 %v7633, %v7721
      %7723 = vmatmul.bf16.gmra.mxu0 %v6424
      %v7724 = vpop.f32.mrf.mxu0
      %v7725 = vadd.f32 %v7636, %v7724
      %v7726 = vpop.f32.mrf.mxu0
      %v7727 = vadd.f32 %v7638, %v7726
      %7728 = vdwg.mxu0
      %7729 = vmatpush.bf16.msra.mxu0 %v7237
      %7730 = vmatpush.bf16.msra.mxu0 %v7236
      %7731 = vmatpush.bf16.msra.mxu0 %v7235
      %7732 = vmatpush.bf16.msra.mxu0 %v7234
      %7733 = vmatpush.bf16.msra.mxu0 %v7233
      %7734 = vmatpush.bf16.msra.mxu0 %v7232
      %7735 = vmatpush.bf16.msra.mxu0 %v7231
      %7736 = vmatpush.bf16.msra.mxu0 %v7230
      %7737 = vmatmul.bf16.gmra.mxu0 %v6185
      %v7738 = vpop.f32.mrf.mxu0
      %v7739 = vadd.f32 %v7650, %v7738
      %v7740 = vpop.f32.mrf.mxu0
      %v7741 = vadd.f32 %v7652, %v7740
      %7742 = vmatmul.bf16.gmra.mxu0 %v6201
      %v7743 = vpop.f32.mrf.mxu0
      %v7744 = vadd.f32 %v7655, %v7743
      %v7745 = vpop.f32.mrf.mxu0
      %v7746 = vadd.f32 %v7657, %v7745
      %7747 = vmatmul.bf16.gmra.mxu0 %v6217
      %v7748 = vpop.f32.mrf.mxu0
      %v7749 = vadd.f32 %v7660, %v7748
      %v7750 = vpop.f32.mrf.mxu0
      %v7751 = vadd.f32 %v7662, %v7750
      %7752 = vmatmul.bf16.gmra.mxu0 %v6233
      %v7753 = vpop.f32.mrf.mxu0
      %v7754 = vadd.f32 %v7665, %v7753
      %v7755 = vpop.f32.mrf.mxu0
      %v7756 = vadd.f32 %v7667, %v7755
      %7757 = vmatmul.bf16.gmra.mxu0 %v6249
      %v7758 = vpop.f32.mrf.mxu0
      %v7759 = vadd.f32 %v7670, %v7758
      %v7760 = vpop.f32.mrf.mxu0
      %v7761 = vadd.f32 %v7672, %v7760
      %7762 = vmatmul.bf16.gmra.mxu0 %v6265
      %v7763 = vpop.f32.mrf.mxu0
      %v7764 = vadd.f32 %v7675, %v7763
      %v7765 = vpop.f32.mrf.mxu0
      %v7766 = vadd.f32 %v7677, %v7765
      %7767 = vmatmul.bf16.gmra.mxu0 %v6281
      %v7768 = vpop.f32.mrf.mxu0
      %v7769 = vadd.f32 %v7680, %v7768
      %v7770 = vpop.f32.mrf.mxu0
      %v7771 = vadd.f32 %v7682, %v7770
      %7772 = vmatmul.bf16.gmra.mxu0 %v6297
      %v7773 = vpop.f32.mrf.mxu0
      %v7774 = vadd.f32 %v7685, %v7773
      %v7775 = vpop.f32.mrf.mxu0
      %v7776 = vadd.f32 %v7687, %v7775
      %7777 = vmatmul.bf16.gmra.mxu0 %v6313
      %v7778 = vpop.f32.mrf.mxu0
      %v7779 = vadd.f32 %v7690, %v7778
      %v7780 = vpop.f32.mrf.mxu0
      %v7781 = vadd.f32 %v7692, %v7780
      %7782 = vmatmul.bf16.gmra.mxu0 %v6329
      %v7783 = vpop.f32.mrf.mxu0
      %v7784 = vadd.f32 %v7695, %v7783
      %v7785 = vpop.f32.mrf.mxu0
      %v7786 = vadd.f32 %v7697, %v7785
      %7787 = vmatmul.bf16.gmra.mxu0 %v6345
      %v7788 = vpop.f32.mrf.mxu0
      %v7789 = vadd.f32 %v7700, %v7788
      %v7790 = vpop.f32.mrf.mxu0
      %v7791 = vadd.f32 %v7702, %v7790
      %7792 = vmatmul.bf16.gmra.mxu0 %v6361
      %v7793 = vpop.f32.mrf.mxu0
      %v7794 = vadd.f32 %v7705, %v7793
      %v7795 = vpop.f32.mrf.mxu0
      %v7796 = vadd.f32 %v7707, %v7795
      %7797 = vmatmul.bf16.gmra.mxu0 %v6377
      %v7798 = vpop.f32.mrf.mxu0
      %v7799 = vadd.f32 %v7710, %v7798
      %v7800 = vpop.f32.mrf.mxu0
      %v7801 = vadd.f32 %v7712, %v7800
      %7802 = vmatmul.bf16.gmra.mxu0 %v6393
      %v7803 = vpop.f32.mrf.mxu0
      %v7804 = vadd.f32 %v7715, %v7803
      %v7805 = vpop.f32.mrf.mxu0
      %v7806 = vadd.f32 %v7717, %v7805
      %7807 = vmatmul.bf16.gmra.mxu0 %v6409
      %v7808 = vpop.f32.mrf.mxu0
      %v7809 = vadd.f32 %v7720, %v7808
      %v7810 = vpop.f32.mrf.mxu0
      %v7811 = vadd.f32 %v7722, %v7810
      %7812 = vmatmul.bf16.gmra.mxu0 %v6425
      %v7813 = vpop.f32.mrf.mxu0
      %v7814 = vadd.f32 %v7725, %v7813
      %v7815 = vpop.f32.mrf.mxu0
      %v7816 = vadd.f32 %v7727, %v7815
      %7817 = vdwg.mxu0
      %7818 = vmatpush.bf16.msra.mxu0 %v7245
      %7819 = vmatpush.bf16.msra.mxu0 %v7244
      %7820 = vmatpush.bf16.msra.mxu0 %v7243
      %7821 = vmatpush.bf16.msra.mxu0 %v7242
      %7822 = vmatpush.bf16.msra.mxu0 %v7241
      %7823 = vmatpush.bf16.msra.mxu0 %v7240
      %7824 = vmatpush.bf16.msra.mxu0 %v7239
      %7825 = vmatpush.bf16.msra.mxu0 %v7238
      %7826 = vmatmul.bf16.gmra.mxu0 %v6186
      %v7827 = vpop.f32.mrf.mxu0
      %v7828 = vadd.f32 %v7739, %v7827
      %v7829 = vpop.f32.mrf.mxu0
      %v7830 = vadd.f32 %v7741, %v7829
      %7831 = vmatmul.bf16.gmra.mxu0 %v6202
      %v7832 = vpop.f32.mrf.mxu0
      %v7833 = vadd.f32 %v7744, %v7832
      %v7834 = vpop.f32.mrf.mxu0
      %v7835 = vadd.f32 %v7746, %v7834
      %7836 = vmatmul.bf16.gmra.mxu0 %v6218
      %v7837 = vpop.f32.mrf.mxu0
      %v7838 = vadd.f32 %v7749, %v7837
      %v7839 = vpop.f32.mrf.mxu0
      %v7840 = vadd.f32 %v7751, %v7839
      %7841 = vmatmul.bf16.gmra.mxu0 %v6234
      %v7842 = vpop.f32.mrf.mxu0
      %v7843 = vadd.f32 %v7754, %v7842
      %v7844 = vpop.f32.mrf.mxu0
      %v7845 = vadd.f32 %v7756, %v7844
      %7846 = vmatmul.bf16.gmra.mxu0 %v6250
      %v7847 = vpop.f32.mrf.mxu0
      %v7848 = vadd.f32 %v7759, %v7847
      %v7849 = vpop.f32.mrf.mxu0
      %v7850 = vadd.f32 %v7761, %v7849
      %7851 = vmatmul.bf16.gmra.mxu0 %v6266
      %v7852 = vpop.f32.mrf.mxu0
      %v7853 = vadd.f32 %v7764, %v7852
      %v7854 = vpop.f32.mrf.mxu0
      %v7855 = vadd.f32 %v7766, %v7854
      %7856 = vmatmul.bf16.gmra.mxu0 %v6282
      %v7857 = vpop.f32.mrf.mxu0
      %v7858 = vadd.f32 %v7769, %v7857
      %v7859 = vpop.f32.mrf.mxu0
      %v7860 = vadd.f32 %v7771, %v7859
      %7861 = vmatmul.bf16.gmra.mxu0 %v6298
      %v7862 = vpop.f32.mrf.mxu0
      %v7863 = vadd.f32 %v7774, %v7862
      %v7864 = vpop.f32.mrf.mxu0
      %v7865 = vadd.f32 %v7776, %v7864
      %7866 = vmatmul.bf16.gmra.mxu0 %v6314
      %v7867 = vpop.f32.mrf.mxu0
      %v7868 = vadd.f32 %v7779, %v7867
      %v7869 = vpop.f32.mrf.mxu0
      %v7870 = vadd.f32 %v7781, %v7869
      %7871 = vmatmul.bf16.gmra.mxu0 %v6330
      %v7872 = vpop.f32.mrf.mxu0
      %v7873 = vadd.f32 %v7784, %v7872
      %v7874 = vpop.f32.mrf.mxu0
      %v7875 = vadd.f32 %v7786, %v7874
      %7876 = vmatmul.bf16.gmra.mxu0 %v6346
      %v7877 = vpop.f32.mrf.mxu0
      %v7878 = vadd.f32 %v7789, %v7877
      %v7879 = vpop.f32.mrf.mxu0
      %v7880 = vadd.f32 %v7791, %v7879
      %7881 = vmatmul.bf16.gmra.mxu0 %v6362
      %v7882 = vpop.f32.mrf.mxu0
      %v7883 = vadd.f32 %v7794, %v7882
      %v7884 = vpop.f32.mrf.mxu0
      %v7885 = vadd.f32 %v7796, %v7884
      %7886 = vmatmul.bf16.gmra.mxu0 %v6378
      %v7887 = vpop.f32.mrf.mxu0
      %v7888 = vadd.f32 %v7799, %v7887
      %v7889 = vpop.f32.mrf.mxu0
      %v7890 = vadd.f32 %v7801, %v7889
      %7891 = vmatmul.bf16.gmra.mxu0 %v6394
      %v7892 = vpop.f32.mrf.mxu0
      %v7893 = vadd.f32 %v7804, %v7892
      %v7894 = vpop.f32.mrf.mxu0
      %v7895 = vadd.f32 %v7806, %v7894
      %7896 = vmatmul.bf16.gmra.mxu0 %v6410
      %v7897 = vpop.f32.mrf.mxu0
      %v7898 = vadd.f32 %v7809, %v7897
      %v7899 = vpop.f32.mrf.mxu0
      %v7900 = vadd.f32 %v7811, %v7899
      %7901 = vmatmul.bf16.gmra.mxu0 %v6426
      %v7902 = vpop.f32.mrf.mxu0
      %v7903 = vadd.f32 %v7814, %v7902
      %v7904 = vpop.f32.mrf.mxu0
      %v7905 = vadd.f32 %v7816, %v7904
      %7906 = vdwg.mxu0
      %7907 = vmatpush.bf16.msra.mxu0 %v7253
      %7908 = vmatpush.bf16.msra.mxu0 %v7252
      %7909 = vmatpush.bf16.msra.mxu0 %v7251
      %7910 = vmatpush.bf16.msra.mxu0 %v7250
      %7911 = vmatpush.bf16.msra.mxu0 %v7249
      %7912 = vmatpush.bf16.msra.mxu0 %v7248
      %7913 = vmatpush.bf16.msra.mxu0 %v7247
      %7914 = vmatpush.bf16.msra.mxu0 %v7246
      %7915 = vmatmul.bf16.gmra.mxu0 %v6187
      %v7916 = vpop.f32.mrf.mxu0
      %v7917 = vadd.f32 %v7828, %v7916
      %v7918 = vpop.f32.mrf.mxu0
      %v7919 = vadd.f32 %v7830, %v7918
      %7920 = vmatmul.bf16.gmra.mxu0 %v6203
      %v7921 = vpop.f32.mrf.mxu0
      %v7922 = vadd.f32 %v7833, %v7921
      %v7923 = vpop.f32.mrf.mxu0
      %v7924 = vadd.f32 %v7835, %v7923
      %7925 = vmatmul.bf16.gmra.mxu0 %v6219
      %v7926 = vpop.f32.mrf.mxu0
      %v7927 = vadd.f32 %v7838, %v7926
      %v7928 = vpop.f32.mrf.mxu0
      %v7929 = vadd.f32 %v7840, %v7928
      %7930 = vmatmul.bf16.gmra.mxu0 %v6235
      %v7931 = vpop.f32.mrf.mxu0
      %v7932 = vadd.f32 %v7843, %v7931
      %v7933 = vpop.f32.mrf.mxu0
      %v7934 = vadd.f32 %v7845, %v7933
      %7935 = vmatmul.bf16.gmra.mxu0 %v6251
      %v7936 = vpop.f32.mrf.mxu0
      %v7937 = vadd.f32 %v7848, %v7936
      %v7938 = vpop.f32.mrf.mxu0
      %v7939 = vadd.f32 %v7850, %v7938
      %7940 = vmatmul.bf16.gmra.mxu0 %v6267
      %v7941 = vpop.f32.mrf.mxu0
      %v7942 = vadd.f32 %v7853, %v7941
      %v7943 = vpop.f32.mrf.mxu0
      %v7944 = vadd.f32 %v7855, %v7943
      %7945 = vmatmul.bf16.gmra.mxu0 %v6283
      %v7946 = vpop.f32.mrf.mxu0
      %v7947 = vadd.f32 %v7858, %v7946
      %v7948 = vpop.f32.mrf.mxu0
      %v7949 = vadd.f32 %v7860, %v7948
      %7950 = vmatmul.bf16.gmra.mxu0 %v6299
      %v7951 = vpop.f32.mrf.mxu0
      %v7952 = vadd.f32 %v7863, %v7951
      %v7953 = vpop.f32.mrf.mxu0
      %v7954 = vadd.f32 %v7865, %v7953
      %7955 = vmatmul.bf16.gmra.mxu0 %v6315
      %v7956 = vpop.f32.mrf.mxu0
      %v7957 = vadd.f32 %v7868, %v7956
      %v7958 = vpop.f32.mrf.mxu0
      %v7959 = vadd.f32 %v7870, %v7958
      %7960 = vmatmul.bf16.gmra.mxu0 %v6331
      %v7961 = vpop.f32.mrf.mxu0
      %v7962 = vadd.f32 %v7873, %v7961
      %v7963 = vpop.f32.mrf.mxu0
      %v7964 = vadd.f32 %v7875, %v7963
      %7965 = vmatmul.bf16.gmra.mxu0 %v6347
      %v7966 = vpop.f32.mrf.mxu0
      %v7967 = vadd.f32 %v7878, %v7966
      %v7968 = vpop.f32.mrf.mxu0
      %v7969 = vadd.f32 %v7880, %v7968
      %7970 = vmatmul.bf16.gmra.mxu0 %v6363
      %v7971 = vpop.f32.mrf.mxu0
      %v7972 = vadd.f32 %v7883, %v7971
      %v7973 = vpop.f32.mrf.mxu0
      %v7974 = vadd.f32 %v7885, %v7973
      %7975 = vmatmul.bf16.gmra.mxu0 %v6379
      %v7976 = vpop.f32.mrf.mxu0
      %v7977 = vadd.f32 %v7888, %v7976
      %v7978 = vpop.f32.mrf.mxu0
      %v7979 = vadd.f32 %v7890, %v7978
      %7980 = vmatmul.bf16.gmra.mxu0 %v6395
      %v7981 = vpop.f32.mrf.mxu0
      %v7982 = vadd.f32 %v7893, %v7981
      %v7983 = vpop.f32.mrf.mxu0
      %v7984 = vadd.f32 %v7895, %v7983
      %7985 = vmatmul.bf16.gmra.mxu0 %v6411
      %v7986 = vpop.f32.mrf.mxu0
      %v7987 = vadd.f32 %v7898, %v7986
      %v7988 = vpop.f32.mrf.mxu0
      %v7989 = vadd.f32 %v7900, %v7988
      %7990 = vmatmul.bf16.gmra.mxu0 %v6427
      %v7991 = vpop.f32.mrf.mxu0
      %v7992 = vadd.f32 %v7903, %v7991
      %v7993 = vpop.f32.mrf.mxu0
      %v7994 = vadd.f32 %v7905, %v7993
      %7995 = vdwg.mxu0
      %7996 = vmatpush.bf16.msra.mxu0 %v7261
      %7997 = vmatpush.bf16.msra.mxu0 %v7260
      %7998 = vmatpush.bf16.msra.mxu0 %v7259
      %7999 = vmatpush.bf16.msra.mxu0 %v7258
      %8000 = vmatpush.bf16.msra.mxu0 %v7257
      %8001 = vmatpush.bf16.msra.mxu0 %v7256
      %8002 = vmatpush.bf16.msra.mxu0 %v7255
      %8003 = vmatpush.bf16.msra.mxu0 %v7254
      %8004 = vmatmul.bf16.gmra.mxu0 %v6188
      %v8005 = vpop.f32.mrf.mxu0
      %v8006 = vadd.f32 %v7917, %v8005
      %v8007 = vpop.f32.mrf.mxu0
      %v8008 = vadd.f32 %v7919, %v8007
      %8009 = vmatmul.bf16.gmra.mxu0 %v6204
      %v8010 = vpop.f32.mrf.mxu0
      %v8011 = vadd.f32 %v7922, %v8010
      %v8012 = vpop.f32.mrf.mxu0
      %v8013 = vadd.f32 %v7924, %v8012
      %8014 = vmatmul.bf16.gmra.mxu0 %v6220
      %v8015 = vpop.f32.mrf.mxu0
      %v8016 = vadd.f32 %v7927, %v8015
      %v8017 = vpop.f32.mrf.mxu0
      %v8018 = vadd.f32 %v7929, %v8017
      %8019 = vmatmul.bf16.gmra.mxu0 %v6236
      %v8020 = vpop.f32.mrf.mxu0
      %v8021 = vadd.f32 %v7932, %v8020
      %v8022 = vpop.f32.mrf.mxu0
      %v8023 = vadd.f32 %v7934, %v8022
      %8024 = vmatmul.bf16.gmra.mxu0 %v6252
      %v8025 = vpop.f32.mrf.mxu0
      %v8026 = vadd.f32 %v7937, %v8025
      %v8027 = vpop.f32.mrf.mxu0
      %v8028 = vadd.f32 %v7939, %v8027
      %8029 = vmatmul.bf16.gmra.mxu0 %v6268
      %v8030 = vpop.f32.mrf.mxu0
      %v8031 = vadd.f32 %v7942, %v8030
      %v8032 = vpop.f32.mrf.mxu0
      %v8033 = vadd.f32 %v7944, %v8032
      %8034 = vmatmul.bf16.gmra.mxu0 %v6284
      %v8035 = vpop.f32.mrf.mxu0
      %v8036 = vadd.f32 %v7947, %v8035
      %v8037 = vpop.f32.mrf.mxu0
      %v8038 = vadd.f32 %v7949, %v8037
      %8039 = vmatmul.bf16.gmra.mxu0 %v6300
      %v8040 = vpop.f32.mrf.mxu0
      %v8041 = vadd.f32 %v7952, %v8040
      %v8042 = vpop.f32.mrf.mxu0
      %v8043 = vadd.f32 %v7954, %v8042
      %8044 = vmatmul.bf16.gmra.mxu0 %v6316
      %v8045 = vpop.f32.mrf.mxu0
      %v8046 = vadd.f32 %v7957, %v8045
      %v8047 = vpop.f32.mrf.mxu0
      %v8048 = vadd.f32 %v7959, %v8047
      %8049 = vmatmul.bf16.gmra.mxu0 %v6332
      %v8050 = vpop.f32.mrf.mxu0
      %v8051 = vadd.f32 %v7962, %v8050
      %v8052 = vpop.f32.mrf.mxu0
      %v8053 = vadd.f32 %v7964, %v8052
      %8054 = vmatmul.bf16.gmra.mxu0 %v6348
      %v8055 = vpop.f32.mrf.mxu0
      %v8056 = vadd.f32 %v7967, %v8055
      %v8057 = vpop.f32.mrf.mxu0
      %v8058 = vadd.f32 %v7969, %v8057
      %8059 = vmatmul.bf16.gmra.mxu0 %v6364
      %v8060 = vpop.f32.mrf.mxu0
      %v8061 = vadd.f32 %v7972, %v8060
      %v8062 = vpop.f32.mrf.mxu0
      %v8063 = vadd.f32 %v7974, %v8062
      %8064 = vmatmul.bf16.gmra.mxu0 %v6380
      %v8065 = vpop.f32.mrf.mxu0
      %v8066 = vadd.f32 %v7977, %v8065
      %v8067 = vpop.f32.mrf.mxu0
      %v8068 = vadd.f32 %v7979, %v8067
      %8069 = vmatmul.bf16.gmra.mxu0 %v6396
      %v8070 = vpop.f32.mrf.mxu0
      %v8071 = vadd.f32 %v7982, %v8070
      %v8072 = vpop.f32.mrf.mxu0
      %v8073 = vadd.f32 %v7984, %v8072
      %8074 = vmatmul.bf16.gmra.mxu0 %v6412
      %v8075 = vpop.f32.mrf.mxu0
      %v8076 = vadd.f32 %v7987, %v8075
      %v8077 = vpop.f32.mrf.mxu0
      %v8078 = vadd.f32 %v7989, %v8077
      %8079 = vmatmul.bf16.gmra.mxu0 %v6428
      %v8080 = vpop.f32.mrf.mxu0
      %v8081 = vadd.f32 %v7992, %v8080
      %v8082 = vpop.f32.mrf.mxu0
      %v8083 = vadd.f32 %v7994, %v8082
      %8084 = vdwg.mxu0
      %8085 = vmatpush.bf16.msra.mxu0 %v7269
      %8086 = vmatpush.bf16.msra.mxu0 %v7268
      %8087 = vmatpush.bf16.msra.mxu0 %v7267
      %8088 = vmatpush.bf16.msra.mxu0 %v7266
      %8089 = vmatpush.bf16.msra.mxu0 %v7265
      %8090 = vmatpush.bf16.msra.mxu0 %v7264
      %8091 = vmatpush.bf16.msra.mxu0 %v7263
      %8092 = vmatpush.bf16.msra.mxu0 %v7262
      %8093 = vmatmul.bf16.gmra.mxu0 %v6189
      %v8094 = vpop.f32.mrf.mxu0
      %v8095 = vadd.f32 %v8006, %v8094
      %v8096 = vpop.f32.mrf.mxu0
      %v8097 = vadd.f32 %v8008, %v8096
      %8098 = vmatmul.bf16.gmra.mxu0 %v6205
      %v8099 = vpop.f32.mrf.mxu0
      %v8100 = vadd.f32 %v8011, %v8099
      %v8101 = vpop.f32.mrf.mxu0
      %v8102 = vadd.f32 %v8013, %v8101
      %8103 = vmatmul.bf16.gmra.mxu0 %v6221
      %v8104 = vpop.f32.mrf.mxu0
      %v8105 = vadd.f32 %v8016, %v8104
      %v8106 = vpop.f32.mrf.mxu0
      %v8107 = vadd.f32 %v8018, %v8106
      %8108 = vmatmul.bf16.gmra.mxu0 %v6237
      %v8109 = vpop.f32.mrf.mxu0
      %v8110 = vadd.f32 %v8021, %v8109
      %v8111 = vpop.f32.mrf.mxu0
      %v8112 = vadd.f32 %v8023, %v8111
      %8113 = vmatmul.bf16.gmra.mxu0 %v6253
      %v8114 = vpop.f32.mrf.mxu0
      %v8115 = vadd.f32 %v8026, %v8114
      %v8116 = vpop.f32.mrf.mxu0
      %v8117 = vadd.f32 %v8028, %v8116
      %8118 = vmatmul.bf16.gmra.mxu0 %v6269
      %v8119 = vpop.f32.mrf.mxu0
      %v8120 = vadd.f32 %v8031, %v8119
      %v8121 = vpop.f32.mrf.mxu0
      %v8122 = vadd.f32 %v8033, %v8121
      %8123 = vmatmul.bf16.gmra.mxu0 %v6285
      %v8124 = vpop.f32.mrf.mxu0
      %v8125 = vadd.f32 %v8036, %v8124
      %v8126 = vpop.f32.mrf.mxu0
      %v8127 = vadd.f32 %v8038, %v8126
      %8128 = vmatmul.bf16.gmra.mxu0 %v6301
      %v8129 = vpop.f32.mrf.mxu0
      %v8130 = vadd.f32 %v8041, %v8129
      %v8131 = vpop.f32.mrf.mxu0
      %v8132 = vadd.f32 %v8043, %v8131
      %8133 = vmatmul.bf16.gmra.mxu0 %v6317
      %v8134 = vpop.f32.mrf.mxu0
      %v8135 = vadd.f32 %v8046, %v8134
      %v8136 = vpop.f32.mrf.mxu0
      %v8137 = vadd.f32 %v8048, %v8136
      %8138 = vmatmul.bf16.gmra.mxu0 %v6333
      %v8139 = vpop.f32.mrf.mxu0
      %v8140 = vadd.f32 %v8051, %v8139
      %v8141 = vpop.f32.mrf.mxu0
      %v8142 = vadd.f32 %v8053, %v8141
      %8143 = vmatmul.bf16.gmra.mxu0 %v6349
      %v8144 = vpop.f32.mrf.mxu0
      %v8145 = vadd.f32 %v8056, %v8144
      %v8146 = vpop.f32.mrf.mxu0
      %v8147 = vadd.f32 %v8058, %v8146
      %8148 = vmatmul.bf16.gmra.mxu0 %v6365
      %v8149 = vpop.f32.mrf.mxu0
      %v8150 = vadd.f32 %v8061, %v8149
      %v8151 = vpop.f32.mrf.mxu0
      %v8152 = vadd.f32 %v8063, %v8151
      %8153 = vmatmul.bf16.gmra.mxu0 %v6381
      %v8154 = vpop.f32.mrf.mxu0
      %v8155 = vadd.f32 %v8066, %v8154
      %v8156 = vpop.f32.mrf.mxu0
      %v8157 = vadd.f32 %v8068, %v8156
      %8158 = vmatmul.bf16.gmra.mxu0 %v6397
      %v8159 = vpop.f32.mrf.mxu0
      %v8160 = vadd.f32 %v8071, %v8159
      %v8161 = vpop.f32.mrf.mxu0
      %v8162 = vadd.f32 %v8073, %v8161
      %8163 = vmatmul.bf16.gmra.mxu0 %v6413
      %v8164 = vpop.f32.mrf.mxu0
      %v8165 = vadd.f32 %v8076, %v8164
      %v8166 = vpop.f32.mrf.mxu0
      %v8167 = vadd.f32 %v8078, %v8166
      %8168 = vmatmul.bf16.gmra.mxu0 %v6429
      %v8169 = vpop.f32.mrf.mxu0
      %v8170 = vadd.f32 %v8081, %v8169
      %v8171 = vpop.f32.mrf.mxu0
      %v8172 = vadd.f32 %v8083, %v8171
      %8173 = vdwg.mxu0
      %8174 = vmatpush.bf16.msra.mxu0 %v7277
      %8175 = vmatpush.bf16.msra.mxu0 %v7276
      %8176 = vmatpush.bf16.msra.mxu0 %v7275
      %8177 = vmatpush.bf16.msra.mxu0 %v7274
      %8178 = vmatpush.bf16.msra.mxu0 %v7273
      %8179 = vmatpush.bf16.msra.mxu0 %v7272
      %8180 = vmatpush.bf16.msra.mxu0 %v7271
      %8181 = vmatpush.bf16.msra.mxu0 %v7270
      %8182 = vmatmul.bf16.gmra.mxu0 %v6190
      %v8183 = vpop.f32.mrf.mxu0
      %v8184 = vadd.f32 %v8095, %v8183
      %v8185 = vpop.f32.mrf.mxu0
      %v8186 = vadd.f32 %v8097, %v8185
      %8187 = vmatmul.bf16.gmra.mxu0 %v6206
      %v8188 = vpop.f32.mrf.mxu0
      %v8189 = vadd.f32 %v8100, %v8188
      %v8190 = vpop.f32.mrf.mxu0
      %v8191 = vadd.f32 %v8102, %v8190
      %8192 = vmatmul.bf16.gmra.mxu0 %v6222
      %v8193 = vpop.f32.mrf.mxu0
      %v8194 = vadd.f32 %v8105, %v8193
      %v8195 = vpop.f32.mrf.mxu0
      %v8196 = vadd.f32 %v8107, %v8195
      %8197 = vmatmul.bf16.gmra.mxu0 %v6238
      %v8198 = vpop.f32.mrf.mxu0
      %v8199 = vadd.f32 %v8110, %v8198
      %v8200 = vpop.f32.mrf.mxu0
      %v8201 = vadd.f32 %v8112, %v8200
      %8202 = vmatmul.bf16.gmra.mxu0 %v6254
      %v8203 = vpop.f32.mrf.mxu0
      %v8204 = vadd.f32 %v8115, %v8203
      %v8205 = vpop.f32.mrf.mxu0
      %v8206 = vadd.f32 %v8117, %v8205
      %8207 = vmatmul.bf16.gmra.mxu0 %v6270
      %v8208 = vpop.f32.mrf.mxu0
      %v8209 = vadd.f32 %v8120, %v8208
      %v8210 = vpop.f32.mrf.mxu0
      %v8211 = vadd.f32 %v8122, %v8210
      %8212 = vmatmul.bf16.gmra.mxu0 %v6286
      %v8213 = vpop.f32.mrf.mxu0
      %v8214 = vadd.f32 %v8125, %v8213
      %v8215 = vpop.f32.mrf.mxu0
      %v8216 = vadd.f32 %v8127, %v8215
      %8217 = vmatmul.bf16.gmra.mxu0 %v6302
      %v8218 = vpop.f32.mrf.mxu0
      %v8219 = vadd.f32 %v8130, %v8218
      %v8220 = vpop.f32.mrf.mxu0
      %v8221 = vadd.f32 %v8132, %v8220
      %8222 = vmatmul.bf16.gmra.mxu0 %v6318
      %v8223 = vpop.f32.mrf.mxu0
      %v8224 = vadd.f32 %v8135, %v8223
      %v8225 = vpop.f32.mrf.mxu0
      %v8226 = vadd.f32 %v8137, %v8225
      %8227 = vmatmul.bf16.gmra.mxu0 %v6334
      %v8228 = vpop.f32.mrf.mxu0
      %v8229 = vadd.f32 %v8140, %v8228
      %v8230 = vpop.f32.mrf.mxu0
      %v8231 = vadd.f32 %v8142, %v8230
      %8232 = vmatmul.bf16.gmra.mxu0 %v6350
      %v8233 = vpop.f32.mrf.mxu0
      %v8234 = vadd.f32 %v8145, %v8233
      %v8235 = vpop.f32.mrf.mxu0
      %v8236 = vadd.f32 %v8147, %v8235
      %8237 = vmatmul.bf16.gmra.mxu0 %v6366
      %v8238 = vpop.f32.mrf.mxu0
      %v8239 = vadd.f32 %v8150, %v8238
      %v8240 = vpop.f32.mrf.mxu0
      %v8241 = vadd.f32 %v8152, %v8240
      %8242 = vmatmul.bf16.gmra.mxu0 %v6382
      %v8243 = vpop.f32.mrf.mxu0
      %v8244 = vadd.f32 %v8155, %v8243
      %v8245 = vpop.f32.mrf.mxu0
      %v8246 = vadd.f32 %v8157, %v8245
      %8247 = vmatmul.bf16.gmra.mxu0 %v6398
      %v8248 = vpop.f32.mrf.mxu0
      %v8249 = vadd.f32 %v8160, %v8248
      %v8250 = vpop.f32.mrf.mxu0
      %v8251 = vadd.f32 %v8162, %v8250
      %8252 = vmatmul.bf16.gmra.mxu0 %v6414
      %v8253 = vpop.f32.mrf.mxu0
      %v8254 = vadd.f32 %v8165, %v8253
      %v8255 = vpop.f32.mrf.mxu0
      %v8256 = vadd.f32 %v8167, %v8255
      %8257 = vmatmul.bf16.gmra.mxu0 %v6430
      %v8258 = vpop.f32.mrf.mxu0
      %v8259 = vadd.f32 %v8170, %v8258
      %v8260 = vpop.f32.mrf.mxu0
      %v8261 = vadd.f32 %v8172, %v8260
      %8262 = vdwg.mxu0
      %8263 = vmatpush.bf16.msra.mxu0 %v7285
      %8264 = vmatpush.bf16.msra.mxu0 %v7284
      %8265 = vmatpush.bf16.msra.mxu0 %v7283
      %8266 = vmatpush.bf16.msra.mxu0 %v7282
      %8267 = vmatpush.bf16.msra.mxu0 %v7281
      %8268 = vmatpush.bf16.msra.mxu0 %v7280
      %8269 = vmatpush.bf16.msra.mxu0 %v7279
      %8270 = vmatpush.bf16.msra.mxu0 %v7278
      %8271 = vmatmul.bf16.gmra.mxu0 %v6191
      %v8272 = vpop.f32.mrf.mxu0
      %v8273 = vadd.f32 %v8184, %v8272
      %v8274 = vpop.f32.mrf.mxu0
      %v8275 = vadd.f32 %v8186, %v8274
      %8276 = vmatmul.bf16.gmra.mxu0 %v6207
      %v8277 = vpop.f32.mrf.mxu0
      %v8278 = vadd.f32 %v8189, %v8277
      %v8279 = vpop.f32.mrf.mxu0
      %v8280 = vadd.f32 %v8191, %v8279
      %8281 = vmatmul.bf16.gmra.mxu0 %v6223
      %v8282 = vpop.f32.mrf.mxu0
      %v8283 = vadd.f32 %v8194, %v8282
      %v8284 = vpop.f32.mrf.mxu0
      %v8285 = vadd.f32 %v8196, %v8284
      %8286 = vmatmul.bf16.gmra.mxu0 %v6239
      %v8287 = vpop.f32.mrf.mxu0
      %v8288 = vadd.f32 %v8199, %v8287
      %v8289 = vpop.f32.mrf.mxu0
      %v8290 = vadd.f32 %v8201, %v8289
      %8291 = vmatmul.bf16.gmra.mxu0 %v6255
      %v8292 = vpop.f32.mrf.mxu0
      %v8293 = vadd.f32 %v8204, %v8292
      %v8294 = vpop.f32.mrf.mxu0
      %v8295 = vadd.f32 %v8206, %v8294
      %8296 = vmatmul.bf16.gmra.mxu0 %v6271
      %v8297 = vpop.f32.mrf.mxu0
      %v8298 = vadd.f32 %v8209, %v8297
      %v8299 = vpop.f32.mrf.mxu0
      %v8300 = vadd.f32 %v8211, %v8299
      %8301 = vmatmul.bf16.gmra.mxu0 %v6287
      %v8302 = vpop.f32.mrf.mxu0
      %v8303 = vadd.f32 %v8214, %v8302
      %v8304 = vpop.f32.mrf.mxu0
      %v8305 = vadd.f32 %v8216, %v8304
      %8306 = vmatmul.bf16.gmra.mxu0 %v6303
      %v8307 = vpop.f32.mrf.mxu0
      %v8308 = vadd.f32 %v8219, %v8307
      %v8309 = vpop.f32.mrf.mxu0
      %v8310 = vadd.f32 %v8221, %v8309
      %8311 = vmatmul.bf16.gmra.mxu0 %v6319
      %v8312 = vpop.f32.mrf.mxu0
      %v8313 = vadd.f32 %v8224, %v8312
      %v8314 = vpop.f32.mrf.mxu0
      %v8315 = vadd.f32 %v8226, %v8314
      %8316 = vmatmul.bf16.gmra.mxu0 %v6335
      %v8317 = vpop.f32.mrf.mxu0
      %v8318 = vadd.f32 %v8229, %v8317
      %v8319 = vpop.f32.mrf.mxu0
      %v8320 = vadd.f32 %v8231, %v8319
      %8321 = vmatmul.bf16.gmra.mxu0 %v6351
      %v8322 = vpop.f32.mrf.mxu0
      %v8323 = vadd.f32 %v8234, %v8322
      %v8324 = vpop.f32.mrf.mxu0
      %v8325 = vadd.f32 %v8236, %v8324
      %8326 = vmatmul.bf16.gmra.mxu0 %v6367
      %v8327 = vpop.f32.mrf.mxu0
      %v8328 = vadd.f32 %v8239, %v8327
      %v8329 = vpop.f32.mrf.mxu0
      %v8330 = vadd.f32 %v8241, %v8329
      %8331 = vmatmul.bf16.gmra.mxu0 %v6383
      %v8332 = vpop.f32.mrf.mxu0
      %v8333 = vadd.f32 %v8244, %v8332
      %v8334 = vpop.f32.mrf.mxu0
      %v8335 = vadd.f32 %v8246, %v8334
      %8336 = vmatmul.bf16.gmra.mxu0 %v6399
      %v8337 = vpop.f32.mrf.mxu0
      %v8338 = vadd.f32 %v8249, %v8337
      %v8339 = vpop.f32.mrf.mxu0
      %v8340 = vadd.f32 %v8251, %v8339
      %8341 = vmatmul.bf16.gmra.mxu0 %v6415
      %v8342 = vpop.f32.mrf.mxu0
      %v8343 = vadd.f32 %v8254, %v8342
      %v8344 = vpop.f32.mrf.mxu0
      %v8345 = vadd.f32 %v8256, %v8344
      %8346 = vmatmul.bf16.gmra.mxu0 %v6431
      %v8347 = vpop.f32.mrf.mxu0
      %v8348 = vadd.f32 %v8259, %v8347
      %v8349 = vpop.f32.mrf.mxu0
      %v8350 = vadd.f32 %v8261, %v8349
      %8351 = vdwg.mxu0
      %8352 = vmatpush.bf16.msra.mxu0 %v7293
      %8353 = vmatpush.bf16.msra.mxu0 %v7292
      %8354 = vmatpush.bf16.msra.mxu0 %v7291
      %8355 = vmatpush.bf16.msra.mxu0 %v7290
      %8356 = vmatpush.bf16.msra.mxu0 %v7289
      %8357 = vmatpush.bf16.msra.mxu0 %v7288
      %8358 = vmatpush.bf16.msra.mxu0 %v7287
      %8359 = vmatpush.bf16.msra.mxu0 %v7286
      %8360 = vmatmul.bf16.gmra.mxu0 %v6192
      %v8361 = vpop.f32.mrf.mxu0
      %v8362 = vadd.f32 %v8273, %v8361
      %v8363 = vpop.f32.mrf.mxu0
      %v8364 = vadd.f32 %v8275, %v8363
      %8365 = vmatmul.bf16.gmra.mxu0 %v6208
      %v8366 = vpop.f32.mrf.mxu0
      %v8367 = vadd.f32 %v8278, %v8366
      %v8368 = vpop.f32.mrf.mxu0
      %v8369 = vadd.f32 %v8280, %v8368
      %8370 = vmatmul.bf16.gmra.mxu0 %v6224
      %v8371 = vpop.f32.mrf.mxu0
      %v8372 = vadd.f32 %v8283, %v8371
      %v8373 = vpop.f32.mrf.mxu0
      %v8374 = vadd.f32 %v8285, %v8373
      %8375 = vmatmul.bf16.gmra.mxu0 %v6240
      %v8376 = vpop.f32.mrf.mxu0
      %v8377 = vadd.f32 %v8288, %v8376
      %v8378 = vpop.f32.mrf.mxu0
      %v8379 = vadd.f32 %v8290, %v8378
      %8380 = vmatmul.bf16.gmra.mxu0 %v6256
      %v8381 = vpop.f32.mrf.mxu0
      %v8382 = vadd.f32 %v8293, %v8381
      %v8383 = vpop.f32.mrf.mxu0
      %v8384 = vadd.f32 %v8295, %v8383
      %8385 = vmatmul.bf16.gmra.mxu0 %v6272
      %v8386 = vpop.f32.mrf.mxu0
      %v8387 = vadd.f32 %v8298, %v8386
      %v8388 = vpop.f32.mrf.mxu0
      %v8389 = vadd.f32 %v8300, %v8388
      %8390 = vmatmul.bf16.gmra.mxu0 %v6288
      %v8391 = vpop.f32.mrf.mxu0
      %v8392 = vadd.f32 %v8303, %v8391
      %v8393 = vpop.f32.mrf.mxu0
      %v8394 = vadd.f32 %v8305, %v8393
      %8395 = vmatmul.bf16.gmra.mxu0 %v6304
      %v8396 = vpop.f32.mrf.mxu0
      %v8397 = vadd.f32 %v8308, %v8396
      %v8398 = vpop.f32.mrf.mxu0
      %v8399 = vadd.f32 %v8310, %v8398
      %8400 = vmatmul.bf16.gmra.mxu0 %v6320
      %v8401 = vpop.f32.mrf.mxu0
      %v8402 = vadd.f32 %v8313, %v8401
      %v8403 = vpop.f32.mrf.mxu0
      %v8404 = vadd.f32 %v8315, %v8403
      %8405 = vmatmul.bf16.gmra.mxu0 %v6336
      %v8406 = vpop.f32.mrf.mxu0
      %v8407 = vadd.f32 %v8318, %v8406
      %v8408 = vpop.f32.mrf.mxu0
      %v8409 = vadd.f32 %v8320, %v8408
      %8410 = vmatmul.bf16.gmra.mxu0 %v6352
      %v8411 = vpop.f32.mrf.mxu0
      %v8412 = vadd.f32 %v8323, %v8411
      %v8413 = vpop.f32.mrf.mxu0
      %v8414 = vadd.f32 %v8325, %v8413
      %8415 = vmatmul.bf16.gmra.mxu0 %v6368
      %v8416 = vpop.f32.mrf.mxu0
      %v8417 = vadd.f32 %v8328, %v8416
      %v8418 = vpop.f32.mrf.mxu0
      %v8419 = vadd.f32 %v8330, %v8418
      %8420 = vmatmul.bf16.gmra.mxu0 %v6384
      %v8421 = vpop.f32.mrf.mxu0
      %v8422 = vadd.f32 %v8333, %v8421
      %v8423 = vpop.f32.mrf.mxu0
      %v8424 = vadd.f32 %v8335, %v8423
      %8425 = vmatmul.bf16.gmra.mxu0 %v6400
      %v8426 = vpop.f32.mrf.mxu0
      %v8427 = vadd.f32 %v8338, %v8426
      %v8428 = vpop.f32.mrf.mxu0
      %v8429 = vadd.f32 %v8340, %v8428
      %8430 = vmatmul.bf16.gmra.mxu0 %v6416
      %v8431 = vpop.f32.mrf.mxu0
      %v8432 = vadd.f32 %v8343, %v8431
      %v8433 = vpop.f32.mrf.mxu0
      %v8434 = vadd.f32 %v8345, %v8433
      %8435 = vmatmul.bf16.gmra.mxu0 %v6432
      %v8436 = vpop.f32.mrf.mxu0
      %v8437 = vadd.f32 %v8348, %v8436
      %v8438 = vpop.f32.mrf.mxu0
      %v8439 = vadd.f32 %v8350, %v8438
      %8440 = vdwg.mxu0
      %8441 = vmatpush.bf16.msra.mxu0 %v7301
      %8442 = vmatpush.bf16.msra.mxu0 %v7300
      %8443 = vmatpush.bf16.msra.mxu0 %v7299
      %8444 = vmatpush.bf16.msra.mxu0 %v7298
      %8445 = vmatpush.bf16.msra.mxu0 %v7297
      %8446 = vmatpush.bf16.msra.mxu0 %v7296
      %8447 = vmatpush.bf16.msra.mxu0 %v7295
      %8448 = vmatpush.bf16.msra.mxu0 %v7294
      %8449 = vmatmul.bf16.gmra.mxu0 %v6193
      %v8450 = vpop.f32.mrf.mxu0
      %v8451 = vadd.f32 %v8362, %v8450
      %v8452 = vpop.f32.mrf.mxu0
      %v8453 = vadd.f32 %v8364, %v8452
      %8454 = vmatmul.bf16.gmra.mxu0 %v6209
      %v8455 = vpop.f32.mrf.mxu0
      %v8456 = vadd.f32 %v8367, %v8455
      %v8457 = vpop.f32.mrf.mxu0
      %v8458 = vadd.f32 %v8369, %v8457
      %8459 = vmatmul.bf16.gmra.mxu0 %v6225
      %v8460 = vpop.f32.mrf.mxu0
      %v8461 = vadd.f32 %v8372, %v8460
      %v8462 = vpop.f32.mrf.mxu0
      %v8463 = vadd.f32 %v8374, %v8462
      %8464 = vmatmul.bf16.gmra.mxu0 %v6241
      %v8465 = vpop.f32.mrf.mxu0
      %v8466 = vadd.f32 %v8377, %v8465
      %v8467 = vpop.f32.mrf.mxu0
      %v8468 = vadd.f32 %v8379, %v8467
      %8469 = vmatmul.bf16.gmra.mxu0 %v6257
      %v8470 = vpop.f32.mrf.mxu0
      %v8471 = vadd.f32 %v8382, %v8470
      %v8472 = vpop.f32.mrf.mxu0
      %v8473 = vadd.f32 %v8384, %v8472
      %8474 = vmatmul.bf16.gmra.mxu0 %v6273
      %v8475 = vpop.f32.mrf.mxu0
      %v8476 = vadd.f32 %v8387, %v8475
      %v8477 = vpop.f32.mrf.mxu0
      %v8478 = vadd.f32 %v8389, %v8477
      %8479 = vmatmul.bf16.gmra.mxu0 %v6289
      %v8480 = vpop.f32.mrf.mxu0
      %v8481 = vadd.f32 %v8392, %v8480
      %v8482 = vpop.f32.mrf.mxu0
      %v8483 = vadd.f32 %v8394, %v8482
      %8484 = vmatmul.bf16.gmra.mxu0 %v6305
      %v8485 = vpop.f32.mrf.mxu0
      %v8486 = vadd.f32 %v8397, %v8485
      %v8487 = vpop.f32.mrf.mxu0
      %v8488 = vadd.f32 %v8399, %v8487
      %8489 = vmatmul.bf16.gmra.mxu0 %v6321
      %v8490 = vpop.f32.mrf.mxu0
      %v8491 = vadd.f32 %v8402, %v8490
      %v8492 = vpop.f32.mrf.mxu0
      %v8493 = vadd.f32 %v8404, %v8492
      %8494 = vmatmul.bf16.gmra.mxu0 %v6337
      %v8495 = vpop.f32.mrf.mxu0
      %v8496 = vadd.f32 %v8407, %v8495
      %v8497 = vpop.f32.mrf.mxu0
      %v8498 = vadd.f32 %v8409, %v8497
      %8499 = vmatmul.bf16.gmra.mxu0 %v6353
      %v8500 = vpop.f32.mrf.mxu0
      %v8501 = vadd.f32 %v8412, %v8500
      %v8502 = vpop.f32.mrf.mxu0
      %v8503 = vadd.f32 %v8414, %v8502
      %8504 = vmatmul.bf16.gmra.mxu0 %v6369
      %v8505 = vpop.f32.mrf.mxu0
      %v8506 = vadd.f32 %v8417, %v8505
      %v8507 = vpop.f32.mrf.mxu0
      %v8508 = vadd.f32 %v8419, %v8507
      %8509 = vmatmul.bf16.gmra.mxu0 %v6385
      %v8510 = vpop.f32.mrf.mxu0
      %v8511 = vadd.f32 %v8422, %v8510
      %v8512 = vpop.f32.mrf.mxu0
      %v8513 = vadd.f32 %v8424, %v8512
      %8514 = vmatmul.bf16.gmra.mxu0 %v6401
      %v8515 = vpop.f32.mrf.mxu0
      %v8516 = vadd.f32 %v8427, %v8515
      %v8517 = vpop.f32.mrf.mxu0
      %v8518 = vadd.f32 %v8429, %v8517
      %8519 = vmatmul.bf16.gmra.mxu0 %v6417
      %v8520 = vpop.f32.mrf.mxu0
      %v8521 = vadd.f32 %v8432, %v8520
      %v8522 = vpop.f32.mrf.mxu0
      %v8523 = vadd.f32 %v8434, %v8522
      %8524 = vmatmul.bf16.gmra.mxu0 %v6433
      %v8525 = vpop.f32.mrf.mxu0
      %v8526 = vadd.f32 %v8437, %v8525
      %v8527 = vpop.f32.mrf.mxu0
      %v8528 = vadd.f32 %v8439, %v8527
      %8529 = vdwg.mxu0
      %8530 = vmatpush.bf16.msra.mxu0 %v7309
      %8531 = vmatpush.bf16.msra.mxu0 %v7308
      %8532 = vmatpush.bf16.msra.mxu0 %v7307
      %8533 = vmatpush.bf16.msra.mxu0 %v7306
      %8534 = vmatpush.bf16.msra.mxu0 %v7305
      %8535 = vmatpush.bf16.msra.mxu0 %v7304
      %8536 = vmatpush.bf16.msra.mxu0 %v7303
      %8537 = vmatpush.bf16.msra.mxu0 %v7302
      %8538 = vmatmul.bf16.gmra.mxu0 %v6194
      %v8539 = vpop.f32.mrf.mxu0
      %v8540 = vadd.f32 %v8451, %v8539
      %v8541 = vpop.f32.mrf.mxu0
      %v8542 = vadd.f32 %v8453, %v8541
      %8543 = vmatmul.bf16.gmra.mxu0 %v6210
      %v8544 = vpop.f32.mrf.mxu0
      %v8545 = vadd.f32 %v8456, %v8544
      %v8546 = vpop.f32.mrf.mxu0
      %v8547 = vadd.f32 %v8458, %v8546
      %8548 = vmatmul.bf16.gmra.mxu0 %v6226
      %v8549 = vpop.f32.mrf.mxu0
      %v8550 = vadd.f32 %v8461, %v8549
      %v8551 = vpop.f32.mrf.mxu0
      %v8552 = vadd.f32 %v8463, %v8551
      %8553 = vmatmul.bf16.gmra.mxu0 %v6242
      %v8554 = vpop.f32.mrf.mxu0
      %v8555 = vadd.f32 %v8466, %v8554
      %v8556 = vpop.f32.mrf.mxu0
      %v8557 = vadd.f32 %v8468, %v8556
      %8558 = vmatmul.bf16.gmra.mxu0 %v6258
      %v8559 = vpop.f32.mrf.mxu0
      %v8560 = vadd.f32 %v8471, %v8559
      %v8561 = vpop.f32.mrf.mxu0
      %v8562 = vadd.f32 %v8473, %v8561
      %8563 = vmatmul.bf16.gmra.mxu0 %v6274
      %v8564 = vpop.f32.mrf.mxu0
      %v8565 = vadd.f32 %v8476, %v8564
      %v8566 = vpop.f32.mrf.mxu0
      %v8567 = vadd.f32 %v8478, %v8566
      %8568 = vmatmul.bf16.gmra.mxu0 %v6290
      %v8569 = vpop.f32.mrf.mxu0
      %v8570 = vadd.f32 %v8481, %v8569
      %v8571 = vpop.f32.mrf.mxu0
      %v8572 = vadd.f32 %v8483, %v8571
      %8573 = vmatmul.bf16.gmra.mxu0 %v6306
      %v8574 = vpop.f32.mrf.mxu0
      %v8575 = vadd.f32 %v8486, %v8574
      %v8576 = vpop.f32.mrf.mxu0
      %v8577 = vadd.f32 %v8488, %v8576
      %8578 = vmatmul.bf16.gmra.mxu0 %v6322
      %v8579 = vpop.f32.mrf.mxu0
      %v8580 = vadd.f32 %v8491, %v8579
      %v8581 = vpop.f32.mrf.mxu0
      %v8582 = vadd.f32 %v8493, %v8581
      %8583 = vmatmul.bf16.gmra.mxu0 %v6338
      %v8584 = vpop.f32.mrf.mxu0
      %v8585 = vadd.f32 %v8496, %v8584
      %v8586 = vpop.f32.mrf.mxu0
      %v8587 = vadd.f32 %v8498, %v8586
      %8588 = vmatmul.bf16.gmra.mxu0 %v6354
      %v8589 = vpop.f32.mrf.mxu0
      %v8590 = vadd.f32 %v8501, %v8589
      %v8591 = vpop.f32.mrf.mxu0
      %v8592 = vadd.f32 %v8503, %v8591
      %8593 = vmatmul.bf16.gmra.mxu0 %v6370
      %v8594 = vpop.f32.mrf.mxu0
      %v8595 = vadd.f32 %v8506, %v8594
      %v8596 = vpop.f32.mrf.mxu0
      %v8597 = vadd.f32 %v8508, %v8596
      %8598 = vmatmul.bf16.gmra.mxu0 %v6386
      %v8599 = vpop.f32.mrf.mxu0
      %v8600 = vadd.f32 %v8511, %v8599
      %v8601 = vpop.f32.mrf.mxu0
      %v8602 = vadd.f32 %v8513, %v8601
      %8603 = vmatmul.bf16.gmra.mxu0 %v6402
      %v8604 = vpop.f32.mrf.mxu0
      %v8605 = vadd.f32 %v8516, %v8604
      %v8606 = vpop.f32.mrf.mxu0
      %v8607 = vadd.f32 %v8518, %v8606
      %8608 = vmatmul.bf16.gmra.mxu0 %v6418
      %v8609 = vpop.f32.mrf.mxu0
      %v8610 = vadd.f32 %v8521, %v8609
      %v8611 = vpop.f32.mrf.mxu0
      %v8612 = vadd.f32 %v8523, %v8611
      %8613 = vmatmul.bf16.gmra.mxu0 %v6434
      %v8614 = vpop.f32.mrf.mxu0
      %v8615 = vadd.f32 %v8526, %v8614
      %v8616 = vpop.f32.mrf.mxu0
      %v8617 = vadd.f32 %v8528, %v8616
      %8618 = vdwg.mxu0
      %8619 = vmatpush.bf16.msra.mxu0 %v7317
      %8620 = vmatpush.bf16.msra.mxu0 %v7316
      %8621 = vmatpush.bf16.msra.mxu0 %v7315
      %8622 = vmatpush.bf16.msra.mxu0 %v7314
      %8623 = vmatpush.bf16.msra.mxu0 %v7313
      %8624 = vmatpush.bf16.msra.mxu0 %v7312
      %8625 = vmatpush.bf16.msra.mxu0 %v7311
      %8626 = vmatpush.bf16.msra.mxu0 %v7310
      %8627 = vmatmul.bf16.gmra.mxu0 %v6195
      %v8628 = vpop.f32.mrf.mxu0
      %v8629 = vadd.f32 %v8540, %v8628
      %v8630 = vpop.f32.mrf.mxu0
      %v8631 = vadd.f32 %v8542, %v8630
      %8632 = vmatmul.bf16.gmra.mxu0 %v6211
      %v8633 = vpop.f32.mrf.mxu0
      %v8634 = vadd.f32 %v8545, %v8633
      %v8635 = vpop.f32.mrf.mxu0
      %v8636 = vadd.f32 %v8547, %v8635
      %8637 = vmatmul.bf16.gmra.mxu0 %v6227
      %v8638 = vpop.f32.mrf.mxu0
      %v8639 = vadd.f32 %v8550, %v8638
      %v8640 = vpop.f32.mrf.mxu0
      %v8641 = vadd.f32 %v8552, %v8640
      %8642 = vmatmul.bf16.gmra.mxu0 %v6243
      %v8643 = vpop.f32.mrf.mxu0
      %v8644 = vadd.f32 %v8555, %v8643
      %v8645 = vpop.f32.mrf.mxu0
      %v8646 = vadd.f32 %v8557, %v8645
      %8647 = vmatmul.bf16.gmra.mxu0 %v6259
      %v8648 = vpop.f32.mrf.mxu0
      %v8649 = vadd.f32 %v8560, %v8648
      %v8650 = vpop.f32.mrf.mxu0
      %v8651 = vadd.f32 %v8562, %v8650
      %8652 = vmatmul.bf16.gmra.mxu0 %v6275
      %v8653 = vpop.f32.mrf.mxu0
      %v8654 = vadd.f32 %v8565, %v8653
      %v8655 = vpop.f32.mrf.mxu0
      %v8656 = vadd.f32 %v8567, %v8655
      %8657 = vmatmul.bf16.gmra.mxu0 %v6291
      %v8658 = vpop.f32.mrf.mxu0
      %v8659 = vadd.f32 %v8570, %v8658
      %v8660 = vpop.f32.mrf.mxu0
      %v8661 = vadd.f32 %v8572, %v8660
      %8662 = vmatmul.bf16.gmra.mxu0 %v6307
      %v8663 = vpop.f32.mrf.mxu0
      %v8664 = vadd.f32 %v8575, %v8663
      %v8665 = vpop.f32.mrf.mxu0
      %v8666 = vadd.f32 %v8577, %v8665
      %8667 = vmatmul.bf16.gmra.mxu0 %v6323
      %v8668 = vpop.f32.mrf.mxu0
      %v8669 = vadd.f32 %v8580, %v8668
      %v8670 = vpop.f32.mrf.mxu0
      %v8671 = vadd.f32 %v8582, %v8670
      %8672 = vmatmul.bf16.gmra.mxu0 %v6339
      %v8673 = vpop.f32.mrf.mxu0
      %v8674 = vadd.f32 %v8585, %v8673
      %v8675 = vpop.f32.mrf.mxu0
      %v8676 = vadd.f32 %v8587, %v8675
      %8677 = vmatmul.bf16.gmra.mxu0 %v6355
      %v8678 = vpop.f32.mrf.mxu0
      %v8679 = vadd.f32 %v8590, %v8678
      %v8680 = vpop.f32.mrf.mxu0
      %v8681 = vadd.f32 %v8592, %v8680
      %8682 = vmatmul.bf16.gmra.mxu0 %v6371
      %v8683 = vpop.f32.mrf.mxu0
      %v8684 = vadd.f32 %v8595, %v8683
      %v8685 = vpop.f32.mrf.mxu0
      %v8686 = vadd.f32 %v8597, %v8685
      %8687 = vmatmul.bf16.gmra.mxu0 %v6387
      %v8688 = vpop.f32.mrf.mxu0
      %v8689 = vadd.f32 %v8600, %v8688
      %v8690 = vpop.f32.mrf.mxu0
      %v8691 = vadd.f32 %v8602, %v8690
      %8692 = vmatmul.bf16.gmra.mxu0 %v6403
      %v8693 = vpop.f32.mrf.mxu0
      %v8694 = vadd.f32 %v8605, %v8693
      %v8695 = vpop.f32.mrf.mxu0
      %v8696 = vadd.f32 %v8607, %v8695
      %8697 = vmatmul.bf16.gmra.mxu0 %v6419
      %v8698 = vpop.f32.mrf.mxu0
      %v8699 = vadd.f32 %v8610, %v8698
      %v8700 = vpop.f32.mrf.mxu0
      %v8701 = vadd.f32 %v8612, %v8700
      %8702 = vmatmul.bf16.gmra.mxu0 %v6435
      %v8703 = vpop.f32.mrf.mxu0
      %v8704 = vadd.f32 %v8615, %v8703
      %v8705 = vpop.f32.mrf.mxu0
      %v8706 = vadd.f32 %v8617, %v8705
      %8707 = vdwg.mxu0
      %8708 = vmatpush.bf16.msra.mxu0 %v7325
      %8709 = vmatpush.bf16.msra.mxu0 %v7324
      %8710 = vmatpush.bf16.msra.mxu0 %v7323
      %8711 = vmatpush.bf16.msra.mxu0 %v7322
      %8712 = vmatpush.bf16.msra.mxu0 %v7321
      %8713 = vmatpush.bf16.msra.mxu0 %v7320
      %8714 = vmatpush.bf16.msra.mxu0 %v7319
      %8715 = vmatpush.bf16.msra.mxu0 %v7318
      %8716 = vmatmul.bf16.gmra.mxu0 %v6196
      %v8717 = vpop.f32.mrf.mxu0
      %v8718 = vadd.f32 %v8629, %v8717
      %v8719 = vpop.f32.mrf.mxu0
      %v8720 = vadd.f32 %v8631, %v8719
      %8721 = vmatmul.bf16.gmra.mxu0 %v6212
      %v8722 = vpop.f32.mrf.mxu0
      %v8723 = vadd.f32 %v8634, %v8722
      %v8724 = vpop.f32.mrf.mxu0
      %v8725 = vadd.f32 %v8636, %v8724
      %8726 = vmatmul.bf16.gmra.mxu0 %v6228
      %v8727 = vpop.f32.mrf.mxu0
      %v8728 = vadd.f32 %v8639, %v8727
      %v8729 = vpop.f32.mrf.mxu0
      %v8730 = vadd.f32 %v8641, %v8729
      %8731 = vmatmul.bf16.gmra.mxu0 %v6244
      %v8732 = vpop.f32.mrf.mxu0
      %v8733 = vadd.f32 %v8644, %v8732
      %v8734 = vpop.f32.mrf.mxu0
      %v8735 = vadd.f32 %v8646, %v8734
      %8736 = vmatmul.bf16.gmra.mxu0 %v6260
      %v8737 = vpop.f32.mrf.mxu0
      %v8738 = vadd.f32 %v8649, %v8737
      %v8739 = vpop.f32.mrf.mxu0
      %v8740 = vadd.f32 %v8651, %v8739
      %8741 = vmatmul.bf16.gmra.mxu0 %v6276
      %v8742 = vpop.f32.mrf.mxu0
      %v8743 = vadd.f32 %v8654, %v8742
      %v8744 = vpop.f32.mrf.mxu0
      %v8745 = vadd.f32 %v8656, %v8744
      %8746 = vmatmul.bf16.gmra.mxu0 %v6292
      %v8747 = vpop.f32.mrf.mxu0
      %v8748 = vadd.f32 %v8659, %v8747
      %v8749 = vpop.f32.mrf.mxu0
      %v8750 = vadd.f32 %v8661, %v8749
      %8751 = vmatmul.bf16.gmra.mxu0 %v6308
      %v8752 = vpop.f32.mrf.mxu0
      %v8753 = vadd.f32 %v8664, %v8752
      %v8754 = vpop.f32.mrf.mxu0
      %v8755 = vadd.f32 %v8666, %v8754
      %8756 = vmatmul.bf16.gmra.mxu0 %v6324
      %v8757 = vpop.f32.mrf.mxu0
      %v8758 = vadd.f32 %v8669, %v8757
      %v8759 = vpop.f32.mrf.mxu0
      %v8760 = vadd.f32 %v8671, %v8759
      %8761 = vmatmul.bf16.gmra.mxu0 %v6340
      %v8762 = vpop.f32.mrf.mxu0
      %v8763 = vadd.f32 %v8674, %v8762
      %v8764 = vpop.f32.mrf.mxu0
      %v8765 = vadd.f32 %v8676, %v8764
      %8766 = vmatmul.bf16.gmra.mxu0 %v6356
      %v8767 = vpop.f32.mrf.mxu0
      %v8768 = vadd.f32 %v8679, %v8767
      %v8769 = vpop.f32.mrf.mxu0
      %v8770 = vadd.f32 %v8681, %v8769
      %8771 = vmatmul.bf16.gmra.mxu0 %v6372
      %v8772 = vpop.f32.mrf.mxu0
      %v8773 = vadd.f32 %v8684, %v8772
      %v8774 = vpop.f32.mrf.mxu0
      %v8775 = vadd.f32 %v8686, %v8774
      %8776 = vmatmul.bf16.gmra.mxu0 %v6388
      %v8777 = vpop.f32.mrf.mxu0
      %v8778 = vadd.f32 %v8689, %v8777
      %v8779 = vpop.f32.mrf.mxu0
      %v8780 = vadd.f32 %v8691, %v8779
      %8781 = vmatmul.bf16.gmra.mxu0 %v6404
      %v8782 = vpop.f32.mrf.mxu0
      %v8783 = vadd.f32 %v8694, %v8782
      %v8784 = vpop.f32.mrf.mxu0
      %v8785 = vadd.f32 %v8696, %v8784
      %8786 = vmatmul.bf16.gmra.mxu0 %v6420
      %v8787 = vpop.f32.mrf.mxu0
      %v8788 = vadd.f32 %v8699, %v8787
      %v8789 = vpop.f32.mrf.mxu0
      %v8790 = vadd.f32 %v8701, %v8789
      %8791 = vmatmul.bf16.gmra.mxu0 %v6436
      %v8792 = vpop.f32.mrf.mxu0
      %v8793 = vadd.f32 %v8704, %v8792
      %v8794 = vpop.f32.mrf.mxu0
      %v8795 = vadd.f32 %v8706, %v8794
      %8796 = vdwg.mxu0
      %8797 = vmatpush.bf16.msra.mxu0 %v7333
      %8798 = vmatpush.bf16.msra.mxu0 %v7332
      %8799 = vmatpush.bf16.msra.mxu0 %v7331
      %8800 = vmatpush.bf16.msra.mxu0 %v7330
      %8801 = vmatpush.bf16.msra.mxu0 %v7329
      %8802 = vmatpush.bf16.msra.mxu0 %v7328
      %8803 = vmatpush.bf16.msra.mxu0 %v7327
      %8804 = vmatpush.bf16.msra.mxu0 %v7326
      %8805 = vmatmul.bf16.gmra.mxu0 %v6197
      %v8806 = vpop.f32.mrf.mxu0
      %v8807 = vadd.f32 %v8718, %v8806
      %v8808 = vpop.f32.mrf.mxu0
      %v8809 = vadd.f32 %v8720, %v8808
      %8810 = vmatmul.bf16.gmra.mxu0 %v6213
      %v8811 = vpop.f32.mrf.mxu0
      %v8812 = vadd.f32 %v8723, %v8811
      %v8813 = vpop.f32.mrf.mxu0
      %v8814 = vadd.f32 %v8725, %v8813
      %8815 = vmatmul.bf16.gmra.mxu0 %v6229
      %v8816 = vpop.f32.mrf.mxu0
      %v8817 = vadd.f32 %v8728, %v8816
      %v8818 = vpop.f32.mrf.mxu0
      %v8819 = vadd.f32 %v8730, %v8818
      %8820 = vmatmul.bf16.gmra.mxu0 %v6245
      %v8821 = vpop.f32.mrf.mxu0
      %v8822 = vadd.f32 %v8733, %v8821
      %v8823 = vpop.f32.mrf.mxu0
      %v8824 = vadd.f32 %v8735, %v8823
      %8825 = vmatmul.bf16.gmra.mxu0 %v6261
      %v8826 = vpop.f32.mrf.mxu0
      %v8827 = vadd.f32 %v8738, %v8826
      %v8828 = vpop.f32.mrf.mxu0
      %v8829 = vadd.f32 %v8740, %v8828
      %8830 = vmatmul.bf16.gmra.mxu0 %v6277
      %v8831 = vpop.f32.mrf.mxu0
      %v8832 = vadd.f32 %v8743, %v8831
      %v8833 = vpop.f32.mrf.mxu0
      %v8834 = vadd.f32 %v8745, %v8833
      %8835 = vmatmul.bf16.gmra.mxu0 %v6293
      %v8836 = vpop.f32.mrf.mxu0
      %v8837 = vadd.f32 %v8748, %v8836
      %v8838 = vpop.f32.mrf.mxu0
      %v8839 = vadd.f32 %v8750, %v8838
      %8840 = vmatmul.bf16.gmra.mxu0 %v6309
      %v8841 = vpop.f32.mrf.mxu0
      %v8842 = vadd.f32 %v8753, %v8841
      %v8843 = vpop.f32.mrf.mxu0
      %v8844 = vadd.f32 %v8755, %v8843
      %8845 = vmatmul.bf16.gmra.mxu0 %v6325
      %v8846 = vpop.f32.mrf.mxu0
      %v8847 = vadd.f32 %v8758, %v8846
      %v8848 = vpop.f32.mrf.mxu0
      %v8849 = vadd.f32 %v8760, %v8848
      %8850 = vmatmul.bf16.gmra.mxu0 %v6341
      %v8851 = vpop.f32.mrf.mxu0
      %v8852 = vadd.f32 %v8763, %v8851
      %v8853 = vpop.f32.mrf.mxu0
      %v8854 = vadd.f32 %v8765, %v8853
      %8855 = vmatmul.bf16.gmra.mxu0 %v6357
      %v8856 = vpop.f32.mrf.mxu0
      %v8857 = vadd.f32 %v8768, %v8856
      %v8858 = vpop.f32.mrf.mxu0
      %v8859 = vadd.f32 %v8770, %v8858
      %8860 = vmatmul.bf16.gmra.mxu0 %v6373
      %v8861 = vpop.f32.mrf.mxu0
      %v8862 = vadd.f32 %v8773, %v8861
      %v8863 = vpop.f32.mrf.mxu0
      %v8864 = vadd.f32 %v8775, %v8863
      %8865 = vmatmul.bf16.gmra.mxu0 %v6389
      %v8866 = vpop.f32.mrf.mxu0
      %v8867 = vadd.f32 %v8778, %v8866
      %v8868 = vpop.f32.mrf.mxu0
      %v8869 = vadd.f32 %v8780, %v8868
      %8870 = vmatmul.bf16.gmra.mxu0 %v6405
      %v8871 = vpop.f32.mrf.mxu0
      %v8872 = vadd.f32 %v8783, %v8871
      %v8873 = vpop.f32.mrf.mxu0
      %v8874 = vadd.f32 %v8785, %v8873
      %8875 = vmatmul.bf16.gmra.mxu0 %v6421
      %v8876 = vpop.f32.mrf.mxu0
      %v8877 = vadd.f32 %v8788, %v8876
      %v8878 = vpop.f32.mrf.mxu0
      %v8879 = vadd.f32 %v8790, %v8878
      %8880 = vmatmul.bf16.gmra.mxu0 %v6437
      %v8881 = vpop.f32.mrf.mxu0
      %v8882 = vadd.f32 %v8793, %v8881
      %v8883 = vpop.f32.mrf.mxu0
      %v8884 = vadd.f32 %v8795, %v8883
      %8885 = vdwg.mxu0
      %v8886 = vmax.f32 %v8807, 0.0
      %v8887 = vmax.f32 %v8809, 0.0
      %v8888 = vmax.f32 %v8812, 0.0
      %v8889 = vmax.f32 %v8814, 0.0
      %v8890 = vmax.f32 %v8817, 0.0
      %v8891 = vmax.f32 %v8819, 0.0
      %v8892 = vmax.f32 %v8822, 0.0
      %v8893 = vmax.f32 %v8824, 0.0
      %v8894 = vmax.f32 %v8827, 0.0
      %v8895 = vmax.f32 %v8829, 0.0
      %v8896 = vmax.f32 %v8832, 0.0
      %v8897 = vmax.f32 %v8834, 0.0
      %v8898 = vmax.f32 %v8837, 0.0
      %v8899 = vmax.f32 %v8839, 0.0
      %v8900 = vmax.f32 %v8842, 0.0
      %v8901 = vmax.f32 %v8844, 0.0
      %v8902 = vmax.f32 %v8847, 0.0
      %v8903 = vmax.f32 %v8849, 0.0
      %v8904 = vmax.f32 %v8852, 0.0
      %v8905 = vmax.f32 %v8854, 0.0
      %v8906 = vmax.f32 %v8857, 0.0
      %v8907 = vmax.f32 %v8859, 0.0
      %v8908 = vmax.f32 %v8862, 0.0
      %v8909 = vmax.f32 %v8864, 0.0
      %v8910 = vmax.f32 %v8867, 0.0
      %v8911 = vmax.f32 %v8869, 0.0
      %v8912 = vmax.f32 %v8872, 0.0
      %v8913 = vmax.f32 %v8874, 0.0
      %v8914 = vmax.f32 %v8877, 0.0
      %v8915 = vmax.f32 %v8879, 0.0
      %v8916 = vmax.f32 %v8882, 0.0
      %v8917 = vmax.f32 %v8884, 0.0
      %v8918 = vpack.c.bf16 %v8886, %v8886
      %v8919 = vpack.c.bf16 %v8887, %v8887
      %v8920 = vpack.c.bf16 %v8888, %v8888
      %v8921 = vpack.c.bf16 %v8889, %v8889
      %v8922 = vpack.c.bf16 %v8890, %v8890
      %v8923 = vpack.c.bf16 %v8891, %v8891
      %v8924 = vpack.c.bf16 %v8892, %v8892
      %v8925 = vpack.c.bf16 %v8893, %v8893
      %v8926 = vpack.c.bf16 %v8894, %v8894
      %v8927 = vpack.c.bf16 %v8895, %v8895
      %v8928 = vpack.c.bf16 %v8896, %v8896
      %v8929 = vpack.c.bf16 %v8897, %v8897
      %v8930 = vpack.c.bf16 %v8898, %v8898
      %v8931 = vpack.c.bf16 %v8899, %v8899
      %v8932 = vpack.c.bf16 %v8900, %v8900
      %v8933 = vpack.c.bf16 %v8901, %v8901
      %v8934 = vpack.c.bf16 %v8902, %v8902
      %v8935 = vpack.c.bf16 %v8903, %v8903
      %v8936 = vpack.c.bf16 %v8904, %v8904
      %v8937 = vpack.c.bf16 %v8905, %v8905
      %v8938 = vpack.c.bf16 %v8906, %v8906
      %v8939 = vpack.c.bf16 %v8907, %v8907
      %v8940 = vpack.c.bf16 %v8908, %v8908
      %v8941 = vpack.c.bf16 %v8909, %v8909
      %v8942 = vpack.c.bf16 %v8910, %v8910
      %v8943 = vpack.c.bf16 %v8911, %v8911
      %v8944 = vpack.c.bf16 %v8912, %v8912
      %v8945 = vpack.c.bf16 %v8913, %v8913
      %v8946 = vpack.c.bf16 %v8914, %v8914
      %v8947 = vpack.c.bf16 %v8915, %v8915
      %v8948 = vpack.c.bf16 %v8916, %v8916
      %v8949 = vpack.c.bf16 %v8917, %v8917
      %8950 = vst [vmem:[#allocation3] sm:$0xf] %v8918
      %8951 = vst [vmem:[#allocation3 + $0x40] sm:$0xf] %v8919
      %8952 = vst [vmem:[#allocation3 + $0x4] sm:$0xf] %v8920
      %8953 = vst [vmem:[#allocation3 + $0x44] sm:$0xf] %v8921
      %8954 = vst [vmem:[#allocation3 + $0x8] sm:$0xf] %v8922
      %8955 = vst [vmem:[#allocation3 + $0x48] sm:$0xf] %v8923
      %8956 = vst [vmem:[#allocation3 + $0xc] sm:$0xf] %v8924
      %8957 = vst [vmem:[#allocation3 + $0x4c] sm:$0xf] %v8925
      %8958 = vst [vmem:[#allocation3 + $0x10] sm:$0xf] %v8926
      %8959 = vst [vmem:[#allocation3 + $0x50] sm:$0xf] %v8927
      %8960 = vst [vmem:[#allocation3 + $0x14] sm:$0xf] %v8928
      %8961 = vst [vmem:[#allocation3 + $0x54] sm:$0xf] %v8929
      %8962 = vst [vmem:[#allocation3 + $0x18] sm:$0xf] %v8930
      %8963 = vst [vmem:[#allocation3 + $0x58] sm:$0xf] %v8931
      %8964 = vst [vmem:[#allocation3 + $0x1c] sm:$0xf] %v8932
      %8965 = vst [vmem:[#allocation3 + $0x5c] sm:$0xf] %v8933
      %8966 = vst [vmem:[#allocation3 + $0x20] sm:$0xf] %v8934
      %8967 = vst [vmem:[#allocation3 + $0x60] sm:$0xf] %v8935
      %8968 = vst [vmem:[#allocation3 + $0x24] sm:$0xf] %v8936
      %8969 = vst [vmem:[#allocation3 + $0x64] sm:$0xf] %v8937
      %8970 = vst [vmem:[#allocation3 + $0x28] sm:$0xf] %v8938
      %8971 = vst [vmem:[#allocation3 + $0x68] sm:$0xf] %v8939
      %8972 = vst [vmem:[#allocation3 + $0x2c] sm:$0xf] %v8940
      %8973 = vst [vmem:[#allocation3 + $0x6c] sm:$0xf] %v8941
      %8974 = vst [vmem:[#allocation3 + $0x30] sm:$0xf] %v8942
      %8975 = vst [vmem:[#allocation3 + $0x70] sm:$0xf] %v8943
      %8976 = vst [vmem:[#allocation3 + $0x34] sm:$0xf] %v8944
      %8977 = vst [vmem:[#allocation3 + $0x74] sm:$0xf] %v8945
      %8978 = vst [vmem:[#allocation3 + $0x38] sm:$0xf] %v8946
      %8979 = vst [vmem:[#allocation3 + $0x78] sm:$0xf] %v8947
      %8980 = vst [vmem:[#allocation3 + $0x3c] sm:$0xf] %v8948
      %8981 = vst [vmem:[#allocation3 + $0x7c] sm:$0xf] %v8949
      %v8982 = vld [vmem:[#allocation3] sm:$0xff]
      %v8983 = vld [vmem:[#allocation3 + $0x8] sm:$0xff]
      %v8984 = vld [vmem:[#allocation3 + $0x10] sm:$0xff]
      %v8985 = vld [vmem:[#allocation3 + $0x18] sm:$0xff]
      %v8986 = vld [vmem:[#allocation3 + $0x20] sm:$0xff]
      %v8987 = vld [vmem:[#allocation3 + $0x28] sm:$0xff]
      %v8988 = vld [vmem:[#allocation3 + $0x30] sm:$0xff]
      %v8989 = vld [vmem:[#allocation3 + $0x38] sm:$0xff]
      %v8990 = vld [vmem:[#allocation3 + $0x40] sm:$0xff]
      %v8991 = vld [vmem:[#allocation3 + $0x48] sm:$0xff]
      %v8992 = vld [vmem:[#allocation3 + $0x50] sm:$0xff]
      %v8993 = vld [vmem:[#allocation3 + $0x58] sm:$0xff]
      %v8994 = vld [vmem:[#allocation3 + $0x60] sm:$0xff]
      %v8995 = vld [vmem:[#allocation3 + $0x68] sm:$0xff]
      %v8996 = vld [vmem:[#allocation3 + $0x70] sm:$0xff]
      %v8997 = vld [vmem:[#allocation3 + $0x78] sm:$0xff]
      %v8998 = vld [vmem:[%s6] sm:$0xf]
      %v8999 = vld [vmem:[%s6 + $0x4] sm:$0xf]
      %v9000 = vld [vmem:[%s6 + $0x8] sm:$0xf]
      %v9001 = vld [vmem:[%s6 + $0xc] sm:$0xf]
      %v9002 = vld [vmem:[%s6 + $0x10] sm:$0xf]
      %v9003 = vld [vmem:[%s6 + $0x14] sm:$0xf]
      %v9004 = vld [vmem:[%s6 + $0x18] sm:$0xf]
      %v9005 = vld [vmem:[%s6 + $0x1c] sm:$0xf]
      %v9006 = vld [vmem:[%s6 + $0x20] sm:$0xf]
      %v9007 = vld [vmem:[%s6 + $0x24] sm:$0xf]
      %v9008 = vld [vmem:[%s6 + $0x28] sm:$0xf]
      %v9009 = vld [vmem:[%s6 + $0x2c] sm:$0xf]
      %v9010 = vld [vmem:[%s6 + $0x30] sm:$0xf]
      %v9011 = vld [vmem:[%s6 + $0x34] sm:$0xf]
      %v9012 = vld [vmem:[%s6 + $0x38] sm:$0xf]
      %v9013 = vld [vmem:[%s6 + $0x3c] sm:$0xf]
      %v9014 = vld [vmem:[%s6 + $0x40] sm:$0xf]
      %v9015 = vld [vmem:[%s6 + $0x44] sm:$0xf]
      %v9016 = vld [vmem:[%s6 + $0x48] sm:$0xf]
      %v9017 = vld [vmem:[%s6 + $0x4c] sm:$0xf]
      %v9018 = vld [vmem:[%s6 + $0x50] sm:$0xf]
      %v9019 = vld [vmem:[%s6 + $0x54] sm:$0xf]
      %v9020 = vld [vmem:[%s6 + $0x58] sm:$0xf]
      %v9021 = vld [vmem:[%s6 + $0x5c] sm:$0xf]
      %v9022 = vld [vmem:[%s6 + $0x60] sm:$0xf]
      %v9023 = vld [vmem:[%s6 + $0x64] sm:$0xf]
      %v9024 = vld [vmem:[%s6 + $0x68] sm:$0xf]
      %v9025 = vld [vmem:[%s6 + $0x6c] sm:$0xf]
      %v9026 = vld [vmem:[%s6 + $0x70] sm:$0xf]
      %v9027 = vld [vmem:[%s6 + $0x74] sm:$0xf]
      %v9028 = vld [vmem:[%s6 + $0x78] sm:$0xf]
      %v9029 = vld [vmem:[%s6 + $0x7c] sm:$0xf]
      %v9030 = vld [vmem:[%s6 + $0x80] sm:$0xf]
      %v9031 = vld [vmem:[%s6 + $0x84] sm:$0xf]
      %v9032 = vld [vmem:[%s6 + $0x88] sm:$0xf]
      %v9033 = vld [vmem:[%s6 + $0x8c] sm:$0xf]
      %v9034 = vld [vmem:[%s6 + $0x90] sm:$0xf]
      %v9035 = vld [vmem:[%s6 + $0x94] sm:$0xf]
      %v9036 = vld [vmem:[%s6 + $0x98] sm:$0xf]
      %v9037 = vld [vmem:[%s6 + $0x9c] sm:$0xf]
      %v9038 = vld [vmem:[%s6 + $0xa0] sm:$0xf]
      %v9039 = vld [vmem:[%s6 + $0xa4] sm:$0xf]
      %v9040 = vld [vmem:[%s6 + $0xa8] sm:$0xf]
      %v9041 = vld [vmem:[%s6 + $0xac] sm:$0xf]
      %v9042 = vld [vmem:[%s6 + $0xb0] sm:$0xf]
      %v9043 = vld [vmem:[%s6 + $0xb4] sm:$0xf]
      %v9044 = vld [vmem:[%s6 + $0xb8] sm:$0xf]
      %v9045 = vld [vmem:[%s6 + $0xbc] sm:$0xf]
      %v9046 = vld [vmem:[%s6 + $0xc0] sm:$0xf]
      %v9047 = vld [vmem:[%s6 + $0xc4] sm:$0xf]
      %v9048 = vld [vmem:[%s6 + $0xc8] sm:$0xf]
      %v9049 = vld [vmem:[%s6 + $0xcc] sm:$0xf]
      %v9050 = vld [vmem:[%s6 + $0xd0] sm:$0xf]
      %v9051 = vld [vmem:[%s6 + $0xd4] sm:$0xf]
      %v9052 = vld [vmem:[%s6 + $0xd8] sm:$0xf]
      %v9053 = vld [vmem:[%s6 + $0xdc] sm:$0xf]
      %v9054 = vld [vmem:[%s6 + $0xe0] sm:$0xf]
      %v9055 = vld [vmem:[%s6 + $0xe4] sm:$0xf]
      %v9056 = vld [vmem:[%s6 + $0xe8] sm:$0xf]
      %v9057 = vld [vmem:[%s6 + $0xec] sm:$0xf]
      %v9058 = vld [vmem:[%s6 + $0xf0] sm:$0xf]
      %v9059 = vld [vmem:[%s6 + $0xf4] sm:$0xf]
      %v9060 = vld [vmem:[%s6 + $0xf8] sm:$0xf]
      %v9061 = vld [vmem:[%s6 + $0xfc] sm:$0xf]
      %v9062 = vld [vmem:[%s6 + $0x100] sm:$0xf]
      %v9063 = vld [vmem:[%s6 + $0x104] sm:$0xf]
      %v9064 = vld [vmem:[%s6 + $0x108] sm:$0xf]
      %v9065 = vld [vmem:[%s6 + $0x10c] sm:$0xf]
      %v9066 = vld [vmem:[%s6 + $0x110] sm:$0xf]
      %v9067 = vld [vmem:[%s6 + $0x114] sm:$0xf]
      %v9068 = vld [vmem:[%s6 + $0x118] sm:$0xf]
      %v9069 = vld [vmem:[%s6 + $0x11c] sm:$0xf]
      %v9070 = vld [vmem:[%s6 + $0x120] sm:$0xf]
      %v9071 = vld [vmem:[%s6 + $0x124] sm:$0xf]
      %v9072 = vld [vmem:[%s6 + $0x128] sm:$0xf]
      %v9073 = vld [vmem:[%s6 + $0x12c] sm:$0xf]
      %v9074 = vld [vmem:[%s6 + $0x130] sm:$0xf]
      %v9075 = vld [vmem:[%s6 + $0x134] sm:$0xf]
      %v9076 = vld [vmem:[%s6 + $0x138] sm:$0xf]
      %v9077 = vld [vmem:[%s6 + $0x13c] sm:$0xf]
      %v9078 = vld [vmem:[%s6 + $0x140] sm:$0xf]
      %v9079 = vld [vmem:[%s6 + $0x144] sm:$0xf]
      %v9080 = vld [vmem:[%s6 + $0x148] sm:$0xf]
      %v9081 = vld [vmem:[%s6 + $0x14c] sm:$0xf]
      %v9082 = vld [vmem:[%s6 + $0x150] sm:$0xf]
      %v9083 = vld [vmem:[%s6 + $0x154] sm:$0xf]
      %v9084 = vld [vmem:[%s6 + $0x158] sm:$0xf]
      %v9085 = vld [vmem:[%s6 + $0x15c] sm:$0xf]
      %v9086 = vld [vmem:[%s6 + $0x160] sm:$0xf]
      %v9087 = vld [vmem:[%s6 + $0x164] sm:$0xf]
      %v9088 = vld [vmem:[%s6 + $0x168] sm:$0xf]
      %v9089 = vld [vmem:[%s6 + $0x16c] sm:$0xf]
      %v9090 = vld [vmem:[%s6 + $0x170] sm:$0xf]
      %v9091 = vld [vmem:[%s6 + $0x174] sm:$0xf]
      %v9092 = vld [vmem:[%s6 + $0x178] sm:$0xf]
      %v9093 = vld [vmem:[%s6 + $0x17c] sm:$0xf]
      %v9094 = vld [vmem:[%s6 + $0x180] sm:$0xf]
      %v9095 = vld [vmem:[%s6 + $0x184] sm:$0xf]
      %v9096 = vld [vmem:[%s6 + $0x188] sm:$0xf]
      %v9097 = vld [vmem:[%s6 + $0x18c] sm:$0xf]
      %v9098 = vld [vmem:[%s6 + $0x190] sm:$0xf]
      %v9099 = vld [vmem:[%s6 + $0x194] sm:$0xf]
      %v9100 = vld [vmem:[%s6 + $0x198] sm:$0xf]
      %v9101 = vld [vmem:[%s6 + $0x19c] sm:$0xf]
      %v9102 = vld [vmem:[%s6 + $0x1a0] sm:$0xf]
      %v9103 = vld [vmem:[%s6 + $0x1a4] sm:$0xf]
      %v9104 = vld [vmem:[%s6 + $0x1a8] sm:$0xf]
      %v9105 = vld [vmem:[%s6 + $0x1ac] sm:$0xf]
      %v9106 = vld [vmem:[%s6 + $0x1b0] sm:$0xf]
      %v9107 = vld [vmem:[%s6 + $0x1b4] sm:$0xf]
      %v9108 = vld [vmem:[%s6 + $0x1b8] sm:$0xf]
      %v9109 = vld [vmem:[%s6 + $0x1bc] sm:$0xf]
      %v9110 = vld [vmem:[%s6 + $0x1c0] sm:$0xf]
      %v9111 = vld [vmem:[%s6 + $0x1c4] sm:$0xf]
      %v9112 = vld [vmem:[%s6 + $0x1c8] sm:$0xf]
      %v9113 = vld [vmem:[%s6 + $0x1cc] sm:$0xf]
      %v9114 = vld [vmem:[%s6 + $0x1d0] sm:$0xf]
      %v9115 = vld [vmem:[%s6 + $0x1d4] sm:$0xf]
      %v9116 = vld [vmem:[%s6 + $0x1d8] sm:$0xf]
      %v9117 = vld [vmem:[%s6 + $0x1dc] sm:$0xf]
      %v9118 = vld [vmem:[%s6 + $0x1e0] sm:$0xf]
      %v9119 = vld [vmem:[%s6 + $0x1e4] sm:$0xf]
      %v9120 = vld [vmem:[%s6 + $0x1e8] sm:$0xf]
      %v9121 = vld [vmem:[%s6 + $0x1ec] sm:$0xf]
      %v9122 = vld [vmem:[%s6 + $0x1f0] sm:$0xf]
      %v9123 = vld [vmem:[%s6 + $0x1f4] sm:$0xf]
      %v9124 = vld [vmem:[%s6 + $0x1f8] sm:$0xf]
      %v9125 = vld [vmem:[%s6 + $0x1fc] sm:$0xf]
      %v9126 = vld [vmem:[%s6 + $0x200] sm:$0xf]
      %v9127 = vld [vmem:[%s6 + $0x204] sm:$0xf]
      %v9128 = vld [vmem:[%s6 + $0x208] sm:$0xf]
      %v9129 = vld [vmem:[%s6 + $0x20c] sm:$0xf]
      %v9130 = vld [vmem:[%s6 + $0x210] sm:$0xf]
      %v9131 = vld [vmem:[%s6 + $0x214] sm:$0xf]
      %v9132 = vld [vmem:[%s6 + $0x218] sm:$0xf]
      %v9133 = vld [vmem:[%s6 + $0x21c] sm:$0xf]
      %v9134 = vld [vmem:[%s6 + $0x220] sm:$0xf]
      %v9135 = vld [vmem:[%s6 + $0x224] sm:$0xf]
      %v9136 = vld [vmem:[%s6 + $0x228] sm:$0xf]
      %v9137 = vld [vmem:[%s6 + $0x22c] sm:$0xf]
      %v9138 = vld [vmem:[%s6 + $0x230] sm:$0xf]
      %v9139 = vld [vmem:[%s6 + $0x234] sm:$0xf]
      %v9140 = vld [vmem:[%s6 + $0x238] sm:$0xf]
      %v9141 = vld [vmem:[%s6 + $0x23c] sm:$0xf]
      %v9142 = vld [vmem:[%s6 + $0x240] sm:$0xf]
      %v9143 = vld [vmem:[%s6 + $0x244] sm:$0xf]
      %v9144 = vld [vmem:[%s6 + $0x248] sm:$0xf]
      %v9145 = vld [vmem:[%s6 + $0x24c] sm:$0xf]
      %v9146 = vld [vmem:[%s6 + $0x250] sm:$0xf]
      %v9147 = vld [vmem:[%s6 + $0x254] sm:$0xf]
      %v9148 = vld [vmem:[%s6 + $0x258] sm:$0xf]
      %v9149 = vld [vmem:[%s6 + $0x25c] sm:$0xf]
      %v9150 = vld [vmem:[%s6 + $0x260] sm:$0xf]
      %v9151 = vld [vmem:[%s6 + $0x264] sm:$0xf]
      %v9152 = vld [vmem:[%s6 + $0x268] sm:$0xf]
      %v9153 = vld [vmem:[%s6 + $0x26c] sm:$0xf]
      %v9154 = vld [vmem:[%s6 + $0x270] sm:$0xf]
      %v9155 = vld [vmem:[%s6 + $0x274] sm:$0xf]
      %v9156 = vld [vmem:[%s6 + $0x278] sm:$0xf]
      %v9157 = vld [vmem:[%s6 + $0x27c] sm:$0xf]
      %v9158 = vld [vmem:[%s6 + $0x280] sm:$0xf]
      %v9159 = vld [vmem:[%s6 + $0x284] sm:$0xf]
      %v9160 = vld [vmem:[%s6 + $0x288] sm:$0xf]
      %v9161 = vld [vmem:[%s6 + $0x28c] sm:$0xf]
      %v9162 = vld [vmem:[%s6 + $0x290] sm:$0xf]
      %v9163 = vld [vmem:[%s6 + $0x294] sm:$0xf]
      %v9164 = vld [vmem:[%s6 + $0x298] sm:$0xf]
      %v9165 = vld [vmem:[%s6 + $0x29c] sm:$0xf]
      %v9166 = vld [vmem:[%s6 + $0x2a0] sm:$0xf]
      %v9167 = vld [vmem:[%s6 + $0x2a4] sm:$0xf]
      %v9168 = vld [vmem:[%s6 + $0x2a8] sm:$0xf]
      %v9169 = vld [vmem:[%s6 + $0x2ac] sm:$0xf]
      %v9170 = vld [vmem:[%s6 + $0x2b0] sm:$0xf]
      %v9171 = vld [vmem:[%s6 + $0x2b4] sm:$0xf]
      %v9172 = vld [vmem:[%s6 + $0x2b8] sm:$0xf]
      %v9173 = vld [vmem:[%s6 + $0x2bc] sm:$0xf]
      %v9174 = vld [vmem:[%s6 + $0x2c0] sm:$0xf]
      %v9175 = vld [vmem:[%s6 + $0x2c4] sm:$0xf]
      %v9176 = vld [vmem:[%s6 + $0x2c8] sm:$0xf]
      %v9177 = vld [vmem:[%s6 + $0x2cc] sm:$0xf]
      %v9178 = vld [vmem:[%s6 + $0x2d0] sm:$0xf]
      %v9179 = vld [vmem:[%s6 + $0x2d4] sm:$0xf]
      %v9180 = vld [vmem:[%s6 + $0x2d8] sm:$0xf]
      %v9181 = vld [vmem:[%s6 + $0x2dc] sm:$0xf]
      %v9182 = vld [vmem:[%s6 + $0x2e0] sm:$0xf]
      %v9183 = vld [vmem:[%s6 + $0x2e4] sm:$0xf]
      %v9184 = vld [vmem:[%s6 + $0x2e8] sm:$0xf]
      %v9185 = vld [vmem:[%s6 + $0x2ec] sm:$0xf]
      %v9186 = vld [vmem:[%s6 + $0x2f0] sm:$0xf]
      %v9187 = vld [vmem:[%s6 + $0x2f4] sm:$0xf]
      %v9188 = vld [vmem:[%s6 + $0x2f8] sm:$0xf]
      %v9189 = vld [vmem:[%s6 + $0x2fc] sm:$0xf]
      %v9190 = vld [vmem:[%s6 + $0x300] sm:$0xf]
      %v9191 = vld [vmem:[%s6 + $0x304] sm:$0xf]
      %v9192 = vld [vmem:[%s6 + $0x308] sm:$0xf]
      %v9193 = vld [vmem:[%s6 + $0x30c] sm:$0xf]
      %v9194 = vld [vmem:[%s6 + $0x310] sm:$0xf]
      %v9195 = vld [vmem:[%s6 + $0x314] sm:$0xf]
      %v9196 = vld [vmem:[%s6 + $0x318] sm:$0xf]
      %v9197 = vld [vmem:[%s6 + $0x31c] sm:$0xf]
      %v9198 = vld [vmem:[%s6 + $0x320] sm:$0xf]
      %v9199 = vld [vmem:[%s6 + $0x324] sm:$0xf]
      %v9200 = vld [vmem:[%s6 + $0x328] sm:$0xf]
      %v9201 = vld [vmem:[%s6 + $0x32c] sm:$0xf]
      %v9202 = vld [vmem:[%s6 + $0x330] sm:$0xf]
      %v9203 = vld [vmem:[%s6 + $0x334] sm:$0xf]
      %v9204 = vld [vmem:[%s6 + $0x338] sm:$0xf]
      %v9205 = vld [vmem:[%s6 + $0x33c] sm:$0xf]
      %v9206 = vld [vmem:[%s6 + $0x340] sm:$0xf]
      %v9207 = vld [vmem:[%s6 + $0x344] sm:$0xf]
      %v9208 = vld [vmem:[%s6 + $0x348] sm:$0xf]
      %v9209 = vld [vmem:[%s6 + $0x34c] sm:$0xf]
      %v9210 = vld [vmem:[%s6 + $0x350] sm:$0xf]
      %v9211 = vld [vmem:[%s6 + $0x354] sm:$0xf]
      %v9212 = vld [vmem:[%s6 + $0x358] sm:$0xf]
      %v9213 = vld [vmem:[%s6 + $0x35c] sm:$0xf]
      %v9214 = vld [vmem:[%s6 + $0x360] sm:$0xf]
      %v9215 = vld [vmem:[%s6 + $0x364] sm:$0xf]
      %v9216 = vld [vmem:[%s6 + $0x368] sm:$0xf]
      %v9217 = vld [vmem:[%s6 + $0x36c] sm:$0xf]
      %v9218 = vld [vmem:[%s6 + $0x370] sm:$0xf]
      %v9219 = vld [vmem:[%s6 + $0x374] sm:$0xf]
      %v9220 = vld [vmem:[%s6 + $0x378] sm:$0xf]
      %v9221 = vld [vmem:[%s6 + $0x37c] sm:$0xf]
      %v9222 = vld [vmem:[%s6 + $0x380] sm:$0xf]
      %v9223 = vld [vmem:[%s6 + $0x384] sm:$0xf]
      %v9224 = vld [vmem:[%s6 + $0x388] sm:$0xf]
      %v9225 = vld [vmem:[%s6 + $0x38c] sm:$0xf]
      %v9226 = vld [vmem:[%s6 + $0x390] sm:$0xf]
      %v9227 = vld [vmem:[%s6 + $0x394] sm:$0xf]
      %v9228 = vld [vmem:[%s6 + $0x398] sm:$0xf]
      %v9229 = vld [vmem:[%s6 + $0x39c] sm:$0xf]
      %v9230 = vld [vmem:[%s6 + $0x3a0] sm:$0xf]
      %v9231 = vld [vmem:[%s6 + $0x3a4] sm:$0xf]
      %v9232 = vld [vmem:[%s6 + $0x3a8] sm:$0xf]
      %v9233 = vld [vmem:[%s6 + $0x3ac] sm:$0xf]
      %v9234 = vld [vmem:[%s6 + $0x3b0] sm:$0xf]
      %v9235 = vld [vmem:[%s6 + $0x3b4] sm:$0xf]
      %v9236 = vld [vmem:[%s6 + $0x3b8] sm:$0xf]
      %v9237 = vld [vmem:[%s6 + $0x3bc] sm:$0xf]
      %v9238 = vld [vmem:[%s6 + $0x3c0] sm:$0xf]
      %v9239 = vld [vmem:[%s6 + $0x3c4] sm:$0xf]
      %v9240 = vld [vmem:[%s6 + $0x3c8] sm:$0xf]
      %v9241 = vld [vmem:[%s6 + $0x3cc] sm:$0xf]
      %v9242 = vld [vmem:[%s6 + $0x3d0] sm:$0xf]
      %v9243 = vld [vmem:[%s6 + $0x3d4] sm:$0xf]
      %v9244 = vld [vmem:[%s6 + $0x3d8] sm:$0xf]
      %v9245 = vld [vmem:[%s6 + $0x3dc] sm:$0xf]
      %v9246 = vld [vmem:[%s6 + $0x3e0] sm:$0xf]
      %v9247 = vld [vmem:[%s6 + $0x3e4] sm:$0xf]
      %v9248 = vld [vmem:[%s6 + $0x3e8] sm:$0xf]
      %v9249 = vld [vmem:[%s6 + $0x3ec] sm:$0xf]
      %v9250 = vld [vmem:[%s6 + $0x3f0] sm:$0xf]
      %v9251 = vld [vmem:[%s6 + $0x3f4] sm:$0xf]
      %v9252 = vld [vmem:[%s6 + $0x3f8] sm:$0xf]
      %v9253 = vld [vmem:[%s6 + $0x3fc] sm:$0xf]
      %v9254 = vld [vmem:[%s7] sm:$0x1]
      %v9256 = vperm.slane %v9254, 0
      %v9274 = vunpack.c.l.b16 %v8982
      %v9275 = vunpack.c.h.b16 %v8982
      %v9276 = vunpack.c.l.b16 %v8983
      %v9277 = vunpack.c.h.b16 %v8983
      %v9278 = vunpack.c.l.b16 %v8984
      %v9279 = vunpack.c.h.b16 %v8984
      %v9280 = vunpack.c.l.b16 %v8985
      %v9281 = vunpack.c.h.b16 %v8985
      %v9282 = vunpack.c.l.b16 %v8986
      %v9283 = vunpack.c.h.b16 %v8986
      %v9284 = vunpack.c.l.b16 %v8987
      %v9285 = vunpack.c.h.b16 %v8987
      %v9286 = vunpack.c.l.b16 %v8988
      %v9287 = vunpack.c.h.b16 %v8988
      %v9288 = vunpack.c.l.b16 %v8989
      %v9289 = vunpack.c.h.b16 %v8989
      %v9290 = vunpack.c.l.b16 %v8990
      %v9291 = vunpack.c.h.b16 %v8990
      %v9292 = vunpack.c.l.b16 %v8991
      %v9293 = vunpack.c.h.b16 %v8991
      %v9294 = vunpack.c.l.b16 %v8992
      %v9295 = vunpack.c.h.b16 %v8992
      %v9296 = vunpack.c.l.b16 %v8993
      %v9297 = vunpack.c.h.b16 %v8993
      %v9298 = vunpack.c.l.b16 %v8994
      %v9299 = vunpack.c.h.b16 %v8994
      %v9300 = vunpack.c.l.b16 %v8995
      %v9301 = vunpack.c.h.b16 %v8995
      %v9302 = vunpack.c.l.b16 %v8996
      %v9303 = vunpack.c.h.b16 %v8996
      %v9304 = vunpack.c.l.b16 %v8997
      %v9305 = vunpack.c.h.b16 %v8997
      %v9306 = vpack.c.b16 %v9290, %v9274
      %v9307 = vpack.c.b16 %v9291, %v9275
      %v9308 = vpack.c.b16 %v9292, %v9276
      %v9309 = vpack.c.b16 %v9293, %v9277
      %v9310 = vpack.c.b16 %v9294, %v9278
      %v9311 = vpack.c.b16 %v9295, %v9279
      %v9312 = vpack.c.b16 %v9296, %v9280
      %v9313 = vpack.c.b16 %v9297, %v9281
      %v9314 = vpack.c.b16 %v9298, %v9282
      %v9315 = vpack.c.b16 %v9299, %v9283
      %v9316 = vpack.c.b16 %v9300, %v9284
      %v9317 = vpack.c.b16 %v9301, %v9285
      %v9318 = vpack.c.b16 %v9302, %v9286
      %v9319 = vpack.c.b16 %v9303, %v9287
      %v9320 = vpack.c.b16 %v9304, %v9288
      %v9321 = vpack.c.b16 %v9305, %v9289
      %v9594 = vunpack.c.l.b16 %v8998
      %v9595 = vunpack.c.l.b16 %v8999
      %v9596 = vunpack.c.l.b16 %v9000
      %v9597 = vunpack.c.l.b16 %v9001
      %v9598 = vunpack.c.l.b16 %v9002
      %v9599 = vunpack.c.l.b16 %v9003
      %v9600 = vunpack.c.l.b16 %v9004
      %v9601 = vunpack.c.l.b16 %v9005
      %v9602 = vunpack.c.l.b16 %v9006
      %v9603 = vunpack.c.l.b16 %v9007
      %v9604 = vunpack.c.l.b16 %v9008
      %v9605 = vunpack.c.l.b16 %v9009
      %v9606 = vunpack.c.l.b16 %v9010
      %v9607 = vunpack.c.l.b16 %v9011
      %v9608 = vunpack.c.l.b16 %v9012
      %v9609 = vunpack.c.l.b16 %v9013
      %v9610 = vunpack.c.l.b16 %v9014
      %v9611 = vunpack.c.l.b16 %v9015
      %v9612 = vunpack.c.l.b16 %v9016
      %v9613 = vunpack.c.l.b16 %v9017
      %v9614 = vunpack.c.l.b16 %v9018
      %v9615 = vunpack.c.l.b16 %v9019
      %v9616 = vunpack.c.l.b16 %v9020
      %v9617 = vunpack.c.l.b16 %v9021
      %v9618 = vunpack.c.l.b16 %v9022
      %v9619 = vunpack.c.l.b16 %v9023
      %v9620 = vunpack.c.l.b16 %v9024
      %v9621 = vunpack.c.l.b16 %v9025
      %v9622 = vunpack.c.l.b16 %v9026
      %v9623 = vunpack.c.l.b16 %v9027
      %v9624 = vunpack.c.l.b16 %v9028
      %v9625 = vunpack.c.l.b16 %v9029
      %v9626 = vunpack.c.l.b16 %v9030
      %v9627 = vunpack.c.l.b16 %v9031
      %v9628 = vunpack.c.l.b16 %v9032
      %v9629 = vunpack.c.l.b16 %v9033
      %v9630 = vunpack.c.l.b16 %v9034
      %v9631 = vunpack.c.l.b16 %v9035
      %v9632 = vunpack.c.l.b16 %v9036
      %v9633 = vunpack.c.l.b16 %v9037
      %v9634 = vunpack.c.l.b16 %v9038
      %v9635 = vunpack.c.l.b16 %v9039
      %v9636 = vunpack.c.l.b16 %v9040
      %v9637 = vunpack.c.l.b16 %v9041
      %v9638 = vunpack.c.l.b16 %v9042
      %v9639 = vunpack.c.l.b16 %v9043
      %v9640 = vunpack.c.l.b16 %v9044
      %v9641 = vunpack.c.l.b16 %v9045
      %v9642 = vunpack.c.l.b16 %v9046
      %v9643 = vunpack.c.l.b16 %v9047
      %v9644 = vunpack.c.l.b16 %v9048
      %v9645 = vunpack.c.l.b16 %v9049
      %v9646 = vunpack.c.l.b16 %v9050
      %v9647 = vunpack.c.l.b16 %v9051
      %v9648 = vunpack.c.l.b16 %v9052
      %v9649 = vunpack.c.l.b16 %v9053
      %v9650 = vunpack.c.l.b16 %v9054
      %v9651 = vunpack.c.l.b16 %v9055
      %v9652 = vunpack.c.l.b16 %v9056
      %v9653 = vunpack.c.l.b16 %v9057
      %v9654 = vunpack.c.l.b16 %v9058
      %v9655 = vunpack.c.l.b16 %v9059
      %v9656 = vunpack.c.l.b16 %v9060
      %v9657 = vunpack.c.l.b16 %v9061
      %v9658 = vunpack.c.l.b16 %v9062
      %v9659 = vunpack.c.l.b16 %v9063
      %v9660 = vunpack.c.l.b16 %v9064
      %v9661 = vunpack.c.l.b16 %v9065
      %v9662 = vunpack.c.l.b16 %v9066
      %v9663 = vunpack.c.l.b16 %v9067
      %v9664 = vunpack.c.l.b16 %v9068
      %v9665 = vunpack.c.l.b16 %v9069
      %v9666 = vunpack.c.l.b16 %v9070
      %v9667 = vunpack.c.l.b16 %v9071
      %v9668 = vunpack.c.l.b16 %v9072
      %v9669 = vunpack.c.l.b16 %v9073
      %v9670 = vunpack.c.l.b16 %v9074
      %v9671 = vunpack.c.l.b16 %v9075
      %v9672 = vunpack.c.l.b16 %v9076
      %v9673 = vunpack.c.l.b16 %v9077
      %v9674 = vunpack.c.l.b16 %v9078
      %v9675 = vunpack.c.l.b16 %v9079
      %v9676 = vunpack.c.l.b16 %v9080
      %v9677 = vunpack.c.l.b16 %v9081
      %v9678 = vunpack.c.l.b16 %v9082
      %v9679 = vunpack.c.l.b16 %v9083
      %v9680 = vunpack.c.l.b16 %v9084
      %v9681 = vunpack.c.l.b16 %v9085
      %v9682 = vunpack.c.l.b16 %v9086
      %v9683 = vunpack.c.l.b16 %v9087
      %v9684 = vunpack.c.l.b16 %v9088
      %v9685 = vunpack.c.l.b16 %v9089
      %v9686 = vunpack.c.l.b16 %v9090
      %v9687 = vunpack.c.l.b16 %v9091
      %v9688 = vunpack.c.l.b16 %v9092
      %v9689 = vunpack.c.l.b16 %v9093
      %v9690 = vunpack.c.l.b16 %v9094
      %v9691 = vunpack.c.l.b16 %v9095
      %v9692 = vunpack.c.l.b16 %v9096
      %v9693 = vunpack.c.l.b16 %v9097
      %v9694 = vunpack.c.l.b16 %v9098
      %v9695 = vunpack.c.l.b16 %v9099
      %v9696 = vunpack.c.l.b16 %v9100
      %v9697 = vunpack.c.l.b16 %v9101
      %v9698 = vunpack.c.l.b16 %v9102
      %v9699 = vunpack.c.l.b16 %v9103
      %v9700 = vunpack.c.l.b16 %v9104
      %v9701 = vunpack.c.l.b16 %v9105
      %v9702 = vunpack.c.l.b16 %v9106
      %v9703 = vunpack.c.l.b16 %v9107
      %v9704 = vunpack.c.l.b16 %v9108
      %v9705 = vunpack.c.l.b16 %v9109
      %v9706 = vunpack.c.l.b16 %v9110
      %v9707 = vunpack.c.l.b16 %v9111
      %v9708 = vunpack.c.l.b16 %v9112
      %v9709 = vunpack.c.l.b16 %v9113
      %v9710 = vunpack.c.l.b16 %v9114
      %v9711 = vunpack.c.l.b16 %v9115
      %v9712 = vunpack.c.l.b16 %v9116
      %v9713 = vunpack.c.l.b16 %v9117
      %v9714 = vunpack.c.l.b16 %v9118
      %v9715 = vunpack.c.l.b16 %v9119
      %v9716 = vunpack.c.l.b16 %v9120
      %v9717 = vunpack.c.l.b16 %v9121
      %v9718 = vunpack.c.l.b16 %v9122
      %v9719 = vunpack.c.l.b16 %v9123
      %v9720 = vunpack.c.l.b16 %v9124
      %v9721 = vunpack.c.l.b16 %v9125
      %v9722 = vunpack.c.l.b16 %v9126
      %v9723 = vunpack.c.l.b16 %v9127
      %v9724 = vunpack.c.l.b16 %v9128
      %v9725 = vunpack.c.l.b16 %v9129
      %v9726 = vunpack.c.l.b16 %v9130
      %v9727 = vunpack.c.l.b16 %v9131
      %v9728 = vunpack.c.l.b16 %v9132
      %v9729 = vunpack.c.l.b16 %v9133
      %v9730 = vunpack.c.l.b16 %v9134
      %v9731 = vunpack.c.l.b16 %v9135
      %v9732 = vunpack.c.l.b16 %v9136
      %v9733 = vunpack.c.l.b16 %v9137
      %v9734 = vunpack.c.l.b16 %v9138
      %v9735 = vunpack.c.l.b16 %v9139
      %v9736 = vunpack.c.l.b16 %v9140
      %v9737 = vunpack.c.l.b16 %v9141
      %v9738 = vunpack.c.l.b16 %v9142
      %v9739 = vunpack.c.l.b16 %v9143
      %v9740 = vunpack.c.l.b16 %v9144
      %v9741 = vunpack.c.l.b16 %v9145
      %v9742 = vunpack.c.l.b16 %v9146
      %v9743 = vunpack.c.l.b16 %v9147
      %v9744 = vunpack.c.l.b16 %v9148
      %v9745 = vunpack.c.l.b16 %v9149
      %v9746 = vunpack.c.l.b16 %v9150
      %v9747 = vunpack.c.l.b16 %v9151
      %v9748 = vunpack.c.l.b16 %v9152
      %v9749 = vunpack.c.l.b16 %v9153
      %v9750 = vunpack.c.l.b16 %v9154
      %v9751 = vunpack.c.l.b16 %v9155
      %v9752 = vunpack.c.l.b16 %v9156
      %v9753 = vunpack.c.l.b16 %v9157
      %v9754 = vunpack.c.l.b16 %v9158
      %v9755 = vunpack.c.l.b16 %v9159
      %v9756 = vunpack.c.l.b16 %v9160
      %v9757 = vunpack.c.l.b16 %v9161
      %v9758 = vunpack.c.l.b16 %v9162
      %v9759 = vunpack.c.l.b16 %v9163
      %v9760 = vunpack.c.l.b16 %v9164
      %v9761 = vunpack.c.l.b16 %v9165
      %v9762 = vunpack.c.l.b16 %v9166
      %v9763 = vunpack.c.l.b16 %v9167
      %v9764 = vunpack.c.l.b16 %v9168
      %v9765 = vunpack.c.l.b16 %v9169
      %v9766 = vunpack.c.l.b16 %v9170
      %v9767 = vunpack.c.l.b16 %v9171
      %v9768 = vunpack.c.l.b16 %v9172
      %v9769 = vunpack.c.l.b16 %v9173
      %v9770 = vunpack.c.l.b16 %v9174
      %v9771 = vunpack.c.l.b16 %v9175
      %v9772 = vunpack.c.l.b16 %v9176
      %v9773 = vunpack.c.l.b16 %v9177
      %v9774 = vunpack.c.l.b16 %v9178
      %v9775 = vunpack.c.l.b16 %v9179
      %v9776 = vunpack.c.l.b16 %v9180
      %v9777 = vunpack.c.l.b16 %v9181
      %v9778 = vunpack.c.l.b16 %v9182
      %v9779 = vunpack.c.l.b16 %v9183
      %v9780 = vunpack.c.l.b16 %v9184
      %v9781 = vunpack.c.l.b16 %v9185
      %v9782 = vunpack.c.l.b16 %v9186
      %v9783 = vunpack.c.l.b16 %v9187
      %v9784 = vunpack.c.l.b16 %v9188
      %v9785 = vunpack.c.l.b16 %v9189
      %v9786 = vunpack.c.l.b16 %v9190
      %v9787 = vunpack.c.l.b16 %v9191
      %v9788 = vunpack.c.l.b16 %v9192
      %v9789 = vunpack.c.l.b16 %v9193
      %v9790 = vunpack.c.l.b16 %v9194
      %v9791 = vunpack.c.l.b16 %v9195
      %v9792 = vunpack.c.l.b16 %v9196
      %v9793 = vunpack.c.l.b16 %v9197
      %v9794 = vunpack.c.l.b16 %v9198
      %v9795 = vunpack.c.l.b16 %v9199
      %v9796 = vunpack.c.l.b16 %v9200
      %v9797 = vunpack.c.l.b16 %v9201
      %v9798 = vunpack.c.l.b16 %v9202
      %v9799 = vunpack.c.l.b16 %v9203
      %v9800 = vunpack.c.l.b16 %v9204
      %v9801 = vunpack.c.l.b16 %v9205
      %v9802 = vunpack.c.l.b16 %v9206
      %v9803 = vunpack.c.l.b16 %v9207
      %v9804 = vunpack.c.l.b16 %v9208
      %v9805 = vunpack.c.l.b16 %v9209
      %v9806 = vunpack.c.l.b16 %v9210
      %v9807 = vunpack.c.l.b16 %v9211
      %v9808 = vunpack.c.l.b16 %v9212
      %v9809 = vunpack.c.l.b16 %v9213
      %v9810 = vunpack.c.l.b16 %v9214
      %v9811 = vunpack.c.l.b16 %v9215
      %v9812 = vunpack.c.l.b16 %v9216
      %v9813 = vunpack.c.l.b16 %v9217
      %v9814 = vunpack.c.l.b16 %v9218
      %v9815 = vunpack.c.l.b16 %v9219
      %v9816 = vunpack.c.l.b16 %v9220
      %v9817 = vunpack.c.l.b16 %v9221
      %v9818 = vunpack.c.l.b16 %v9222
      %v9819 = vunpack.c.l.b16 %v9223
      %v9820 = vunpack.c.l.b16 %v9224
      %v9821 = vunpack.c.l.b16 %v9225
      %v9822 = vunpack.c.l.b16 %v9226
      %v9823 = vunpack.c.l.b16 %v9227
      %v9824 = vunpack.c.l.b16 %v9228
      %v9825 = vunpack.c.l.b16 %v9229
      %v9826 = vunpack.c.l.b16 %v9230
      %v9827 = vunpack.c.l.b16 %v9231
      %v9828 = vunpack.c.l.b16 %v9232
      %v9829 = vunpack.c.l.b16 %v9233
      %v9830 = vunpack.c.l.b16 %v9234
      %v9831 = vunpack.c.l.b16 %v9235
      %v9832 = vunpack.c.l.b16 %v9236
      %v9833 = vunpack.c.l.b16 %v9237
      %v9834 = vunpack.c.l.b16 %v9238
      %v9835 = vunpack.c.l.b16 %v9239
      %v9836 = vunpack.c.l.b16 %v9240
      %v9837 = vunpack.c.l.b16 %v9241
      %v9838 = vunpack.c.l.b16 %v9242
      %v9839 = vunpack.c.l.b16 %v9243
      %v9840 = vunpack.c.l.b16 %v9244
      %v9841 = vunpack.c.l.b16 %v9245
      %v9842 = vunpack.c.l.b16 %v9246
      %v9843 = vunpack.c.l.b16 %v9247
      %v9844 = vunpack.c.l.b16 %v9248
      %v9845 = vunpack.c.l.b16 %v9249
      %v9846 = vunpack.c.l.b16 %v9250
      %v9847 = vunpack.c.l.b16 %v9251
      %v9848 = vunpack.c.l.b16 %v9252
      %v9849 = vunpack.c.l.b16 %v9253
      %v9850 = vpack.c.b16 %v9595, %v9594
      %v9851 = vpack.c.b16 %v9597, %v9596
      %v9852 = vpack.c.b16 %v9599, %v9598
      %v9853 = vpack.c.b16 %v9601, %v9600
      %v9854 = vpack.c.b16 %v9603, %v9602
      %v9855 = vpack.c.b16 %v9605, %v9604
      %v9856 = vpack.c.b16 %v9607, %v9606
      %v9857 = vpack.c.b16 %v9609, %v9608
      %v9858 = vpack.c.b16 %v9611, %v9610
      %v9859 = vpack.c.b16 %v9613, %v9612
      %v9860 = vpack.c.b16 %v9615, %v9614
      %v9861 = vpack.c.b16 %v9617, %v9616
      %v9862 = vpack.c.b16 %v9619, %v9618
      %v9863 = vpack.c.b16 %v9621, %v9620
      %v9864 = vpack.c.b16 %v9623, %v9622
      %v9865 = vpack.c.b16 %v9625, %v9624
      %v9866 = vpack.c.b16 %v9627, %v9626
      %v9867 = vpack.c.b16 %v9629, %v9628
      %v9868 = vpack.c.b16 %v9631, %v9630
      %v9869 = vpack.c.b16 %v9633, %v9632
      %v9870 = vpack.c.b16 %v9635, %v9634
      %v9871 = vpack.c.b16 %v9637, %v9636
      %v9872 = vpack.c.b16 %v9639, %v9638
      %v9873 = vpack.c.b16 %v9641, %v9640
      %v9874 = vpack.c.b16 %v9643, %v9642
      %v9875 = vpack.c.b16 %v9645, %v9644
      %v9876 = vpack.c.b16 %v9647, %v9646
      %v9877 = vpack.c.b16 %v9649, %v9648
      %v9878 = vpack.c.b16 %v9651, %v9650
      %v9879 = vpack.c.b16 %v9653, %v9652
      %v9880 = vpack.c.b16 %v9655, %v9654
      %v9881 = vpack.c.b16 %v9657, %v9656
      %v9882 = vpack.c.b16 %v9659, %v9658
      %v9883 = vpack.c.b16 %v9661, %v9660
      %v9884 = vpack.c.b16 %v9663, %v9662
      %v9885 = vpack.c.b16 %v9665, %v9664
      %v9886 = vpack.c.b16 %v9667, %v9666
      %v9887 = vpack.c.b16 %v9669, %v9668
      %v9888 = vpack.c.b16 %v9671, %v9670
      %v9889 = vpack.c.b16 %v9673, %v9672
      %v9890 = vpack.c.b16 %v9675, %v9674
      %v9891 = vpack.c.b16 %v9677, %v9676
      %v9892 = vpack.c.b16 %v9679, %v9678
      %v9893 = vpack.c.b16 %v9681, %v9680
      %v9894 = vpack.c.b16 %v9683, %v9682
      %v9895 = vpack.c.b16 %v9685, %v9684
      %v9896 = vpack.c.b16 %v9687, %v9686
      %v9897 = vpack.c.b16 %v9689, %v9688
      %v9898 = vpack.c.b16 %v9691, %v9690
      %v9899 = vpack.c.b16 %v9693, %v9692
      %v9900 = vpack.c.b16 %v9695, %v9694
      %v9901 = vpack.c.b16 %v9697, %v9696
      %v9902 = vpack.c.b16 %v9699, %v9698
      %v9903 = vpack.c.b16 %v9701, %v9700
      %v9904 = vpack.c.b16 %v9703, %v9702
      %v9905 = vpack.c.b16 %v9705, %v9704
      %v9906 = vpack.c.b16 %v9707, %v9706
      %v9907 = vpack.c.b16 %v9709, %v9708
      %v9908 = vpack.c.b16 %v9711, %v9710
      %v9909 = vpack.c.b16 %v9713, %v9712
      %v9910 = vpack.c.b16 %v9715, %v9714
      %v9911 = vpack.c.b16 %v9717, %v9716
      %v9912 = vpack.c.b16 %v9719, %v9718
      %v9913 = vpack.c.b16 %v9721, %v9720
      %v9914 = vpack.c.b16 %v9723, %v9722
      %v9915 = vpack.c.b16 %v9725, %v9724
      %v9916 = vpack.c.b16 %v9727, %v9726
      %v9917 = vpack.c.b16 %v9729, %v9728
      %v9918 = vpack.c.b16 %v9731, %v9730
      %v9919 = vpack.c.b16 %v9733, %v9732
      %v9920 = vpack.c.b16 %v9735, %v9734
      %v9921 = vpack.c.b16 %v9737, %v9736
      %v9922 = vpack.c.b16 %v9739, %v9738
      %v9923 = vpack.c.b16 %v9741, %v9740
      %v9924 = vpack.c.b16 %v9743, %v9742
      %v9925 = vpack.c.b16 %v9745, %v9744
      %v9926 = vpack.c.b16 %v9747, %v9746
      %v9927 = vpack.c.b16 %v9749, %v9748
      %v9928 = vpack.c.b16 %v9751, %v9750
      %v9929 = vpack.c.b16 %v9753, %v9752
      %v9930 = vpack.c.b16 %v9755, %v9754
      %v9931 = vpack.c.b16 %v9757, %v9756
      %v9932 = vpack.c.b16 %v9759, %v9758
      %v9933 = vpack.c.b16 %v9761, %v9760
      %v9934 = vpack.c.b16 %v9763, %v9762
      %v9935 = vpack.c.b16 %v9765, %v9764
      %v9936 = vpack.c.b16 %v9767, %v9766
      %v9937 = vpack.c.b16 %v9769, %v9768
      %v9938 = vpack.c.b16 %v9771, %v9770
      %v9939 = vpack.c.b16 %v9773, %v9772
      %v9940 = vpack.c.b16 %v9775, %v9774
      %v9941 = vpack.c.b16 %v9777, %v9776
      %v9942 = vpack.c.b16 %v9779, %v9778
      %v9943 = vpack.c.b16 %v9781, %v9780
      %v9944 = vpack.c.b16 %v9783, %v9782
      %v9945 = vpack.c.b16 %v9785, %v9784
      %v9946 = vpack.c.b16 %v9787, %v9786
      %v9947 = vpack.c.b16 %v9789, %v9788
      %v9948 = vpack.c.b16 %v9791, %v9790
      %v9949 = vpack.c.b16 %v9793, %v9792
      %v9950 = vpack.c.b16 %v9795, %v9794
      %v9951 = vpack.c.b16 %v9797, %v9796
      %v9952 = vpack.c.b16 %v9799, %v9798
      %v9953 = vpack.c.b16 %v9801, %v9800
      %v9954 = vpack.c.b16 %v9803, %v9802
      %v9955 = vpack.c.b16 %v9805, %v9804
      %v9956 = vpack.c.b16 %v9807, %v9806
      %v9957 = vpack.c.b16 %v9809, %v9808
      %v9958 = vpack.c.b16 %v9811, %v9810
      %v9959 = vpack.c.b16 %v9813, %v9812
      %v9960 = vpack.c.b16 %v9815, %v9814
      %v9961 = vpack.c.b16 %v9817, %v9816
      %v9962 = vpack.c.b16 %v9819, %v9818
      %v9963 = vpack.c.b16 %v9821, %v9820
      %v9964 = vpack.c.b16 %v9823, %v9822
      %v9965 = vpack.c.b16 %v9825, %v9824
      %v9966 = vpack.c.b16 %v9827, %v9826
      %v9967 = vpack.c.b16 %v9829, %v9828
      %v9968 = vpack.c.b16 %v9831, %v9830
      %v9969 = vpack.c.b16 %v9833, %v9832
      %v9970 = vpack.c.b16 %v9835, %v9834
      %v9971 = vpack.c.b16 %v9837, %v9836
      %v9972 = vpack.c.b16 %v9839, %v9838
      %v9973 = vpack.c.b16 %v9841, %v9840
      %v9974 = vpack.c.b16 %v9843, %v9842
      %v9975 = vpack.c.b16 %v9845, %v9844
      %v9976 = vpack.c.b16 %v9847, %v9846
      %v9977 = vpack.c.b16 %v9849, %v9848
      %10106 = vmatpush.bf16.msra.mxu0 %v9857
      %10107 = vmatpush.bf16.msra.mxu0 %v9856
      %10108 = vmatpush.bf16.msra.mxu0 %v9855
      %10109 = vmatpush.bf16.msra.mxu0 %v9854
      %10110 = vmatpush.bf16.msra.mxu0 %v9853
      %10111 = vmatpush.bf16.msra.mxu0 %v9852
      %10112 = vmatpush.bf16.msra.mxu0 %v9851
      %10113 = vmatpush.bf16.msra.mxu0 %v9850
      %10114 = vmatmul.bf16.gmra.mxu0 %v9306
      %v10115 = vpop.f32.mrf.mxu0
      %v10116 = vadd.f32 %v9256, %v10115
      %v10117 = vpop.f32.mrf.mxu0
      %v10118 = vadd.f32 %v9256, %v10117
      %10119 = vdwg.mxu0
      %10120 = vmatpush.bf16.msra.mxu0 %v9865
      %10121 = vmatpush.bf16.msra.mxu0 %v9864
      %10122 = vmatpush.bf16.msra.mxu0 %v9863
      %10123 = vmatpush.bf16.msra.mxu0 %v9862
      %10124 = vmatpush.bf16.msra.mxu0 %v9861
      %10125 = vmatpush.bf16.msra.mxu0 %v9860
      %10126 = vmatpush.bf16.msra.mxu0 %v9859
      %10127 = vmatpush.bf16.msra.mxu0 %v9858
      %10128 = vmatmul.bf16.gmra.mxu0 %v9307
      %v10129 = vpop.f32.mrf.mxu0
      %v10130 = vadd.f32 %v10116, %v10129
      %v10131 = vpop.f32.mrf.mxu0
      %v10132 = vadd.f32 %v10118, %v10131
      %10133 = vdwg.mxu0
      %10134 = vmatpush.bf16.msra.mxu0 %v9873
      %10135 = vmatpush.bf16.msra.mxu0 %v9872
      %10136 = vmatpush.bf16.msra.mxu0 %v9871
      %10137 = vmatpush.bf16.msra.mxu0 %v9870
      %10138 = vmatpush.bf16.msra.mxu0 %v9869
      %10139 = vmatpush.bf16.msra.mxu0 %v9868
      %10140 = vmatpush.bf16.msra.mxu0 %v9867
      %10141 = vmatpush.bf16.msra.mxu0 %v9866
      %10142 = vmatmul.bf16.gmra.mxu0 %v9308
      %v10143 = vpop.f32.mrf.mxu0
      %v10144 = vadd.f32 %v10130, %v10143
      %v10145 = vpop.f32.mrf.mxu0
      %v10146 = vadd.f32 %v10132, %v10145
      %10147 = vdwg.mxu0
      %10148 = vmatpush.bf16.msra.mxu0 %v9881
      %10149 = vmatpush.bf16.msra.mxu0 %v9880
      %10150 = vmatpush.bf16.msra.mxu0 %v9879
      %10151 = vmatpush.bf16.msra.mxu0 %v9878
      %10152 = vmatpush.bf16.msra.mxu0 %v9877
      %10153 = vmatpush.bf16.msra.mxu0 %v9876
      %10154 = vmatpush.bf16.msra.mxu0 %v9875
      %10155 = vmatpush.bf16.msra.mxu0 %v9874
      %10156 = vmatmul.bf16.gmra.mxu0 %v9309
      %v10157 = vpop.f32.mrf.mxu0
      %v10158 = vadd.f32 %v10144, %v10157
      %v10159 = vpop.f32.mrf.mxu0
      %v10160 = vadd.f32 %v10146, %v10159
      %10161 = vdwg.mxu0
      %10162 = vmatpush.bf16.msra.mxu0 %v9889
      %10163 = vmatpush.bf16.msra.mxu0 %v9888
      %10164 = vmatpush.bf16.msra.mxu0 %v9887
      %10165 = vmatpush.bf16.msra.mxu0 %v9886
      %10166 = vmatpush.bf16.msra.mxu0 %v9885
      %10167 = vmatpush.bf16.msra.mxu0 %v9884
      %10168 = vmatpush.bf16.msra.mxu0 %v9883
      %10169 = vmatpush.bf16.msra.mxu0 %v9882
      %10170 = vmatmul.bf16.gmra.mxu0 %v9310
      %v10171 = vpop.f32.mrf.mxu0
      %v10172 = vadd.f32 %v10158, %v10171
      %v10173 = vpop.f32.mrf.mxu0
      %v10174 = vadd.f32 %v10160, %v10173
      %10175 = vdwg.mxu0
      %10176 = vmatpush.bf16.msra.mxu0 %v9897
      %10177 = vmatpush.bf16.msra.mxu0 %v9896
      %10178 = vmatpush.bf16.msra.mxu0 %v9895
      %10179 = vmatpush.bf16.msra.mxu0 %v9894
      %10180 = vmatpush.bf16.msra.mxu0 %v9893
      %10181 = vmatpush.bf16.msra.mxu0 %v9892
      %10182 = vmatpush.bf16.msra.mxu0 %v9891
      %10183 = vmatpush.bf16.msra.mxu0 %v9890
      %10184 = vmatmul.bf16.gmra.mxu0 %v9311
      %v10185 = vpop.f32.mrf.mxu0
      %v10186 = vadd.f32 %v10172, %v10185
      %v10187 = vpop.f32.mrf.mxu0
      %v10188 = vadd.f32 %v10174, %v10187
      %10189 = vdwg.mxu0
      %10190 = vmatpush.bf16.msra.mxu0 %v9905
      %10191 = vmatpush.bf16.msra.mxu0 %v9904
      %10192 = vmatpush.bf16.msra.mxu0 %v9903
      %10193 = vmatpush.bf16.msra.mxu0 %v9902
      %10194 = vmatpush.bf16.msra.mxu0 %v9901
      %10195 = vmatpush.bf16.msra.mxu0 %v9900
      %10196 = vmatpush.bf16.msra.mxu0 %v9899
      %10197 = vmatpush.bf16.msra.mxu0 %v9898
      %10198 = vmatmul.bf16.gmra.mxu0 %v9312
      %v10199 = vpop.f32.mrf.mxu0
      %v10200 = vadd.f32 %v10186, %v10199
      %v10201 = vpop.f32.mrf.mxu0
      %v10202 = vadd.f32 %v10188, %v10201
      %10203 = vdwg.mxu0
      %10204 = vmatpush.bf16.msra.mxu0 %v9913
      %10205 = vmatpush.bf16.msra.mxu0 %v9912
      %10206 = vmatpush.bf16.msra.mxu0 %v9911
      %10207 = vmatpush.bf16.msra.mxu0 %v9910
      %10208 = vmatpush.bf16.msra.mxu0 %v9909
      %10209 = vmatpush.bf16.msra.mxu0 %v9908
      %10210 = vmatpush.bf16.msra.mxu0 %v9907
      %10211 = vmatpush.bf16.msra.mxu0 %v9906
      %10212 = vmatmul.bf16.gmra.mxu0 %v9313
      %v10213 = vpop.f32.mrf.mxu0
      %v10214 = vadd.f32 %v10200, %v10213
      %v10215 = vpop.f32.mrf.mxu0
      %v10216 = vadd.f32 %v10202, %v10215
      %10217 = vdwg.mxu0
      %10218 = vmatpush.bf16.msra.mxu0 %v9921
      %10219 = vmatpush.bf16.msra.mxu0 %v9920
      %10220 = vmatpush.bf16.msra.mxu0 %v9919
      %10221 = vmatpush.bf16.msra.mxu0 %v9918
      %10222 = vmatpush.bf16.msra.mxu0 %v9917
      %10223 = vmatpush.bf16.msra.mxu0 %v9916
      %10224 = vmatpush.bf16.msra.mxu0 %v9915
      %10225 = vmatpush.bf16.msra.mxu0 %v9914
      %10226 = vmatmul.bf16.gmra.mxu0 %v9314
      %v10227 = vpop.f32.mrf.mxu0
      %v10228 = vadd.f32 %v10214, %v10227
      %v10229 = vpop.f32.mrf.mxu0
      %v10230 = vadd.f32 %v10216, %v10229
      %10231 = vdwg.mxu0
      %10232 = vmatpush.bf16.msra.mxu0 %v9929
      %10233 = vmatpush.bf16.msra.mxu0 %v9928
      %10234 = vmatpush.bf16.msra.mxu0 %v9927
      %10235 = vmatpush.bf16.msra.mxu0 %v9926
      %10236 = vmatpush.bf16.msra.mxu0 %v9925
      %10237 = vmatpush.bf16.msra.mxu0 %v9924
      %10238 = vmatpush.bf16.msra.mxu0 %v9923
      %10239 = vmatpush.bf16.msra.mxu0 %v9922
      %10240 = vmatmul.bf16.gmra.mxu0 %v9315
      %v10241 = vpop.f32.mrf.mxu0
      %v10242 = vadd.f32 %v10228, %v10241
      %v10243 = vpop.f32.mrf.mxu0
      %v10244 = vadd.f32 %v10230, %v10243
      %10245 = vdwg.mxu0
      %10246 = vmatpush.bf16.msra.mxu0 %v9937
      %10247 = vmatpush.bf16.msra.mxu0 %v9936
      %10248 = vmatpush.bf16.msra.mxu0 %v9935
      %10249 = vmatpush.bf16.msra.mxu0 %v9934
      %10250 = vmatpush.bf16.msra.mxu0 %v9933
      %10251 = vmatpush.bf16.msra.mxu0 %v9932
      %10252 = vmatpush.bf16.msra.mxu0 %v9931
      %10253 = vmatpush.bf16.msra.mxu0 %v9930
      %10254 = vmatmul.bf16.gmra.mxu0 %v9316
      %v10255 = vpop.f32.mrf.mxu0
      %v10256 = vadd.f32 %v10242, %v10255
      %v10257 = vpop.f32.mrf.mxu0
      %v10258 = vadd.f32 %v10244, %v10257
      %10259 = vdwg.mxu0
      %10260 = vmatpush.bf16.msra.mxu0 %v9945
      %10261 = vmatpush.bf16.msra.mxu0 %v9944
      %10262 = vmatpush.bf16.msra.mxu0 %v9943
      %10263 = vmatpush.bf16.msra.mxu0 %v9942
      %10264 = vmatpush.bf16.msra.mxu0 %v9941
      %10265 = vmatpush.bf16.msra.mxu0 %v9940
      %10266 = vmatpush.bf16.msra.mxu0 %v9939
      %10267 = vmatpush.bf16.msra.mxu0 %v9938
      %10268 = vmatmul.bf16.gmra.mxu0 %v9317
      %v10269 = vpop.f32.mrf.mxu0
      %v10270 = vadd.f32 %v10256, %v10269
      %v10271 = vpop.f32.mrf.mxu0
      %v10272 = vadd.f32 %v10258, %v10271
      %10273 = vdwg.mxu0
      %10274 = vmatpush.bf16.msra.mxu0 %v9953
      %10275 = vmatpush.bf16.msra.mxu0 %v9952
      %10276 = vmatpush.bf16.msra.mxu0 %v9951
      %10277 = vmatpush.bf16.msra.mxu0 %v9950
      %10278 = vmatpush.bf16.msra.mxu0 %v9949
      %10279 = vmatpush.bf16.msra.mxu0 %v9948
      %10280 = vmatpush.bf16.msra.mxu0 %v9947
      %10281 = vmatpush.bf16.msra.mxu0 %v9946
      %10282 = vmatmul.bf16.gmra.mxu0 %v9318
      %v10283 = vpop.f32.mrf.mxu0
      %v10284 = vadd.f32 %v10270, %v10283
      %v10285 = vpop.f32.mrf.mxu0
      %v10286 = vadd.f32 %v10272, %v10285
      %10287 = vdwg.mxu0
      %10288 = vmatpush.bf16.msra.mxu0 %v9961
      %10289 = vmatpush.bf16.msra.mxu0 %v9960
      %10290 = vmatpush.bf16.msra.mxu0 %v9959
      %10291 = vmatpush.bf16.msra.mxu0 %v9958
      %10292 = vmatpush.bf16.msra.mxu0 %v9957
      %10293 = vmatpush.bf16.msra.mxu0 %v9956
      %10294 = vmatpush.bf16.msra.mxu0 %v9955
      %10295 = vmatpush.bf16.msra.mxu0 %v9954
      %10296 = vmatmul.bf16.gmra.mxu0 %v9319
      %v10297 = vpop.f32.mrf.mxu0
      %v10298 = vadd.f32 %v10284, %v10297
      %v10299 = vpop.f32.mrf.mxu0
      %v10300 = vadd.f32 %v10286, %v10299
      %10301 = vdwg.mxu0
      %10302 = vmatpush.bf16.msra.mxu0 %v9969
      %10303 = vmatpush.bf16.msra.mxu0 %v9968
      %10304 = vmatpush.bf16.msra.mxu0 %v9967
      %10305 = vmatpush.bf16.msra.mxu0 %v9966
      %10306 = vmatpush.bf16.msra.mxu0 %v9965
      %10307 = vmatpush.bf16.msra.mxu0 %v9964
      %10308 = vmatpush.bf16.msra.mxu0 %v9963
      %10309 = vmatpush.bf16.msra.mxu0 %v9962
      %10310 = vmatmul.bf16.gmra.mxu0 %v9320
      %v10311 = vpop.f32.mrf.mxu0
      %v10312 = vadd.f32 %v10298, %v10311
      %v10313 = vpop.f32.mrf.mxu0
      %v10314 = vadd.f32 %v10300, %v10313
      %10315 = vdwg.mxu0
      %10316 = vmatpush.bf16.msra.mxu0 %v9977
      %10317 = vmatpush.bf16.msra.mxu0 %v9976
      %10318 = vmatpush.bf16.msra.mxu0 %v9975
      %10319 = vmatpush.bf16.msra.mxu0 %v9974
      %10320 = vmatpush.bf16.msra.mxu0 %v9973
      %10321 = vmatpush.bf16.msra.mxu0 %v9972
      %10322 = vmatpush.bf16.msra.mxu0 %v9971
      %10323 = vmatpush.bf16.msra.mxu0 %v9970
      %10324 = vmatmul.bf16.gmra.mxu0 %v9321
      %v10325 = vpop.f32.mrf.mxu0
      %v10326 = vadd.f32 %v10312, %v10325
      %v10327 = vpop.f32.mrf.mxu0
      %v10328 = vadd.f32 %v10314, %v10327
      %10329 = vdwg.mxu0
      %10330 = vst [vmem:[%s310] sm:$0xff] %v10326
      %10331 = vst [vmem:[%s310 + $0x8] sm:$0xff] %v10328
      %s10332 = smul.u32 2, %s19
      %p10333 = scmp.lt.s32.totalorder %s10332, 3
      %s10334 = scalar_select %p10333, %s10332, 3
      %s10335 = smul.addr %s10334, 8
      %s10336 = scalar_lea.vmem %s8, %s10335
      // Predicated region
      $region53: #{encoder_forward.1} parent=51 // pred_check
        %p10337 = pneg %p210
      $region54: #{encoder_forward.1} parent=51 // pred_check_branch
        %10339 = sbr.rel (%p10337) target = $region56
      $region55: #{encoder_forward.1} parent=51 // pred_region
        %s10340 = smul.u32 2, %s19
      $region56: #{encoder_forward.1} parent=51 // pred_fallthru
        _
    $region52: #{encoder_forward.1} parent=5 // pred_fallthru
      _
    %p10341 = scmp.le.s32.totalorder 2, %s14
    // Predicated region
    $region57: #{encoder_forward.1} parent=5 // pred_check
      %p10342 = pneg %p10341
    $region58: #{encoder_forward.1} parent=5 // pred_check_branch
      %10344 = sbr.rel (%p10342) target = $region60
    $region59: #{encoder_forward.1} parent=5 // pred_region
      %s10345 = ssub.s32 %s14, 2
      // Predicated region
      $region61: #{encoder_forward.1} parent=59 // pred_check
        %p10346 = pneg %p216
      $region62: #{encoder_forward.1} parent=59 // pred_check_branch
        %10348 = sbr.rel (%p10346) target = $region64
      $region63: #{encoder_forward.1} parent=59 // pred_region
        %s10349 = smul.u32 2, %s20
        %p10350 = scmp.lt.s32.totalorder %s10349, 3
        %s10351 = scalar_select %p10350, %s10349, 3
        %s10352 = smul.addr %s10351, 8
        %s10353 = scalar_lea.vmem %s8, %s10352
      $region64: #{encoder_forward.1} parent=59 // pred_fallthru
        _
    $region60: #{encoder_forward.1} parent=5 // pred_fallthru
      _
  $region6: #{encoder_forward.1} parent=0 // loop_footer
    %s18 = sadd.s32 1, %s14
  $region7: #{encoder_forward.1} parent=0 // loop_footer_branch
    %13 = sbr.rel target = $region3
  $region8: #{encoder_forward.1} parent=0 // loop_exit
    _

</llo_original>
